<compile_context>
chip_gen: v6e
topology: v6e:2x2x1
jax: 0.10.0
libtpu: 0.0.40
codegen_flags: <defaults>
</compile_context>

<pallas_src>
import functools
import math

import jax
import jax.numpy as jnp
from jax.experimental import pallas as pl
from jax.experimental.pallas import tpu as pltpu


K_PAD = 128      # padded contraction dim for the patch-embed matmul (3*4*4=48 -> 128)
S_PAD = 80       # padded sequence length (65 -> 80, multiple of 16 for bf16 packing)
CLS_PAD = 128    # padded class/lane dim for the classifier output (10 -> 128)
HEAD_ROWS = 8    # sublane-aligned row count used for the tiny classifier-head matmuls


def _layer_norm(x, g, b, eps=1e-5):
    mu = jnp.mean(x, axis=-1, keepdims=True)
    xc = x - mu
    var = jnp.mean(xc * xc, axis=-1, keepdims=True)
    return xc * jax.lax.rsqrt(var + eps) * g + b


# ----------------------------- fused forward kernel -----------------------------

def _fused_forward_kernel(xp_ref, base_ref, ext_ref, pw_ref,
                          qkvw_ref, ow_ref, f1w_ref, f2w_ref, vec_ref,
                          fcw_ref, fcb_ref, w1_ref, w2_ref, fb_ref,
                          o_ref, h_ref,
                          *, S_pad, S_valid, nH, Dh, D, F):
    """grid = (batch, layer).  One post-LN encoder layer per step, plus the
    patch-embed prologue at layer 0 and the classifier-head epilogue at the
    last layer.  The (S_pad, D) activation lives in VMEM scratch h_ref."""
    l = pl.program_id(1)

    # --- layer-0 prologue: patch embedding ---------------------------------
    # base_ref already contains cls_token + pos_embed + conv bias at the right
    # rows (and zeros at padded rows); xp has zeros at the cls/pad rows.
    @pl.when(l == 0)
    def _():
        h_ref[...] = (jnp.dot(xp_ref[...].astype(jnp.bfloat16), pw_ref[...],
                              preferred_element_type=jnp.float32)
                      + base_ref[...])

    # --- unpack the packed per-layer bias / LayerNorm vectors (one DMA) -----
    qkv_b = vec_ref[0:1, :]           # (1, 3D)  (softmax scale already folded in)
    out_b = vec_ref[1:2, 0:D]
    ln1_g = vec_ref[2:3, 0:D]
    ln1_b = vec_ref[3:4, 0:D]
    ff1_b = vec_ref[4:5, 0:F]
    ff2_b = vec_ref[5:6, 0:D]
    ln2_g = vec_ref[6:7, 0:D]
    ln2_b = vec_ref[7:8, 0:D]

    h = h_ref[...]                                    # (S_pad, D) f32, VMEM-resident
    hb = h.astype(jnp.bfloat16)

    # --- fused Q/K/V projection (one wide matmul), cast to bf16 once --------
    qkv = (jnp.dot(hb, qkvw_ref[...], preferred_element_type=jnp.float32)
           + qkv_b).astype(jnp.bfloat16)              # (S_pad, 3D) bf16

    # key-padding mask: columns >= S_valid are padding tokens
    col = jax.lax.broadcasted_iota(jnp.int32, (1, S_pad), 1)
    mask_bias = jnp.where(col < S_valid, 0.0, -1e30).astype(jnp.float32)

    # --- per-head attention; out-projection accumulated per head ------------
    attn = jnp.zeros((S_pad, D), jnp.float32)
    for hi in range(nH):
        c0 = hi * Dh
        q_h = qkv[:, c0:c0 + Dh]
        k_h = qkv[:, D + c0:D + c0 + Dh]
        v_h = qkv[:, 2 * D + c0:2 * D + c0 + Dh]
        # scores: contract last dims (no materialized k.T); scale pre-folded in q
        s = jax.lax.dot_general(q_h, k_h, (((1,), (1,)), ((), ())),
                                preferred_element_type=jnp.float32)
        s = s + mask_bias
        m = jnp.max(s, axis=-1, keepdims=True)
        p = jnp.exp(s - m)
        p = p * pl.reciprocal(jnp.sum(p, axis=-1, keepdims=True), approx=False)
        ctx_h = jnp.dot(p.astype(jnp.bfloat16), v_h,
                        preferred_element_type=jnp.float32)
        attn = attn + jnp.dot(ctx_h.astype(jnp.bfloat16), ow_ref[c0:c0 + Dh, :],
                              preferred_element_type=jnp.float32)
    attn = attn + out_b

    # --- post-norm residual #1, feed-forward, post-norm residual #2 ---------
    h1 = _layer_norm(h + attn, ln1_g, ln1_b)

    ff = jnp.dot(h1.astype(jnp.bfloat16), f1w_ref[...],
                 preferred_element_type=jnp.float32) + ff1_b
    ff = jnp.maximum(ff, 0.0)
    ff = jnp.dot(ff.astype(jnp.bfloat16), f2w_ref[...],
                 preferred_element_type=jnp.float32) + ff2_b
    h2 = _layer_norm(h1 + ff, ln2_g, ln2_b)
    h_ref[...] = h2

    # --- last-layer epilogue: fused classifier head --------------------------
    @pl.when(l == pl.num_programs(1) - 1)
    def _():
        # use HEAD_ROWS sublane-aligned rows; only row 0 (cls token) is kept.
        cls = h2[0:HEAD_ROWS, :].astype(jnp.bfloat16)
        feat = jnp.dot(cls, fcw_ref[...],
                       preferred_element_type=jnp.float32) + fcb_ref[...]
        feat = jnp.maximum(feat, 0.0)
        ext_b = jnp.broadcast_to(ext_ref[...].astype(jnp.bfloat16),
                                 (HEAD_ROWS, ext_ref.shape[-1]))
        logits = (jnp.dot(feat.astype(jnp.bfloat16), w1_ref[...],
                          preferred_element_type=jnp.float32)
                  + jnp.dot(ext_b, w2_ref[...],
                            preferred_element_type=jnp.float32)
                  + fb_ref[...])
        o_ref[...] = logits[0:1, :]


# ----------------------------- parameter init -----------------------------

def _trunc_normal(key, shape, std=0.02):
    return std * jax.random.truncated_normal(key, -2.0, 2.0, shape, jnp.float32)


def _dense_init(key, fan_in, fan_out):
    # torch.nn.Linear-style uniform init (deterministic synthetic weights).
    bound = 1.0 / math.sqrt(fan_in)
    kw, kb = jax.random.split(key)
    w = jax.random.uniform(kw, (fan_in, fan_out), jnp.float32, -bound, bound)
    b = jax.random.uniform(kb, (1, fan_out), jnp.float32, -bound, bound)
    return w, b


def init_params(key, *, patch_size, emb_dim, num_layers, num_classes,
                num_heads=8, ff_dim=256, mlp_hidden=512, external_dim=2560):
    D = emb_dim
    num_patches = (32 // patch_size) ** 2
    k_in = 3 * patch_size * patch_size
    Dh = D // num_heads
    scale = 1.0 / math.sqrt(Dh)
    VW = max(3 * D, ff_dim)                      # packed bias/LN vector width
    keys = jax.random.split(key, 6 + num_layers)

    patch_w, patch_b = _dense_init(keys[0], k_in, D)
    patch_w = jnp.pad(patch_w, ((0, K_PAD - k_in), (0, 0)))   # zero-pad contraction

    params = {
        "patch_w": patch_w.astype(jnp.bfloat16),
        "patch_b": patch_b,                       # folded into `base` in the wrapper
        "cls_token": _trunc_normal(keys[1], (1, 1, D)),
        "pos_embed": _trunc_normal(keys[2], (1, num_patches + 1, D)),
    }

    def padv(v):
        return jnp.pad(v, ((0, 0), (0, VW - v.shape[1])))

    qkv_ws, out_ws, ff1_ws, ff2_ws, vecs = [], [], [], [], []
    ones = jnp.ones((1, D), jnp.float32)
    zeros = jnp.zeros((1, D), jnp.float32)
    for li in range(num_layers):
        lk = jax.random.split(keys[3 + li], 4)
        qkv_w, qkv_b = _dense_init(lk[0], D, 3 * D)      # torch in_proj analogue
        # fold the 1/sqrt(Dh) softmax scale into the Q projection
        qkv_w = qkv_w.at[:, :D].multiply(scale)
        qkv_b = qkv_b.at[:, :D].multiply(scale)
        ow, ob = _dense_init(lk[1], D, D)
        f1w, f1b = _dense_init(lk[2], D, ff_dim)
        f2w, f2b = _dense_init(lk[3], ff_dim, D)

        vec = jnp.concatenate([padv(qkv_b), padv(ob), padv(ones), padv(zeros),
                               padv(f1b), padv(f2b), padv(ones), padv(zeros)],
                              axis=0)                    # (8, VW)
        qkv_ws.append(qkv_w); out_ws.append(ow)
        ff1_ws.append(f1w); ff2_ws.append(f2w); vecs.append(vec)

    params["enc"] = {
        "qkv_w": jnp.stack(qkv_ws).astype(jnp.bfloat16),   # (L, D, 3D)
        "out_w": jnp.stack(out_ws).astype(jnp.bfloat16),   # (L, D, D)
        "ff1_w": jnp.stack(ff1_ws).astype(jnp.bfloat16),   # (L, D, F)
        "ff2_w": jnp.stack(ff2_ws).astype(jnp.bfloat16),   # (L, F, D)
        "vec":   jnp.stack(vecs),                          # (L, 8, VW) f32
    }

    # mlp_head: Linear(D -> 512) + ReLU (+ Dropout, identity in eval)
    fc_w, fc_b = _dense_init(keys[3 + num_layers], D, mlp_hidden)
    # final_layer: Linear(512 + external_dim -> num_classes), split for fusion
    fin_w, fin_b = _dense_init(keys[4 + num_layers], mlp_hidden + external_dim,
                               num_classes)
    params.update({
        "fc_w": fc_w.astype(jnp.bfloat16), "fc_b": fc_b,
        "fin_w1": jnp.pad(fin_w[:mlp_hidden],
                          ((0, 0), (0, CLS_PAD - num_classes))).astype(jnp.bfloat16),
        "fin_w2": jnp.pad(fin_w[mlp_hidden:],
                          ((0, 0), (0, CLS_PAD - num_classes))).astype(jnp.bfloat16),
        "fin_b": jnp.pad(fin_b, ((0, 0), (0, CLS_PAD - num_classes))),
    })
    return params


# ----------------------------- forward pass -----------------------------

def enhanced_transformer_forward(params, x, external, *, patch_size, emb_dim,
                                 num_heads=8, num_classes=10):
    B = x.shape[0]
    p = patch_size
    D = emb_dim
    hp = 32 // p
    N = hp * hp
    S = N + 1
    k_in = 3 * p * p

    # Conv2d(k=s=p) patches, channel-major, laid out directly at their final
    # token rows: row 0 (cls slot) and rows S..S_PAD-1 are zero.
    xp = x.reshape(B, 3, hp, p, hp, p).transpose(0, 2, 4, 1, 3, 5).reshape(B, N, k_in)
    xp = jnp.pad(xp, ((0, 0), (1, S_PAD - S), (0, K_PAD - k_in)))   # (B, S_PAD, K_PAD)

    # cls token + pos embed + conv bias folded into one additive base (shared by batch)
    pos = params["pos_embed"][0]                                     # (S, D)
    row0 = pos[0:1] + params["cls_token"][0]                         # cls row
    rows = pos[1:] + params["patch_b"]                               # patch rows
    base = jnp.concatenate([row0, rows,
                            jnp.zeros((S_PAD - S, D), jnp.float32)], axis=0)

    ext = external.reshape(B, 1, -1)
    enc = params["enc"]
    L = enc["qkv_w"].shape[0]
    F = enc["ff1_w"].shape[-1]
    VW = enc["vec"].shape[-1]
    EXT = ext.shape[-1]
    HID = params["fc_w"].shape[-1]

    kernel = functools.partial(_fused_forward_kernel, S_pad=S_PAD, S_valid=S,
                               nH=num_heads, Dh=D // num_heads, D=D, F=F)

    grid_spec = pltpu.PrefetchScalarGridSpec(
        num_scalar_prefetch=0,
        grid=(B, L),
        in_specs=[
            pl.BlockSpec((None, S_PAD, K_PAD), lambda b, l: (b, 0, 0)),   # patches
            pl.BlockSpec((S_PAD, D), lambda b, l: (0, 0)),                # base
            pl.BlockSpec((None, 1, EXT), lambda b, l: (b, 0, 0)),         # external
            pl.BlockSpec((K_PAD, D), lambda b, l: (0, 0)),                # patch_w
            pl.BlockSpec((None, D, 3 * D), lambda b, l: (l, 0, 0)),       # qkv_w
            pl.BlockSpec((None, D, D), lambda b, l: (l, 0, 0)),           # out_w
            pl.BlockSpec((None, D, F), lambda b, l: (l, 0, 0)),           # ff1_w
            pl.BlockSpec((None, F, D), lambda b, l: (l, 0, 0)),           # ff2_w
            pl.BlockSpec((None, 8, VW), lambda b, l: (l, 0, 0)),          # packed biases/LN
            pl.BlockSpec((D, HID), lambda b, l: (0, 0)),                  # fc_w
            pl.BlockSpec((1, HID), lambda b, l: (0, 0)),                  # fc_b
            pl.BlockSpec((HID, CLS_PAD), lambda b, l: (0, 0)),            # fin_w1
            pl.BlockSpec((EXT, CLS_PAD), lambda b, l: (0, 0)),            # fin_w2
            pl.BlockSpec((1, CLS_PAD), lambda b, l: (0, 0)),              # fin_b
        ],
        out_specs=pl.BlockSpec((None, 1, CLS_PAD), lambda b, l: (b, 0, 0)),
        scratch_shapes=[pltpu.VMEM((S_PAD, D), jnp.float32)],             # resident h
    )

    logits = pl.pallas_call(
        kernel,
        grid_spec=grid_spec,
        out_shape=jax.ShapeDtypeStruct((B, 1, CLS_PAD), jnp.float32),
        compiler_params=pltpu.CompilerParams(
            dimension_semantics=("parallel", "arbitrary")),
    )(xp, base, ext,
      params["patch_w"], enc["qkv_w"], enc["out_w"], enc["ff1_w"], enc["ff2_w"],
      enc["vec"], params["fc_w"], params["fc_b"],
      params["fin_w1"], params["fin_w2"], params["fin_b"])

    return logits.reshape(B, CLS_PAD)[:, :num_classes]


# ----------------------------- main -----------------------------

if __name__ == "__main__":
    # EnhancedTransformer defaults: 32x32 RGB, patch 4 -> 64 patches (+cls => 65),
    # emb 128, 2 layers, 8 heads, ffn 256, mlp_head hidden 512, external 2560, 10 classes.
    PATCH, EMB, LAYERS, CLASSES, EXT_DIM, BATCH, HEADS = 4, 128, 2, 10, 2560, 2, 8

    key = jax.random.PRNGKey(0)
    kx, ke, kp = jax.random.split(key, 3)
    x = jax.random.normal(kx, (BATCH, 3, 32, 32), dtype=jnp.float32)
    ext = jax.random.normal(ke, (BATCH, EXT_DIM), dtype=jnp.float32)
    params = init_params(kp, patch_size=PATCH, emb_dim=EMB, num_layers=LAYERS,
                         num_classes=CLASSES, num_heads=HEADS, external_dim=EXT_DIM)

    fwd = jax.jit(functools.partial(enhanced_transformer_forward,
                                    patch_size=PATCH, emb_dim=EMB,
                                    num_heads=HEADS, num_classes=CLASSES))
    out = fwd(params, x, ext)
    jax.block_until_ready(out)
    assert out.shape == (BATCH, CLASSES) and out.dtype == jnp.float32
    assert bool(jnp.all(jnp.isfinite(out)))
    print("KERNEL_OK")
</pallas_src>

<mosaic_0001>
module attributes {stable_mosaic.version = 11 : i64} {
  func.func @_fused_forward_kernel(%arg0: i32, %arg1: i32, %arg2: memref<1x80x128xf32, #tpu.memory_space<vmem>>, %arg3: memref<80x128xf32, #tpu.memory_space<vmem>>, %arg4: memref<1x1x2560xf32, #tpu.memory_space<vmem>>, %arg5: memref<128x128xbf16, #tpu.memory_space<vmem>>, %arg6: memref<1x128x384xbf16, #tpu.memory_space<vmem>>, %arg7: memref<1x128x128xbf16, #tpu.memory_space<vmem>>, %arg8: memref<1x128x256xbf16, #tpu.memory_space<vmem>>, %arg9: memref<1x256x128xbf16, #tpu.memory_space<vmem>>, %arg10: memref<1x8x384xf32, #tpu.memory_space<vmem>>, %arg11: memref<128x512xbf16, #tpu.memory_space<vmem>>, %arg12: memref<1x512xf32, #tpu.memory_space<vmem>>, %arg13: memref<512x128xbf16, #tpu.memory_space<vmem>>, %arg14: memref<2560x128xbf16, #tpu.memory_space<vmem>>, %arg15: memref<1x128xf32, #tpu.memory_space<vmem>>, %arg16: memref<1x1x128xf32, #tpu.memory_space<vmem>>, %arg17: memref<80x128xf32, #tpu.memory_space<vmem>>) attributes {dimension_semantics = [#tpu.dimension_semantics<parallel>, #tpu.dimension_semantics<arbitrary>], iteration_bounds = array<i64: 2, 2>, scalar_prefetch = 0 : i64, scratch_operands = 1 : i64, tpu.core_type = #tpu.core_type<tc>, window_params = [{transform_indices = @transform_0, window_bounds = array<i64: 1, 80, 128>}, {pipeline_mode = #tpu.pipeline_mode<synchronous>, transform_indices = @transform_1, window_bounds = array<i64: 80, 128>}, {transform_indices = @transform_2, window_bounds = array<i64: 1, 1, 2560>}, {pipeline_mode = #tpu.pipeline_mode<synchronous>, transform_indices = @transform_3, window_bounds = array<i64: 128, 128>}, {transform_indices = @transform_4, window_bounds = array<i64: 1, 128, 384>}, {transform_indices = @transform_5, window_bounds = array<i64: 1, 128, 128>}, {transform_indices = @transform_6, window_bounds = array<i64: 1, 128, 256>}, {transform_indices = @transform_7, window_bounds = array<i64: 1, 256, 128>}, {transform_indices = @transform_8, window_bounds = array<i64: 1, 8, 384>}, {pipeline_mode = #tpu.pipeline_mode<synchronous>, transform_indices = @transform_9, window_bounds = array<i64: 128, 512>}, {pipeline_mode = #tpu.pipeline_mode<synchronous>, transform_indices = @transform_10, window_bounds = array<i64: 1, 512>}, {pipeline_mode = #tpu.pipeline_mode<synchronous>, transform_indices = @transform_11, window_bounds = array<i64: 512, 128>}, {pipeline_mode = #tpu.pipeline_mode<synchronous>, transform_indices = @transform_12, window_bounds = array<i64: 2560, 128>}, {pipeline_mode = #tpu.pipeline_mode<synchronous>, transform_indices = @transform_13, window_bounds = array<i64: 1, 128>}, {transform_indices = @transform_14, window_bounds = array<i64: 1, 1, 128>}]} {
    %c0_i32 = arith.constant 0 : i32
    %0 = arith.cmpi eq, %arg1, %c0_i32 : i32
    %1 = arith.extui %0 : i1 to i32
    %c0_i32_0 = arith.constant 0 : i32
    %2 = arith.cmpi ne, %1, %c0_i32_0 : i32
    scf.if %2 {
      %c0_104 = arith.constant 0 : index
      %c0_105 = arith.constant 0 : index
      %c0_106 = arith.constant 0 : index
      %280 = vector.load %arg2[%c0_104, %c0_105, %c0_106] : memref<1x80x128xf32, #tpu.memory_space<vmem>>, vector<1x80x128xf32>
      %281 = vector.shape_cast %280 : vector<1x80x128xf32> to vector<80x128xf32>
      %282 = arith.truncf %281 : vector<80x128xf32> to vector<80x128xbf16>
      %c0_107 = arith.constant 0 : index
      %c0_108 = arith.constant 0 : index
      %283 = vector.load %arg5[%c0_107, %c0_108] : memref<128x128xbf16, #tpu.memory_space<vmem>>, vector<128x128xbf16>
      %cst_109 = arith.constant dense<0.000000e+00> : vector<80x128xf32>
      %284 = tpu.matmul %282, %283, %cst_109 {dimension_numbers = #tpu.dot_dimension_numbers<[1], [0], [0], [1], [0, 0, 1, 1], [], []>} : vector<80x128xbf16>, vector<128x128xbf16>, vector<80x128xf32> -> vector<80x128xf32>
      %c0_110 = arith.constant 0 : index
      %c0_111 = arith.constant 0 : index
      %285 = vector.load %arg3[%c0_110, %c0_111] : memref<80x128xf32, #tpu.memory_space<vmem>>, vector<80x128xf32>
      %286 = arith.addf %284, %285 : vector<80x128xf32>
      %c0_112 = arith.constant 0 : index
      %c0_113 = arith.constant 0 : index
      %287 = vector.load %arg17[%c0_112, %c0_113] : memref<80x128xf32, #tpu.memory_space<vmem>>, vector<80x128xf32>
      tpu.vector_store %arg17[%c0_112, %c0_113], %286 {strides = array<i32>} : memref<80x128xf32, #tpu.memory_space<vmem>>, vector<80x128xf32>,
    } else {
    }
    %c0 = arith.constant 0 : index
    %c0_1 = arith.constant 0 : index
    %c0_2 = arith.constant 0 : index
    %3 = vector.load %arg10[%c0, %c0_1, %c0_2] : memref<1x8x384xf32, #tpu.memory_space<vmem>>, vector<1x1x384xf32>
    %4 = vector.shape_cast %3 : vector<1x1x384xf32> to vector<1x384xf32>
    %c0_3 = arith.constant 0 : index
    %c1 = arith.constant 1 : index
    %c0_4 = arith.constant 0 : index
    %5 = vector.load %arg10[%c0_3, %c1, %c0_4] : memref<1x8x384xf32, #tpu.memory_space<vmem>>, vector<1x1x128xf32>
    %6 = vector.shape_cast %5 : vector<1x1x128xf32> to vector<1x128xf32>
    %c0_5 = arith.constant 0 : index
    %c2 = arith.constant 2 : index
    %c0_6 = arith.constant 0 : index
    %7 = vector.load %arg10[%c0_5, %c2, %c0_6] : memref<1x8x384xf32, #tpu.memory_space<vmem>>, vector<1x1x128xf32>
    %8 = vector.shape_cast %7 : vector<1x1x128xf32> to vector<1x128xf32>
    %c0_7 = arith.constant 0 : index
    %c3 = arith.constant 3 : index
    %c0_8 = arith.constant 0 : index
    %9 = vector.load %arg10[%c0_7, %c3, %c0_8] : memref<1x8x384xf32, #tpu.memory_space<vmem>>, vector<1x1x128xf32>
    %10 = vector.shape_cast %9 : vector<1x1x128xf32> to vector<1x128xf32>
    %c0_9 = arith.constant 0 : index
    %c4 = arith.constant 4 : index
    %c0_10 = arith.constant 0 : index
    %11 = vector.load %arg10[%c0_9, %c4, %c0_10] : memref<1x8x384xf32, #tpu.memory_space<vmem>>, vector<1x1x256xf32>
    %12 = vector.shape_cast %11 : vector<1x1x256xf32> to vector<1x256xf32>
    %c0_11 = arith.constant 0 : index
    %c5 = arith.constant 5 : index
    %c0_12 = arith.constant 0 : index
    %13 = vector.load %arg10[%c0_11, %c5, %c0_12] : memref<1x8x384xf32, #tpu.memory_space<vmem>>, vector<1x1x128xf32>
    %14 = vector.shape_cast %13 : vector<1x1x128xf32> to vector<1x128xf32>
    %c0_13 = arith.constant 0 : index
    %c6 = arith.constant 6 : index
    %c0_14 = arith.constant 0 : index
    %15 = vector.load %arg10[%c0_13, %c6, %c0_14] : memref<1x8x384xf32, #tpu.memory_space<vmem>>, vector<1x1x128xf32>
    %16 = vector.shape_cast %15 : vector<1x1x128xf32> to vector<1x128xf32>
    %c0_15 = arith.constant 0 : index
    %c7 = arith.constant 7 : index
    %c0_16 = arith.constant 0 : index
    %17 = vector.load %arg10[%c0_15, %c7, %c0_16] : memref<1x8x384xf32, #tpu.memory_space<vmem>>, vector<1x1x128xf32>
    %18 = vector.shape_cast %17 : vector<1x1x128xf32> to vector<1x128xf32>
    %c0_17 = arith.constant 0 : index
    %c0_18 = arith.constant 0 : index
    %19 = vector.load %arg17[%c0_17, %c0_18] : memref<80x128xf32, #tpu.memory_space<vmem>>, vector<80x128xf32>
    %20 = arith.truncf %19 : vector<80x128xf32> to vector<80x128xbf16>
    %c0_19 = arith.constant 0 : index
    %c0_20 = arith.constant 0 : index
    %c0_21 = arith.constant 0 : index
    %21 = vector.load %arg6[%c0_19, %c0_20, %c0_21] : memref<1x128x384xbf16, #tpu.memory_space<vmem>>, vector<1x128x384xbf16>
    %22 = vector.shape_cast %21 : vector<1x128x384xbf16> to vector<128x384xbf16>
    %cst = arith.constant dense<0.000000e+00> : vector<80x384xf32>
    %23 = tpu.matmul %20, %22, %cst {dimension_numbers = #tpu.dot_dimension_numbers<[1], [0], [0], [1], [0, 0, 1, 1], [], []>} : vector<80x128xbf16>, vector<128x384xbf16>, vector<80x384xf32> -> vector<80x384xf32>
    %24 = vector.broadcast %4 : vector<1x384xf32> to vector<80x384xf32>
    %25 = arith.addf %23, %24 : vector<80x384xf32>
    %26 = arith.truncf %25 : vector<80x384xf32> to vector<80x384xbf16>
    %27 = tpu.iota {dimensions = array<i32: 1>} : vector<1x80xi32>
    %c65_i32 = arith.constant 65 : i32
    %28 = vector.broadcast %c65_i32 : i32 to vector<1x80xi32>
    %29 = arith.cmpi slt, %27, %28 : vector<1x80xi32>
    %cst_22 = arith.constant 0.000000e+00 : f32
    %cst_23 = arith.constant -1.000000e+30 : f32
    %30 = vector.broadcast %cst_22 : f32 to vector<1x80xf32>
    %31 = vector.broadcast %cst_23 : f32 to vector<1x80xf32>
    %32 = arith.select %29, %30, %31 : vector<1x80xi1>, vector<1x80xf32>
    %cst_24 = arith.constant 0.000000e+00 : f32
    %33 = vector.broadcast %cst_24 : f32 to vector<80x128xf32>
    %34 = vector.extract_strided_slice %26 {offsets = [0, 0], sizes = [80, 16], strides = [1, 1]} : vector<80x384xbf16> to vector<80x16xbf16>
    %35 = vector.extract_strided_slice %26 {offsets = [0, 128], sizes = [80, 16], strides = [1, 1]} : vector<80x384xbf16> to vector<80x16xbf16>
    %36 = vector.extract_strided_slice %26 {offsets = [0, 256], sizes = [80, 16], strides = [1, 1]} : vector<80x384xbf16> to vector<80x16xbf16>
    %cst_25 = arith.constant dense<0.000000e+00> : vector<80x80xf32>
    %37 = tpu.matmul %34, %35, %cst_25 {dimension_numbers = #tpu.dot_dimension_numbers<[1], [1], [0], [0], [0, 0, 1, 0], [], []>} : vector<80x16xbf16>, vector<80x16xbf16>, vector<80x80xf32> -> vector<80x80xf32>
    %38 = vector.broadcast %32 : vector<1x80xf32> to vector<80x80xf32>
    %39 = arith.addf %37, %38 : vector<80x80xf32>
    %cst_26 = arith.constant dense<0xFF800000> : vector<80xf32>
    %40 = vector.multi_reduction <maximumf>, %39, %cst_26 [1] : vector<80x80xf32> to vector<80xf32>
    %41 = vector.shape_cast %40 : vector<80xf32> to vector<80x1xf32>
    %42 = vector.broadcast %41 : vector<80x1xf32> to vector<80x80xf32>
    %43 = arith.subf %39, %42 : vector<80x80xf32>
    %44 = math.exp %43 : vector<80x80xf32>
    %cst_27 = arith.constant dense<0.000000e+00> : vector<80xf32>
    %45 = vector.multi_reduction <add>, %44, %cst_27 [1] : vector<80x80xf32> to vector<80xf32>
    %46 = vector.shape_cast %45 : vector<80xf32> to vector<80x1xf32>
    %47 = tpu.reciprocal %46 : vector<80x1xf32> -> vector<80x1xf32>
    %48 = vector.broadcast %47 : vector<80x1xf32> to vector<80x80xf32>
    %49 = arith.mulf %44, %48 : vector<80x80xf32>
    %50 = arith.truncf %49 : vector<80x80xf32> to vector<80x80xbf16>
    %cst_28 = arith.constant dense<0.000000e+00> : vector<80x16xf32>
    %51 = tpu.matmul %50, %36, %cst_28 {dimension_numbers = #tpu.dot_dimension_numbers<[1], [0], [0], [1], [0, 0, 1, 1], [], []>} : vector<80x80xbf16>, vector<80x16xbf16>, vector<80x16xf32> -> vector<80x16xf32>
    %52 = arith.truncf %51 : vector<80x16xf32> to vector<80x16xbf16>
    %c0_29 = arith.constant 0 : index
    %c0_30 = arith.constant 0 : index
    %c0_31 = arith.constant 0 : index
    %53 = vector.load %arg7[%c0_29, %c0_30, %c0_31] : memref<1x128x128xbf16, #tpu.memory_space<vmem>>, vector<1x16x128xbf16>
    %54 = vector.shape_cast %53 : vector<1x16x128xbf16> to vector<16x128xbf16>
    %cst_32 = arith.constant dense<0.000000e+00> : vector<80x128xf32>
    %55 = tpu.matmul %52, %54, %cst_32 {dimension_numbers = #tpu.dot_dimension_numbers<[1], [0], [0], [1], [0, 0, 1, 1], [], []>} : vector<80x16xbf16>, vector<16x128xbf16>, vector<80x128xf32> -> vector<80x128xf32>
    %56 = arith.addf %33, %55 : vector<80x128xf32>
    %57 = vector.extract_strided_slice %26 {offsets = [0, 16], sizes = [80, 16], strides = [1, 1]} : vector<80x384xbf16> to vector<80x16xbf16>
    %58 = vector.extract_strided_slice %26 {offsets = [0, 144], sizes = [80, 16], strides = [1, 1]} : vector<80x384xbf16> to vector<80x16xbf16>
    %59 = vector.extract_strided_slice %26 {offsets = [0, 272], sizes = [80, 16], strides = [1, 1]} : vector<80x384xbf16> to vector<80x16xbf16>
    %cst_33 = arith.constant dense<0.000000e+00> : vector<80x80xf32>
    %60 = tpu.matmul %57, %58, %cst_33 {dimension_numbers = #tpu.dot_dimension_numbers<[1], [1], [0], [0], [0, 0, 1, 0], [], []>} : vector<80x16xbf16>, vector<80x16xbf16>, vector<80x80xf32> -> vector<80x80xf32>
    %61 = vector.broadcast %32 : vector<1x80xf32> to vector<80x80xf32>
    %62 = arith.addf %60, %61 : vector<80x80xf32>
    %cst_34 = arith.constant dense<0xFF800000> : vector<80xf32>
    %63 = vector.multi_reduction <maximumf>, %62, %cst_34 [1] : vector<80x80xf32> to vector<80xf32>
    %64 = vector.shape_cast %63 : vector<80xf32> to vector<80x1xf32>
    %65 = vector.broadcast %64 : vector<80x1xf32> to vector<80x80xf32>
    %66 = arith.subf %62, %65 : vector<80x80xf32>
    %67 = math.exp %66 : vector<80x80xf32>
    %cst_35 = arith.constant dense<0.000000e+00> : vector<80xf32>
    %68 = vector.multi_reduction <add>, %67, %cst_35 [1] : vector<80x80xf32> to vector<80xf32>
    %69 = vector.shape_cast %68 : vector<80xf32> to vector<80x1xf32>
    %70 = tpu.reciprocal %69 : vector<80x1xf32> -> vector<80x1xf32>
    %71 = vector.broadcast %70 : vector<80x1xf32> to vector<80x80xf32>
    %72 = arith.mulf %67, %71 : vector<80x80xf32>
    %73 = arith.truncf %72 : vector<80x80xf32> to vector<80x80xbf16>
    %cst_36 = arith.constant dense<0.000000e+00> : vector<80x16xf32>
    %74 = tpu.matmul %73, %59, %cst_36 {dimension_numbers = #tpu.dot_dimension_numbers<[1], [0], [0], [1], [0, 0, 1, 1], [], []>} : vector<80x80xbf16>, vector<80x16xbf16>, vector<80x16xf32> -> vector<80x16xf32>
    %75 = arith.truncf %74 : vector<80x16xf32> to vector<80x16xbf16>
    %c0_37 = arith.constant 0 : index
    %c16 = arith.constant 16 : index
    %c0_38 = arith.constant 0 : index
    %76 = vector.load %arg7[%c0_37, %c16, %c0_38] : memref<1x128x128xbf16, #tpu.memory_space<vmem>>, vector<1x16x128xbf16>
    %77 = vector.shape_cast %76 : vector<1x16x128xbf16> to vector<16x128xbf16>
    %cst_39 = arith.constant dense<0.000000e+00> : vector<80x128xf32>
    %78 = tpu.matmul %75, %77, %cst_39 {dimension_numbers = #tpu.dot_dimension_numbers<[1], [0], [0], [1], [0, 0, 1, 1], [], []>} : vector<80x16xbf16>, vector<16x128xbf16>, vector<80x128xf32> -> vector<80x128xf32>
    %79 = arith.addf %56, %78 : vector<80x128xf32>
    %80 = vector.extract_strided_slice %26 {offsets = [0, 32], sizes = [80, 16], strides = [1, 1]} : vector<80x384xbf16> to vector<80x16xbf16>
    %81 = vector.extract_strided_slice %26 {offsets = [0, 160], sizes = [80, 16], strides = [1, 1]} : vector<80x384xbf16> to vector<80x16xbf16>
    %82 = vector.extract_strided_slice %26 {offsets = [0, 288], sizes = [80, 16], strides = [1, 1]} : vector<80x384xbf16> to vector<80x16xbf16>
    %cst_40 = arith.constant dense<0.000000e+00> : vector<80x80xf32>
    %83 = tpu.matmul %80, %81, %cst_40 {dimension_numbers = #tpu.dot_dimension_numbers<[1], [1], [0], [0], [0, 0, 1, 0], [], []>} : vector<80x16xbf16>, vector<80x16xbf16>, vector<80x80xf32> -> vector<80x80xf32>
    %84 = vector.broadcast %32 : vector<1x80xf32> to vector<80x80xf32>
    %85 = arith.addf %83, %84 : vector<80x80xf32>
    %cst_41 = arith.constant dense<0xFF800000> : vector<80xf32>
    %86 = vector.multi_reduction <maximumf>, %85, %cst_41 [1] : vector<80x80xf32> to vector<80xf32>
    %87 = vector.shape_cast %86 : vector<80xf32> to vector<80x1xf32>
    %88 = vector.broadcast %87 : vector<80x1xf32> to vector<80x80xf32>
    %89 = arith.subf %85, %88 : vector<80x80xf32>
    %90 = math.exp %89 : vector<80x80xf32>
    %cst_42 = arith.constant dense<0.000000e+00> : vector<80xf32>
    %91 = vector.multi_reduction <add>, %90, %cst_42 [1] : vector<80x80xf32> to vector<80xf32>
    %92 = vector.shape_cast %91 : vector<80xf32> to vector<80x1xf32>
    %93 = tpu.reciprocal %92 : vector<80x1xf32> -> vector<80x1xf32>
    %94 = vector.broadcast %93 : vector<80x1xf32> to vector<80x80xf32>
    %95 = arith.mulf %90, %94 : vector<80x80xf32>
    %96 = arith.truncf %95 : vector<80x80xf32> to vector<80x80xbf16>
    %cst_43 = arith.constant dense<0.000000e+00> : vector<80x16xf32>
    %97 = tpu.matmul %96, %82, %cst_43 {dimension_numbers = #tpu.dot_dimension_numbers<[1], [0], [0], [1], [0, 0, 1, 1], [], []>} : vector<80x80xbf16>, vector<80x16xbf16>, vector<80x16xf32> -> vector<80x16xf32>
    %98 = arith.truncf %97 : vector<80x16xf32> to vector<80x16xbf16>
    %c0_44 = arith.constant 0 : index
    %c32 = arith.constant 32 : index
    %c0_45 = arith.constant 0 : index
    %99 = vector.load %arg7[%c0_44, %c32, %c0_45] : memref<1x128x128xbf16, #tpu.memory_space<vmem>>, vector<1x16x128xbf16>
    %100 = vector.shape_cast %99 : vector<1x16x128xbf16> to vector<16x128xbf16>
    %cst_46 = arith.constant dense<0.000000e+00> : vector<80x128xf32>
    %101 = tpu.matmul %98, %100, %cst_46 {dimension_numbers = #tpu.dot_dimension_numbers<[1], [0], [0], [1], [0, 0, 1, 1], [], []>} : vector<80x16xbf16>, vector<16x128xbf16>, vector<80x128xf32> -> vector<80x128xf32>
    %102 = arith.addf %79, %101 : vector<80x128xf32>
    %103 = vector.extract_strided_slice %26 {offsets = [0, 48], sizes = [80, 16], strides = [1, 1]} : vector<80x384xbf16> to vector<80x16xbf16>
    %104 = vector.extract_strided_slice %26 {offsets = [0, 176], sizes = [80, 16], strides = [1, 1]} : vector<80x384xbf16> to vector<80x16xbf16>
    %105 = vector.extract_strided_slice %26 {offsets = [0, 304], sizes = [80, 16], strides = [1, 1]} : vector<80x384xbf16> to vector<80x16xbf16>
    %cst_47 = arith.constant dense<0.000000e+00> : vector<80x80xf32>
    %106 = tpu.matmul %103, %104, %cst_47 {dimension_numbers = #tpu.dot_dimension_numbers<[1], [1], [0], [0], [0, 0, 1, 0], [], []>} : vector<80x16xbf16>, vector<80x16xbf16>, vector<80x80xf32> -> vector<80x80xf32>
    %107 = vector.broadcast %32 : vector<1x80xf32> to vector<80x80xf32>
    %108 = arith.addf %106, %107 : vector<80x80xf32>
    %cst_48 = arith.constant dense<0xFF800000> : vector<80xf32>
    %109 = vector.multi_reduction <maximumf>, %108, %cst_48 [1] : vector<80x80xf32> to vector<80xf32>
    %110 = vector.shape_cast %109 : vector<80xf32> to vector<80x1xf32>
    %111 = vector.broadcast %110 : vector<80x1xf32> to vector<80x80xf32>
    %112 = arith.subf %108, %111 : vector<80x80xf32>
    %113 = math.exp %112 : vector<80x80xf32>
    %cst_49 = arith.constant dense<0.000000e+00> : vector<80xf32>
    %114 = vector.multi_reduction <add>, %113, %cst_49 [1] : vector<80x80xf32> to vector<80xf32>
    %115 = vector.shape_cast %114 : vector<80xf32> to vector<80x1xf32>
    %116 = tpu.reciprocal %115 : vector<80x1xf32> -> vector<80x1xf32>
    %117 = vector.broadcast %116 : vector<80x1xf32> to vector<80x80xf32>
    %118 = arith.mulf %113, %117 : vector<80x80xf32>
    %119 = arith.truncf %118 : vector<80x80xf32> to vector<80x80xbf16>
    %cst_50 = arith.constant dense<0.000000e+00> : vector<80x16xf32>
    %120 = tpu.matmul %119, %105, %cst_50 {dimension_numbers = #tpu.dot_dimension_numbers<[1], [0], [0], [1], [0, 0, 1, 1], [], []>} : vector<80x80xbf16>, vector<80x16xbf16>, vector<80x16xf32> -> vector<80x16xf32>
    %121 = arith.truncf %120 : vector<80x16xf32> to vector<80x16xbf16>
    %c0_51 = arith.constant 0 : index
    %c48 = arith.constant 48 : index
    %c0_52 = arith.constant 0 : index
    %122 = vector.load %arg7[%c0_51, %c48, %c0_52] : memref<1x128x128xbf16, #tpu.memory_space<vmem>>, vector<1x16x128xbf16>
    %123 = vector.shape_cast %122 : vector<1x16x128xbf16> to vector<16x128xbf16>
    %cst_53 = arith.constant dense<0.000000e+00> : vector<80x128xf32>
    %124 = tpu.matmul %121, %123, %cst_53 {dimension_numbers = #tpu.dot_dimension_numbers<[1], [0], [0], [1], [0, 0, 1, 1], [], []>} : vector<80x16xbf16>, vector<16x128xbf16>, vector<80x128xf32> -> vector<80x128xf32>
    %125 = arith.addf %102, %124 : vector<80x128xf32>
    %126 = vector.extract_strided_slice %26 {offsets = [0, 64], sizes = [80, 16], strides = [1, 1]} : vector<80x384xbf16> to vector<80x16xbf16>
    %127 = vector.extract_strided_slice %26 {offsets = [0, 192], sizes = [80, 16], strides = [1, 1]} : vector<80x384xbf16> to vector<80x16xbf16>
    %128 = vector.extract_strided_slice %26 {offsets = [0, 320], sizes = [80, 16], strides = [1, 1]} : vector<80x384xbf16> to vector<80x16xbf16>
    %cst_54 = arith.constant dense<0.000000e+00> : vector<80x80xf32>
    %129 = tpu.matmul %126, %127, %cst_54 {dimension_numbers = #tpu.dot_dimension_numbers<[1], [1], [0], [0], [0, 0, 1, 0], [], []>} : vector<80x16xbf16>, vector<80x16xbf16>, vector<80x80xf32> -> vector<80x80xf32>
    %130 = vector.broadcast %32 : vector<1x80xf32> to vector<80x80xf32>
    %131 = arith.addf %129, %130 : vector<80x80xf32>
    %cst_55 = arith.constant dense<0xFF800000> : vector<80xf32>
    %132 = vector.multi_reduction <maximumf>, %131, %cst_55 [1] : vector<80x80xf32> to vector<80xf32>
    %133 = vector.shape_cast %132 : vector<80xf32> to vector<80x1xf32>
    %134 = vector.broadcast %133 : vector<80x1xf32> to vector<80x80xf32>
    %135 = arith.subf %131, %134 : vector<80x80xf32>
    %136 = math.exp %135 : vector<80x80xf32>
    %cst_56 = arith.constant dense<0.000000e+00> : vector<80xf32>
    %137 = vector.multi_reduction <add>, %136, %cst_56 [1] : vector<80x80xf32> to vector<80xf32>
    %138 = vector.shape_cast %137 : vector<80xf32> to vector<80x1xf32>
    %139 = tpu.reciprocal %138 : vector<80x1xf32> -> vector<80x1xf32>
    %140 = vector.broadcast %139 : vector<80x1xf32> to vector<80x80xf32>
    %141 = arith.mulf %136, %140 : vector<80x80xf32>
    %142 = arith.truncf %141 : vector<80x80xf32> to vector<80x80xbf16>
    %cst_57 = arith.constant dense<0.000000e+00> : vector<80x16xf32>
    %143 = tpu.matmul %142, %128, %cst_57 {dimension_numbers = #tpu.dot_dimension_numbers<[1], [0], [0], [1], [0, 0, 1, 1], [], []>} : vector<80x80xbf16>, vector<80x16xbf16>, vector<80x16xf32> -> vector<80x16xf32>
    %144 = arith.truncf %143 : vector<80x16xf32> to vector<80x16xbf16>
    %c0_58 = arith.constant 0 : index
    %c64 = arith.constant 64 : index
    %c0_59 = arith.constant 0 : index
    %145 = vector.load %arg7[%c0_58, %c64, %c0_59] : memref<1x128x128xbf16, #tpu.memory_space<vmem>>, vector<1x16x128xbf16>
    %146 = vector.shape_cast %145 : vector<1x16x128xbf16> to vector<16x128xbf16>
    %cst_60 = arith.constant dense<0.000000e+00> : vector<80x128xf32>
    %147 = tpu.matmul %144, %146, %cst_60 {dimension_numbers = #tpu.dot_dimension_numbers<[1], [0], [0], [1], [0, 0, 1, 1], [], []>} : vector<80x16xbf16>, vector<16x128xbf16>, vector<80x128xf32> -> vector<80x128xf32>
    %148 = arith.addf %125, %147 : vector<80x128xf32>
    %149 = vector.extract_strided_slice %26 {offsets = [0, 80], sizes = [80, 16], strides = [1, 1]} : vector<80x384xbf16> to vector<80x16xbf16>
    %150 = vector.extract_strided_slice %26 {offsets = [0, 208], sizes = [80, 16], strides = [1, 1]} : vector<80x384xbf16> to vector<80x16xbf16>
    %151 = vector.extract_strided_slice %26 {offsets = [0, 336], sizes = [80, 16], strides = [1, 1]} : vector<80x384xbf16> to vector<80x16xbf16>
    %cst_61 = arith.constant dense<0.000000e+00> : vector<80x80xf32>
    %152 = tpu.matmul %149, %150, %cst_61 {dimension_numbers = #tpu.dot_dimension_numbers<[1], [1], [0], [0], [0, 0, 1, 0], [], []>} : vector<80x16xbf16>, vector<80x16xbf16>, vector<80x80xf32> -> vector<80x80xf32>
    %153 = vector.broadcast %32 : vector<1x80xf32> to vector<80x80xf32>
    %154 = arith.addf %152, %153 : vector<80x80xf32>
    %cst_62 = arith.constant dense<0xFF800000> : vector<80xf32>
    %155 = vector.multi_reduction <maximumf>, %154, %cst_62 [1] : vector<80x80xf32> to vector<80xf32>
    %156 = vector.shape_cast %155 : vector<80xf32> to vector<80x1xf32>
    %157 = vector.broadcast %156 : vector<80x1xf32> to vector<80x80xf32>
    %158 = arith.subf %154, %157 : vector<80x80xf32>
    %159 = math.exp %158 : vector<80x80xf32>
    %cst_63 = arith.constant dense<0.000000e+00> : vector<80xf32>
    %160 = vector.multi_reduction <add>, %159, %cst_63 [1] : vector<80x80xf32> to vector<80xf32>
    %161 = vector.shape_cast %160 : vector<80xf32> to vector<80x1xf32>
    %162 = tpu.reciprocal %161 : vector<80x1xf32> -> vector<80x1xf32>
    %163 = vector.broadcast %162 : vector<80x1xf32> to vector<80x80xf32>
    %164 = arith.mulf %159, %163 : vector<80x80xf32>
    %165 = arith.truncf %164 : vector<80x80xf32> to vector<80x80xbf16>
    %cst_64 = arith.constant dense<0.000000e+00> : vector<80x16xf32>
    %166 = tpu.matmul %165, %151, %cst_64 {dimension_numbers = #tpu.dot_dimension_numbers<[1], [0], [0], [1], [0, 0, 1, 1], [], []>} : vector<80x80xbf16>, vector<80x16xbf16>, vector<80x16xf32> -> vector<80x16xf32>
    %167 = arith.truncf %166 : vector<80x16xf32> to vector<80x16xbf16>
    %c0_65 = arith.constant 0 : index
    %c80 = arith.constant 80 : index
    %c0_66 = arith.constant 0 : index
    %168 = vector.load %arg7[%c0_65, %c80, %c0_66] : memref<1x128x128xbf16, #tpu.memory_space<vmem>>, vector<1x16x128xbf16>
    %169 = vector.shape_cast %168 : vector<1x16x128xbf16> to vector<16x128xbf16>
    %cst_67 = arith.constant dense<0.000000e+00> : vector<80x128xf32>
    %170 = tpu.matmul %167, %169, %cst_67 {dimension_numbers = #tpu.dot_dimension_numbers<[1], [0], [0], [1], [0, 0, 1, 1], [], []>} : vector<80x16xbf16>, vector<16x128xbf16>, vector<80x128xf32> -> vector<80x128xf32>
    %171 = arith.addf %148, %170 : vector<80x128xf32>
    %172 = vector.extract_strided_slice %26 {offsets = [0, 96], sizes = [80, 16], strides = [1, 1]} : vector<80x384xbf16> to vector<80x16xbf16>
    %173 = vector.extract_strided_slice %26 {offsets = [0, 224], sizes = [80, 16], strides = [1, 1]} : vector<80x384xbf16> to vector<80x16xbf16>
    %174 = vector.extract_strided_slice %26 {offsets = [0, 352], sizes = [80, 16], strides = [1, 1]} : vector<80x384xbf16> to vector<80x16xbf16>
    %cst_68 = arith.constant dense<0.000000e+00> : vector<80x80xf32>
    %175 = tpu.matmul %172, %173, %cst_68 {dimension_numbers = #tpu.dot_dimension_numbers<[1], [1], [0], [0], [0, 0, 1, 0], [], []>} : vector<80x16xbf16>, vector<80x16xbf16>, vector<80x80xf32> -> vector<80x80xf32>
    %176 = vector.broadcast %32 : vector<1x80xf32> to vector<80x80xf32>
    %177 = arith.addf %175, %176 : vector<80x80xf32>
    %cst_69 = arith.constant dense<0xFF800000> : vector<80xf32>
    %178 = vector.multi_reduction <maximumf>, %177, %cst_69 [1] : vector<80x80xf32> to vector<80xf32>
    %179 = vector.shape_cast %178 : vector<80xf32> to vector<80x1xf32>
    %180 = vector.broadcast %179 : vector<80x1xf32> to vector<80x80xf32>
    %181 = arith.subf %177, %180 : vector<80x80xf32>
    %182 = math.exp %181 : vector<80x80xf32>
    %cst_70 = arith.constant dense<0.000000e+00> : vector<80xf32>
    %183 = vector.multi_reduction <add>, %182, %cst_70 [1] : vector<80x80xf32> to vector<80xf32>
    %184 = vector.shape_cast %183 : vector<80xf32> to vector<80x1xf32>
    %185 = tpu.reciprocal %184 : vector<80x1xf32> -> vector<80x1xf32>
    %186 = vector.broadcast %185 : vector<80x1xf32> to vector<80x80xf32>
    %187 = arith.mulf %182, %186 : vector<80x80xf32>
    %188 = arith.truncf %187 : vector<80x80xf32> to vector<80x80xbf16>
    %cst_71 = arith.constant dense<0.000000e+00> : vector<80x16xf32>
    %189 = tpu.matmul %188, %174, %cst_71 {dimension_numbers = #tpu.dot_dimension_numbers<[1], [0], [0], [1], [0, 0, 1, 1], [], []>} : vector<80x80xbf16>, vector<80x16xbf16>, vector<80x16xf32> -> vector<80x16xf32>
    %190 = arith.truncf %189 : vector<80x16xf32> to vector<80x16xbf16>
    %c0_72 = arith.constant 0 : index
    %c96 = arith.constant 96 : index
    %c0_73 = arith.constant 0 : index
    %191 = vector.load %arg7[%c0_72, %c96, %c0_73] : memref<1x128x128xbf16, #tpu.memory_space<vmem>>, vector<1x16x128xbf16>
    %192 = vector.shape_cast %191 : vector<1x16x128xbf16> to vector<16x128xbf16>
    %cst_74 = arith.constant dense<0.000000e+00> : vector<80x128xf32>
    %193 = tpu.matmul %190, %192, %cst_74 {dimension_numbers = #tpu.dot_dimension_numbers<[1], [0], [0], [1], [0, 0, 1, 1], [], []>} : vector<80x16xbf16>, vector<16x128xbf16>, vector<80x128xf32> -> vector<80x128xf32>
    %194 = arith.addf %171, %193 : vector<80x128xf32>
    %195 = vector.extract_strided_slice %26 {offsets = [0, 112], sizes = [80, 16], strides = [1, 1]} : vector<80x384xbf16> to vector<80x16xbf16>
    %196 = vector.extract_strided_slice %26 {offsets = [0, 240], sizes = [80, 16], strides = [1, 1]} : vector<80x384xbf16> to vector<80x16xbf16>
    %197 = vector.extract_strided_slice %26 {offsets = [0, 368], sizes = [80, 16], strides = [1, 1]} : vector<80x384xbf16> to vector<80x16xbf16>
    %cst_75 = arith.constant dense<0.000000e+00> : vector<80x80xf32>
    %198 = tpu.matmul %195, %196, %cst_75 {dimension_numbers = #tpu.dot_dimension_numbers<[1], [1], [0], [0], [0, 0, 1, 0], [], []>} : vector<80x16xbf16>, vector<80x16xbf16>, vector<80x80xf32> -> vector<80x80xf32>
    %199 = vector.broadcast %32 : vector<1x80xf32> to vector<80x80xf32>
    %200 = arith.addf %198, %199 : vector<80x80xf32>
    %cst_76 = arith.constant dense<0xFF800000> : vector<80xf32>
    %201 = vector.multi_reduction <maximumf>, %200, %cst_76 [1] : vector<80x80xf32> to vector<80xf32>
    %202 = vector.shape_cast %201 : vector<80xf32> to vector<80x1xf32>
    %203 = vector.broadcast %202 : vector<80x1xf32> to vector<80x80xf32>
    %204 = arith.subf %200, %203 : vector<80x80xf32>
    %205 = math.exp %204 : vector<80x80xf32>
    %cst_77 = arith.constant dense<0.000000e+00> : vector<80xf32>
    %206 = vector.multi_reduction <add>, %205, %cst_77 [1] : vector<80x80xf32> to vector<80xf32>
    %207 = vector.shape_cast %206 : vector<80xf32> to vector<80x1xf32>
    %208 = tpu.reciprocal %207 : vector<80x1xf32> -> vector<80x1xf32>
    %209 = vector.broadcast %208 : vector<80x1xf32> to vector<80x80xf32>
    %210 = arith.mulf %205, %209 : vector<80x80xf32>
    %211 = arith.truncf %210 : vector<80x80xf32> to vector<80x80xbf16>
    %cst_78 = arith.constant dense<0.000000e+00> : vector<80x16xf32>
    %212 = tpu.matmul %211, %197, %cst_78 {dimension_numbers = #tpu.dot_dimension_numbers<[1], [0], [0], [1], [0, 0, 1, 1], [], []>} : vector<80x80xbf16>, vector<80x16xbf16>, vector<80x16xf32> -> vector<80x16xf32>
    %213 = arith.truncf %212 : vector<80x16xf32> to vector<80x16xbf16>
    %c0_79 = arith.constant 0 : index
    %c112 = arith.constant 112 : index
    %c0_80 = arith.constant 0 : index
    %214 = vector.load %arg7[%c0_79, %c112, %c0_80] : memref<1x128x128xbf16, #tpu.memory_space<vmem>>, vector<1x16x128xbf16>
    %215 = vector.shape_cast %214 : vector<1x16x128xbf16> to vector<16x128xbf16>
    %cst_81 = arith.constant dense<0.000000e+00> : vector<80x128xf32>
    %216 = tpu.matmul %213, %215, %cst_81 {dimension_numbers = #tpu.dot_dimension_numbers<[1], [0], [0], [1], [0, 0, 1, 1], [], []>} : vector<80x16xbf16>, vector<16x128xbf16>, vector<80x128xf32> -> vector<80x128xf32>
    %217 = arith.addf %194, %216 : vector<80x128xf32>
    %218 = vector.broadcast %6 : vector<1x128xf32> to vector<80x128xf32>
    %219 = arith.addf %217, %218 : vector<80x128xf32>
    %220 = arith.addf %19, %219 : vector<80x128xf32>
    %cst_82 = arith.constant dense<0.000000e+00> : vector<80xf32>
    %221 = vector.multi_reduction <add>, %220, %cst_82 [1] : vector<80x128xf32> to vector<80xf32>
    %222 = vector.shape_cast %221 : vector<80xf32> to vector<80x1xf32>
    %cst_83 = arith.constant 1.280000e+02 : f32
    %223 = vector.broadcast %cst_83 : f32 to vector<80x1xf32>
    %224 = arith.divf %222, %223 : vector<80x1xf32>
    %225 = vector.broadcast %224 : vector<80x1xf32> to vector<80x128xf32>
    %226 = arith.subf %220, %225 : vector<80x128xf32>
    %227 = arith.mulf %226, %226 : vector<80x128xf32>
    %cst_84 = arith.constant dense<0.000000e+00> : vector<80xf32>
    %228 = vector.multi_reduction <add>, %227, %cst_84 [1] : vector<80x128xf32> to vector<80xf32>
    %229 = vector.shape_cast %228 : vector<80xf32> to vector<80x1xf32>
    %cst_85 = arith.constant 1.280000e+02 : f32
    %230 = vector.broadcast %cst_85 : f32 to vector<80x1xf32>
    %231 = arith.divf %229, %230 : vector<80x1xf32>
    %cst_86 = arith.constant 9.99999974E-6 : f32
    %232 = vector.broadcast %cst_86 : f32 to vector<80x1xf32>
    %233 = arith.addf %231, %232 : vector<80x1xf32>
    %234 = math.rsqrt %233 : vector<80x1xf32>
    %235 = vector.broadcast %234 : vector<80x1xf32> to vector<80x128xf32>
    %236 = arith.mulf %226, %235 : vector<80x128xf32>
    %237 = vector.broadcast %8 : vector<1x128xf32> to vector<80x128xf32>
    %238 = arith.mulf %236, %237 : vector<80x128xf32>
    %239 = vector.broadcast %10 : vector<1x128xf32> to vector<80x128xf32>
    %240 = arith.addf %238, %239 : vector<80x128xf32>
    %241 = arith.truncf %240 : vector<80x128xf32> to vector<80x128xbf16>
    %c0_87 = arith.constant 0 : index
    %c0_88 = arith.constant 0 : index
    %c0_89 = arith.constant 0 : index
    %242 = vector.load %arg8[%c0_87, %c0_88, %c0_89] : memref<1x128x256xbf16, #tpu.memory_space<vmem>>, vector<1x128x256xbf16>
    %243 = vector.shape_cast %242 : vector<1x128x256xbf16> to vector<128x256xbf16>
    %cst_90 = arith.constant dense<0.000000e+00> : vector<80x256xf32>
    %244 = tpu.matmul %241, %243, %cst_90 {dimension_numbers = #tpu.dot_dimension_numbers<[1], [0], [0], [1], [0, 0, 1, 1], [], []>} : vector<80x128xbf16>, vector<128x256xbf16>, vector<80x256xf32> -> vector<80x256xf32>
    %245 = vector.broadcast %12 : vector<1x256xf32> to vector<80x256xf32>
    %246 = arith.addf %244, %245 : vector<80x256xf32>
    %cst_91 = arith.constant 0.000000e+00 : f32
    %247 = vector.broadcast %cst_91 : f32 to vector<80x256xf32>
    %248 = arith.maximumf %246, %247 : vector<80x256xf32>
    %249 = arith.truncf %248 : vector<80x256xf32> to vector<80x256xbf16>
    %c0_92 = arith.constant 0 : index
    %c0_93 = arith.constant 0 : index
    %c0_94 = arith.constant 0 : index
    %250 = vector.load %arg9[%c0_92, %c0_93, %c0_94] : memref<1x256x128xbf16, #tpu.memory_space<vmem>>, vector<1x256x128xbf16>
    %251 = vector.shape_cast %250 : vector<1x256x128xbf16> to vector<256x128xbf16>
    %cst_95 = arith.constant dense<0.000000e+00> : vector<80x128xf32>
    %252 = tpu.matmul %249, %251, %cst_95 {dimension_numbers = #tpu.dot_dimension_numbers<[1], [0], [0], [1], [0, 0, 1, 1], [], []>} : vector<80x256xbf16>, vector<256x128xbf16>, vector<80x128xf32> -> vector<80x128xf32>
    %253 = vector.broadcast %14 : vector<1x128xf32> to vector<80x128xf32>
    %254 = arith.addf %252, %253 : vector<80x128xf32>
    %255 = arith.addf %240, %254 : vector<80x128xf32>
    %cst_96 = arith.constant dense<0.000000e+00> : vector<80xf32>
    %256 = vector.multi_reduction <add>, %255, %cst_96 [1] : vector<80x128xf32> to vector<80xf32>
    %257 = vector.shape_cast %256 : vector<80xf32> to vector<80x1xf32>
    %cst_97 = arith.constant 1.280000e+02 : f32
    %258 = vector.broadcast %cst_97 : f32 to vector<80x1xf32>
    %259 = arith.divf %257, %258 : vector<80x1xf32>
    %260 = vector.broadcast %259 : vector<80x1xf32> to vector<80x128xf32>
    %261 = arith.subf %255, %260 : vector<80x128xf32>
    %262 = arith.mulf %261, %261 : vector<80x128xf32>
    %cst_98 = arith.constant dense<0.000000e+00> : vector<80xf32>
    %263 = vector.multi_reduction <add>, %262, %cst_98 [1] : vector<80x128xf32> to vector<80xf32>
    %264 = vector.shape_cast %263 : vector<80xf32> to vector<80x1xf32>
    %cst_99 = arith.constant 1.280000e+02 : f32
    %265 = vector.broadcast %cst_99 : f32 to vector<80x1xf32>
    %266 = arith.divf %264, %265 : vector<80x1xf32>
    %cst_100 = arith.constant 9.99999974E-6 : f32
    %267 = vector.broadcast %cst_100 : f32 to vector<80x1xf32>
    %268 = arith.addf %266, %267 : vector<80x1xf32>
    %269 = math.rsqrt %268 : vector<80x1xf32>
    %270 = vector.broadcast %269 : vector<80x1xf32> to vector<80x128xf32>
    %271 = arith.mulf %261, %270 : vector<80x128xf32>
    %272 = vector.broadcast %16 : vector<1x128xf32> to vector<80x128xf32>
    %273 = arith.mulf %271, %272 : vector<80x128xf32>
    %274 = vector.broadcast %18 : vector<1x128xf32> to vector<80x128xf32>
    %275 = arith.addf %273, %274 : vector<80x128xf32>
    %c0_101 = arith.constant 0 : index
    %c0_102 = arith.constant 0 : index
    %276 = vector.load %arg17[%c0_101, %c0_102] : memref<80x128xf32, #tpu.memory_space<vmem>>, vector<80x128xf32>
    tpu.vector_store %arg17[%c0_101, %c0_102], %275 {strides = array<i32>} : memref<80x128xf32, #tpu.memory_space<vmem>>, vector<80x128xf32>,
    %c1_i32 = arith.constant 1 : i32
    %277 = arith.cmpi eq, %arg1, %c1_i32 : i32
    %278 = arith.extui %277 : i1 to i32
    %c0_i32_103 = arith.constant 0 : i32
    %279 = arith.cmpi ne, %278, %c0_i32_103 : i32
    scf.if %279 {
      %280 = vector.extract_strided_slice %275 {offsets = [0, 0], sizes = [8, 128], strides = [1, 1]} : vector<80x128xf32> to vector<8x128xf32>
      %281 = arith.truncf %280 : vector<8x128xf32> to vector<8x128xbf16>
      %c0_104 = arith.constant 0 : index
      %c0_105 = arith.constant 0 : index
      %282 = vector.load %arg11[%c0_104, %c0_105] : memref<128x512xbf16, #tpu.memory_space<vmem>>, vector<128x512xbf16>
      %cst_106 = arith.constant dense<0.000000e+00> : vector<8x512xf32>
      %283 = tpu.matmul %281, %282, %cst_106 {dimension_numbers = #tpu.dot_dimension_numbers<[1], [0], [0], [1], [0, 0, 1, 1], [], []>} : vector<8x128xbf16>, vector<128x512xbf16>, vector<8x512xf32> -> vector<8x512xf32>
      %c0_107 = arith.constant 0 : index
      %c0_108 = arith.constant 0 : index
      %284 = vector.load %arg12[%c0_107, %c0_108] : memref<1x512xf32, #tpu.memory_space<vmem>>, vector<1x512xf32>
      %285 = vector.broadcast %284 : vector<1x512xf32> to vector<8x512xf32>
      %286 = arith.addf %283, %285 : vector<8x512xf32>
      %cst_109 = arith.constant 0.000000e+00 : f32
      %287 = vector.broadcast %cst_109 : f32 to vector<8x512xf32>
      %288 = arith.maximumf %286, %287 : vector<8x512xf32>
      %c0_110 = arith.constant 0 : index
      %c0_111 = arith.constant 0 : index
      %c0_112 = arith.constant 0 : index
      %289 = vector.load %arg4[%c0_110, %c0_111, %c0_112] : memref<1x1x2560xf32, #tpu.memory_space<vmem>>, vector<1x1x2560xf32>
      %290 = vector.shape_cast %289 : vector<1x1x2560xf32> to vector<1x2560xf32>
      %291 = arith.truncf %290 : vector<1x2560xf32> to vector<1x2560xbf16>
      %292 = vector.shape_cast %291 : vector<1x2560xbf16> to vector<1x2560xbf16>
      %293 = vector.broadcast %292 : vector<1x2560xbf16> to vector<8x2560xbf16>
      %294 = arith.truncf %288 : vector<8x512xf32> to vector<8x512xbf16>
      %c0_113 = arith.constant 0 : index
      %c0_114 = arith.constant 0 : index
      %295 = vector.load %arg13[%c0_113, %c0_114] : memref<512x128xbf16, #tpu.memory_space<vmem>>, vector<512x128xbf16>
      %cst_115 = arith.constant dense<0.000000e+00> : vector<8x128xf32>
      %296 = tpu.matmul %294, %295, %cst_115 {dimension_numbers = #tpu.dot_dimension_numbers<[1], [0], [0], [1], [0, 0, 1, 1], [], []>} : vector<8x512xbf16>, vector<512x128xbf16>, vector<8x128xf32> -> vector<8x128xf32>
      %c0_116 = arith.constant 0 : index
      %c0_117 = arith.constant 0 : index
      %297 = vector.load %arg14[%c0_116, %c0_117] : memref<2560x128xbf16, #tpu.memory_space<vmem>>, vector<2560x128xbf16>
      %cst_118 = arith.constant dense<0.000000e+00> : vector<8x128xf32>
      %298 = tpu.matmul %293, %297, %cst_118 {dimension_numbers = #tpu.dot_dimension_numbers<[1], [0], [0], [1], [0, 0, 1, 1], [], []>} : vector<8x2560xbf16>, vector<2560x128xbf16>, vector<8x128xf32> -> vector<8x128xf32>
      %299 = arith.addf %296, %298 : vector<8x128xf32>
      %c0_119 = arith.constant 0 : index
      %c0_120 = arith.constant 0 : index
      %300 = vector.load %arg15[%c0_119, %c0_120] : memref<1x128xf32, #tpu.memory_space<vmem>>, vector<1x128xf32>
      %301 = vector.broadcast %300 : vector<1x128xf32> to vector<8x128xf32>
      %302 = arith.addf %299, %301 : vector<8x128xf32>
      %303 = vector.extract_strided_slice %302 {offsets = [0, 0], sizes = [1, 128], strides = [1, 1]} : vector<8x128xf32> to vector<1x128xf32>
      %c0_121 = arith.constant 0 : index
      %c0_122 = arith.constant 0 : index
      %c0_123 = arith.constant 0 : index
      %304 = vector.load %arg16[%c0_121, %c0_122, %c0_123] : memref<1x1x128xf32, #tpu.memory_space<vmem>>, vector<1x1x128xf32>
      %305 = vector.shape_cast %304 : vector<1x1x128xf32> to vector<1x128xf32>
      %306 = vector.shape_cast %303 : vector<1x128xf32> to vector<1x1x128xf32>
      tpu.vector_store %arg16[%c0_121, %c0_122, %c0_123], %306 {strides = array<i32>} : memref<1x1x128xf32, #tpu.memory_space<vmem>>, vector<1x1x128xf32>,
    } else {
    }
    return
  }
  func.func @transform_0(%arg0: i32, %arg1: i32) -> (i32, i32, i32) {
    %c0_i32 = arith.constant 0 : i32
    %c0_i32_0 = arith.constant 0 : i32
    %c0_i32_1 = arith.constant 0 : i32
    return %arg0, %c0_i32, %c0_i32_0 : i32, i32, i32
  }
  func.func @transform_1(%arg0: i32, %arg1: i32) -> (i32, i32) {
    %c0_i32 = arith.constant 0 : i32
    %c0_i32_0 = arith.constant 0 : i32
    %c0_i32_1 = arith.constant 0 : i32
    return %c0_i32, %c0_i32_0 : i32, i32
  }
  func.func @transform_2(%arg0: i32, %arg1: i32) -> (i32, i32, i32) {
    %c0_i32 = arith.constant 0 : i32
    %c0_i32_0 = arith.constant 0 : i32
    %c0_i32_1 = arith.constant 0 : i32
    return %arg0, %c0_i32, %c0_i32_0 : i32, i32, i32
  }
  func.func @transform_3(%arg0: i32, %arg1: i32) -> (i32, i32) {
    %c0_i32 = arith.constant 0 : i32
    %c0_i32_0 = arith.constant 0 : i32
    %c0_i32_1 = arith.constant 0 : i32
    return %c0_i32, %c0_i32_0 : i32, i32
  }
  func.func @transform_4(%arg0: i32, %arg1: i32) -> (i32, i32, i32) {
    %c0_i32 = arith.constant 0 : i32
    %c0_i32_0 = arith.constant 0 : i32
    %c0_i32_1 = arith.constant 0 : i32
    return %arg1, %c0_i32, %c0_i32_0 : i32, i32, i32
  }
  func.func @transform_5(%arg0: i32, %arg1: i32) -> (i32, i32, i32) {
    %c0_i32 = arith.constant 0 : i32
    %c0_i32_0 = arith.constant 0 : i32
    %c0_i32_1 = arith.constant 0 : i32
    return %arg1, %c0_i32, %c0_i32_0 : i32, i32, i32
  }
  func.func @transform_6(%arg0: i32, %arg1: i32) -> (i32, i32, i32) {
    %c0_i32 = arith.constant 0 : i32
    %c0_i32_0 = arith.constant 0 : i32
    %c0_i32_1 = arith.constant 0 : i32
    return %arg1, %c0_i32, %c0_i32_0 : i32, i32, i32
  }
  func.func @transform_7(%arg0: i32, %arg1: i32) -> (i32, i32, i32) {
    %c0_i32 = arith.constant 0 : i32
    %c0_i32_0 = arith.constant 0 : i32
    %c0_i32_1 = arith.constant 0 : i32
    return %arg1, %c0_i32, %c0_i32_0 : i32, i32, i32
  }
  func.func @transform_8(%arg0: i32, %arg1: i32) -> (i32, i32, i32) {
    %c0_i32 = arith.constant 0 : i32
    %c0_i32_0 = arith.constant 0 : i32
    %c0_i32_1 = arith.constant 0 : i32
    return %arg1, %c0_i32, %c0_i32_0 : i32, i32, i32
  }
  func.func @transform_9(%arg0: i32, %arg1: i32) -> (i32, i32) {
    %c0_i32 = arith.constant 0 : i32
    %c0_i32_0 = arith.constant 0 : i32
    %c0_i32_1 = arith.constant 0 : i32
    return %c0_i32, %c0_i32_0 : i32, i32
  }
  func.func @transform_10(%arg0: i32, %arg1: i32) -> (i32, i32) {
    %c0_i32 = arith.constant 0 : i32
    %c0_i32_0 = arith.constant 0 : i32
    %c0_i32_1 = arith.constant 0 : i32
    return %c0_i32, %c0_i32_0 : i32, i32
  }
  func.func @transform_11(%arg0: i32, %arg1: i32) -> (i32, i32) {
    %c0_i32 = arith.constant 0 : i32
    %c0_i32_0 = arith.constant 0 : i32
    %c0_i32_1 = arith.constant 0 : i32
    return %c0_i32, %c0_i32_0 : i32, i32
  }
  func.func @transform_12(%arg0: i32, %arg1: i32) -> (i32, i32) {
    %c0_i32 = arith.constant 0 : i32
    %c0_i32_0 = arith.constant 0 : i32
    %c0_i32_1 = arith.constant 0 : i32
    return %c0_i32, %c0_i32_0 : i32, i32
  }
  func.func @transform_13(%arg0: i32, %arg1: i32) -> (i32, i32) {
    %c0_i32 = arith.constant 0 : i32
    %c0_i32_0 = arith.constant 0 : i32
    %c0_i32_1 = arith.constant 0 : i32
    return %c0_i32, %c0_i32_0 : i32, i32
  }
  func.func @transform_14(%arg0: i32, %arg1: i32) -> (i32, i32, i32) {
    %c0_i32 = arith.constant 0 : i32
    %c0_i32_0 = arith.constant 0 : i32
    %c0_i32_1 = arith.constant 0 : i32
    return %arg0, %c0_i32, %c0_i32_0 : i32, i32, i32
  }
}

</mosaic_0001>

<llo_original>
// kernel: enhanced_transformer_forward.1
$region0: #{enhanced_transformer_forward.1}
  #allocation0 [shape = 'u32[]', space=smem, size = 0x4, offset = 0x4, fixed_abs, tag = 'smem constant byte address 0x4 - core index']
  #allocation1 [shape = 'u32[144,128]{1,0:T(1,128)}', space=vmem, size = 0x12000, scoped, tag = 'internal scratch']
  #allocation2 [shape = 'f32[80,128]{1,0:T(8,128)}', space=vmem, size = 0xa000, scoped, tag = 'scratch operand']
  %s0 = inlined_call_operand.vmem [shape: f32[2,80,128], index: 0, kind: input, shape index: {}]
  %s1 = inlined_call_operand.vmem [shape: f32[80,128], index: 1, kind: input, shape index: {}]
  %s2 = inlined_call_operand.vmem [shape: f32[2,1,2560], index: 2, kind: input, shape index: {}]
  %s3 = inlined_call_operand.vmem [shape: bf16[128,128], index: 3, kind: input, shape index: {}]
  %s4 = inlined_call_operand.vmem [shape: bf16[2,128,384], index: 4, kind: input, shape index: {}]
  %s5 = inlined_call_operand.vmem [shape: bf16[2,128,128], index: 5, kind: input, shape index: {}]
  %s6 = inlined_call_operand.vmem [shape: bf16[2,128,256], index: 6, kind: input, shape index: {}]
  %s7 = inlined_call_operand.vmem [shape: bf16[2,256,128], index: 7, kind: input, shape index: {}]
  %s8 = inlined_call_operand.vmem [shape: f32[2,8,384], index: 8, kind: input, shape index: {}]
  %s9 = inlined_call_operand.vmem [shape: bf16[128,512], index: 9, kind: input, shape index: {}]
  %s10 = inlined_call_operand.vmem [shape: f32[1,512], index: 10, kind: input, shape index: {}]
  %s11 = inlined_call_operand.vmem [shape: bf16[512,128], index: 11, kind: input, shape index: {}]
  %s12 = inlined_call_operand.vmem [shape: bf16[2560,128], index: 12, kind: input, shape index: {}]
  %s13 = inlined_call_operand.vmem [shape: f32[1,128], index: 13, kind: input, shape index: {}]
  %s14 = inlined_call_operand.hbm [shape: f32[2,1,128], index: 14, kind: output, shape index: {}]
  %s15 = sld [smem:[#allocation0]]
  $region97: #{enhanced_transformer_forward.1} parent=0
    _
  %s17 = ssub.s32 1, %s15
  %s18 = scalar_select 0, %s17, %s15
  $region1: #{enhanced_transformer_forward.1} parent=0
    #allocation3 [shape = 'u8[1024]{0}', space=vmem, size = 0x400, scoped, tag = 'output window, operand 0']
    #allocation4 [shape = 's32[2]{0}', space=sflag, size = 0x8, scoped, tag = 'scoped memory for enhanced_transformer_forward.1']
    %19 = vsyncpa [#allocation4], 0
    %s20 = scalar_lea.sflag [#allocation4], 1
    %21 = vsyncpa %s20, 0
    loop: start=0, step=1, limit=6
    $region2: #{enhanced_transformer_forward.1} parent=1 // loop_pre_header
      _
    $region3: #{enhanced_transformer_forward.1} parent=1 // loop_header
      %s23 = sphi 0, %s27
      %p24 = scmp.ge.s32.totalorder %s23, 6
      %s30 = sphi 0, %s42
      %s31 = sphi 0, %s38
      %s32 = sphi 0, %s30
      %s33 = sphi 0, %s31
      %s34 = sphi 0, %s32
      %s35 = sphi 0, %s33
      %s45 = sphi 0, %s47
      %s48 = sphi 0, %s45
      %s49 = sphi 0, %s48
      %s65 = sphi 0, %s49
      %s69 = sphi 0, %s69
      %s71 = sphi 0, %s69
      %s72 = sphi 0, %s71
      %s86 = sphi 0, %s72
      %s92 = sphi 0, %s94
      %s95 = sphi 0, %s92
      %s96 = sphi 0, %s95
      %s112 = sphi 0, %s96
      %s116 = sphi 0, %s116
      %s118 = sphi 0, %s116
      %s119 = sphi 0, %s118
      %s133 = sphi 0, %s119
      %s139 = sphi 0, %s141
      %s142 = sphi 0, %s139
      %s143 = sphi 0, %s142
      %s159 = sphi 0, %s143
      %s165 = sphi 0, %s167
      %s168 = sphi 0, %s165
      %s169 = sphi 0, %s168
      %s185 = sphi 0, %s169
      %s191 = sphi 0, %s193
      %s194 = sphi 0, %s191
      %s195 = sphi 0, %s194
      %s211 = sphi 0, %s195
      %s217 = sphi 0, %s219
      %s220 = sphi 0, %s217
      %s221 = sphi 0, %s220
      %s237 = sphi 0, %s221
      %s243 = sphi 0, %s245
      %s246 = sphi 0, %s243
      %s247 = sphi 0, %s246
      %s263 = sphi 0, %s247
      %s267 = sphi 0, %s267
      %s269 = sphi 0, %s267
      %s270 = sphi 0, %s269
      %s284 = sphi 0, %s270
      %s288 = sphi 0, %s288
      %s290 = sphi 0, %s288
      %s291 = sphi 0, %s290
      %s305 = sphi 0, %s291
      %s309 = sphi 0, %s309
      %s311 = sphi 0, %s309
      %s312 = sphi 0, %s311
      %s326 = sphi 0, %s312
      %s330 = sphi 0, %s330
      %s332 = sphi 0, %s330
      %s333 = sphi 0, %s332
      %s347 = sphi 0, %s333
      %s351 = sphi 0, %s351
      %s353 = sphi 0, %s351
      %s354 = sphi 0, %s353
      %s368 = sphi 0, %s354
      %s374 = sphi 0, %s376
      %s377 = sphi 0, %s374
      %s378 = sphi 0, %s377
      %s394 = sphi 0, %s378
    $region4: #{enhanced_transformer_forward.1} parent=1 // loop_header_branch
      %26 = sbr.rel (%p24) target = $region8
    $region5: #{enhanced_transformer_forward.1} parent=1 // loop_body
      %s28 = ssub.s32 %s23, 1
      %s29 = ssub.s32 %s23, 2
      %s36 = sadd.s32 1, %s31
      %p37 = scmp.ge.s32.totalorder %s36, 2
      %s38 = scalar_select %p37, 0, %s36
      %s39 = sadd.s32 1, %s30
      %s40 = scalar_select %p37, %s39, %s30
      %p41 = scmp.ge.s32.totalorder %s40, 2
      %s42 = scalar_select %p41, 0, %s40
      %s43 = ssub.s32 %s30, %s42
      %p44 = scmp.eq.s32.totalorder %s43, 0
      %s46 = sadd.s32 %s45, 1
      %s47 = scalar_select %p44, %s45, %s46
      %p50 = pneg %p44
      %p51 = scmp.eq.s32.totalorder %s23, 3
      %p52 = por %p50, %p51
      %p53 = scmp.ne.s32.totalorder %s45, %s48
      %p54 = scmp.eq.s32.totalorder %s23, 0
      %p55 = por %p53, %p54
      %p56 = scmp.ne.s32.totalorder %s45, %s48
      %p57 = scmp.eq.s32.totalorder %s28, 3
      %p58 = por %p56, %p57
      %p59 = scmp.ne.s32.totalorder %s48, %s49
      %p60 = scmp.eq.s32.totalorder %s28, 0
      %p61 = por %p59, %p60
      %p62 = scmp.ne.s32.totalorder %s48, %s49
      %p63 = scmp.eq.s32.totalorder %s29, 3
      %p64 = por %p62, %p63
      %p66 = scmp.ne.s32.totalorder %s49, %s65
      %p67 = scmp.eq.s32.totalorder %s29, 0
      %p68 = por %p66, %p67
      %s70 = sadd.s32 %s69, 1
      %p73 = scmp.eq.s32.totalorder %s23, 3
      %p74 = scmp.ne.s32.totalorder %s69, %s71
      %p75 = scmp.eq.s32.totalorder %s23, 0
      %p76 = por %p74, %p75
      %p77 = scmp.ne.s32.totalorder %s69, %s71
      %p78 = scmp.eq.s32.totalorder %s28, 3
      %p79 = por %p77, %p78
      %p80 = scmp.ne.s32.totalorder %s71, %s72
      %p81 = scmp.eq.s32.totalorder %s28, 0
      %p82 = por %p80, %p81
      %p83 = scmp.ne.s32.totalorder %s71, %s72
      %p84 = scmp.eq.s32.totalorder %s29, 3
      %p85 = por %p83, %p84
      %p87 = scmp.ne.s32.totalorder %s72, %s86
      %p88 = scmp.eq.s32.totalorder %s29, 0
      %p89 = por %p87, %p88
      %s90 = ssub.s32 %s30, %s42
      %p91 = scmp.eq.s32.totalorder %s90, 0
      %s93 = sadd.s32 %s92, 1
      %s94 = scalar_select %p91, %s92, %s93
      %p97 = pneg %p91
      %p98 = scmp.eq.s32.totalorder %s23, 3
      %p99 = por %p97, %p98
      %p100 = scmp.ne.s32.totalorder %s92, %s95
      %p101 = scmp.eq.s32.totalorder %s23, 0
      %p102 = por %p100, %p101
      %p103 = scmp.ne.s32.totalorder %s92, %s95
      %p104 = scmp.eq.s32.totalorder %s28, 3
      %p105 = por %p103, %p104
      %p106 = scmp.ne.s32.totalorder %s95, %s96
      %p107 = scmp.eq.s32.totalorder %s28, 0
      %p108 = por %p106, %p107
      %p109 = scmp.ne.s32.totalorder %s95, %s96
      %p110 = scmp.eq.s32.totalorder %s29, 3
      %p111 = por %p109, %p110
      %p113 = scmp.ne.s32.totalorder %s96, %s112
      %p114 = scmp.eq.s32.totalorder %s29, 0
      %p115 = por %p113, %p114
      %s117 = sadd.s32 %s116, 1
      %p120 = scmp.eq.s32.totalorder %s23, 3
      %p121 = scmp.ne.s32.totalorder %s116, %s118
      %p122 = scmp.eq.s32.totalorder %s23, 0
      %p123 = por %p121, %p122
      %p124 = scmp.ne.s32.totalorder %s116, %s118
      %p125 = scmp.eq.s32.totalorder %s28, 3
      %p126 = por %p124, %p125
      %p127 = scmp.ne.s32.totalorder %s118, %s119
      %p128 = scmp.eq.s32.totalorder %s28, 0
      %p129 = por %p127, %p128
      %p130 = scmp.ne.s32.totalorder %s118, %s119
      %p131 = scmp.eq.s32.totalorder %s29, 3
      %p132 = por %p130, %p131
      %p134 = scmp.ne.s32.totalorder %s119, %s133
      %p135 = scmp.eq.s32.totalorder %s29, 0
      %p136 = por %p134, %p135
      %s137 = ssub.s32 %s31, %s38
      %p138 = scmp.eq.s32.totalorder %s137, 0
      %s140 = sadd.s32 %s139, 1
      %s141 = scalar_select %p138, %s139, %s140
      %p144 = pneg %p138
      %p145 = scmp.eq.s32.totalorder %s23, 3
      %p146 = por %p144, %p145
      %p147 = scmp.ne.s32.totalorder %s139, %s142
      %p148 = scmp.eq.s32.totalorder %s23, 0
      %p149 = por %p147, %p148
      %p150 = scmp.ne.s32.totalorder %s139, %s142
      %p151 = scmp.eq.s32.totalorder %s28, 3
      %p152 = por %p150, %p151
      %p153 = scmp.ne.s32.totalorder %s142, %s143
      %p154 = scmp.eq.s32.totalorder %s28, 0
      %p155 = por %p153, %p154
      %p156 = scmp.ne.s32.totalorder %s142, %s143
      %p157 = scmp.eq.s32.totalorder %s29, 3
      %p158 = por %p156, %p157
      %p160 = scmp.ne.s32.totalorder %s143, %s159
      %p161 = scmp.eq.s32.totalorder %s29, 0
      %p162 = por %p160, %p161
      %s163 = ssub.s32 %s31, %s38
      %p164 = scmp.eq.s32.totalorder %s163, 0
      %s166 = sadd.s32 %s165, 1
      %s167 = scalar_select %p164, %s165, %s166
      %p170 = pneg %p164
      %p171 = scmp.eq.s32.totalorder %s23, 3
      %p172 = por %p170, %p171
      %p173 = scmp.ne.s32.totalorder %s165, %s168
      %p174 = scmp.eq.s32.totalorder %s23, 0
      %p175 = por %p173, %p174
      %p176 = scmp.ne.s32.totalorder %s165, %s168
      %p177 = scmp.eq.s32.totalorder %s28, 3
      %p178 = por %p176, %p177
      %p179 = scmp.ne.s32.totalorder %s168, %s169
      %p180 = scmp.eq.s32.totalorder %s28, 0
      %p181 = por %p179, %p180
      %p182 = scmp.ne.s32.totalorder %s168, %s169
      %p183 = scmp.eq.s32.totalorder %s29, 3
      %p184 = por %p182, %p183
      %p186 = scmp.ne.s32.totalorder %s169, %s185
      %p187 = scmp.eq.s32.totalorder %s29, 0
      %p188 = por %p186, %p187
      %s189 = ssub.s32 %s31, %s38
      %p190 = scmp.eq.s32.totalorder %s189, 0
      %s192 = sadd.s32 %s191, 1
      %s193 = scalar_select %p190, %s191, %s192
      %p196 = pneg %p190
      %p197 = scmp.eq.s32.totalorder %s23, 3
      %p198 = por %p196, %p197
      %p199 = scmp.ne.s32.totalorder %s191, %s194
      %p200 = scmp.eq.s32.totalorder %s23, 0
      %p201 = por %p199, %p200
      %p202 = scmp.ne.s32.totalorder %s191, %s194
      %p203 = scmp.eq.s32.totalorder %s28, 3
      %p204 = por %p202, %p203
      %p205 = scmp.ne.s32.totalorder %s194, %s195
      %p206 = scmp.eq.s32.totalorder %s28, 0
      %p207 = por %p205, %p206
      %p208 = scmp.ne.s32.totalorder %s194, %s195
      %p209 = scmp.eq.s32.totalorder %s29, 3
      %p210 = por %p208, %p209
      %p212 = scmp.ne.s32.totalorder %s195, %s211
      %p213 = scmp.eq.s32.totalorder %s29, 0
      %p214 = por %p212, %p213
      %s215 = ssub.s32 %s31, %s38
      %p216 = scmp.eq.s32.totalorder %s215, 0
      %s218 = sadd.s32 %s217, 1
      %s219 = scalar_select %p216, %s217, %s218
      %p222 = pneg %p216
      %p223 = scmp.eq.s32.totalorder %s23, 3
      %p224 = por %p222, %p223
      %p225 = scmp.ne.s32.totalorder %s217, %s220
      %p226 = scmp.eq.s32.totalorder %s23, 0
      %p227 = por %p225, %p226
      %p228 = scmp.ne.s32.totalorder %s217, %s220
      %p229 = scmp.eq.s32.totalorder %s28, 3
      %p230 = por %p228, %p229
      %p231 = scmp.ne.s32.totalorder %s220, %s221
      %p232 = scmp.eq.s32.totalorder %s28, 0
      %p233 = por %p231, %p232
      %p234 = scmp.ne.s32.totalorder %s220, %s221
      %p235 = scmp.eq.s32.totalorder %s29, 3
      %p236 = por %p234, %p235
      %p238 = scmp.ne.s32.totalorder %s221, %s237
      %p239 = scmp.eq.s32.totalorder %s29, 0
      %p240 = por %p238, %p239
      %s241 = ssub.s32 %s31, %s38
      %p242 = scmp.eq.s32.totalorder %s241, 0
      %s244 = sadd.s32 %s243, 1
      %s245 = scalar_select %p242, %s243, %s244
      %p248 = pneg %p242
      %p249 = scmp.eq.s32.totalorder %s23, 3
      %p250 = por %p248, %p249
      %p251 = scmp.ne.s32.totalorder %s243, %s246
      %p252 = scmp.eq.s32.totalorder %s23, 0
      %p253 = por %p251, %p252
      %p254 = scmp.ne.s32.totalorder %s243, %s246
      %p255 = scmp.eq.s32.totalorder %s28, 3
      %p256 = por %p254, %p255
      %p257 = scmp.ne.s32.totalorder %s246, %s247
      %p258 = scmp.eq.s32.totalorder %s28, 0
      %p259 = por %p257, %p258
      %p260 = scmp.ne.s32.totalorder %s246, %s247
      %p261 = scmp.eq.s32.totalorder %s29, 3
      %p262 = por %p260, %p261
      %p264 = scmp.ne.s32.totalorder %s247, %s263
      %p265 = scmp.eq.s32.totalorder %s29, 0
      %p266 = por %p264, %p265
      %s268 = sadd.s32 %s267, 1
      %p271 = scmp.eq.s32.totalorder %s23, 3
      %p272 = scmp.ne.s32.totalorder %s267, %s269
      %p273 = scmp.eq.s32.totalorder %s23, 0
      %p274 = por %p272, %p273
      %p275 = scmp.ne.s32.totalorder %s267, %s269
      %p276 = scmp.eq.s32.totalorder %s28, 3
      %p277 = por %p275, %p276
      %p278 = scmp.ne.s32.totalorder %s269, %s270
      %p279 = scmp.eq.s32.totalorder %s28, 0
      %p280 = por %p278, %p279
      %p281 = scmp.ne.s32.totalorder %s269, %s270
      %p282 = scmp.eq.s32.totalorder %s29, 3
      %p283 = por %p281, %p282
      %p285 = scmp.ne.s32.totalorder %s270, %s284
      %p286 = scmp.eq.s32.totalorder %s29, 0
      %p287 = por %p285, %p286
      %s289 = sadd.s32 %s288, 1
      %p292 = scmp.eq.s32.totalorder %s23, 3
      %p293 = scmp.ne.s32.totalorder %s288, %s290
      %p294 = scmp.eq.s32.totalorder %s23, 0
      %p295 = por %p293, %p294
      %p296 = scmp.ne.s32.totalorder %s288, %s290
      %p297 = scmp.eq.s32.totalorder %s28, 3
      %p298 = por %p296, %p297
      %p299 = scmp.ne.s32.totalorder %s290, %s291
      %p300 = scmp.eq.s32.totalorder %s28, 0
      %p301 = por %p299, %p300
      %p302 = scmp.ne.s32.totalorder %s290, %s291
      %p303 = scmp.eq.s32.totalorder %s29, 3
      %p304 = por %p302, %p303
      %p306 = scmp.ne.s32.totalorder %s291, %s305
      %p307 = scmp.eq.s32.totalorder %s29, 0
      %p308 = por %p306, %p307
      %s310 = sadd.s32 %s309, 1
      %p313 = scmp.eq.s32.totalorder %s23, 3
      %p314 = scmp.ne.s32.totalorder %s309, %s311
      %p315 = scmp.eq.s32.totalorder %s23, 0
      %p316 = por %p314, %p315
      %p317 = scmp.ne.s32.totalorder %s309, %s311
      %p318 = scmp.eq.s32.totalorder %s28, 3
      %p319 = por %p317, %p318
      %p320 = scmp.ne.s32.totalorder %s311, %s312
      %p321 = scmp.eq.s32.totalorder %s28, 0
      %p322 = por %p320, %p321
      %p323 = scmp.ne.s32.totalorder %s311, %s312
      %p324 = scmp.eq.s32.totalorder %s29, 3
      %p325 = por %p323, %p324
      %p327 = scmp.ne.s32.totalorder %s312, %s326
      %p328 = scmp.eq.s32.totalorder %s29, 0
      %p329 = por %p327, %p328
      %s331 = sadd.s32 %s330, 1
      %p334 = scmp.eq.s32.totalorder %s23, 3
      %p335 = scmp.ne.s32.totalorder %s330, %s332
      %p336 = scmp.eq.s32.totalorder %s23, 0
      %p337 = por %p335, %p336
      %p338 = scmp.ne.s32.totalorder %s330, %s332
      %p339 = scmp.eq.s32.totalorder %s28, 3
      %p340 = por %p338, %p339
      %p341 = scmp.ne.s32.totalorder %s332, %s333
      %p342 = scmp.eq.s32.totalorder %s28, 0
      %p343 = por %p341, %p342
      %p344 = scmp.ne.s32.totalorder %s332, %s333
      %p345 = scmp.eq.s32.totalorder %s29, 3
      %p346 = por %p344, %p345
      %p348 = scmp.ne.s32.totalorder %s333, %s347
      %p349 = scmp.eq.s32.totalorder %s29, 0
      %p350 = por %p348, %p349
      %s352 = sadd.s32 %s351, 1
      %p355 = scmp.eq.s32.totalorder %s23, 3
      %p356 = scmp.ne.s32.totalorder %s351, %s353
      %p357 = scmp.eq.s32.totalorder %s23, 0
      %p358 = por %p356, %p357
      %p359 = scmp.ne.s32.totalorder %s351, %s353
      %p360 = scmp.eq.s32.totalorder %s28, 3
      %p361 = por %p359, %p360
      %p362 = scmp.ne.s32.totalorder %s353, %s354
      %p363 = scmp.eq.s32.totalorder %s28, 0
      %p364 = por %p362, %p363
      %p365 = scmp.ne.s32.totalorder %s353, %s354
      %p366 = scmp.eq.s32.totalorder %s29, 3
      %p367 = por %p365, %p366
      %p369 = scmp.ne.s32.totalorder %s354, %s368
      %p370 = scmp.eq.s32.totalorder %s29, 0
      %p371 = por %p369, %p370
      %s372 = ssub.s32 %s30, %s42
      %p373 = scmp.eq.s32.totalorder %s372, 0
      %s375 = sadd.s32 %s374, 1
      %s376 = scalar_select %p373, %s374, %s375
      %p379 = pneg %p373
      %p380 = scmp.eq.s32.totalorder %s23, 3
      %p381 = por %p379, %p380
      %p382 = scmp.ne.s32.totalorder %s374, %s377
      %p383 = scmp.eq.s32.totalorder %s23, 0
      %p384 = por %p382, %p383
      %p385 = scmp.ne.s32.totalorder %s374, %s377
      %p386 = scmp.eq.s32.totalorder %s28, 3
      %p387 = por %p385, %p386
      %p388 = scmp.ne.s32.totalorder %s377, %s378
      %p389 = scmp.eq.s32.totalorder %s28, 0
      %p390 = por %p388, %p389
      %p391 = scmp.ne.s32.totalorder %s377, %s378
      %p392 = scmp.eq.s32.totalorder %s29, 3
      %p393 = por %p391, %p392
      %p395 = scmp.ne.s32.totalorder %s378, %s394
      %p396 = scmp.eq.s32.totalorder %s29, 0
      %p397 = por %p395, %p396
      %p398 = scmp.le.s32.totalorder 1, %s23
      %p399 = scmp.lt.s32.totalorder %s23, 5
      %p400 = pnand %p398, %p399
      %p401 = pneg %p400
      // Predicated region
      $region9: #{enhanced_transformer_forward.1} parent=5 // pred_check
        _
      $region10: #{enhanced_transformer_forward.1} parent=5 // pred_check_branch
        %403 = sbr.rel (%p400) target = $region12
      $region11: #{enhanced_transformer_forward.1} parent=5 // pred_region
        %s404 = ssub.s32 %s23, 1
        // Predicated region
        $region13: #{enhanced_transformer_forward.1} parent=11 // pred_check
          %p405 = pneg %p82
        $region14: #{enhanced_transformer_forward.1} parent=11 // pred_check_branch
          %407 = sbr.rel (%p405) target = $region16
        $region15: #{enhanced_transformer_forward.1} parent=11 // pred_region
          _
        $region16: #{enhanced_transformer_forward.1} parent=11 // pred_fallthru
          _
        // Predicated region
        $region17: #{enhanced_transformer_forward.1} parent=11 // pred_check
          %p408 = pneg %p129
        $region18: #{enhanced_transformer_forward.1} parent=11 // pred_check_branch
          %410 = sbr.rel (%p408) target = $region20
        $region19: #{enhanced_transformer_forward.1} parent=11 // pred_region
          _
        $region20: #{enhanced_transformer_forward.1} parent=11 // pred_fallthru
          _
        // Predicated region
        $region21: #{enhanced_transformer_forward.1} parent=11 // pred_check
          %p411 = pneg %p280
        $region22: #{enhanced_transformer_forward.1} parent=11 // pred_check_branch
          %413 = sbr.rel (%p411) target = $region24
        $region23: #{enhanced_transformer_forward.1} parent=11 // pred_region
          _
        $region24: #{enhanced_transformer_forward.1} parent=11 // pred_fallthru
          _
        // Predicated region
        $region25: #{enhanced_transformer_forward.1} parent=11 // pred_check
          %p414 = pneg %p301
        $region26: #{enhanced_transformer_forward.1} parent=11 // pred_check_branch
          %416 = sbr.rel (%p414) target = $region28
        $region27: #{enhanced_transformer_forward.1} parent=11 // pred_region
          _
        $region28: #{enhanced_transformer_forward.1} parent=11 // pred_fallthru
          _
        // Predicated region
        $region29: #{enhanced_transformer_forward.1} parent=11 // pred_check
          %p417 = pneg %p322
        $region30: #{enhanced_transformer_forward.1} parent=11 // pred_check_branch
          %419 = sbr.rel (%p417) target = $region32
        $region31: #{enhanced_transformer_forward.1} parent=11 // pred_region
          _
        $region32: #{enhanced_transformer_forward.1} parent=11 // pred_fallthru
          _
        // Predicated region
        $region33: #{enhanced_transformer_forward.1} parent=11 // pred_check
          %p420 = pneg %p343
        $region34: #{enhanced_transformer_forward.1} parent=11 // pred_check_branch
          %422 = sbr.rel (%p420) target = $region36
        $region35: #{enhanced_transformer_forward.1} parent=11 // pred_region
          _
        $region36: #{enhanced_transformer_forward.1} parent=11 // pred_fallthru
          _
        // Predicated region
        $region37: #{enhanced_transformer_forward.1} parent=11 // pred_check
          %p423 = pneg %p364
        $region38: #{enhanced_transformer_forward.1} parent=11 // pred_check_branch
          %425 = sbr.rel (%p423) target = $region40
        $region39: #{enhanced_transformer_forward.1} parent=11 // pred_region
          _
        $region40: #{enhanced_transformer_forward.1} parent=11 // pred_fallthru
          _
      $region12: #{enhanced_transformer_forward.1} parent=5 // pred_fallthru
        _
      %p426 = scmp.lt.s32.totalorder %s23, 4
      // Predicated region
      $region41: #{enhanced_transformer_forward.1} parent=5 // pred_check
        %p427 = pneg %p426
      $region42: #{enhanced_transformer_forward.1} parent=5 // pred_check_branch
        %429 = sbr.rel (%p427) target = $region44
      $region43: #{enhanced_transformer_forward.1} parent=5 // pred_region
        // Predicated region
        $region45: #{enhanced_transformer_forward.1} parent=43 // pred_check
          %p430 = pneg %p55
        $region46: #{enhanced_transformer_forward.1} parent=43 // pred_check_branch
          %432 = sbr.rel (%p430) target = $region48
        $region47: #{enhanced_transformer_forward.1} parent=43 // pred_region
          %p433 = scmp.lt.s32.totalorder %s30, 1
          %s434 = scalar_select %p433, %s30, 1
          %s435 = smul.addr %s434, 10
          %s436 = smul.addr %s435, 8
          %s437 = scalar_lea.vmem %s0, %s436
        $region48: #{enhanced_transformer_forward.1} parent=43 // pred_fallthru
          _
        // Predicated region
        $region49: #{enhanced_transformer_forward.1} parent=43 // pred_check
          %p438 = pneg %p102
        $region50: #{enhanced_transformer_forward.1} parent=43 // pred_check_branch
          %440 = sbr.rel (%p438) target = $region52
        $region51: #{enhanced_transformer_forward.1} parent=43 // pred_region
          %p441 = scmp.lt.s32.totalorder %s30, 1
          %s442 = scalar_select %p441, %s30, 1
          %s443 = smul.addr %s442, 20
          %s444 = scalar_lea.vmem %s2, %s443
        $region52: #{enhanced_transformer_forward.1} parent=43 // pred_fallthru
          _
        // Predicated region
        $region53: #{enhanced_transformer_forward.1} parent=43 // pred_check
          %p445 = pneg %p149
        $region54: #{enhanced_transformer_forward.1} parent=43 // pred_check_branch
          %447 = sbr.rel (%p445) target = $region56
        $region55: #{enhanced_transformer_forward.1} parent=43 // pred_region
          %p448 = scmp.lt.s32.totalorder %s31, 1
          %s449 = scalar_select %p448, %s31, 1
          %s450 = smul.addr %s449, 48
          %s451 = smul.addr %s450, 4
          %s452 = scalar_lea.vmem %s4, %s451
        $region56: #{enhanced_transformer_forward.1} parent=43 // pred_fallthru
          _
        // Predicated region
        $region57: #{enhanced_transformer_forward.1} parent=43 // pred_check
          %p453 = pneg %p175
        $region58: #{enhanced_transformer_forward.1} parent=43 // pred_check_branch
          %455 = sbr.rel (%p453) target = $region60
        $region59: #{enhanced_transformer_forward.1} parent=43 // pred_region
          %p456 = scmp.lt.s32.totalorder %s31, 1
          %s457 = scalar_select %p456, %s31, 1
          %s458 = smul.addr %s457, 16
          %s459 = smul.addr %s458, 4
          %s460 = scalar_lea.vmem %s5, %s459
        $region60: #{enhanced_transformer_forward.1} parent=43 // pred_fallthru
          _
        // Predicated region
        $region61: #{enhanced_transformer_forward.1} parent=43 // pred_check
          %p461 = pneg %p201
        $region62: #{enhanced_transformer_forward.1} parent=43 // pred_check_branch
          %463 = sbr.rel (%p461) target = $region64
        $region63: #{enhanced_transformer_forward.1} parent=43 // pred_region
          %p464 = scmp.lt.s32.totalorder %s31, 1
          %s465 = scalar_select %p464, %s31, 1
          %s466 = smul.addr %s465, 32
          %s467 = smul.addr %s466, 4
          %s468 = scalar_lea.vmem %s6, %s467
        $region64: #{enhanced_transformer_forward.1} parent=43 // pred_fallthru
          _
        // Predicated region
        $region65: #{enhanced_transformer_forward.1} parent=43 // pred_check
          %p469 = pneg %p227
        $region66: #{enhanced_transformer_forward.1} parent=43 // pred_check_branch
          %471 = sbr.rel (%p469) target = $region68
        $region67: #{enhanced_transformer_forward.1} parent=43 // pred_region
          %p472 = scmp.lt.s32.totalorder %s31, 1
          %s473 = scalar_select %p472, %s31, 1
          %s474 = smul.addr %s473, 32
          %s475 = smul.addr %s474, 4
          %s476 = scalar_lea.vmem %s7, %s475
        $region68: #{enhanced_transformer_forward.1} parent=43 // pred_fallthru
          _
        // Predicated region
        $region69: #{enhanced_transformer_forward.1} parent=43 // pred_check
          %p477 = pneg %p253
        $region70: #{enhanced_transformer_forward.1} parent=43 // pred_check_branch
          %479 = sbr.rel (%p477) target = $region72
        $region71: #{enhanced_transformer_forward.1} parent=43 // pred_region
          %p480 = scmp.lt.s32.totalorder %s31, 1
          %s481 = scalar_select %p480, %s31, 1
          %s482 = smul.addr %s481, 3
          %s483 = smul.addr %s482, 8
          %s484 = scalar_lea.vmem %s8, %s483
        $region72: #{enhanced_transformer_forward.1} parent=43 // pred_fallthru
          _
      $region44: #{enhanced_transformer_forward.1} parent=5 // pred_fallthru
        _
      %p485 = scmp.le.s32.totalorder 1, %s23
      %p486 = scmp.lt.s32.totalorder %s23, 5
      %p487 = pnand %p485, %p486
      %p488 = pneg %p487
      // Predicated region
      $region73: #{enhanced_transformer_forward.1} parent=5 // pred_check
        _
      $region74: #{enhanced_transformer_forward.1} parent=5 // pred_check_branch
        %490 = sbr.rel (%p487) target = $region76
      $region75: #{enhanced_transformer_forward.1} parent=5 // pred_region
        %s491 = ssub.s32 %s23, 1
        %p492 = scmp.lt.s32.totalorder %s32, 1
        %s493 = scalar_select %p492, %s32, 1
        %s494 = smul.addr %s493, 10
        %s495 = smul.addr %s494, 8
        %s496 = scalar_lea.vmem %s0, %s495
        %p497 = pneg %p61
        %p498 = pneg %p58
        %p499 = pneg %p82
        %p500 = pneg %p79
        %p501 = scmp.lt.s32.totalorder %s32, 1
        %s502 = scalar_select %p501, %s32, 1
        %s503 = smul.addr %s502, 20
        %s504 = scalar_lea.vmem %s2, %s503
        %p505 = pneg %p108
        %p506 = pneg %p105
        %p507 = pneg %p129
        %p508 = pneg %p126
        %p509 = scmp.lt.s32.totalorder %s33, 1
        %s510 = scalar_select %p509, %s33, 1
        %s511 = smul.addr %s510, 48
        %s512 = smul.addr %s511, 4
        %s513 = scalar_lea.vmem %s4, %s512
        %p514 = pneg %p155
        %p515 = pneg %p152
        %p516 = scmp.lt.s32.totalorder %s33, 1
        %s517 = scalar_select %p516, %s33, 1
        %s518 = smul.addr %s517, 16
        %s519 = smul.addr %s518, 4
        %s520 = scalar_lea.vmem %s5, %s519
        %p521 = pneg %p181
        %p522 = pneg %p178
        %p523 = scmp.lt.s32.totalorder %s33, 1
        %s524 = scalar_select %p523, %s33, 1
        %s525 = smul.addr %s524, 32
        %s526 = smul.addr %s525, 4
        %s527 = scalar_lea.vmem %s6, %s526
        %p528 = pneg %p207
        %p529 = pneg %p204
        %p530 = scmp.lt.s32.totalorder %s33, 1
        %s531 = scalar_select %p530, %s33, 1
        %s532 = smul.addr %s531, 32
        %s533 = smul.addr %s532, 4
        %s534 = scalar_lea.vmem %s7, %s533
        %p535 = pneg %p233
        %p536 = pneg %p230
        %p537 = scmp.lt.s32.totalorder %s33, 1
        %s538 = scalar_select %p537, %s33, 1
        %s539 = smul.addr %s538, 3
        %s540 = smul.addr %s539, 8
        %s541 = scalar_lea.vmem %s8, %s540
        %p542 = pneg %p259
        %p543 = pneg %p256
        %p544 = pneg %p280
        %p545 = pneg %p277
        %p546 = pneg %p301
        %p547 = pneg %p298
        %p548 = pneg %p322
        %p549 = pneg %p319
        %p550 = pneg %p343
        %p551 = pneg %p340
        %p552 = pneg %p364
        %p553 = pneg %p361
        %p554 = pneg %p390
        %p555 = pneg %p387
        %s556 = sand.u32 %s377, 1
        %s557 = scalar_lea.sflag [#allocation4], %s556
        %s558 = sand.u32 %s377, 1
        %s559 = scalar_lea.vmem [#allocation3], %s558
        %p560 = scmp.lt.s32.totalorder %s32, 1
        %s561 = scalar_select %p560, %s32, 1
        %s562 = smul.addr %s561, 10
        %s563 = smul.addr %s562, 8
        %s564 = scalar_lea.vmem %s0, %s563
        %p565 = scmp.lt.s32.totalorder %s32, 1
        %s566 = scalar_select %p565, %s32, 1
        %s567 = smul.addr %s566, 20
        %s568 = scalar_lea.vmem %s2, %s567
        %p569 = scmp.lt.s32.totalorder %s33, 1
        %s570 = scalar_select %p569, %s33, 1
        %s571 = smul.addr %s570, 48
        %s572 = smul.addr %s571, 4
        %s573 = scalar_lea.vmem %s4, %s572
        %p574 = scmp.lt.s32.totalorder %s33, 1
        %s575 = scalar_select %p574, %s33, 1
        %s576 = smul.addr %s575, 16
        %s577 = smul.addr %s576, 4
        %s578 = scalar_lea.vmem %s5, %s577
        %p579 = scmp.lt.s32.totalorder %s33, 1
        %s580 = scalar_select %p579, %s33, 1
        %s581 = smul.addr %s580, 32
        %s582 = smul.addr %s581, 4
        %s583 = scalar_lea.vmem %s6, %s582
        %p584 = scmp.lt.s32.totalorder %s33, 1
        %s585 = scalar_select %p584, %s33, 1
        %s586 = smul.addr %s585, 32
        %s587 = smul.addr %s586, 4
        %s588 = scalar_lea.vmem %s7, %s587
        %p589 = scmp.lt.s32.totalorder %s33, 1
        %s590 = scalar_select %p589, %s33, 1
        %s591 = smul.addr %s590, 3
        %s592 = smul.addr %s591, 8
        %s593 = scalar_lea.vmem %s8, %s592
        %p595 = scmp.eq.s32.totalorder %s33, 0
        // Predicated region
        $region77: #{enhanced_transformer_forward.1} parent=75 // pred_check
          %p596 = pneg %p595
        $region78: #{enhanced_transformer_forward.1} parent=75 // pred_check_branch
          %598 = sbr.rel (%p596) target = $region80
        $region79: #{enhanced_transformer_forward.1} parent=75 // pred_region
          %v599 = vld [vmem:[%s564] sm:$0xff]
          %v600 = vld [vmem:[%s564 + $0x8] sm:$0xff]
          %v601 = vld [vmem:[%s564 + $0x10] sm:$0xff]
          %v602 = vld [vmem:[%s564 + $0x18] sm:$0xff]
          %v603 = vld [vmem:[%s564 + $0x20] sm:$0xff]
          %v604 = vld [vmem:[%s564 + $0x28] sm:$0xff]
          %v605 = vld [vmem:[%s564 + $0x30] sm:$0xff]
          %v606 = vld [vmem:[%s564 + $0x38] sm:$0xff]
          %v607 = vld [vmem:[%s564 + $0x40] sm:$0xff]
          %v608 = vld [vmem:[%s564 + $0x48] sm:$0xff]
          %v609 = vpack.c.bf16 %v600, %v599
          %v610 = vpack.c.bf16 %v602, %v601
          %v611 = vpack.c.bf16 %v604, %v603
          %v612 = vpack.c.bf16 %v606, %v605
          %v613 = vpack.c.bf16 %v608, %v607
          %v614 = vld [vmem:[%s3] sm:$0xf]
          %v615 = vld [vmem:[%s3 + $0x4] sm:$0xf]
          %v616 = vld [vmem:[%s3 + $0x8] sm:$0xf]
          %v617 = vld [vmem:[%s3 + $0xc] sm:$0xf]
          %v618 = vld [vmem:[%s3 + $0x10] sm:$0xf]
          %v619 = vld [vmem:[%s3 + $0x14] sm:$0xf]
          %v620 = vld [vmem:[%s3 + $0x18] sm:$0xf]
          %v621 = vld [vmem:[%s3 + $0x1c] sm:$0xf]
          %v622 = vld [vmem:[%s3 + $0x20] sm:$0xf]
          %v623 = vld [vmem:[%s3 + $0x24] sm:$0xf]
          %v624 = vld [vmem:[%s3 + $0x28] sm:$0xf]
          %v625 = vld [vmem:[%s3 + $0x2c] sm:$0xf]
          %v626 = vld [vmem:[%s3 + $0x30] sm:$0xf]
          %v627 = vld [vmem:[%s3 + $0x34] sm:$0xf]
          %v628 = vld [vmem:[%s3 + $0x38] sm:$0xf]
          %v629 = vld [vmem:[%s3 + $0x3c] sm:$0xf]
          %v630 = vld [vmem:[%s1] sm:$0xff]
          %v631 = vld [vmem:[%s1 + $0x8] sm:$0xff]
          %v632 = vld [vmem:[%s1 + $0x10] sm:$0xff]
          %v633 = vld [vmem:[%s1 + $0x18] sm:$0xff]
          %v634 = vld [vmem:[%s1 + $0x20] sm:$0xff]
          %v635 = vld [vmem:[%s1 + $0x28] sm:$0xff]
          %v636 = vld [vmem:[%s1 + $0x30] sm:$0xff]
          %v637 = vld [vmem:[%s1 + $0x38] sm:$0xff]
          %v638 = vld [vmem:[%s1 + $0x40] sm:$0xff]
          %v639 = vld [vmem:[%s1 + $0x48] sm:$0xff]
          %v656 = vunpack.c.l.b16 %v614
          %v657 = vunpack.c.l.b16 %v615
          %v658 = vunpack.c.l.b16 %v616
          %v659 = vunpack.c.l.b16 %v617
          %v660 = vunpack.c.l.b16 %v618
          %v661 = vunpack.c.l.b16 %v619
          %v662 = vunpack.c.l.b16 %v620
          %v663 = vunpack.c.l.b16 %v621
          %v664 = vunpack.c.l.b16 %v622
          %v665 = vunpack.c.l.b16 %v623
          %v666 = vunpack.c.l.b16 %v624
          %v667 = vunpack.c.l.b16 %v625
          %v668 = vunpack.c.l.b16 %v626
          %v669 = vunpack.c.l.b16 %v627
          %v670 = vunpack.c.l.b16 %v628
          %v671 = vunpack.c.l.b16 %v629
          %v672 = vpack.c.b16 %v657, %v656
          %v673 = vpack.c.b16 %v659, %v658
          %v674 = vpack.c.b16 %v661, %v660
          %v675 = vpack.c.b16 %v663, %v662
          %v676 = vpack.c.b16 %v665, %v664
          %v677 = vpack.c.b16 %v667, %v666
          %v678 = vpack.c.b16 %v669, %v668
          %v679 = vpack.c.b16 %v671, %v670
          %688 = vmatprep.subr.bf16.mxu0 0
          %689 = vmatpush1.bf16.msra.mxu0 %v679
          %690 = vmatprep.subr.bf16.mxu0 0
          %691 = vmatpush1.bf16.msra.mxu0 %v678
          %692 = vmatprep.subr.bf16.mxu0 0
          %693 = vmatpush1.bf16.msra.mxu0 %v677
          %694 = vmatprep.subr.bf16.mxu0 0
          %695 = vmatpush1.bf16.msra.mxu0 %v676
          %696 = vmatprep.subr.bf16.mxu0 0
          %697 = vmatpush1.bf16.msra.mxu0 %v675
          %698 = vmatprep.subr.bf16.mxu0 0
          %699 = vmatpush1.bf16.msra.mxu0 %v674
          %700 = vmatprep.subr.bf16.mxu0 0
          %701 = vmatpush1.bf16.msra.mxu0 %v673
          %702 = vmatprep.subr.bf16.mxu0 0
          %703 = vmatpush1.bf16.msra.mxu0 %v672
          %704 = vmatprep.subr.bf16.mxu0 0
          %705 = vmatpush2.bf16.msra.mxu0 0
          %706 = vmatprep.subr.bf16.mxu0 0
          %707 = vmatpush2.bf16.msra.mxu0 0
          %708 = vmatprep.subr.bf16.mxu0 0
          %709 = vmatpush2.bf16.msra.mxu0 0
          %710 = vmatprep.subr.bf16.mxu0 0
          %711 = vmatpush2.bf16.msra.mxu0 0
          %712 = vmatprep.subr.bf16.mxu0 0
          %713 = vmatpush2.bf16.msra.mxu0 0
          %714 = vmatprep.subr.bf16.mxu0 0
          %715 = vmatpush2.bf16.msra.mxu0 0
          %716 = vmatprep.subr.bf16.mxu0 0
          %717 = vmatpush2.bf16.msra.mxu0 0
          %718 = vmatprep.subr.bf16.mxu0 0
          %719 = vmatpush2.bf16.msra.mxu0 0
          %720 = vmatprep.mubr.bf16.mxu0 0
          %721 = vmatmul.mubr.bf16.gmra.mxu0 %v609
          %v722 = vpop.f32.mrf.mxu0
          %v723 = vadd.f32 %v630, %v722
          %v724 = vpop.f32.mrf.mxu0
          %v725 = vpop.f32.mrf.mxu0
          %v726 = vadd.f32 %v631, %v725
          %v727 = vpop.f32.mrf.mxu0
          %728 = vmatprep.mubr.bf16.mxu0 0
          %729 = vmatmul.mubr.bf16.gmra.mxu0 %v610
          %v730 = vpop.f32.mrf.mxu0
          %v731 = vadd.f32 %v632, %v730
          %v732 = vpop.f32.mrf.mxu0
          %v733 = vpop.f32.mrf.mxu0
          %v734 = vadd.f32 %v633, %v733
          %v735 = vpop.f32.mrf.mxu0
          %736 = vmatprep.mubr.bf16.mxu0 0
          %737 = vmatmul.mubr.bf16.gmra.mxu0 %v611
          %v738 = vpop.f32.mrf.mxu0
          %v739 = vadd.f32 %v634, %v738
          %v740 = vpop.f32.mrf.mxu0
          %v741 = vpop.f32.mrf.mxu0
          %v742 = vadd.f32 %v635, %v741
          %v743 = vpop.f32.mrf.mxu0
          %744 = vmatprep.mubr.bf16.mxu0 0
          %745 = vmatmul.mubr.bf16.gmra.mxu0 %v612
          %v746 = vpop.f32.mrf.mxu0
          %v747 = vadd.f32 %v636, %v746
          %v748 = vpop.f32.mrf.mxu0
          %v749 = vpop.f32.mrf.mxu0
          %v750 = vadd.f32 %v637, %v749
          %v751 = vpop.f32.mrf.mxu0
          %752 = vmatprep.mubr.bf16.mxu0 0
          %753 = vmatmul.mubr.bf16.gmra.mxu0 %v613
          %v754 = vpop.f32.mrf.mxu0
          %v755 = vadd.f32 %v638, %v754
          %v756 = vpop.f32.mrf.mxu0
          %v757 = vpop.f32.mrf.mxu0
          %v758 = vadd.f32 %v639, %v757
          %v759 = vpop.f32.mrf.mxu0
          %760 = vdwg.mxu0
          %761 = vst [vmem:[#allocation2] sm:$0xff] %v723
          %762 = vst [vmem:[#allocation2 + $0x8] sm:$0xff] %v726
          %763 = vst [vmem:[#allocation2 + $0x10] sm:$0xff] %v731
          %764 = vst [vmem:[#allocation2 + $0x18] sm:$0xff] %v734
          %765 = vst [vmem:[#allocation2 + $0x20] sm:$0xff] %v739
          %766 = vst [vmem:[#allocation2 + $0x28] sm:$0xff] %v742
          %767 = vst [vmem:[#allocation2 + $0x30] sm:$0xff] %v747
          %768 = vst [vmem:[#allocation2 + $0x38] sm:$0xff] %v750
          %769 = vst [vmem:[#allocation2 + $0x40] sm:$0xff] %v755
          %770 = vst [vmem:[#allocation2 + $0x48] sm:$0xff] %v758
        $region80: #{enhanced_transformer_forward.1} parent=75 // pred_fallthru
          _
        %v771 = vld [vmem:[%s593] ss:$8 sm:$0x7]
        %v772 = vld [vmem:[%s593 + $0x1] ss:$0 sm:$0xff]
        %v773 = vld [vmem:[%s593 + $0x2] ss:$0 sm:$0xff]
        %v774 = vld [vmem:[%s593 + $0x3] ss:$0 sm:$0xff]
        %s775 = scalar_lea.vmem %s593, 4
        %v776 = vld [vmem:[%s775] ss:$8 sm:$0x3]
        %v777 = vld [vmem:[%s593 + $0x5] ss:$0 sm:$0xff]
        %v778 = vld [vmem:[%s593 + $0x6] ss:$0 sm:$0xff]
        %v779 = vld [vmem:[%s593 + $0x7] ss:$0 sm:$0xff]
        %v780 = vld [vmem:[#allocation2] sm:$0xff]
        %v781 = vld [vmem:[#allocation2 + $0x8] sm:$0xff]
        %v782 = vld [vmem:[#allocation2 + $0x10] sm:$0xff]
        %v783 = vld [vmem:[#allocation2 + $0x18] sm:$0xff]
        %v784 = vld [vmem:[#allocation2 + $0x20] sm:$0xff]
        %v785 = vld [vmem:[#allocation2 + $0x28] sm:$0xff]
        %v786 = vld [vmem:[#allocation2 + $0x30] sm:$0xff]
        %v787 = vld [vmem:[#allocation2 + $0x38] sm:$0xff]
        %v788 = vld [vmem:[#allocation2 + $0x40] sm:$0xff]
        %v789 = vld [vmem:[#allocation2 + $0x48] sm:$0xff]
        %v790 = vpack.c.bf16 %v781, %v780
        %v791 = vpack.c.bf16 %v783, %v782
        %v792 = vpack.c.bf16 %v785, %v784
        %v793 = vpack.c.bf16 %v787, %v786
        %v794 = vpack.c.bf16 %v789, %v788
        %v795 = vld [vmem:[%s573] sm:$0xff]
        %v796 = vld [vmem:[%s573 + $0x8] sm:$0xf]
        %v797 = vld [vmem:[%s573 + $0xc] sm:$0xff]
        %v798 = vld [vmem:[%s573 + $0x14] sm:$0xf]
        %v799 = vld [vmem:[%s573 + $0x18] sm:$0xff]
        %v800 = vld [vmem:[%s573 + $0x20] sm:$0xf]
        %v801 = vld [vmem:[%s573 + $0x24] sm:$0xff]
        %v802 = vld [vmem:[%s573 + $0x2c] sm:$0xf]
        %v803 = vld [vmem:[%s573 + $0x30] sm:$0xff]
        %v804 = vld [vmem:[%s573 + $0x38] sm:$0xf]
        %v805 = vld [vmem:[%s573 + $0x3c] sm:$0xff]
        %v806 = vld [vmem:[%s573 + $0x44] sm:$0xf]
        %v807 = vld [vmem:[%s573 + $0x48] sm:$0xff]
        %v808 = vld [vmem:[%s573 + $0x50] sm:$0xf]
        %v809 = vld [vmem:[%s573 + $0x54] sm:$0xff]
        %v810 = vld [vmem:[%s573 + $0x5c] sm:$0xf]
        %v811 = vld [vmem:[%s573 + $0x60] sm:$0xff]
        %v812 = vld [vmem:[%s573 + $0x68] sm:$0xf]
        %v813 = vld [vmem:[%s573 + $0x6c] sm:$0xff]
        %v814 = vld [vmem:[%s573 + $0x74] sm:$0xf]
        %v815 = vld [vmem:[%s573 + $0x78] sm:$0xff]
        %v816 = vld [vmem:[%s573 + $0x80] sm:$0xf]
        %v817 = vld [vmem:[%s573 + $0x84] sm:$0xff]
        %v818 = vld [vmem:[%s573 + $0x8c] sm:$0xf]
        %v819 = vld [vmem:[%s573 + $0x90] sm:$0xff]
        %v820 = vld [vmem:[%s573 + $0x98] sm:$0xf]
        %v821 = vld [vmem:[%s573 + $0x9c] sm:$0xff]
        %v822 = vld [vmem:[%s573 + $0xa4] sm:$0xf]
        %v823 = vld [vmem:[%s573 + $0xa8] sm:$0xff]
        %v824 = vld [vmem:[%s573 + $0xb0] sm:$0xf]
        %v825 = vld [vmem:[%s573 + $0xb4] sm:$0xff]
        %v826 = vld [vmem:[%s573 + $0xbc] sm:$0xf]
        %v828 = vlaneseq
        %v829 = vshrl.u32 %v828, 7
        %v830 = vsub.s32 0, %v829
        %v831 = vrot.slane %v771, %v830
        %v832 = vlaneseq
        %v833 = vshrl.u32 %v832, 7
        %v834 = vsub.s32 1, %v833
        %v835 = vrot.slane %v771, %v834
        %v836 = vlaneseq
        %v837 = vshrl.u32 %v836, 7
        %v838 = vsub.s32 2, %v837
        %v839 = vrot.slane %v771, %v838
        %v875 = vunpack.c.l.b16 %v795
        %v876 = vunpack.c.h.b16 %v795
        %v877 = vunpack.c.l.b16 %v796
        %v878 = vunpack.c.l.b16 %v797
        %v879 = vunpack.c.h.b16 %v797
        %v880 = vunpack.c.l.b16 %v798
        %v881 = vunpack.c.l.b16 %v799
        %v882 = vunpack.c.h.b16 %v799
        %v883 = vunpack.c.l.b16 %v800
        %v884 = vunpack.c.l.b16 %v801
        %v885 = vunpack.c.h.b16 %v801
        %v886 = vunpack.c.l.b16 %v802
        %v887 = vunpack.c.l.b16 %v803
        %v888 = vunpack.c.h.b16 %v803
        %v889 = vunpack.c.l.b16 %v804
        %v890 = vunpack.c.l.b16 %v805
        %v891 = vunpack.c.h.b16 %v805
        %v892 = vunpack.c.l.b16 %v806
        %v893 = vunpack.c.l.b16 %v807
        %v894 = vunpack.c.h.b16 %v807
        %v895 = vunpack.c.l.b16 %v808
        %v896 = vunpack.c.l.b16 %v809
        %v897 = vunpack.c.h.b16 %v809
        %v898 = vunpack.c.l.b16 %v810
        %v899 = vunpack.c.l.b16 %v811
        %v900 = vunpack.c.h.b16 %v811
        %v901 = vunpack.c.l.b16 %v812
        %v902 = vunpack.c.l.b16 %v813
        %v903 = vunpack.c.h.b16 %v813
        %v904 = vunpack.c.l.b16 %v814
        %v905 = vunpack.c.l.b16 %v815
        %v906 = vunpack.c.h.b16 %v815
        %v907 = vunpack.c.l.b16 %v816
        %v908 = vunpack.c.l.b16 %v817
        %v909 = vunpack.c.h.b16 %v817
        %v910 = vunpack.c.l.b16 %v818
        %v911 = vunpack.c.l.b16 %v819
        %v912 = vunpack.c.h.b16 %v819
        %v913 = vunpack.c.l.b16 %v820
        %v914 = vunpack.c.l.b16 %v821
        %v915 = vunpack.c.h.b16 %v821
        %v916 = vunpack.c.l.b16 %v822
        %v917 = vunpack.c.l.b16 %v823
        %v918 = vunpack.c.h.b16 %v823
        %v919 = vunpack.c.l.b16 %v824
        %v920 = vunpack.c.l.b16 %v825
        %v921 = vunpack.c.h.b16 %v825
        %v922 = vunpack.c.l.b16 %v826
        %v923 = vpack.c.b16 %v878, %v875
        %v924 = vpack.c.b16 %v879, %v876
        %v925 = vpack.c.b16 %v880, %v877
        %v926 = vpack.c.b16 %v884, %v881
        %v927 = vpack.c.b16 %v885, %v882
        %v928 = vpack.c.b16 %v886, %v883
        %v929 = vpack.c.b16 %v890, %v887
        %v930 = vpack.c.b16 %v891, %v888
        %v931 = vpack.c.b16 %v892, %v889
        %v932 = vpack.c.b16 %v896, %v893
        %v933 = vpack.c.b16 %v897, %v894
        %v934 = vpack.c.b16 %v898, %v895
        %v935 = vpack.c.b16 %v902, %v899
        %v936 = vpack.c.b16 %v903, %v900
        %v937 = vpack.c.b16 %v904, %v901
        %v938 = vpack.c.b16 %v908, %v905
        %v939 = vpack.c.b16 %v909, %v906
        %v940 = vpack.c.b16 %v910, %v907
        %v941 = vpack.c.b16 %v914, %v911
        %v942 = vpack.c.b16 %v915, %v912
        %v943 = vpack.c.b16 %v916, %v913
        %v944 = vpack.c.b16 %v920, %v917
        %v945 = vpack.c.b16 %v921, %v918
        %v946 = vpack.c.b16 %v922, %v919
        %971 = vmatprep.subr.bf16.mxu0 %v945
        %972 = vmatpush1.bf16.msra.mxu0 %v944
        %973 = vmatprep.subr.bf16.mxu0 %v942
        %974 = vmatpush1.bf16.msra.mxu0 %v941
        %975 = vmatprep.subr.bf16.mxu0 %v939
        %976 = vmatpush1.bf16.msra.mxu0 %v938
        %977 = vmatprep.subr.bf16.mxu0 %v936
        %978 = vmatpush1.bf16.msra.mxu0 %v935
        %979 = vmatprep.subr.bf16.mxu0 %v933
        %980 = vmatpush1.bf16.msra.mxu0 %v932
        %981 = vmatprep.subr.bf16.mxu0 %v930
        %982 = vmatpush1.bf16.msra.mxu0 %v929
        %983 = vmatprep.subr.bf16.mxu0 %v927
        %984 = vmatpush1.bf16.msra.mxu0 %v926
        %985 = vmatprep.subr.bf16.mxu0 %v924
        %986 = vmatpush1.bf16.msra.mxu0 %v923
        %987 = vmatprep.subr.bf16.mxu0 0
        %988 = vmatpush2.bf16.msra.mxu0 0
        %989 = vmatprep.subr.bf16.mxu0 0
        %990 = vmatpush2.bf16.msra.mxu0 0
        %991 = vmatprep.subr.bf16.mxu0 0
        %992 = vmatpush2.bf16.msra.mxu0 0
        %993 = vmatprep.subr.bf16.mxu0 0
        %994 = vmatpush2.bf16.msra.mxu0 0
        %995 = vmatprep.subr.bf16.mxu0 0
        %996 = vmatpush2.bf16.msra.mxu0 0
        %997 = vmatprep.subr.bf16.mxu0 0
        %998 = vmatpush2.bf16.msra.mxu0 0
        %999 = vmatprep.subr.bf16.mxu0 0
        %1000 = vmatpush2.bf16.msra.mxu0 0
        %1001 = vmatprep.subr.bf16.mxu0 0
        %1002 = vmatpush2.bf16.msra.mxu0 0
        %1003 = vmatprep.mubr.bf16.mxu0 0
        %1004 = vmatmul.mubr.bf16.gmra.mxu0 %v790
        %v1005 = vpop.f32.mrf.mxu0
        %v1006 = vadd.f32 %v831, %v1005
        %v1007 = vpop.f32.mrf.mxu0
        %v1008 = vadd.f32 %v835, %v1007
        %v1009 = vpop.f32.mrf.mxu0
        %v1010 = vadd.f32 %v831, %v1009
        %v1011 = vpop.f32.mrf.mxu0
        %v1012 = vadd.f32 %v835, %v1011
        %1013 = vmatprep.mubr.bf16.mxu0 0
        %1014 = vmatmul.mubr.bf16.gmra.mxu0 %v791
        %v1015 = vpop.f32.mrf.mxu0
        %v1016 = vadd.f32 %v831, %v1015
        %v1017 = vpop.f32.mrf.mxu0
        %v1018 = vadd.f32 %v835, %v1017
        %v1019 = vpop.f32.mrf.mxu0
        %v1020 = vadd.f32 %v831, %v1019
        %v1021 = vpop.f32.mrf.mxu0
        %v1022 = vadd.f32 %v835, %v1021
        %1023 = vmatprep.mubr.bf16.mxu0 0
        %1024 = vmatmul.mubr.bf16.gmra.mxu0 %v792
        %v1025 = vpop.f32.mrf.mxu0
        %v1026 = vadd.f32 %v831, %v1025
        %v1027 = vpop.f32.mrf.mxu0
        %v1028 = vadd.f32 %v835, %v1027
        %v1029 = vpop.f32.mrf.mxu0
        %v1030 = vadd.f32 %v831, %v1029
        %v1031 = vpop.f32.mrf.mxu0
        %v1032 = vadd.f32 %v835, %v1031
        %1033 = vmatprep.mubr.bf16.mxu0 0
        %1034 = vmatmul.mubr.bf16.gmra.mxu0 %v793
        %v1035 = vpop.f32.mrf.mxu0
        %v1036 = vadd.f32 %v831, %v1035
        %v1037 = vpop.f32.mrf.mxu0
        %v1038 = vadd.f32 %v835, %v1037
        %v1039 = vpop.f32.mrf.mxu0
        %v1040 = vadd.f32 %v831, %v1039
        %v1041 = vpop.f32.mrf.mxu0
        %v1042 = vadd.f32 %v835, %v1041
        %1043 = vmatprep.mubr.bf16.mxu0 0
        %1044 = vmatmul.mubr.bf16.gmra.mxu0 %v794
        %v1045 = vpop.f32.mrf.mxu0
        %v1046 = vadd.f32 %v831, %v1045
        %v1047 = vpop.f32.mrf.mxu0
        %v1048 = vadd.f32 %v835, %v1047
        %v1049 = vpop.f32.mrf.mxu0
        %v1050 = vadd.f32 %v831, %v1049
        %v1051 = vpop.f32.mrf.mxu0
        %v1052 = vadd.f32 %v835, %v1051
        %1053 = vdwg.mxu0
        %1054 = vmatprep.subr.bf16.mxu0 0
        %1055 = vmatpush1.bf16.msra.mxu0 %v946
        %1056 = vmatprep.subr.bf16.mxu0 0
        %1057 = vmatpush1.bf16.msra.mxu0 %v943
        %1058 = vmatprep.subr.bf16.mxu0 0
        %1059 = vmatpush1.bf16.msra.mxu0 %v940
        %1060 = vmatprep.subr.bf16.mxu0 0
        %1061 = vmatpush1.bf16.msra.mxu0 %v937
        %1062 = vmatprep.subr.bf16.mxu0 0
        %1063 = vmatpush1.bf16.msra.mxu0 %v934
        %1064 = vmatprep.subr.bf16.mxu0 0
        %1065 = vmatpush1.bf16.msra.mxu0 %v931
        %1066 = vmatprep.subr.bf16.mxu0 0
        %1067 = vmatpush1.bf16.msra.mxu0 %v928
        %1068 = vmatprep.subr.bf16.mxu0 0
        %1069 = vmatpush1.bf16.msra.mxu0 %v925
        %1070 = vmatprep.subr.bf16.mxu0 0
        %1071 = vmatpush2.bf16.msra.mxu0 0
        %1072 = vmatprep.subr.bf16.mxu0 0
        %1073 = vmatpush2.bf16.msra.mxu0 0
        %1074 = vmatprep.subr.bf16.mxu0 0
        %1075 = vmatpush2.bf16.msra.mxu0 0
        %1076 = vmatprep.subr.bf16.mxu0 0
        %1077 = vmatpush2.bf16.msra.mxu0 0
        %1078 = vmatprep.subr.bf16.mxu0 0
        %1079 = vmatpush2.bf16.msra.mxu0 0
        %1080 = vmatprep.subr.bf16.mxu0 0
        %1081 = vmatpush2.bf16.msra.mxu0 0
        %1082 = vmatprep.subr.bf16.mxu0 0
        %1083 = vmatpush2.bf16.msra.mxu0 0
        %1084 = vmatprep.subr.bf16.mxu0 0
        %1085 = vmatpush2.bf16.msra.mxu0 0
        %1086 = vmatprep.mubr.bf16.mxu0 0
        %1087 = vmatmul.mubr.bf16.gmra.mxu0 %v790
        %v1088 = vpop.f32.mrf.mxu0
        %v1089 = vadd.f32 %v839, %v1088
        %v1090 = vpop.f32.mrf.mxu0
        %v1091 = vpop.f32.mrf.mxu0
        %v1092 = vadd.f32 %v839, %v1091
        %v1093 = vpop.f32.mrf.mxu0
        %1094 = vmatprep.mubr.bf16.mxu0 0
        %1095 = vmatmul.mubr.bf16.gmra.mxu0 %v791
        %v1096 = vpop.f32.mrf.mxu0
        %v1097 = vadd.f32 %v839, %v1096
        %v1098 = vpop.f32.mrf.mxu0
        %v1099 = vpop.f32.mrf.mxu0
        %v1100 = vadd.f32 %v839, %v1099
        %v1101 = vpop.f32.mrf.mxu0
        %1102 = vmatprep.mubr.bf16.mxu0 0
        %1103 = vmatmul.mubr.bf16.gmra.mxu0 %v792
        %v1104 = vpop.f32.mrf.mxu0
        %v1105 = vadd.f32 %v839, %v1104
        %v1106 = vpop.f32.mrf.mxu0
        %v1107 = vpop.f32.mrf.mxu0
        %v1108 = vadd.f32 %v839, %v1107
        %v1109 = vpop.f32.mrf.mxu0
        %1110 = vmatprep.mubr.bf16.mxu0 0
        %1111 = vmatmul.mubr.bf16.gmra.mxu0 %v793
        %v1112 = vpop.f32.mrf.mxu0
        %v1113 = vadd.f32 %v839, %v1112
        %v1114 = vpop.f32.mrf.mxu0
        %v1115 = vpop.f32.mrf.mxu0
        %v1116 = vadd.f32 %v839, %v1115
        %v1117 = vpop.f32.mrf.mxu0
        %1118 = vmatprep.mubr.bf16.mxu0 0
        %1119 = vmatmul.mubr.bf16.gmra.mxu0 %v794
        %v1120 = vpop.f32.mrf.mxu0
        %v1121 = vadd.f32 %v839, %v1120
        %v1122 = vpop.f32.mrf.mxu0
        %v1123 = vpop.f32.mrf.mxu0
        %v1124 = vadd.f32 %v839, %v1123
        %v1125 = vpop.f32.mrf.mxu0
        %1126 = vdwg.mxu0
        %v1127 = vpack.c.bf16 %v1010, %v1006
        %v1128 = vpack.c.bf16 %v1012, %v1008
        %v1129 = vpack.c.bf16 %v1092, %v1089
        %v1130 = vpack.c.bf16 %v1020, %v1016
        %v1131 = vpack.c.bf16 %v1022, %v1018
        %v1132 = vpack.c.bf16 %v1100, %v1097
        %v1133 = vpack.c.bf16 %v1030, %v1026
        %v1134 = vpack.c.bf16 %v1032, %v1028
        %v1135 = vpack.c.bf16 %v1108, %v1105
        %v1136 = vpack.c.bf16 %v1040, %v1036
        %v1137 = vpack.c.bf16 %v1042, %v1038
        %v1138 = vpack.c.bf16 %v1116, %v1113
        %v1139 = vpack.c.bf16 %v1050, %v1046
        %v1140 = vpack.c.bf16 %v1052, %v1048
        %v1141 = vpack.c.bf16 %v1124, %v1121
        %v1142 = vlaneseq
        %v1143 = vand.u32 %v1142, 127
        %vm1144 = vcmp.lt.s32.totalorder %v1143, 65
        %v1145 = vsel %vm1144, 0.0, -1e+30
        %vm1146 = vcmask 130048
        %v1148 = vsel %vm1146, %v1127, 0
        %v1151 = vsel %vm1146, %v1130, 0
        %v1154 = vsel %vm1146, %v1133, 0
        %v1157 = vsel %vm1146, %v1136, 0
        %v1160 = vsel %vm1146, %v1139, 0
        %v1163 = vsel %vm1146, %v1128, 0
        %v1166 = vsel %vm1146, %v1131, 0
        %v1169 = vsel %vm1146, %v1134, 0
        %v1172 = vsel %vm1146, %v1137, 0
        %v1175 = vsel %vm1146, %v1140, 0
        %1177 = vmatprep.subr.bf16.mxu0 0
        %1178 = vmatpush1.bf16.xpose.msra.mxu0 0
        %1179 = vmatprep.subr.bf16.mxu0 0
        %1180 = vmatpush1.bf16.xpose.msra.mxu0 0
        %1181 = vmatprep.subr.bf16.mxu0 0
        %1182 = vmatpush1.bf16.xpose.msra.mxu0 0
        %1183 = vmatprep.subr.bf16.mxu0 0
        %1184 = vmatpush1.bf16.xpose.msra.mxu0 %v1175
        %1185 = vmatprep.subr.bf16.mxu0 0
        %1186 = vmatpush1.bf16.xpose.msra.mxu0 %v1172
        %1187 = vmatprep.subr.bf16.mxu0 0
        %1188 = vmatpush1.bf16.xpose.msra.mxu0 %v1169
        %1189 = vmatprep.subr.bf16.mxu0 0
        %1190 = vmatpush1.bf16.xpose.msra.mxu0 %v1166
        %1191 = vmatprep.subr.bf16.mxu0 0
        %1192 = vmatpush1.bf16.xpose.msra.mxu0 %v1163
        %1193 = vmatprep.subr.bf16.mxu0 0
        %1194 = vmatpush2.bf16.xpose.msra.mxu0 0
        %1195 = vmatprep.subr.bf16.mxu0 0
        %1196 = vmatpush2.bf16.xpose.msra.mxu0 0
        %1197 = vmatprep.subr.bf16.mxu0 0
        %1198 = vmatpush2.bf16.xpose.msra.mxu0 0
        %1199 = vmatprep.subr.bf16.mxu0 0
        %1200 = vmatpush2.bf16.xpose.msra.mxu0 0
        %1201 = vmatprep.subr.bf16.mxu0 0
        %1202 = vmatpush2.bf16.xpose.msra.mxu0 0
        %1203 = vmatprep.subr.bf16.mxu0 0
        %1204 = vmatpush2.bf16.xpose.msra.mxu0 0
        %1205 = vmatprep.subr.bf16.mxu0 0
        %1206 = vmatpush2.bf16.xpose.msra.mxu0 0
        %1207 = vmatprep.subr.bf16.mxu0 0
        %1208 = vmatpush2.bf16.xpose.msra.mxu0 0
        %1209 = vmatprep.mubr.bf16.mxu0 0
        %1210 = vmatmul.mubr.bf16.gmra.mxu0 %v1148
        %v1211 = vpop.f32.mrf.mxu0
        %v1212 = vadd.f32 %v1145, %v1211
        %v1213 = vpop.f32.mrf.mxu0
        %v1214 = vpop.f32.mrf.mxu0
        %v1215 = vadd.f32 %v1145, %v1214
        %v1216 = vpop.f32.mrf.mxu0
        %1217 = vmatprep.mubr.bf16.mxu0 0
        %1218 = vmatmul.mubr.bf16.gmra.mxu0 %v1151
        %v1219 = vpop.f32.mrf.mxu0
        %v1220 = vadd.f32 %v1145, %v1219
        %v1221 = vpop.f32.mrf.mxu0
        %v1222 = vpop.f32.mrf.mxu0
        %v1223 = vadd.f32 %v1145, %v1222
        %v1224 = vpop.f32.mrf.mxu0
        %1225 = vmatprep.mubr.bf16.mxu0 0
        %1226 = vmatmul.mubr.bf16.gmra.mxu0 %v1154
        %v1227 = vpop.f32.mrf.mxu0
        %v1228 = vadd.f32 %v1145, %v1227
        %v1229 = vpop.f32.mrf.mxu0
        %v1230 = vpop.f32.mrf.mxu0
        %v1231 = vadd.f32 %v1145, %v1230
        %v1232 = vpop.f32.mrf.mxu0
        %1233 = vmatprep.mubr.bf16.mxu0 0
        %1234 = vmatmul.mubr.bf16.gmra.mxu0 %v1157
        %v1235 = vpop.f32.mrf.mxu0
        %v1236 = vadd.f32 %v1145, %v1235
        %v1237 = vpop.f32.mrf.mxu0
        %v1238 = vpop.f32.mrf.mxu0
        %v1239 = vadd.f32 %v1145, %v1238
        %v1240 = vpop.f32.mrf.mxu0
        %1241 = vmatprep.mubr.bf16.mxu0 0
        %1242 = vmatmul.mubr.bf16.gmra.mxu0 %v1160
        %v1243 = vpop.f32.mrf.mxu0
        %v1244 = vadd.f32 %v1145, %v1243
        %v1245 = vpop.f32.mrf.mxu0
        %v1246 = vpop.f32.mrf.mxu0
        %v1247 = vadd.f32 %v1145, %v1246
        %v1248 = vpop.f32.mrf.mxu0
        %1249 = vdwg.mxu0
        %vm1250 = vcmask 654336
        %v1251 = vsel %vm1250, %v1212, -inf
        %1252 = vmax.xlane.f32.xlu0 %v1251
        %v1253 = vpop.xlane.xlu0 %1252
        %v1254 = vsel %vm1250, %v1215, -inf
        %1255 = vmax.xlane.f32.xlu0 %v1254
        %v1256 = vpop.xlane.xlu0 %1255
        %v1257 = vsel %vm1250, %v1220, -inf
        %1258 = vmax.xlane.f32.xlu0 %v1257
        %v1259 = vpop.xlane.xlu0 %1258
        %v1260 = vsel %vm1250, %v1223, -inf
        %1261 = vmax.xlane.f32.xlu0 %v1260
        %v1262 = vpop.xlane.xlu0 %1261
        %v1263 = vsel %vm1250, %v1228, -inf
        %1264 = vmax.xlane.f32.xlu0 %v1263
        %v1265 = vpop.xlane.xlu0 %1264
        %v1266 = vsel %vm1250, %v1231, -inf
        %1267 = vmax.xlane.f32.xlu0 %v1266
        %v1268 = vpop.xlane.xlu0 %1267
        %v1269 = vsel %vm1250, %v1236, -inf
        %1270 = vmax.xlane.f32.xlu0 %v1269
        %v1271 = vpop.xlane.xlu0 %1270
        %v1272 = vsel %vm1250, %v1239, -inf
        %1273 = vmax.xlane.f32.xlu0 %v1272
        %v1274 = vpop.xlane.xlu0 %1273
        %v1275 = vsel %vm1250, %v1244, -inf
        %1276 = vmax.xlane.f32.xlu0 %v1275
        %v1277 = vpop.xlane.xlu0 %1276
        %v1278 = vsel %vm1250, %v1247, -inf
        %1279 = vmax.xlane.f32.xlu0 %v1278
        %v1280 = vpop.xlane.xlu0 %1279
        %v1281 = vsub.f32 %v1212, %v1253
        %v1282 = vsub.f32 %v1215, %v1256
        %v1283 = vsub.f32 %v1220, %v1259
        %v1284 = vsub.f32 %v1223, %v1262
        %v1285 = vsub.f32 %v1228, %v1265
        %v1286 = vsub.f32 %v1231, %v1268
        %v1287 = vsub.f32 %v1236, %v1271
        %v1288 = vsub.f32 %v1239, %v1274
        %v1289 = vsub.f32 %v1244, %v1277
        %v1290 = vsub.f32 %v1247, %v1280
        %v1291 = vmul.f32 %v1281, 1.442695
        %v1292 = vpow.pop %v1291
        %v1293 = vmul.f32 %v1282, 1.442695
        %v1294 = vpow.pop %v1293
        %v1295 = vmul.f32 %v1283, 1.442695
        %v1296 = vpow.pop %v1295
        %v1297 = vmul.f32 %v1284, 1.442695
        %v1298 = vpow.pop %v1297
        %v1299 = vmul.f32 %v1285, 1.442695
        %v1300 = vpow.pop %v1299
        %v1301 = vmul.f32 %v1286, 1.442695
        %v1302 = vpow.pop %v1301
        %v1303 = vmul.f32 %v1287, 1.442695
        %v1304 = vpow.pop %v1303
        %v1305 = vmul.f32 %v1288, 1.442695
        %v1306 = vpow.pop %v1305
        %v1307 = vmul.f32 %v1289, 1.442695
        %v1308 = vpow.pop %v1307
        %v1309 = vmul.f32 %v1290, 1.442695
        %v1310 = vpow.pop %v1309
        %v1311 = vsel %vm1250, %v1292, 0.0
        %1312 = vadd.xlane.f32.xlu0 %v1311
        %v1313 = vpop.xlane.xlu0 %1312
        %v1314 = vsel %vm1250, %v1294, 0.0
        %1315 = vadd.xlane.f32.xlu0 %v1314
        %v1316 = vpop.xlane.xlu0 %1315
        %v1317 = vsel %vm1250, %v1296, 0.0
        %1318 = vadd.xlane.f32.xlu0 %v1317
        %v1319 = vpop.xlane.xlu0 %1318
        %v1320 = vsel %vm1250, %v1298, 0.0
        %1321 = vadd.xlane.f32.xlu0 %v1320
        %v1322 = vpop.xlane.xlu0 %1321
        %v1323 = vsel %vm1250, %v1300, 0.0
        %1324 = vadd.xlane.f32.xlu0 %v1323
        %v1325 = vpop.xlane.xlu0 %1324
        %v1326 = vsel %vm1250, %v1302, 0.0
        %1327 = vadd.xlane.f32.xlu0 %v1326
        %v1328 = vpop.xlane.xlu0 %1327
        %v1329 = vsel %vm1250, %v1304, 0.0
        %1330 = vadd.xlane.f32.xlu0 %v1329
        %v1331 = vpop.xlane.xlu0 %1330
        %v1332 = vsel %vm1250, %v1306, 0.0
        %1333 = vadd.xlane.f32.xlu0 %v1332
        %v1334 = vpop.xlane.xlu0 %1333
        %v1335 = vsel %vm1250, %v1308, 0.0
        %1336 = vadd.xlane.f32.xlu0 %v1335
        %v1337 = vpop.xlane.xlu0 %1336
        %v1338 = vsel %vm1250, %v1310, 0.0
        %1339 = vadd.xlane.f32.xlu0 %v1338
        %v1340 = vpop.xlane.xlu0 %1339
        %v1341 = vrcp.pop %v1313
        %v1342 = vrcp.pop %v1316
        %v1343 = vrcp.pop %v1319
        %v1344 = vrcp.pop %v1322
        %v1345 = vrcp.pop %v1325
        %v1346 = vrcp.pop %v1328
        %v1347 = vrcp.pop %v1331
        %v1348 = vrcp.pop %v1334
        %v1349 = vrcp.pop %v1337
        %v1350 = vrcp.pop %v1340
        %v1351 = vmul.f32 %v1292, %v1341
        %v1352 = vmul.f32 %v1294, %v1342
        %v1353 = vmul.f32 %v1296, %v1343
        %v1354 = vmul.f32 %v1298, %v1344
        %v1355 = vmul.f32 %v1300, %v1345
        %v1356 = vmul.f32 %v1302, %v1346
        %v1357 = vmul.f32 %v1304, %v1347
        %v1358 = vmul.f32 %v1306, %v1348
        %v1359 = vmul.f32 %v1308, %v1349
        %v1360 = vmul.f32 %v1310, %v1350
        %v1361 = vpack.c.bf16 %v1352, %v1351
        %v1362 = vpack.c.bf16 %v1354, %v1353
        %v1363 = vpack.c.bf16 %v1356, %v1355
        %v1364 = vpack.c.bf16 %v1358, %v1357
        %v1365 = vpack.c.bf16 %v1360, %v1359
        %v1367 = vsel %vm1250, %v1361, 0
        %v1370 = vsel %vm1250, %v1362, 0
        %v1373 = vsel %vm1250, %v1363, 0
        %v1376 = vsel %vm1250, %v1364, 0
        %v1379 = vsel %vm1250, %v1365, 0
        %1381 = vmatprep.subr.bf16.mxu0 0
        %1382 = vmatpush1.bf16.msra.mxu0 0
        %1383 = vmatprep.subr.bf16.mxu0 0
        %1384 = vmatpush1.bf16.msra.mxu0 0
        %1385 = vmatprep.subr.bf16.mxu0 0
        %1386 = vmatpush1.bf16.msra.mxu0 0
        %1387 = vmatprep.subr.bf16.mxu0 0
        %1388 = vmatpush1.bf16.msra.mxu0 %v1141
        %1389 = vmatprep.subr.bf16.mxu0 0
        %1390 = vmatpush1.bf16.msra.mxu0 %v1138
        %1391 = vmatprep.subr.bf16.mxu0 0
        %1392 = vmatpush1.bf16.msra.mxu0 %v1135
        %1393 = vmatprep.subr.bf16.mxu0 0
        %1394 = vmatpush1.bf16.msra.mxu0 %v1132
        %1395 = vmatprep.subr.bf16.mxu0 0
        %1396 = vmatpush1.bf16.msra.mxu0 %v1129
        %1397 = vmatprep.subr.bf16.mxu0 0
        %1398 = vmatpush2.bf16.msra.mxu0 0
        %1399 = vmatprep.subr.bf16.mxu0 0
        %1400 = vmatpush2.bf16.msra.mxu0 0
        %1401 = vmatprep.subr.bf16.mxu0 0
        %1402 = vmatpush2.bf16.msra.mxu0 0
        %1403 = vmatprep.subr.bf16.mxu0 0
        %1404 = vmatpush2.bf16.msra.mxu0 0
        %1405 = vmatprep.subr.bf16.mxu0 0
        %1406 = vmatpush2.bf16.msra.mxu0 0
        %1407 = vmatprep.subr.bf16.mxu0 0
        %1408 = vmatpush2.bf16.msra.mxu0 0
        %1409 = vmatprep.subr.bf16.mxu0 0
        %1410 = vmatpush2.bf16.msra.mxu0 0
        %1411 = vmatprep.subr.bf16.mxu0 0
        %1412 = vmatpush2.bf16.msra.mxu0 0
        %1413 = vmatprep.mubr.bf16.mxu0 0
        %1414 = vmatmul.mubr.bf16.gmra.mxu0 %v1367
        %v1415 = vpop.f32.mrf.mxu0
        %v1416 = vadd.f32 0.0, %v1415
        %v1417 = vpop.f32.mrf.mxu0
        %v1418 = vpop.f32.mrf.mxu0
        %v1419 = vadd.f32 0.0, %v1418
        %v1420 = vpop.f32.mrf.mxu0
        %1421 = vmatprep.mubr.bf16.mxu0 0
        %1422 = vmatmul.mubr.bf16.gmra.mxu0 %v1370
        %v1423 = vpop.f32.mrf.mxu0
        %v1424 = vadd.f32 0.0, %v1423
        %v1425 = vpop.f32.mrf.mxu0
        %v1426 = vpop.f32.mrf.mxu0
        %v1427 = vadd.f32 0.0, %v1426
        %v1428 = vpop.f32.mrf.mxu0
        %1429 = vmatprep.mubr.bf16.mxu0 0
        %1430 = vmatmul.mubr.bf16.gmra.mxu0 %v1373
        %v1431 = vpop.f32.mrf.mxu0
        %v1432 = vadd.f32 0.0, %v1431
        %v1433 = vpop.f32.mrf.mxu0
        %v1434 = vpop.f32.mrf.mxu0
        %v1435 = vadd.f32 0.0, %v1434
        %v1436 = vpop.f32.mrf.mxu0
        %1437 = vmatprep.mubr.bf16.mxu0 0
        %1438 = vmatmul.mubr.bf16.gmra.mxu0 %v1376
        %v1439 = vpop.f32.mrf.mxu0
        %v1440 = vadd.f32 0.0, %v1439
        %v1441 = vpop.f32.mrf.mxu0
        %v1442 = vpop.f32.mrf.mxu0
        %v1443 = vadd.f32 0.0, %v1442
        %v1444 = vpop.f32.mrf.mxu0
        %1445 = vmatprep.mubr.bf16.mxu0 0
        %1446 = vmatmul.mubr.bf16.gmra.mxu0 %v1379
        %v1447 = vpop.f32.mrf.mxu0
        %v1448 = vadd.f32 0.0, %v1447
        %v1449 = vpop.f32.mrf.mxu0
        %v1450 = vpop.f32.mrf.mxu0
        %v1451 = vadd.f32 0.0, %v1450
        %v1452 = vpop.f32.mrf.mxu0
        %1453 = vdwg.mxu0
        %v1454 = vpack.c.bf16 %v1419, %v1416
        %v1455 = vpack.c.bf16 %v1427, %v1424
        %v1456 = vpack.c.bf16 %v1435, %v1432
        %v1457 = vpack.c.bf16 %v1443, %v1440
        %v1458 = vpack.c.bf16 %v1451, %v1448
        %v1459 = vld [vmem:[%s578] sm:$0xf]
        %v1460 = vld [vmem:[%s578 + $0x4] sm:$0xf]
        %1466 = vrot.lane.b32.xlu0 %v1127, 112
        %v1467 = vpop.permute.xlu0 %1466
        %1468 = vrot.lane.b32.xlu0 %v1130, 112
        %v1469 = vpop.permute.xlu0 %1468
        %1470 = vrot.lane.b32.xlu0 %v1133, 112
        %v1471 = vpop.permute.xlu0 %1470
        %1472 = vrot.lane.b32.xlu0 %v1136, 112
        %v1473 = vpop.permute.xlu0 %1472
        %1474 = vrot.lane.b32.xlu0 %v1139, 112
        %v1475 = vpop.permute.xlu0 %1474
        %1481 = vrot.lane.b32.xlu0 %v1128, 112
        %v1482 = vpop.permute.xlu0 %1481
        %1483 = vrot.lane.b32.xlu0 %v1131, 112
        %v1484 = vpop.permute.xlu0 %1483
        %1485 = vrot.lane.b32.xlu0 %v1134, 112
        %v1486 = vpop.permute.xlu0 %1485
        %1487 = vrot.lane.b32.xlu0 %v1137, 112
        %v1488 = vpop.permute.xlu0 %1487
        %1489 = vrot.lane.b32.xlu0 %v1140, 112
        %v1490 = vpop.permute.xlu0 %1489
        %v1492 = vsel %vm1146, %v1467, 0
        %v1495 = vsel %vm1146, %v1469, 0
        %v1498 = vsel %vm1146, %v1471, 0
        %v1501 = vsel %vm1146, %v1473, 0
        %v1504 = vsel %vm1146, %v1475, 0
        %v1507 = vsel %vm1146, %v1482, 0
        %v1510 = vsel %vm1146, %v1484, 0
        %v1513 = vsel %vm1146, %v1486, 0
        %v1516 = vsel %vm1146, %v1488, 0
        %v1519 = vsel %vm1146, %v1490, 0
        %1521 = vmatprep.subr.bf16.mxu0 0
        %1522 = vmatpush1.bf16.xpose.msra.mxu0 0
        %1523 = vmatprep.subr.bf16.mxu0 0
        %1524 = vmatpush1.bf16.xpose.msra.mxu0 0
        %1525 = vmatprep.subr.bf16.mxu0 0
        %1526 = vmatpush1.bf16.xpose.msra.mxu0 0
        %1527 = vmatprep.subr.bf16.mxu0 0
        %1528 = vmatpush1.bf16.xpose.msra.mxu0 %v1519
        %1529 = vmatprep.subr.bf16.mxu0 0
        %1530 = vmatpush1.bf16.xpose.msra.mxu0 %v1516
        %1531 = vmatprep.subr.bf16.mxu0 0
        %1532 = vmatpush1.bf16.xpose.msra.mxu0 %v1513
        %1533 = vmatprep.subr.bf16.mxu0 0
        %1534 = vmatpush1.bf16.xpose.msra.mxu0 %v1510
        %1535 = vmatprep.subr.bf16.mxu0 0
        %1536 = vmatpush1.bf16.xpose.msra.mxu0 %v1507
        %1537 = vmatprep.subr.bf16.mxu0 0
        %1538 = vmatpush2.bf16.xpose.msra.mxu0 0
        %1539 = vmatprep.subr.bf16.mxu0 0
        %1540 = vmatpush2.bf16.xpose.msra.mxu0 0
        %1541 = vmatprep.subr.bf16.mxu0 0
        %1542 = vmatpush2.bf16.xpose.msra.mxu0 0
        %1543 = vmatprep.subr.bf16.mxu0 0
        %1544 = vmatpush2.bf16.xpose.msra.mxu0 0
        %1545 = vmatprep.subr.bf16.mxu0 0
        %1546 = vmatpush2.bf16.xpose.msra.mxu0 0
        %1547 = vmatprep.subr.bf16.mxu0 0
        %1548 = vmatpush2.bf16.xpose.msra.mxu0 0
        %1549 = vmatprep.subr.bf16.mxu0 0
        %1550 = vmatpush2.bf16.xpose.msra.mxu0 0
        %1551 = vmatprep.subr.bf16.mxu0 0
        %1552 = vmatpush2.bf16.xpose.msra.mxu0 0
        %1553 = vmatprep.mubr.bf16.mxu0 0
        %1554 = vmatmul.mubr.bf16.gmra.mxu0 %v1492
        %v1555 = vpop.f32.mrf.mxu0
        %v1556 = vadd.f32 %v1145, %v1555
        %v1557 = vpop.f32.mrf.mxu0
        %v1558 = vpop.f32.mrf.mxu0
        %v1559 = vadd.f32 %v1145, %v1558
        %v1560 = vpop.f32.mrf.mxu0
        %1561 = vmatprep.mubr.bf16.mxu0 0
        %1562 = vmatmul.mubr.bf16.gmra.mxu0 %v1495
        %v1563 = vpop.f32.mrf.mxu0
        %v1564 = vadd.f32 %v1145, %v1563
        %v1565 = vpop.f32.mrf.mxu0
        %v1566 = vpop.f32.mrf.mxu0
        %v1567 = vadd.f32 %v1145, %v1566
        %v1568 = vpop.f32.mrf.mxu0
        %1569 = vmatprep.mubr.bf16.mxu0 0
        %1570 = vmatmul.mubr.bf16.gmra.mxu0 %v1498
        %v1571 = vpop.f32.mrf.mxu0
        %v1572 = vadd.f32 %v1145, %v1571
        %v1573 = vpop.f32.mrf.mxu0
        %v1574 = vpop.f32.mrf.mxu0
        %v1575 = vadd.f32 %v1145, %v1574
        %v1576 = vpop.f32.mrf.mxu0
        %1577 = vmatprep.mubr.bf16.mxu0 0
        %1578 = vmatmul.mubr.bf16.gmra.mxu0 %v1501
        %v1579 = vpop.f32.mrf.mxu0
        %v1580 = vadd.f32 %v1145, %v1579
        %v1581 = vpop.f32.mrf.mxu0
        %v1582 = vpop.f32.mrf.mxu0
        %v1583 = vadd.f32 %v1145, %v1582
        %v1584 = vpop.f32.mrf.mxu0
        %1585 = vmatprep.mubr.bf16.mxu0 0
        %1586 = vmatmul.mubr.bf16.gmra.mxu0 %v1504
        %v1587 = vpop.f32.mrf.mxu0
        %v1588 = vadd.f32 %v1145, %v1587
        %v1589 = vpop.f32.mrf.mxu0
        %v1590 = vpop.f32.mrf.mxu0
        %v1591 = vadd.f32 %v1145, %v1590
        %v1592 = vpop.f32.mrf.mxu0
        %1593 = vdwg.mxu0
        %v1594 = vsel %vm1250, %v1556, -inf
        %1595 = vmax.xlane.f32.xlu0 %v1594
        %v1596 = vpop.xlane.xlu0 %1595
        %v1597 = vsel %vm1250, %v1559, -inf
        %1598 = vmax.xlane.f32.xlu0 %v1597
        %v1599 = vpop.xlane.xlu0 %1598
        %v1600 = vsel %vm1250, %v1564, -inf
        %1601 = vmax.xlane.f32.xlu0 %v1600
        %v1602 = vpop.xlane.xlu0 %1601
        %v1603 = vsel %vm1250, %v1567, -inf
        %1604 = vmax.xlane.f32.xlu0 %v1603
        %v1605 = vpop.xlane.xlu0 %1604
        %v1606 = vsel %vm1250, %v1572, -inf
        %1607 = vmax.xlane.f32.xlu0 %v1606
        %v1608 = vpop.xlane.xlu0 %1607
        %v1609 = vsel %vm1250, %v1575, -inf
        %1610 = vmax.xlane.f32.xlu0 %v1609
        %v1611 = vpop.xlane.xlu0 %1610
        %v1612 = vsel %vm1250, %v1580, -inf
        %1613 = vmax.xlane.f32.xlu0 %v1612
        %v1614 = vpop.xlane.xlu0 %1613
        %v1615 = vsel %vm1250, %v1583, -inf
        %1616 = vmax.xlane.f32.xlu0 %v1615
        %v1617 = vpop.xlane.xlu0 %1616
        %v1618 = vsel %vm1250, %v1588, -inf
        %1619 = vmax.xlane.f32.xlu0 %v1618
        %v1620 = vpop.xlane.xlu0 %1619
        %v1621 = vsel %vm1250, %v1591, -inf
        %1622 = vmax.xlane.f32.xlu0 %v1621
        %v1623 = vpop.xlane.xlu0 %1622
        %v1624 = vsub.f32 %v1556, %v1596
        %v1625 = vsub.f32 %v1559, %v1599
        %v1626 = vsub.f32 %v1564, %v1602
        %v1627 = vsub.f32 %v1567, %v1605
        %v1628 = vsub.f32 %v1572, %v1608
        %v1629 = vsub.f32 %v1575, %v1611
        %v1630 = vsub.f32 %v1580, %v1614
        %v1631 = vsub.f32 %v1583, %v1617
        %v1632 = vsub.f32 %v1588, %v1620
        %v1633 = vsub.f32 %v1591, %v1623
        %v1634 = vmul.f32 %v1624, 1.442695
        %v1635 = vpow.pop %v1634
        %v1636 = vmul.f32 %v1625, 1.442695
        %v1637 = vpow.pop %v1636
        %v1638 = vmul.f32 %v1626, 1.442695
        %v1639 = vpow.pop %v1638
        %v1640 = vmul.f32 %v1627, 1.442695
        %v1641 = vpow.pop %v1640
        %v1642 = vmul.f32 %v1628, 1.442695
        %v1643 = vpow.pop %v1642
        %v1644 = vmul.f32 %v1629, 1.442695
        %v1645 = vpow.pop %v1644
        %v1646 = vmul.f32 %v1630, 1.442695
        %v1647 = vpow.pop %v1646
        %v1648 = vmul.f32 %v1631, 1.442695
        %v1649 = vpow.pop %v1648
        %v1650 = vmul.f32 %v1632, 1.442695
        %v1651 = vpow.pop %v1650
        %v1652 = vmul.f32 %v1633, 1.442695
        %v1653 = vpow.pop %v1652
        %v1654 = vsel %vm1250, %v1635, 0.0
        %1655 = vadd.xlane.f32.xlu0 %v1654
        %v1656 = vpop.xlane.xlu0 %1655
        %v1657 = vsel %vm1250, %v1637, 0.0
        %1658 = vadd.xlane.f32.xlu0 %v1657
        %v1659 = vpop.xlane.xlu0 %1658
        %v1660 = vsel %vm1250, %v1639, 0.0
        %1661 = vadd.xlane.f32.xlu0 %v1660
        %v1662 = vpop.xlane.xlu0 %1661
        %v1663 = vsel %vm1250, %v1641, 0.0
        %1664 = vadd.xlane.f32.xlu0 %v1663
        %v1665 = vpop.xlane.xlu0 %1664
        %v1666 = vsel %vm1250, %v1643, 0.0
        %1667 = vadd.xlane.f32.xlu0 %v1666
        %v1668 = vpop.xlane.xlu0 %1667
        %v1669 = vsel %vm1250, %v1645, 0.0
        %1670 = vadd.xlane.f32.xlu0 %v1669
        %v1671 = vpop.xlane.xlu0 %1670
        %v1672 = vsel %vm1250, %v1647, 0.0
        %1673 = vadd.xlane.f32.xlu0 %v1672
        %v1674 = vpop.xlane.xlu0 %1673
        %v1675 = vsel %vm1250, %v1649, 0.0
        %1676 = vadd.xlane.f32.xlu0 %v1675
        %v1677 = vpop.xlane.xlu0 %1676
        %v1678 = vsel %vm1250, %v1651, 0.0
        %1679 = vadd.xlane.f32.xlu0 %v1678
        %v1680 = vpop.xlane.xlu0 %1679
        %v1681 = vsel %vm1250, %v1653, 0.0
        %1682 = vadd.xlane.f32.xlu0 %v1681
        %v1683 = vpop.xlane.xlu0 %1682
        %v1684 = vrcp.pop %v1656
        %v1685 = vrcp.pop %v1659
        %v1686 = vrcp.pop %v1662
        %v1687 = vrcp.pop %v1665
        %v1688 = vrcp.pop %v1668
        %v1689 = vrcp.pop %v1671
        %v1690 = vrcp.pop %v1674
        %v1691 = vrcp.pop %v1677
        %v1692 = vrcp.pop %v1680
        %v1693 = vrcp.pop %v1683
        %v1694 = vmul.f32 %v1635, %v1684
        %v1695 = vmul.f32 %v1637, %v1685
        %v1696 = vmul.f32 %v1639, %v1686
        %v1697 = vmul.f32 %v1641, %v1687
        %v1698 = vmul.f32 %v1643, %v1688
        %v1699 = vmul.f32 %v1645, %v1689
        %v1700 = vmul.f32 %v1647, %v1690
        %v1701 = vmul.f32 %v1649, %v1691
        %v1702 = vmul.f32 %v1651, %v1692
        %v1703 = vmul.f32 %v1653, %v1693
        %v1704 = vpack.c.bf16 %v1695, %v1694
        %v1705 = vpack.c.bf16 %v1697, %v1696
        %v1706 = vpack.c.bf16 %v1699, %v1698
        %v1707 = vpack.c.bf16 %v1701, %v1700
        %v1708 = vpack.c.bf16 %v1703, %v1702
        %1714 = vrot.lane.b32.xlu0 %v1129, 112
        %v1715 = vpop.permute.xlu0 %1714
        %1716 = vrot.lane.b32.xlu0 %v1132, 112
        %v1717 = vpop.permute.xlu0 %1716
        %1718 = vrot.lane.b32.xlu0 %v1135, 112
        %v1719 = vpop.permute.xlu0 %1718
        %1720 = vrot.lane.b32.xlu0 %v1138, 112
        %v1721 = vpop.permute.xlu0 %1720
        %1722 = vrot.lane.b32.xlu0 %v1141, 112
        %v1723 = vpop.permute.xlu0 %1722
        %v1730 = vsel %vm1250, %v1704, 0
        %v1733 = vsel %vm1250, %v1705, 0
        %v1736 = vsel %vm1250, %v1706, 0
        %v1739 = vsel %vm1250, %v1707, 0
        %v1742 = vsel %vm1250, %v1708, 0
        %1744 = vmatprep.subr.bf16.mxu0 0
        %1745 = vmatpush1.bf16.msra.mxu0 0
        %1746 = vmatprep.subr.bf16.mxu0 0
        %1747 = vmatpush1.bf16.msra.mxu0 0
        %1748 = vmatprep.subr.bf16.mxu0 0
        %1749 = vmatpush1.bf16.msra.mxu0 0
        %1750 = vmatprep.subr.bf16.mxu0 0
        %1751 = vmatpush1.bf16.msra.mxu0 %v1723
        %1752 = vmatprep.subr.bf16.mxu0 0
        %1753 = vmatpush1.bf16.msra.mxu0 %v1721
        %1754 = vmatprep.subr.bf16.mxu0 0
        %1755 = vmatpush1.bf16.msra.mxu0 %v1719
        %1756 = vmatprep.subr.bf16.mxu0 0
        %1757 = vmatpush1.bf16.msra.mxu0 %v1717
        %1758 = vmatprep.subr.bf16.mxu0 0
        %1759 = vmatpush1.bf16.msra.mxu0 %v1715
        %1760 = vmatprep.subr.bf16.mxu0 0
        %1761 = vmatpush2.bf16.msra.mxu0 0
        %1762 = vmatprep.subr.bf16.mxu0 0
        %1763 = vmatpush2.bf16.msra.mxu0 0
        %1764 = vmatprep.subr.bf16.mxu0 0
        %1765 = vmatpush2.bf16.msra.mxu0 0
        %1766 = vmatprep.subr.bf16.mxu0 0
        %1767 = vmatpush2.bf16.msra.mxu0 0
        %1768 = vmatprep.subr.bf16.mxu0 0
        %1769 = vmatpush2.bf16.msra.mxu0 0
        %1770 = vmatprep.subr.bf16.mxu0 0
        %1771 = vmatpush2.bf16.msra.mxu0 0
        %1772 = vmatprep.subr.bf16.mxu0 0
        %1773 = vmatpush2.bf16.msra.mxu0 0
        %1774 = vmatprep.subr.bf16.mxu0 0
        %1775 = vmatpush2.bf16.msra.mxu0 0
        %1776 = vmatprep.mubr.bf16.mxu0 0
        %1777 = vmatmul.mubr.bf16.gmra.mxu0 %v1730
        %v1778 = vpop.f32.mrf.mxu0
        %v1779 = vadd.f32 0.0, %v1778
        %v1780 = vpop.f32.mrf.mxu0
        %v1781 = vpop.f32.mrf.mxu0
        %v1782 = vadd.f32 0.0, %v1781
        %v1783 = vpop.f32.mrf.mxu0
        %1784 = vmatprep.mubr.bf16.mxu0 0
        %1785 = vmatmul.mubr.bf16.gmra.mxu0 %v1733
        %v1786 = vpop.f32.mrf.mxu0
        %v1787 = vadd.f32 0.0, %v1786
        %v1788 = vpop.f32.mrf.mxu0
        %v1789 = vpop.f32.mrf.mxu0
        %v1790 = vadd.f32 0.0, %v1789
        %v1791 = vpop.f32.mrf.mxu0
        %1792 = vmatprep.mubr.bf16.mxu0 0
        %1793 = vmatmul.mubr.bf16.gmra.mxu0 %v1736
        %v1794 = vpop.f32.mrf.mxu0
        %v1795 = vadd.f32 0.0, %v1794
        %v1796 = vpop.f32.mrf.mxu0
        %v1797 = vpop.f32.mrf.mxu0
        %v1798 = vadd.f32 0.0, %v1797
        %v1799 = vpop.f32.mrf.mxu0
        %1800 = vmatprep.mubr.bf16.mxu0 0
        %1801 = vmatmul.mubr.bf16.gmra.mxu0 %v1739
        %v1802 = vpop.f32.mrf.mxu0
        %v1803 = vadd.f32 0.0, %v1802
        %v1804 = vpop.f32.mrf.mxu0
        %v1805 = vpop.f32.mrf.mxu0
        %v1806 = vadd.f32 0.0, %v1805
        %v1807 = vpop.f32.mrf.mxu0
        %1808 = vmatprep.mubr.bf16.mxu0 0
        %1809 = vmatmul.mubr.bf16.gmra.mxu0 %v1742
        %v1810 = vpop.f32.mrf.mxu0
        %v1811 = vadd.f32 0.0, %v1810
        %v1812 = vpop.f32.mrf.mxu0
        %v1813 = vpop.f32.mrf.mxu0
        %v1814 = vadd.f32 0.0, %v1813
        %v1815 = vpop.f32.mrf.mxu0
        %1816 = vdwg.mxu0
        %v1817 = vpack.c.bf16 %v1782, %v1779
        %v1818 = vpack.c.bf16 %v1790, %v1787
        %v1819 = vpack.c.bf16 %v1798, %v1795
        %v1820 = vpack.c.bf16 %v1806, %v1803
        %v1821 = vpack.c.bf16 %v1814, %v1811
        %v1822 = vld [vmem:[%s578 + $0x8] sm:$0xf]
        %v1823 = vld [vmem:[%s578 + $0xc] sm:$0xf]
        %v1826 = vunpack.c.l.b16 %v1822
        %v1827 = vunpack.c.l.b16 %v1823
        %v1828 = vpack.c.b16 %v1827, %v1826
        %v1831 = vsel %vm1146, %v1817, 0
        %v1834 = vsel %vm1146, %v1818, 0
        %v1837 = vsel %vm1146, %v1819, 0
        %v1840 = vsel %vm1146, %v1820, 0
        %v1843 = vsel %vm1146, %v1821, 0
        %1845 = vmatprep.subr.bf16.mxu0 0
        %1846 = vmatpush1.bf16.msra.mxu0 0
        %1847 = vmatprep.subr.bf16.mxu0 0
        %1848 = vmatpush1.bf16.msra.mxu0 0
        %1849 = vmatprep.subr.bf16.mxu0 0
        %1850 = vmatpush1.bf16.msra.mxu0 0
        %1851 = vmatprep.subr.bf16.mxu0 0
        %1852 = vmatpush1.bf16.msra.mxu0 0
        %1853 = vmatprep.subr.bf16.mxu0 0
        %1854 = vmatpush1.bf16.msra.mxu0 0
        %1855 = vmatprep.subr.bf16.mxu0 0
        %1856 = vmatpush1.bf16.msra.mxu0 0
        %1857 = vmatprep.subr.bf16.mxu0 0
        %1858 = vmatpush1.bf16.msra.mxu0 0
        %1859 = vmatprep.subr.bf16.mxu0 0
        %1860 = vmatpush1.bf16.msra.mxu0 %v1828
        %1861 = vmatprep.subr.bf16.mxu0 0
        %1862 = vmatpush2.bf16.msra.mxu0 0
        %1863 = vmatprep.subr.bf16.mxu0 0
        %1864 = vmatpush2.bf16.msra.mxu0 0
        %1865 = vmatprep.subr.bf16.mxu0 0
        %1866 = vmatpush2.bf16.msra.mxu0 0
        %1867 = vmatprep.subr.bf16.mxu0 0
        %1868 = vmatpush2.bf16.msra.mxu0 0
        %1869 = vmatprep.subr.bf16.mxu0 0
        %1870 = vmatpush2.bf16.msra.mxu0 0
        %1871 = vmatprep.subr.bf16.mxu0 0
        %1872 = vmatpush2.bf16.msra.mxu0 0
        %1873 = vmatprep.subr.bf16.mxu0 0
        %1874 = vmatpush2.bf16.msra.mxu0 0
        %1875 = vmatprep.subr.bf16.mxu0 0
        %1876 = vmatpush2.bf16.msra.mxu0 0
        %1877 = vmatprep.mubr.bf16.mxu0 0
        %1878 = vmatmul.mubr.bf16.gmra.mxu0 %v1831
        %v1879 = vpop.f32.mrf.mxu0
        %v1880 = vadd.f32 0.0, %v1879
        %v1881 = vpop.f32.mrf.mxu0
        %v1882 = vpop.f32.mrf.mxu0
        %v1883 = vadd.f32 0.0, %v1882
        %v1884 = vpop.f32.mrf.mxu0
        %1885 = vmatprep.mubr.bf16.mxu0 0
        %1886 = vmatmul.mubr.bf16.gmra.mxu0 %v1834
        %v1887 = vpop.f32.mrf.mxu0
        %v1888 = vadd.f32 0.0, %v1887
        %v1889 = vpop.f32.mrf.mxu0
        %v1890 = vpop.f32.mrf.mxu0
        %v1891 = vadd.f32 0.0, %v1890
        %v1892 = vpop.f32.mrf.mxu0
        %1893 = vmatprep.mubr.bf16.mxu0 0
        %1894 = vmatmul.mubr.bf16.gmra.mxu0 %v1837
        %v1895 = vpop.f32.mrf.mxu0
        %v1896 = vadd.f32 0.0, %v1895
        %v1897 = vpop.f32.mrf.mxu0
        %v1898 = vpop.f32.mrf.mxu0
        %v1899 = vadd.f32 0.0, %v1898
        %v1900 = vpop.f32.mrf.mxu0
        %1901 = vmatprep.mubr.bf16.mxu0 0
        %1902 = vmatmul.mubr.bf16.gmra.mxu0 %v1840
        %v1903 = vpop.f32.mrf.mxu0
        %v1904 = vadd.f32 0.0, %v1903
        %v1905 = vpop.f32.mrf.mxu0
        %v1906 = vpop.f32.mrf.mxu0
        %v1907 = vadd.f32 0.0, %v1906
        %v1908 = vpop.f32.mrf.mxu0
        %1909 = vmatprep.mubr.bf16.mxu0 0
        %1910 = vmatmul.mubr.bf16.gmra.mxu0 %v1843
        %v1911 = vpop.f32.mrf.mxu0
        %v1912 = vadd.f32 0.0, %v1911
        %v1913 = vpop.f32.mrf.mxu0
        %v1914 = vpop.f32.mrf.mxu0
        %v1915 = vadd.f32 0.0, %v1914
        %v1916 = vpop.f32.mrf.mxu0
        %1917 = vdwg.mxu0
        %v1920 = vunpack.c.l.b16 %v1459
        %v1921 = vunpack.c.l.b16 %v1460
        %v1922 = vpack.c.b16 %v1921, %v1920
        %v1925 = vsel %vm1146, %v1454, 0
        %v1928 = vsel %vm1146, %v1455, 0
        %v1931 = vsel %vm1146, %v1456, 0
        %v1934 = vsel %vm1146, %v1457, 0
        %v1937 = vsel %vm1146, %v1458, 0
        %1939 = vmatprep.subr.bf16.mxu0 0
        %1940 = vmatpush1.bf16.msra.mxu0 0
        %1941 = vmatprep.subr.bf16.mxu0 0
        %1942 = vmatpush1.bf16.msra.mxu0 0
        %1943 = vmatprep.subr.bf16.mxu0 0
        %1944 = vmatpush1.bf16.msra.mxu0 0
        %1945 = vmatprep.subr.bf16.mxu0 0
        %1946 = vmatpush1.bf16.msra.mxu0 0
        %1947 = vmatprep.subr.bf16.mxu0 0
        %1948 = vmatpush1.bf16.msra.mxu0 0
        %1949 = vmatprep.subr.bf16.mxu0 0
        %1950 = vmatpush1.bf16.msra.mxu0 0
        %1951 = vmatprep.subr.bf16.mxu0 0
        %1952 = vmatpush1.bf16.msra.mxu0 0
        %1953 = vmatprep.subr.bf16.mxu0 0
        %1954 = vmatpush1.bf16.msra.mxu0 %v1922
        %1955 = vmatprep.subr.bf16.mxu0 0
        %1956 = vmatpush2.bf16.msra.mxu0 0
        %1957 = vmatprep.subr.bf16.mxu0 0
        %1958 = vmatpush2.bf16.msra.mxu0 0
        %1959 = vmatprep.subr.bf16.mxu0 0
        %1960 = vmatpush2.bf16.msra.mxu0 0
        %1961 = vmatprep.subr.bf16.mxu0 0
        %1962 = vmatpush2.bf16.msra.mxu0 0
        %1963 = vmatprep.subr.bf16.mxu0 0
        %1964 = vmatpush2.bf16.msra.mxu0 0
        %1965 = vmatprep.subr.bf16.mxu0 0
        %1966 = vmatpush2.bf16.msra.mxu0 0
        %1967 = vmatprep.subr.bf16.mxu0 0
        %1968 = vmatpush2.bf16.msra.mxu0 0
        %1969 = vmatprep.subr.bf16.mxu0 0
        %1970 = vmatpush2.bf16.msra.mxu0 0
        %1971 = vmatprep.mubr.bf16.mxu0 0
        %1972 = vmatmul.mubr.bf16.gmra.mxu0 %v1925
        %v1973 = vpop.f32.mrf.mxu0
        %v1974 = vadd.f32 %v1880, %v1973
        %v1975 = vpop.f32.mrf.mxu0
        %v1976 = vpop.f32.mrf.mxu0
        %v1977 = vadd.f32 %v1883, %v1976
        %v1978 = vpop.f32.mrf.mxu0
        %1979 = vmatprep.mubr.bf16.mxu0 0
        %1980 = vmatmul.mubr.bf16.gmra.mxu0 %v1928
        %v1981 = vpop.f32.mrf.mxu0
        %v1982 = vadd.f32 %v1888, %v1981
        %v1983 = vpop.f32.mrf.mxu0
        %v1984 = vpop.f32.mrf.mxu0
        %v1985 = vadd.f32 %v1891, %v1984
        %v1986 = vpop.f32.mrf.mxu0
        %1987 = vmatprep.mubr.bf16.mxu0 0
        %1988 = vmatmul.mubr.bf16.gmra.mxu0 %v1931
        %v1989 = vpop.f32.mrf.mxu0
        %v1990 = vadd.f32 %v1896, %v1989
        %v1991 = vpop.f32.mrf.mxu0
        %v1992 = vpop.f32.mrf.mxu0
        %v1993 = vadd.f32 %v1899, %v1992
        %v1994 = vpop.f32.mrf.mxu0
        %1995 = vmatprep.mubr.bf16.mxu0 0
        %1996 = vmatmul.mubr.bf16.gmra.mxu0 %v1934
        %v1997 = vpop.f32.mrf.mxu0
        %v1998 = vadd.f32 %v1904, %v1997
        %v1999 = vpop.f32.mrf.mxu0
        %v2000 = vpop.f32.mrf.mxu0
        %v2001 = vadd.f32 %v1907, %v2000
        %v2002 = vpop.f32.mrf.mxu0
        %2003 = vmatprep.mubr.bf16.mxu0 0
        %2004 = vmatmul.mubr.bf16.gmra.mxu0 %v1937
        %v2005 = vpop.f32.mrf.mxu0
        %v2006 = vadd.f32 %v1912, %v2005
        %v2007 = vpop.f32.mrf.mxu0
        %v2008 = vpop.f32.mrf.mxu0
        %v2009 = vadd.f32 %v1915, %v2008
        %v2010 = vpop.f32.mrf.mxu0
        %2011 = vdwg.mxu0
        %2012 = vrot.lane.b32.xlu0 %v1127, 96
        %v2013 = vpop.permute.xlu0 %2012
        %2014 = vrot.lane.b32.xlu0 %v1130, 96
        %v2015 = vpop.permute.xlu0 %2014
        %2016 = vrot.lane.b32.xlu0 %v1133, 96
        %v2017 = vpop.permute.xlu0 %2016
        %2018 = vrot.lane.b32.xlu0 %v1136, 96
        %v2019 = vpop.permute.xlu0 %2018
        %2020 = vrot.lane.b32.xlu0 %v1139, 96
        %v2021 = vpop.permute.xlu0 %2020
        %2022 = vrot.lane.b32.xlu0 %v1128, 96
        %v2023 = vpop.permute.xlu0 %2022
        %2024 = vrot.lane.b32.xlu0 %v1131, 96
        %v2025 = vpop.permute.xlu0 %2024
        %2026 = vrot.lane.b32.xlu0 %v1134, 96
        %v2027 = vpop.permute.xlu0 %2026
        %2028 = vrot.lane.b32.xlu0 %v1137, 96
        %v2029 = vpop.permute.xlu0 %2028
        %2030 = vrot.lane.b32.xlu0 %v1140, 96
        %v2031 = vpop.permute.xlu0 %2030
        %v2033 = vsel %vm1146, %v2013, 0
        %v2036 = vsel %vm1146, %v2015, 0
        %v2039 = vsel %vm1146, %v2017, 0
        %v2042 = vsel %vm1146, %v2019, 0
        %v2045 = vsel %vm1146, %v2021, 0
        %v2048 = vsel %vm1146, %v2023, 0
        %v2051 = vsel %vm1146, %v2025, 0
        %v2054 = vsel %vm1146, %v2027, 0
        %v2057 = vsel %vm1146, %v2029, 0
        %v2060 = vsel %vm1146, %v2031, 0
        %2062 = vmatprep.subr.bf16.mxu0 0
        %2063 = vmatpush1.bf16.xpose.msra.mxu0 0
        %2064 = vmatprep.subr.bf16.mxu0 0
        %2065 = vmatpush1.bf16.xpose.msra.mxu0 0
        %2066 = vmatprep.subr.bf16.mxu0 0
        %2067 = vmatpush1.bf16.xpose.msra.mxu0 0
        %2068 = vmatprep.subr.bf16.mxu0 0
        %2069 = vmatpush1.bf16.xpose.msra.mxu0 %v2060
        %2070 = vmatprep.subr.bf16.mxu0 0
        %2071 = vmatpush1.bf16.xpose.msra.mxu0 %v2057
        %2072 = vmatprep.subr.bf16.mxu0 0
        %2073 = vmatpush1.bf16.xpose.msra.mxu0 %v2054
        %2074 = vmatprep.subr.bf16.mxu0 0
        %2075 = vmatpush1.bf16.xpose.msra.mxu0 %v2051
        %2076 = vmatprep.subr.bf16.mxu0 0
        %2077 = vmatpush1.bf16.xpose.msra.mxu0 %v2048
        %2078 = vmatprep.subr.bf16.mxu0 0
        %2079 = vmatpush2.bf16.xpose.msra.mxu0 0
        %2080 = vmatprep.subr.bf16.mxu0 0
        %2081 = vmatpush2.bf16.xpose.msra.mxu0 0
        %2082 = vmatprep.subr.bf16.mxu0 0
        %2083 = vmatpush2.bf16.xpose.msra.mxu0 0
        %2084 = vmatprep.subr.bf16.mxu0 0
        %2085 = vmatpush2.bf16.xpose.msra.mxu0 0
        %2086 = vmatprep.subr.bf16.mxu0 0
        %2087 = vmatpush2.bf16.xpose.msra.mxu0 0
        %2088 = vmatprep.subr.bf16.mxu0 0
        %2089 = vmatpush2.bf16.xpose.msra.mxu0 0
        %2090 = vmatprep.subr.bf16.mxu0 0
        %2091 = vmatpush2.bf16.xpose.msra.mxu0 0
        %2092 = vmatprep.subr.bf16.mxu0 0
        %2093 = vmatpush2.bf16.xpose.msra.mxu0 0
        %2094 = vmatprep.mubr.bf16.mxu0 0
        %2095 = vmatmul.mubr.bf16.gmra.mxu0 %v2033
        %v2096 = vpop.f32.mrf.mxu0
        %v2097 = vadd.f32 %v1145, %v2096
        %v2098 = vpop.f32.mrf.mxu0
        %v2099 = vpop.f32.mrf.mxu0
        %v2100 = vadd.f32 %v1145, %v2099
        %v2101 = vpop.f32.mrf.mxu0
        %2102 = vmatprep.mubr.bf16.mxu0 0
        %2103 = vmatmul.mubr.bf16.gmra.mxu0 %v2036
        %v2104 = vpop.f32.mrf.mxu0
        %v2105 = vadd.f32 %v1145, %v2104
        %v2106 = vpop.f32.mrf.mxu0
        %v2107 = vpop.f32.mrf.mxu0
        %v2108 = vadd.f32 %v1145, %v2107
        %v2109 = vpop.f32.mrf.mxu0
        %2110 = vmatprep.mubr.bf16.mxu0 0
        %2111 = vmatmul.mubr.bf16.gmra.mxu0 %v2039
        %v2112 = vpop.f32.mrf.mxu0
        %v2113 = vadd.f32 %v1145, %v2112
        %v2114 = vpop.f32.mrf.mxu0
        %v2115 = vpop.f32.mrf.mxu0
        %v2116 = vadd.f32 %v1145, %v2115
        %v2117 = vpop.f32.mrf.mxu0
        %2118 = vmatprep.mubr.bf16.mxu0 0
        %2119 = vmatmul.mubr.bf16.gmra.mxu0 %v2042
        %v2120 = vpop.f32.mrf.mxu0
        %v2121 = vadd.f32 %v1145, %v2120
        %v2122 = vpop.f32.mrf.mxu0
        %v2123 = vpop.f32.mrf.mxu0
        %v2124 = vadd.f32 %v1145, %v2123
        %v2125 = vpop.f32.mrf.mxu0
        %2126 = vmatprep.mubr.bf16.mxu0 0
        %2127 = vmatmul.mubr.bf16.gmra.mxu0 %v2045
        %v2128 = vpop.f32.mrf.mxu0
        %v2129 = vadd.f32 %v1145, %v2128
        %v2130 = vpop.f32.mrf.mxu0
        %v2131 = vpop.f32.mrf.mxu0
        %v2132 = vadd.f32 %v1145, %v2131
        %v2133 = vpop.f32.mrf.mxu0
        %2134 = vdwg.mxu0
        %v2135 = vsel %vm1250, %v2097, -inf
        %2136 = vmax.xlane.f32.xlu0 %v2135
        %v2137 = vpop.xlane.xlu0 %2136
        %v2138 = vsel %vm1250, %v2100, -inf
        %2139 = vmax.xlane.f32.xlu0 %v2138
        %v2140 = vpop.xlane.xlu0 %2139
        %v2141 = vsel %vm1250, %v2105, -inf
        %2142 = vmax.xlane.f32.xlu0 %v2141
        %v2143 = vpop.xlane.xlu0 %2142
        %v2144 = vsel %vm1250, %v2108, -inf
        %2145 = vmax.xlane.f32.xlu0 %v2144
        %v2146 = vpop.xlane.xlu0 %2145
        %v2147 = vsel %vm1250, %v2113, -inf
        %2148 = vmax.xlane.f32.xlu0 %v2147
        %v2149 = vpop.xlane.xlu0 %2148
        %v2150 = vsel %vm1250, %v2116, -inf
        %2151 = vmax.xlane.f32.xlu0 %v2150
        %v2152 = vpop.xlane.xlu0 %2151
        %v2153 = vsel %vm1250, %v2121, -inf
        %2154 = vmax.xlane.f32.xlu0 %v2153
        %v2155 = vpop.xlane.xlu0 %2154
        %v2156 = vsel %vm1250, %v2124, -inf
        %2157 = vmax.xlane.f32.xlu0 %v2156
        %v2158 = vpop.xlane.xlu0 %2157
        %v2159 = vsel %vm1250, %v2129, -inf
        %2160 = vmax.xlane.f32.xlu0 %v2159
        %v2161 = vpop.xlane.xlu0 %2160
        %v2162 = vsel %vm1250, %v2132, -inf
        %2163 = vmax.xlane.f32.xlu0 %v2162
        %v2164 = vpop.xlane.xlu0 %2163
        %v2165 = vsub.f32 %v2097, %v2137
        %v2166 = vsub.f32 %v2100, %v2140
        %v2167 = vsub.f32 %v2105, %v2143
        %v2168 = vsub.f32 %v2108, %v2146
        %v2169 = vsub.f32 %v2113, %v2149
        %v2170 = vsub.f32 %v2116, %v2152
        %v2171 = vsub.f32 %v2121, %v2155
        %v2172 = vsub.f32 %v2124, %v2158
        %v2173 = vsub.f32 %v2129, %v2161
        %v2174 = vsub.f32 %v2132, %v2164
        %v2175 = vmul.f32 %v2165, 1.442695
        %v2176 = vpow.pop %v2175
        %v2177 = vmul.f32 %v2166, 1.442695
        %v2178 = vpow.pop %v2177
        %v2179 = vmul.f32 %v2167, 1.442695
        %v2180 = vpow.pop %v2179
        %v2181 = vmul.f32 %v2168, 1.442695
        %v2182 = vpow.pop %v2181
        %v2183 = vmul.f32 %v2169, 1.442695
        %v2184 = vpow.pop %v2183
        %v2185 = vmul.f32 %v2170, 1.442695
        %v2186 = vpow.pop %v2185
        %v2187 = vmul.f32 %v2171, 1.442695
        %v2188 = vpow.pop %v2187
        %v2189 = vmul.f32 %v2172, 1.442695
        %v2190 = vpow.pop %v2189
        %v2191 = vmul.f32 %v2173, 1.442695
        %v2192 = vpow.pop %v2191
        %v2193 = vmul.f32 %v2174, 1.442695
        %v2194 = vpow.pop %v2193
        %v2195 = vsel %vm1250, %v2176, 0.0
        %2196 = vadd.xlane.f32.xlu0 %v2195
        %v2197 = vpop.xlane.xlu0 %2196
        %v2198 = vsel %vm1250, %v2178, 0.0
        %2199 = vadd.xlane.f32.xlu0 %v2198
        %v2200 = vpop.xlane.xlu0 %2199
        %v2201 = vsel %vm1250, %v2180, 0.0
        %2202 = vadd.xlane.f32.xlu0 %v2201
        %v2203 = vpop.xlane.xlu0 %2202
        %v2204 = vsel %vm1250, %v2182, 0.0
        %2205 = vadd.xlane.f32.xlu0 %v2204
        %v2206 = vpop.xlane.xlu0 %2205
        %v2207 = vsel %vm1250, %v2184, 0.0
        %2208 = vadd.xlane.f32.xlu0 %v2207
        %v2209 = vpop.xlane.xlu0 %2208
        %v2210 = vsel %vm1250, %v2186, 0.0
        %2211 = vadd.xlane.f32.xlu0 %v2210
        %v2212 = vpop.xlane.xlu0 %2211
        %v2213 = vsel %vm1250, %v2188, 0.0
        %2214 = vadd.xlane.f32.xlu0 %v2213
        %v2215 = vpop.xlane.xlu0 %2214
        %v2216 = vsel %vm1250, %v2190, 0.0
        %2217 = vadd.xlane.f32.xlu0 %v2216
        %v2218 = vpop.xlane.xlu0 %2217
        %v2219 = vsel %vm1250, %v2192, 0.0
        %2220 = vadd.xlane.f32.xlu0 %v2219
        %v2221 = vpop.xlane.xlu0 %2220
        %v2222 = vsel %vm1250, %v2194, 0.0
        %2223 = vadd.xlane.f32.xlu0 %v2222
        %v2224 = vpop.xlane.xlu0 %2223
        %v2225 = vrcp.pop %v2197
        %v2226 = vrcp.pop %v2200
        %v2227 = vrcp.pop %v2203
        %v2228 = vrcp.pop %v2206
        %v2229 = vrcp.pop %v2209
        %v2230 = vrcp.pop %v2212
        %v2231 = vrcp.pop %v2215
        %v2232 = vrcp.pop %v2218
        %v2233 = vrcp.pop %v2221
        %v2234 = vrcp.pop %v2224
        %v2235 = vmul.f32 %v2176, %v2225
        %v2236 = vmul.f32 %v2178, %v2226
        %v2237 = vmul.f32 %v2180, %v2227
        %v2238 = vmul.f32 %v2182, %v2228
        %v2239 = vmul.f32 %v2184, %v2229
        %v2240 = vmul.f32 %v2186, %v2230
        %v2241 = vmul.f32 %v2188, %v2231
        %v2242 = vmul.f32 %v2190, %v2232
        %v2243 = vmul.f32 %v2192, %v2233
        %v2244 = vmul.f32 %v2194, %v2234
        %v2245 = vpack.c.bf16 %v2236, %v2235
        %v2246 = vpack.c.bf16 %v2238, %v2237
        %v2247 = vpack.c.bf16 %v2240, %v2239
        %v2248 = vpack.c.bf16 %v2242, %v2241
        %v2249 = vpack.c.bf16 %v2244, %v2243
        %2250 = vrot.lane.b32.xlu0 %v1129, 96
        %v2251 = vpop.permute.xlu0 %2250
        %2252 = vrot.lane.b32.xlu0 %v1132, 96
        %v2253 = vpop.permute.xlu0 %2252
        %2254 = vrot.lane.b32.xlu0 %v1135, 96
        %v2255 = vpop.permute.xlu0 %2254
        %2256 = vrot.lane.b32.xlu0 %v1138, 96
        %v2257 = vpop.permute.xlu0 %2256
        %2258 = vrot.lane.b32.xlu0 %v1141, 96
        %v2259 = vpop.permute.xlu0 %2258
        %v2266 = vsel %vm1250, %v2245, 0
        %v2269 = vsel %vm1250, %v2246, 0
        %v2272 = vsel %vm1250, %v2247, 0
        %v2275 = vsel %vm1250, %v2248, 0
        %v2278 = vsel %vm1250, %v2249, 0
        %2280 = vmatprep.subr.bf16.mxu0 0
        %2281 = vmatpush1.bf16.msra.mxu0 0
        %2282 = vmatprep.subr.bf16.mxu0 0
        %2283 = vmatpush1.bf16.msra.mxu0 0
        %2284 = vmatprep.subr.bf16.mxu0 0
        %2285 = vmatpush1.bf16.msra.mxu0 0
        %2286 = vmatprep.subr.bf16.mxu0 0
        %2287 = vmatpush1.bf16.msra.mxu0 %v2259
        %2288 = vmatprep.subr.bf16.mxu0 0
        %2289 = vmatpush1.bf16.msra.mxu0 %v2257
        %2290 = vmatprep.subr.bf16.mxu0 0
        %2291 = vmatpush1.bf16.msra.mxu0 %v2255
        %2292 = vmatprep.subr.bf16.mxu0 0
        %2293 = vmatpush1.bf16.msra.mxu0 %v2253
        %2294 = vmatprep.subr.bf16.mxu0 0
        %2295 = vmatpush1.bf16.msra.mxu0 %v2251
        %2296 = vmatprep.subr.bf16.mxu0 0
        %2297 = vmatpush2.bf16.msra.mxu0 0
        %2298 = vmatprep.subr.bf16.mxu0 0
        %2299 = vmatpush2.bf16.msra.mxu0 0
        %2300 = vmatprep.subr.bf16.mxu0 0
        %2301 = vmatpush2.bf16.msra.mxu0 0
        %2302 = vmatprep.subr.bf16.mxu0 0
        %2303 = vmatpush2.bf16.msra.mxu0 0
        %2304 = vmatprep.subr.bf16.mxu0 0
        %2305 = vmatpush2.bf16.msra.mxu0 0
        %2306 = vmatprep.subr.bf16.mxu0 0
        %2307 = vmatpush2.bf16.msra.mxu0 0
        %2308 = vmatprep.subr.bf16.mxu0 0
        %2309 = vmatpush2.bf16.msra.mxu0 0
        %2310 = vmatprep.subr.bf16.mxu0 0
        %2311 = vmatpush2.bf16.msra.mxu0 0
        %2312 = vmatprep.mubr.bf16.mxu0 0
        %2313 = vmatmul.mubr.bf16.gmra.mxu0 %v2266
        %v2314 = vpop.f32.mrf.mxu0
        %v2315 = vadd.f32 0.0, %v2314
        %v2316 = vpop.f32.mrf.mxu0
        %v2317 = vpop.f32.mrf.mxu0
        %v2318 = vadd.f32 0.0, %v2317
        %v2319 = vpop.f32.mrf.mxu0
        %2320 = vmatprep.mubr.bf16.mxu0 0
        %2321 = vmatmul.mubr.bf16.gmra.mxu0 %v2269
        %v2322 = vpop.f32.mrf.mxu0
        %v2323 = vadd.f32 0.0, %v2322
        %v2324 = vpop.f32.mrf.mxu0
        %v2325 = vpop.f32.mrf.mxu0
        %v2326 = vadd.f32 0.0, %v2325
        %v2327 = vpop.f32.mrf.mxu0
        %2328 = vmatprep.mubr.bf16.mxu0 0
        %2329 = vmatmul.mubr.bf16.gmra.mxu0 %v2272
        %v2330 = vpop.f32.mrf.mxu0
        %v2331 = vadd.f32 0.0, %v2330
        %v2332 = vpop.f32.mrf.mxu0
        %v2333 = vpop.f32.mrf.mxu0
        %v2334 = vadd.f32 0.0, %v2333
        %v2335 = vpop.f32.mrf.mxu0
        %2336 = vmatprep.mubr.bf16.mxu0 0
        %2337 = vmatmul.mubr.bf16.gmra.mxu0 %v2275
        %v2338 = vpop.f32.mrf.mxu0
        %v2339 = vadd.f32 0.0, %v2338
        %v2340 = vpop.f32.mrf.mxu0
        %v2341 = vpop.f32.mrf.mxu0
        %v2342 = vadd.f32 0.0, %v2341
        %v2343 = vpop.f32.mrf.mxu0
        %2344 = vmatprep.mubr.bf16.mxu0 0
        %2345 = vmatmul.mubr.bf16.gmra.mxu0 %v2278
        %v2346 = vpop.f32.mrf.mxu0
        %v2347 = vadd.f32 0.0, %v2346
        %v2348 = vpop.f32.mrf.mxu0
        %v2349 = vpop.f32.mrf.mxu0
        %v2350 = vadd.f32 0.0, %v2349
        %v2351 = vpop.f32.mrf.mxu0
        %2352 = vdwg.mxu0
        %v2353 = vpack.c.bf16 %v2318, %v2315
        %v2354 = vpack.c.bf16 %v2326, %v2323
        %v2355 = vpack.c.bf16 %v2334, %v2331
        %v2356 = vpack.c.bf16 %v2342, %v2339
        %v2357 = vpack.c.bf16 %v2350, %v2347
        %v2358 = vld [vmem:[%s578 + $0x10] sm:$0xf]
        %v2359 = vld [vmem:[%s578 + $0x14] sm:$0xf]
        %v2362 = vunpack.c.l.b16 %v2358
        %v2363 = vunpack.c.l.b16 %v2359
        %v2364 = vpack.c.b16 %v2363, %v2362
        %v2367 = vsel %vm1146, %v2353, 0
        %v2370 = vsel %vm1146, %v2354, 0
        %v2373 = vsel %vm1146, %v2355, 0
        %v2376 = vsel %vm1146, %v2356, 0
        %v2379 = vsel %vm1146, %v2357, 0
        %2381 = vmatprep.subr.bf16.mxu0 0
        %2382 = vmatpush1.bf16.msra.mxu0 0
        %2383 = vmatprep.subr.bf16.mxu0 0
        %2384 = vmatpush1.bf16.msra.mxu0 0
        %2385 = vmatprep.subr.bf16.mxu0 0
        %2386 = vmatpush1.bf16.msra.mxu0 0
        %2387 = vmatprep.subr.bf16.mxu0 0
        %2388 = vmatpush1.bf16.msra.mxu0 0
        %2389 = vmatprep.subr.bf16.mxu0 0
        %2390 = vmatpush1.bf16.msra.mxu0 0
        %2391 = vmatprep.subr.bf16.mxu0 0
        %2392 = vmatpush1.bf16.msra.mxu0 0
        %2393 = vmatprep.subr.bf16.mxu0 0
        %2394 = vmatpush1.bf16.msra.mxu0 0
        %2395 = vmatprep.subr.bf16.mxu0 0
        %2396 = vmatpush1.bf16.msra.mxu0 %v2364
        %2397 = vmatprep.subr.bf16.mxu0 0
        %2398 = vmatpush2.bf16.msra.mxu0 0
        %2399 = vmatprep.subr.bf16.mxu0 0
        %2400 = vmatpush2.bf16.msra.mxu0 0
        %2401 = vmatprep.subr.bf16.mxu0 0
        %2402 = vmatpush2.bf16.msra.mxu0 0
        %2403 = vmatprep.subr.bf16.mxu0 0
        %2404 = vmatpush2.bf16.msra.mxu0 0
        %2405 = vmatprep.subr.bf16.mxu0 0
        %2406 = vmatpush2.bf16.msra.mxu0 0
        %2407 = vmatprep.subr.bf16.mxu0 0
        %2408 = vmatpush2.bf16.msra.mxu0 0
        %2409 = vmatprep.subr.bf16.mxu0 0
        %2410 = vmatpush2.bf16.msra.mxu0 0
        %2411 = vmatprep.subr.bf16.mxu0 0
        %2412 = vmatpush2.bf16.msra.mxu0 0
        %2413 = vmatprep.mubr.bf16.mxu0 0
        %2414 = vmatmul.mubr.bf16.gmra.mxu0 %v2367
        %v2415 = vpop.f32.mrf.mxu0
        %v2416 = vadd.f32 0.0, %v2415
        %v2417 = vpop.f32.mrf.mxu0
        %v2418 = vpop.f32.mrf.mxu0
        %v2419 = vadd.f32 0.0, %v2418
        %v2420 = vpop.f32.mrf.mxu0
        %2421 = vmatprep.mubr.bf16.mxu0 0
        %2422 = vmatmul.mubr.bf16.gmra.mxu0 %v2370
        %v2423 = vpop.f32.mrf.mxu0
        %v2424 = vadd.f32 0.0, %v2423
        %v2425 = vpop.f32.mrf.mxu0
        %v2426 = vpop.f32.mrf.mxu0
        %v2427 = vadd.f32 0.0, %v2426
        %v2428 = vpop.f32.mrf.mxu0
        %2429 = vmatprep.mubr.bf16.mxu0 0
        %2430 = vmatmul.mubr.bf16.gmra.mxu0 %v2373
        %v2431 = vpop.f32.mrf.mxu0
        %v2432 = vadd.f32 0.0, %v2431
        %v2433 = vpop.f32.mrf.mxu0
        %v2434 = vpop.f32.mrf.mxu0
        %v2435 = vadd.f32 0.0, %v2434
        %v2436 = vpop.f32.mrf.mxu0
        %2437 = vmatprep.mubr.bf16.mxu0 0
        %2438 = vmatmul.mubr.bf16.gmra.mxu0 %v2376
        %v2439 = vpop.f32.mrf.mxu0
        %v2440 = vadd.f32 0.0, %v2439
        %v2441 = vpop.f32.mrf.mxu0
        %v2442 = vpop.f32.mrf.mxu0
        %v2443 = vadd.f32 0.0, %v2442
        %v2444 = vpop.f32.mrf.mxu0
        %2445 = vmatprep.mubr.bf16.mxu0 0
        %2446 = vmatmul.mubr.bf16.gmra.mxu0 %v2379
        %v2447 = vpop.f32.mrf.mxu0
        %v2448 = vadd.f32 0.0, %v2447
        %v2449 = vpop.f32.mrf.mxu0
        %v2450 = vpop.f32.mrf.mxu0
        %v2451 = vadd.f32 0.0, %v2450
        %v2452 = vpop.f32.mrf.mxu0
        %2453 = vdwg.mxu0
        %v2454 = vadd.f32 %v1974, %v2416
        %v2455 = vadd.f32 %v1977, %v2419
        %v2456 = vadd.f32 %v1982, %v2424
        %v2457 = vadd.f32 %v1985, %v2427
        %v2458 = vadd.f32 %v1990, %v2432
        %v2459 = vadd.f32 %v1993, %v2435
        %v2460 = vadd.f32 %v1998, %v2440
        %v2461 = vadd.f32 %v2001, %v2443
        %v2462 = vadd.f32 %v2006, %v2448
        %v2463 = vadd.f32 %v2009, %v2451
        %2464 = vrot.lane.b32.xlu0 %v1127, 80
        %v2465 = vpop.permute.xlu0 %2464
        %2466 = vrot.lane.b32.xlu0 %v1130, 80
        %v2467 = vpop.permute.xlu0 %2466
        %2468 = vrot.lane.b32.xlu0 %v1133, 80
        %v2469 = vpop.permute.xlu0 %2468
        %2470 = vrot.lane.b32.xlu0 %v1136, 80
        %v2471 = vpop.permute.xlu0 %2470
        %2472 = vrot.lane.b32.xlu0 %v1139, 80
        %v2473 = vpop.permute.xlu0 %2472
        %2474 = vrot.lane.b32.xlu0 %v1128, 80
        %v2475 = vpop.permute.xlu0 %2474
        %2476 = vrot.lane.b32.xlu0 %v1131, 80
        %v2477 = vpop.permute.xlu0 %2476
        %2478 = vrot.lane.b32.xlu0 %v1134, 80
        %v2479 = vpop.permute.xlu0 %2478
        %2480 = vrot.lane.b32.xlu0 %v1137, 80
        %v2481 = vpop.permute.xlu0 %2480
        %2482 = vrot.lane.b32.xlu0 %v1140, 80
        %v2483 = vpop.permute.xlu0 %2482
        %v2485 = vsel %vm1146, %v2465, 0
        %v2488 = vsel %vm1146, %v2467, 0
        %v2491 = vsel %vm1146, %v2469, 0
        %v2494 = vsel %vm1146, %v2471, 0
        %v2497 = vsel %vm1146, %v2473, 0
        %v2500 = vsel %vm1146, %v2475, 0
        %v2503 = vsel %vm1146, %v2477, 0
        %v2506 = vsel %vm1146, %v2479, 0
        %v2509 = vsel %vm1146, %v2481, 0
        %v2512 = vsel %vm1146, %v2483, 0
        %2514 = vmatprep.subr.bf16.mxu0 0
        %2515 = vmatpush1.bf16.xpose.msra.mxu0 0
        %2516 = vmatprep.subr.bf16.mxu0 0
        %2517 = vmatpush1.bf16.xpose.msra.mxu0 0
        %2518 = vmatprep.subr.bf16.mxu0 0
        %2519 = vmatpush1.bf16.xpose.msra.mxu0 0
        %2520 = vmatprep.subr.bf16.mxu0 0
        %2521 = vmatpush1.bf16.xpose.msra.mxu0 %v2512
        %2522 = vmatprep.subr.bf16.mxu0 0
        %2523 = vmatpush1.bf16.xpose.msra.mxu0 %v2509
        %2524 = vmatprep.subr.bf16.mxu0 0
        %2525 = vmatpush1.bf16.xpose.msra.mxu0 %v2506
        %2526 = vmatprep.subr.bf16.mxu0 0
        %2527 = vmatpush1.bf16.xpose.msra.mxu0 %v2503
        %2528 = vmatprep.subr.bf16.mxu0 0
        %2529 = vmatpush1.bf16.xpose.msra.mxu0 %v2500
        %2530 = vmatprep.subr.bf16.mxu0 0
        %2531 = vmatpush2.bf16.xpose.msra.mxu0 0
        %2532 = vmatprep.subr.bf16.mxu0 0
        %2533 = vmatpush2.bf16.xpose.msra.mxu0 0
        %2534 = vmatprep.subr.bf16.mxu0 0
        %2535 = vmatpush2.bf16.xpose.msra.mxu0 0
        %2536 = vmatprep.subr.bf16.mxu0 0
        %2537 = vmatpush2.bf16.xpose.msra.mxu0 0
        %2538 = vmatprep.subr.bf16.mxu0 0
        %2539 = vmatpush2.bf16.xpose.msra.mxu0 0
        %2540 = vmatprep.subr.bf16.mxu0 0
        %2541 = vmatpush2.bf16.xpose.msra.mxu0 0
        %2542 = vmatprep.subr.bf16.mxu0 0
        %2543 = vmatpush2.bf16.xpose.msra.mxu0 0
        %2544 = vmatprep.subr.bf16.mxu0 0
        %2545 = vmatpush2.bf16.xpose.msra.mxu0 0
        %2546 = vmatprep.mubr.bf16.mxu0 0
        %2547 = vmatmul.mubr.bf16.gmra.mxu0 %v2485
        %v2548 = vpop.f32.mrf.mxu0
        %v2549 = vadd.f32 %v1145, %v2548
        %v2550 = vpop.f32.mrf.mxu0
        %v2551 = vpop.f32.mrf.mxu0
        %v2552 = vadd.f32 %v1145, %v2551
        %v2553 = vpop.f32.mrf.mxu0
        %2554 = vmatprep.mubr.bf16.mxu0 0
        %2555 = vmatmul.mubr.bf16.gmra.mxu0 %v2488
        %v2556 = vpop.f32.mrf.mxu0
        %v2557 = vadd.f32 %v1145, %v2556
        %v2558 = vpop.f32.mrf.mxu0
        %v2559 = vpop.f32.mrf.mxu0
        %v2560 = vadd.f32 %v1145, %v2559
        %v2561 = vpop.f32.mrf.mxu0
        %2562 = vmatprep.mubr.bf16.mxu0 0
        %2563 = vmatmul.mubr.bf16.gmra.mxu0 %v2491
        %v2564 = vpop.f32.mrf.mxu0
        %v2565 = vadd.f32 %v1145, %v2564
        %v2566 = vpop.f32.mrf.mxu0
        %v2567 = vpop.f32.mrf.mxu0
        %v2568 = vadd.f32 %v1145, %v2567
        %v2569 = vpop.f32.mrf.mxu0
        %2570 = vmatprep.mubr.bf16.mxu0 0
        %2571 = vmatmul.mubr.bf16.gmra.mxu0 %v2494
        %v2572 = vpop.f32.mrf.mxu0
        %v2573 = vadd.f32 %v1145, %v2572
        %v2574 = vpop.f32.mrf.mxu0
        %v2575 = vpop.f32.mrf.mxu0
        %v2576 = vadd.f32 %v1145, %v2575
        %v2577 = vpop.f32.mrf.mxu0
        %2578 = vmatprep.mubr.bf16.mxu0 0
        %2579 = vmatmul.mubr.bf16.gmra.mxu0 %v2497
        %v2580 = vpop.f32.mrf.mxu0
        %v2581 = vadd.f32 %v1145, %v2580
        %v2582 = vpop.f32.mrf.mxu0
        %v2583 = vpop.f32.mrf.mxu0
        %v2584 = vadd.f32 %v1145, %v2583
        %v2585 = vpop.f32.mrf.mxu0
        %2586 = vdwg.mxu0
        %v2587 = vsel %vm1250, %v2549, -inf
        %2588 = vmax.xlane.f32.xlu0 %v2587
        %v2589 = vpop.xlane.xlu0 %2588
        %v2590 = vsel %vm1250, %v2552, -inf
        %2591 = vmax.xlane.f32.xlu0 %v2590
        %v2592 = vpop.xlane.xlu0 %2591
        %v2593 = vsel %vm1250, %v2557, -inf
        %2594 = vmax.xlane.f32.xlu0 %v2593
        %v2595 = vpop.xlane.xlu0 %2594
        %v2596 = vsel %vm1250, %v2560, -inf
        %2597 = vmax.xlane.f32.xlu0 %v2596
        %v2598 = vpop.xlane.xlu0 %2597
        %v2599 = vsel %vm1250, %v2565, -inf
        %2600 = vmax.xlane.f32.xlu0 %v2599
        %v2601 = vpop.xlane.xlu0 %2600
        %v2602 = vsel %vm1250, %v2568, -inf
        %2603 = vmax.xlane.f32.xlu0 %v2602
        %v2604 = vpop.xlane.xlu0 %2603
        %v2605 = vsel %vm1250, %v2573, -inf
        %2606 = vmax.xlane.f32.xlu0 %v2605
        %v2607 = vpop.xlane.xlu0 %2606
        %v2608 = vsel %vm1250, %v2576, -inf
        %2609 = vmax.xlane.f32.xlu0 %v2608
        %v2610 = vpop.xlane.xlu0 %2609
        %v2611 = vsel %vm1250, %v2581, -inf
        %2612 = vmax.xlane.f32.xlu0 %v2611
        %v2613 = vpop.xlane.xlu0 %2612
        %v2614 = vsel %vm1250, %v2584, -inf
        %2615 = vmax.xlane.f32.xlu0 %v2614
        %v2616 = vpop.xlane.xlu0 %2615
        %v2617 = vsub.f32 %v2549, %v2589
        %v2618 = vsub.f32 %v2552, %v2592
        %v2619 = vsub.f32 %v2557, %v2595
        %v2620 = vsub.f32 %v2560, %v2598
        %v2621 = vsub.f32 %v2565, %v2601
        %v2622 = vsub.f32 %v2568, %v2604
        %v2623 = vsub.f32 %v2573, %v2607
        %v2624 = vsub.f32 %v2576, %v2610
        %v2625 = vsub.f32 %v2581, %v2613
        %v2626 = vsub.f32 %v2584, %v2616
        %v2627 = vmul.f32 %v2617, 1.442695
        %v2628 = vpow.pop %v2627
        %v2629 = vmul.f32 %v2618, 1.442695
        %v2630 = vpow.pop %v2629
        %v2631 = vmul.f32 %v2619, 1.442695
        %v2632 = vpow.pop %v2631
        %v2633 = vmul.f32 %v2620, 1.442695
        %v2634 = vpow.pop %v2633
        %v2635 = vmul.f32 %v2621, 1.442695
        %v2636 = vpow.pop %v2635
        %v2637 = vmul.f32 %v2622, 1.442695
        %v2638 = vpow.pop %v2637
        %v2639 = vmul.f32 %v2623, 1.442695
        %v2640 = vpow.pop %v2639
        %v2641 = vmul.f32 %v2624, 1.442695
        %v2642 = vpow.pop %v2641
        %v2643 = vmul.f32 %v2625, 1.442695
        %v2644 = vpow.pop %v2643
        %v2645 = vmul.f32 %v2626, 1.442695
        %v2646 = vpow.pop %v2645
        %v2647 = vsel %vm1250, %v2628, 0.0
        %2648 = vadd.xlane.f32.xlu0 %v2647
        %v2649 = vpop.xlane.xlu0 %2648
        %v2650 = vsel %vm1250, %v2630, 0.0
        %2651 = vadd.xlane.f32.xlu0 %v2650
        %v2652 = vpop.xlane.xlu0 %2651
        %v2653 = vsel %vm1250, %v2632, 0.0
        %2654 = vadd.xlane.f32.xlu0 %v2653
        %v2655 = vpop.xlane.xlu0 %2654
        %v2656 = vsel %vm1250, %v2634, 0.0
        %2657 = vadd.xlane.f32.xlu0 %v2656
        %v2658 = vpop.xlane.xlu0 %2657
        %v2659 = vsel %vm1250, %v2636, 0.0
        %2660 = vadd.xlane.f32.xlu0 %v2659
        %v2661 = vpop.xlane.xlu0 %2660
        %v2662 = vsel %vm1250, %v2638, 0.0
        %2663 = vadd.xlane.f32.xlu0 %v2662
        %v2664 = vpop.xlane.xlu0 %2663
        %v2665 = vsel %vm1250, %v2640, 0.0
        %2666 = vadd.xlane.f32.xlu0 %v2665
        %v2667 = vpop.xlane.xlu0 %2666
        %v2668 = vsel %vm1250, %v2642, 0.0
        %2669 = vadd.xlane.f32.xlu0 %v2668
        %v2670 = vpop.xlane.xlu0 %2669
        %v2671 = vsel %vm1250, %v2644, 0.0
        %2672 = vadd.xlane.f32.xlu0 %v2671
        %v2673 = vpop.xlane.xlu0 %2672
        %v2674 = vsel %vm1250, %v2646, 0.0
        %2675 = vadd.xlane.f32.xlu0 %v2674
        %v2676 = vpop.xlane.xlu0 %2675
        %v2677 = vrcp.pop %v2649
        %v2678 = vrcp.pop %v2652
        %v2679 = vrcp.pop %v2655
        %v2680 = vrcp.pop %v2658
        %v2681 = vrcp.pop %v2661
        %v2682 = vrcp.pop %v2664
        %v2683 = vrcp.pop %v2667
        %v2684 = vrcp.pop %v2670
        %v2685 = vrcp.pop %v2673
        %v2686 = vrcp.pop %v2676
        %v2687 = vmul.f32 %v2628, %v2677
        %v2688 = vmul.f32 %v2630, %v2678
        %v2689 = vmul.f32 %v2632, %v2679
        %v2690 = vmul.f32 %v2634, %v2680
        %v2691 = vmul.f32 %v2636, %v2681
        %v2692 = vmul.f32 %v2638, %v2682
        %v2693 = vmul.f32 %v2640, %v2683
        %v2694 = vmul.f32 %v2642, %v2684
        %v2695 = vmul.f32 %v2644, %v2685
        %v2696 = vmul.f32 %v2646, %v2686
        %v2697 = vpack.c.bf16 %v2688, %v2687
        %v2698 = vpack.c.bf16 %v2690, %v2689
        %v2699 = vpack.c.bf16 %v2692, %v2691
        %v2700 = vpack.c.bf16 %v2694, %v2693
        %v2701 = vpack.c.bf16 %v2696, %v2695
        %2702 = vrot.lane.b32.xlu0 %v1129, 80
        %v2703 = vpop.permute.xlu0 %2702
        %2704 = vrot.lane.b32.xlu0 %v1132, 80
        %v2705 = vpop.permute.xlu0 %2704
        %2706 = vrot.lane.b32.xlu0 %v1135, 80
        %v2707 = vpop.permute.xlu0 %2706
        %2708 = vrot.lane.b32.xlu0 %v1138, 80
        %v2709 = vpop.permute.xlu0 %2708
        %2710 = vrot.lane.b32.xlu0 %v1141, 80
        %v2711 = vpop.permute.xlu0 %2710
        %v2718 = vsel %vm1250, %v2697, 0
        %v2721 = vsel %vm1250, %v2698, 0
        %v2724 = vsel %vm1250, %v2699, 0
        %v2727 = vsel %vm1250, %v2700, 0
        %v2730 = vsel %vm1250, %v2701, 0
        %2732 = vmatprep.subr.bf16.mxu0 0
        %2733 = vmatpush1.bf16.msra.mxu0 0
        %2734 = vmatprep.subr.bf16.mxu0 0
        %2735 = vmatpush1.bf16.msra.mxu0 0
        %2736 = vmatprep.subr.bf16.mxu0 0
        %2737 = vmatpush1.bf16.msra.mxu0 0
        %2738 = vmatprep.subr.bf16.mxu0 0
        %2739 = vmatpush1.bf16.msra.mxu0 %v2711
        %2740 = vmatprep.subr.bf16.mxu0 0
        %2741 = vmatpush1.bf16.msra.mxu0 %v2709
        %2742 = vmatprep.subr.bf16.mxu0 0
        %2743 = vmatpush1.bf16.msra.mxu0 %v2707
        %2744 = vmatprep.subr.bf16.mxu0 0
        %2745 = vmatpush1.bf16.msra.mxu0 %v2705
        %2746 = vmatprep.subr.bf16.mxu0 0
        %2747 = vmatpush1.bf16.msra.mxu0 %v2703
        %2748 = vmatprep.subr.bf16.mxu0 0
        %2749 = vmatpush2.bf16.msra.mxu0 0
        %2750 = vmatprep.subr.bf16.mxu0 0
        %2751 = vmatpush2.bf16.msra.mxu0 0
        %2752 = vmatprep.subr.bf16.mxu0 0
        %2753 = vmatpush2.bf16.msra.mxu0 0
        %2754 = vmatprep.subr.bf16.mxu0 0
        %2755 = vmatpush2.bf16.msra.mxu0 0
        %2756 = vmatprep.subr.bf16.mxu0 0
        %2757 = vmatpush2.bf16.msra.mxu0 0
        %2758 = vmatprep.subr.bf16.mxu0 0
        %2759 = vmatpush2.bf16.msra.mxu0 0
        %2760 = vmatprep.subr.bf16.mxu0 0
        %2761 = vmatpush2.bf16.msra.mxu0 0
        %2762 = vmatprep.subr.bf16.mxu0 0
        %2763 = vmatpush2.bf16.msra.mxu0 0
        %2764 = vmatprep.mubr.bf16.mxu0 0
        %2765 = vmatmul.mubr.bf16.gmra.mxu0 %v2718
        %v2766 = vpop.f32.mrf.mxu0
        %v2767 = vadd.f32 0.0, %v2766
        %v2768 = vpop.f32.mrf.mxu0
        %v2769 = vpop.f32.mrf.mxu0
        %v2770 = vadd.f32 0.0, %v2769
        %v2771 = vpop.f32.mrf.mxu0
        %2772 = vmatprep.mubr.bf16.mxu0 0
        %2773 = vmatmul.mubr.bf16.gmra.mxu0 %v2721
        %v2774 = vpop.f32.mrf.mxu0
        %v2775 = vadd.f32 0.0, %v2774
        %v2776 = vpop.f32.mrf.mxu0
        %v2777 = vpop.f32.mrf.mxu0
        %v2778 = vadd.f32 0.0, %v2777
        %v2779 = vpop.f32.mrf.mxu0
        %2780 = vmatprep.mubr.bf16.mxu0 0
        %2781 = vmatmul.mubr.bf16.gmra.mxu0 %v2724
        %v2782 = vpop.f32.mrf.mxu0
        %v2783 = vadd.f32 0.0, %v2782
        %v2784 = vpop.f32.mrf.mxu0
        %v2785 = vpop.f32.mrf.mxu0
        %v2786 = vadd.f32 0.0, %v2785
        %v2787 = vpop.f32.mrf.mxu0
        %2788 = vmatprep.mubr.bf16.mxu0 0
        %2789 = vmatmul.mubr.bf16.gmra.mxu0 %v2727
        %v2790 = vpop.f32.mrf.mxu0
        %v2791 = vadd.f32 0.0, %v2790
        %v2792 = vpop.f32.mrf.mxu0
        %v2793 = vpop.f32.mrf.mxu0
        %v2794 = vadd.f32 0.0, %v2793
        %v2795 = vpop.f32.mrf.mxu0
        %2796 = vmatprep.mubr.bf16.mxu0 0
        %2797 = vmatmul.mubr.bf16.gmra.mxu0 %v2730
        %v2798 = vpop.f32.mrf.mxu0
        %v2799 = vadd.f32 0.0, %v2798
        %v2800 = vpop.f32.mrf.mxu0
        %v2801 = vpop.f32.mrf.mxu0
        %v2802 = vadd.f32 0.0, %v2801
        %v2803 = vpop.f32.mrf.mxu0
        %2804 = vdwg.mxu0
        %v2805 = vpack.c.bf16 %v2770, %v2767
        %v2806 = vpack.c.bf16 %v2778, %v2775
        %v2807 = vpack.c.bf16 %v2786, %v2783
        %v2808 = vpack.c.bf16 %v2794, %v2791
        %v2809 = vpack.c.bf16 %v2802, %v2799
        %v2810 = vld [vmem:[%s578 + $0x18] sm:$0xf]
        %v2811 = vld [vmem:[%s578 + $0x1c] sm:$0xf]
        %v2814 = vunpack.c.l.b16 %v2810
        %v2815 = vunpack.c.l.b16 %v2811
        %v2816 = vpack.c.b16 %v2815, %v2814
        %v2819 = vsel %vm1146, %v2805, 0
        %v2822 = vsel %vm1146, %v2806, 0
        %v2825 = vsel %vm1146, %v2807, 0
        %v2828 = vsel %vm1146, %v2808, 0
        %v2831 = vsel %vm1146, %v2809, 0
        %2833 = vmatprep.subr.bf16.mxu0 0
        %2834 = vmatpush1.bf16.msra.mxu0 0
        %2835 = vmatprep.subr.bf16.mxu0 0
        %2836 = vmatpush1.bf16.msra.mxu0 0
        %2837 = vmatprep.subr.bf16.mxu0 0
        %2838 = vmatpush1.bf16.msra.mxu0 0
        %2839 = vmatprep.subr.bf16.mxu0 0
        %2840 = vmatpush1.bf16.msra.mxu0 0
        %2841 = vmatprep.subr.bf16.mxu0 0
        %2842 = vmatpush1.bf16.msra.mxu0 0
        %2843 = vmatprep.subr.bf16.mxu0 0
        %2844 = vmatpush1.bf16.msra.mxu0 0
        %2845 = vmatprep.subr.bf16.mxu0 0
        %2846 = vmatpush1.bf16.msra.mxu0 0
        %2847 = vmatprep.subr.bf16.mxu0 0
        %2848 = vmatpush1.bf16.msra.mxu0 %v2816
        %2849 = vmatprep.subr.bf16.mxu0 0
        %2850 = vmatpush2.bf16.msra.mxu0 0
        %2851 = vmatprep.subr.bf16.mxu0 0
        %2852 = vmatpush2.bf16.msra.mxu0 0
        %2853 = vmatprep.subr.bf16.mxu0 0
        %2854 = vmatpush2.bf16.msra.mxu0 0
        %2855 = vmatprep.subr.bf16.mxu0 0
        %2856 = vmatpush2.bf16.msra.mxu0 0
        %2857 = vmatprep.subr.bf16.mxu0 0
        %2858 = vmatpush2.bf16.msra.mxu0 0
        %2859 = vmatprep.subr.bf16.mxu0 0
        %2860 = vmatpush2.bf16.msra.mxu0 0
        %2861 = vmatprep.subr.bf16.mxu0 0
        %2862 = vmatpush2.bf16.msra.mxu0 0
        %2863 = vmatprep.subr.bf16.mxu0 0
        %2864 = vmatpush2.bf16.msra.mxu0 0
        %2865 = vmatprep.mubr.bf16.mxu0 0
        %2866 = vmatmul.mubr.bf16.gmra.mxu0 %v2819
        %v2867 = vpop.f32.mrf.mxu0
        %v2868 = vadd.f32 0.0, %v2867
        %v2869 = vpop.f32.mrf.mxu0
        %v2870 = vpop.f32.mrf.mxu0
        %v2871 = vadd.f32 0.0, %v2870
        %v2872 = vpop.f32.mrf.mxu0
        %2873 = vmatprep.mubr.bf16.mxu0 0
        %2874 = vmatmul.mubr.bf16.gmra.mxu0 %v2822
        %v2875 = vpop.f32.mrf.mxu0
        %v2876 = vadd.f32 0.0, %v2875
        %v2877 = vpop.f32.mrf.mxu0
        %v2878 = vpop.f32.mrf.mxu0
        %v2879 = vadd.f32 0.0, %v2878
        %v2880 = vpop.f32.mrf.mxu0
        %2881 = vmatprep.mubr.bf16.mxu0 0
        %2882 = vmatmul.mubr.bf16.gmra.mxu0 %v2825
        %v2883 = vpop.f32.mrf.mxu0
        %v2884 = vadd.f32 0.0, %v2883
        %v2885 = vpop.f32.mrf.mxu0
        %v2886 = vpop.f32.mrf.mxu0
        %v2887 = vadd.f32 0.0, %v2886
        %v2888 = vpop.f32.mrf.mxu0
        %2889 = vmatprep.mubr.bf16.mxu0 0
        %2890 = vmatmul.mubr.bf16.gmra.mxu0 %v2828
        %v2891 = vpop.f32.mrf.mxu0
        %v2892 = vadd.f32 0.0, %v2891
        %v2893 = vpop.f32.mrf.mxu0
        %v2894 = vpop.f32.mrf.mxu0
        %v2895 = vadd.f32 0.0, %v2894
        %v2896 = vpop.f32.mrf.mxu0
        %2897 = vmatprep.mubr.bf16.mxu0 0
        %2898 = vmatmul.mubr.bf16.gmra.mxu0 %v2831
        %v2899 = vpop.f32.mrf.mxu0
        %v2900 = vadd.f32 0.0, %v2899
        %v2901 = vpop.f32.mrf.mxu0
        %v2902 = vpop.f32.mrf.mxu0
        %v2903 = vadd.f32 0.0, %v2902
        %v2904 = vpop.f32.mrf.mxu0
        %2905 = vdwg.mxu0
        %v2906 = vadd.f32 %v2454, %v2868
        %v2907 = vadd.f32 %v2455, %v2871
        %v2908 = vadd.f32 %v2456, %v2876
        %v2909 = vadd.f32 %v2457, %v2879
        %v2910 = vadd.f32 %v2458, %v2884
        %v2911 = vadd.f32 %v2459, %v2887
        %v2912 = vadd.f32 %v2460, %v2892
        %v2913 = vadd.f32 %v2461, %v2895
        %v2914 = vadd.f32 %v2462, %v2900
        %v2915 = vadd.f32 %v2463, %v2903
        %2916 = vrot.lane.b32.xlu0 %v1127, 64
        %v2917 = vpop.permute.xlu0 %2916
        %2918 = vrot.lane.b32.xlu0 %v1130, 64
        %v2919 = vpop.permute.xlu0 %2918
        %2920 = vrot.lane.b32.xlu0 %v1133, 64
        %v2921 = vpop.permute.xlu0 %2920
        %2922 = vrot.lane.b32.xlu0 %v1136, 64
        %v2923 = vpop.permute.xlu0 %2922
        %2924 = vrot.lane.b32.xlu0 %v1139, 64
        %v2925 = vpop.permute.xlu0 %2924
        %2926 = vrot.lane.b32.xlu0 %v1128, 64
        %v2927 = vpop.permute.xlu0 %2926
        %2928 = vrot.lane.b32.xlu0 %v1131, 64
        %v2929 = vpop.permute.xlu0 %2928
        %2930 = vrot.lane.b32.xlu0 %v1134, 64
        %v2931 = vpop.permute.xlu0 %2930
        %2932 = vrot.lane.b32.xlu0 %v1137, 64
        %v2933 = vpop.permute.xlu0 %2932
        %2934 = vrot.lane.b32.xlu0 %v1140, 64
        %v2935 = vpop.permute.xlu0 %2934
        %v2937 = vsel %vm1146, %v2917, 0
        %v2940 = vsel %vm1146, %v2919, 0
        %v2943 = vsel %vm1146, %v2921, 0
        %v2946 = vsel %vm1146, %v2923, 0
        %v2949 = vsel %vm1146, %v2925, 0
        %v2952 = vsel %vm1146, %v2927, 0
        %v2955 = vsel %vm1146, %v2929, 0
        %v2958 = vsel %vm1146, %v2931, 0
        %v2961 = vsel %vm1146, %v2933, 0
        %v2964 = vsel %vm1146, %v2935, 0
        %2966 = vmatprep.subr.bf16.mxu0 0
        %2967 = vmatpush1.bf16.xpose.msra.mxu0 0
        %2968 = vmatprep.subr.bf16.mxu0 0
        %2969 = vmatpush1.bf16.xpose.msra.mxu0 0
        %2970 = vmatprep.subr.bf16.mxu0 0
        %2971 = vmatpush1.bf16.xpose.msra.mxu0 0
        %2972 = vmatprep.subr.bf16.mxu0 0
        %2973 = vmatpush1.bf16.xpose.msra.mxu0 %v2964
        %2974 = vmatprep.subr.bf16.mxu0 0
        %2975 = vmatpush1.bf16.xpose.msra.mxu0 %v2961
        %2976 = vmatprep.subr.bf16.mxu0 0
        %2977 = vmatpush1.bf16.xpose.msra.mxu0 %v2958
        %2978 = vmatprep.subr.bf16.mxu0 0
        %2979 = vmatpush1.bf16.xpose.msra.mxu0 %v2955
        %2980 = vmatprep.subr.bf16.mxu0 0
        %2981 = vmatpush1.bf16.xpose.msra.mxu0 %v2952
        %2982 = vmatprep.subr.bf16.mxu0 0
        %2983 = vmatpush2.bf16.xpose.msra.mxu0 0
        %2984 = vmatprep.subr.bf16.mxu0 0
        %2985 = vmatpush2.bf16.xpose.msra.mxu0 0
        %2986 = vmatprep.subr.bf16.mxu0 0
        %2987 = vmatpush2.bf16.xpose.msra.mxu0 0
        %2988 = vmatprep.subr.bf16.mxu0 0
        %2989 = vmatpush2.bf16.xpose.msra.mxu0 0
        %2990 = vmatprep.subr.bf16.mxu0 0
        %2991 = vmatpush2.bf16.xpose.msra.mxu0 0
        %2992 = vmatprep.subr.bf16.mxu0 0
        %2993 = vmatpush2.bf16.xpose.msra.mxu0 0
        %2994 = vmatprep.subr.bf16.mxu0 0
        %2995 = vmatpush2.bf16.xpose.msra.mxu0 0
        %2996 = vmatprep.subr.bf16.mxu0 0
        %2997 = vmatpush2.bf16.xpose.msra.mxu0 0
        %2998 = vmatprep.mubr.bf16.mxu0 0
        %2999 = vmatmul.mubr.bf16.gmra.mxu0 %v2937
        %v3000 = vpop.f32.mrf.mxu0
        %v3001 = vadd.f32 %v1145, %v3000
        %v3002 = vpop.f32.mrf.mxu0
        %v3003 = vpop.f32.mrf.mxu0
        %v3004 = vadd.f32 %v1145, %v3003
        %v3005 = vpop.f32.mrf.mxu0
        %3006 = vmatprep.mubr.bf16.mxu0 0
        %3007 = vmatmul.mubr.bf16.gmra.mxu0 %v2940
        %v3008 = vpop.f32.mrf.mxu0
        %v3009 = vadd.f32 %v1145, %v3008
        %v3010 = vpop.f32.mrf.mxu0
        %v3011 = vpop.f32.mrf.mxu0
        %v3012 = vadd.f32 %v1145, %v3011
        %v3013 = vpop.f32.mrf.mxu0
        %3014 = vmatprep.mubr.bf16.mxu0 0
        %3015 = vmatmul.mubr.bf16.gmra.mxu0 %v2943
        %v3016 = vpop.f32.mrf.mxu0
        %v3017 = vadd.f32 %v1145, %v3016
        %v3018 = vpop.f32.mrf.mxu0
        %v3019 = vpop.f32.mrf.mxu0
        %v3020 = vadd.f32 %v1145, %v3019
        %v3021 = vpop.f32.mrf.mxu0
        %3022 = vmatprep.mubr.bf16.mxu0 0
        %3023 = vmatmul.mubr.bf16.gmra.mxu0 %v2946
        %v3024 = vpop.f32.mrf.mxu0
        %v3025 = vadd.f32 %v1145, %v3024
        %v3026 = vpop.f32.mrf.mxu0
        %v3027 = vpop.f32.mrf.mxu0
        %v3028 = vadd.f32 %v1145, %v3027
        %v3029 = vpop.f32.mrf.mxu0
        %3030 = vmatprep.mubr.bf16.mxu0 0
        %3031 = vmatmul.mubr.bf16.gmra.mxu0 %v2949
        %v3032 = vpop.f32.mrf.mxu0
        %v3033 = vadd.f32 %v1145, %v3032
        %v3034 = vpop.f32.mrf.mxu0
        %v3035 = vpop.f32.mrf.mxu0
        %v3036 = vadd.f32 %v1145, %v3035
        %v3037 = vpop.f32.mrf.mxu0
        %3038 = vdwg.mxu0
        %v3039 = vsel %vm1250, %v3001, -inf
        %3040 = vmax.xlane.f32.xlu0 %v3039
        %v3041 = vpop.xlane.xlu0 %3040
        %v3042 = vsel %vm1250, %v3004, -inf
        %3043 = vmax.xlane.f32.xlu0 %v3042
        %v3044 = vpop.xlane.xlu0 %3043
        %v3045 = vsel %vm1250, %v3009, -inf
        %3046 = vmax.xlane.f32.xlu0 %v3045
        %v3047 = vpop.xlane.xlu0 %3046
        %v3048 = vsel %vm1250, %v3012, -inf
        %3049 = vmax.xlane.f32.xlu0 %v3048
        %v3050 = vpop.xlane.xlu0 %3049
        %v3051 = vsel %vm1250, %v3017, -inf
        %3052 = vmax.xlane.f32.xlu0 %v3051
        %v3053 = vpop.xlane.xlu0 %3052
        %v3054 = vsel %vm1250, %v3020, -inf
        %3055 = vmax.xlane.f32.xlu0 %v3054
        %v3056 = vpop.xlane.xlu0 %3055
        %v3057 = vsel %vm1250, %v3025, -inf
        %3058 = vmax.xlane.f32.xlu0 %v3057
        %v3059 = vpop.xlane.xlu0 %3058
        %v3060 = vsel %vm1250, %v3028, -inf
        %3061 = vmax.xlane.f32.xlu0 %v3060
        %v3062 = vpop.xlane.xlu0 %3061
        %v3063 = vsel %vm1250, %v3033, -inf
        %3064 = vmax.xlane.f32.xlu0 %v3063
        %v3065 = vpop.xlane.xlu0 %3064
        %v3066 = vsel %vm1250, %v3036, -inf
        %3067 = vmax.xlane.f32.xlu0 %v3066
        %v3068 = vpop.xlane.xlu0 %3067
        %v3069 = vsub.f32 %v3001, %v3041
        %v3070 = vsub.f32 %v3004, %v3044
        %v3071 = vsub.f32 %v3009, %v3047
        %v3072 = vsub.f32 %v3012, %v3050
        %v3073 = vsub.f32 %v3017, %v3053
        %v3074 = vsub.f32 %v3020, %v3056
        %v3075 = vsub.f32 %v3025, %v3059
        %v3076 = vsub.f32 %v3028, %v3062
        %v3077 = vsub.f32 %v3033, %v3065
        %v3078 = vsub.f32 %v3036, %v3068
        %v3079 = vmul.f32 %v3069, 1.442695
        %v3080 = vpow.pop %v3079
        %v3081 = vmul.f32 %v3070, 1.442695
        %v3082 = vpow.pop %v3081
        %v3083 = vmul.f32 %v3071, 1.442695
        %v3084 = vpow.pop %v3083
        %v3085 = vmul.f32 %v3072, 1.442695
        %v3086 = vpow.pop %v3085
        %v3087 = vmul.f32 %v3073, 1.442695
        %v3088 = vpow.pop %v3087
        %v3089 = vmul.f32 %v3074, 1.442695
        %v3090 = vpow.pop %v3089
        %v3091 = vmul.f32 %v3075, 1.442695
        %v3092 = vpow.pop %v3091
        %v3093 = vmul.f32 %v3076, 1.442695
        %v3094 = vpow.pop %v3093
        %v3095 = vmul.f32 %v3077, 1.442695
        %v3096 = vpow.pop %v3095
        %v3097 = vmul.f32 %v3078, 1.442695
        %v3098 = vpow.pop %v3097
        %v3099 = vsel %vm1250, %v3080, 0.0
        %3100 = vadd.xlane.f32.xlu0 %v3099
        %v3101 = vpop.xlane.xlu0 %3100
        %v3102 = vsel %vm1250, %v3082, 0.0
        %3103 = vadd.xlane.f32.xlu0 %v3102
        %v3104 = vpop.xlane.xlu0 %3103
        %v3105 = vsel %vm1250, %v3084, 0.0
        %3106 = vadd.xlane.f32.xlu0 %v3105
        %v3107 = vpop.xlane.xlu0 %3106
        %v3108 = vsel %vm1250, %v3086, 0.0
        %3109 = vadd.xlane.f32.xlu0 %v3108
        %v3110 = vpop.xlane.xlu0 %3109
        %v3111 = vsel %vm1250, %v3088, 0.0
        %3112 = vadd.xlane.f32.xlu0 %v3111
        %v3113 = vpop.xlane.xlu0 %3112
        %v3114 = vsel %vm1250, %v3090, 0.0
        %3115 = vadd.xlane.f32.xlu0 %v3114
        %v3116 = vpop.xlane.xlu0 %3115
        %v3117 = vsel %vm1250, %v3092, 0.0
        %3118 = vadd.xlane.f32.xlu0 %v3117
        %v3119 = vpop.xlane.xlu0 %3118
        %v3120 = vsel %vm1250, %v3094, 0.0
        %3121 = vadd.xlane.f32.xlu0 %v3120
        %v3122 = vpop.xlane.xlu0 %3121
        %v3123 = vsel %vm1250, %v3096, 0.0
        %3124 = vadd.xlane.f32.xlu0 %v3123
        %v3125 = vpop.xlane.xlu0 %3124
        %v3126 = vsel %vm1250, %v3098, 0.0
        %3127 = vadd.xlane.f32.xlu0 %v3126
        %v3128 = vpop.xlane.xlu0 %3127
        %v3129 = vrcp.pop %v3101
        %v3130 = vrcp.pop %v3104
        %v3131 = vrcp.pop %v3107
        %v3132 = vrcp.pop %v3110
        %v3133 = vrcp.pop %v3113
        %v3134 = vrcp.pop %v3116
        %v3135 = vrcp.pop %v3119
        %v3136 = vrcp.pop %v3122
        %v3137 = vrcp.pop %v3125
        %v3138 = vrcp.pop %v3128
        %v3139 = vmul.f32 %v3080, %v3129
        %v3140 = vmul.f32 %v3082, %v3130
        %v3141 = vmul.f32 %v3084, %v3131
        %v3142 = vmul.f32 %v3086, %v3132
        %v3143 = vmul.f32 %v3088, %v3133
        %v3144 = vmul.f32 %v3090, %v3134
        %v3145 = vmul.f32 %v3092, %v3135
        %v3146 = vmul.f32 %v3094, %v3136
        %v3147 = vmul.f32 %v3096, %v3137
        %v3148 = vmul.f32 %v3098, %v3138
        %v3149 = vpack.c.bf16 %v3140, %v3139
        %v3150 = vpack.c.bf16 %v3142, %v3141
        %v3151 = vpack.c.bf16 %v3144, %v3143
        %v3152 = vpack.c.bf16 %v3146, %v3145
        %v3153 = vpack.c.bf16 %v3148, %v3147
        %3154 = vrot.lane.b32.xlu0 %v1129, 64
        %v3155 = vpop.permute.xlu0 %3154
        %3156 = vrot.lane.b32.xlu0 %v1132, 64
        %v3157 = vpop.permute.xlu0 %3156
        %3158 = vrot.lane.b32.xlu0 %v1135, 64
        %v3159 = vpop.permute.xlu0 %3158
        %3160 = vrot.lane.b32.xlu0 %v1138, 64
        %v3161 = vpop.permute.xlu0 %3160
        %3162 = vrot.lane.b32.xlu0 %v1141, 64
        %v3163 = vpop.permute.xlu0 %3162
        %v3170 = vsel %vm1250, %v3149, 0
        %v3173 = vsel %vm1250, %v3150, 0
        %v3176 = vsel %vm1250, %v3151, 0
        %v3179 = vsel %vm1250, %v3152, 0
        %v3182 = vsel %vm1250, %v3153, 0
        %3184 = vmatprep.subr.bf16.mxu0 0
        %3185 = vmatpush1.bf16.msra.mxu0 0
        %3186 = vmatprep.subr.bf16.mxu0 0
        %3187 = vmatpush1.bf16.msra.mxu0 0
        %3188 = vmatprep.subr.bf16.mxu0 0
        %3189 = vmatpush1.bf16.msra.mxu0 0
        %3190 = vmatprep.subr.bf16.mxu0 0
        %3191 = vmatpush1.bf16.msra.mxu0 %v3163
        %3192 = vmatprep.subr.bf16.mxu0 0
        %3193 = vmatpush1.bf16.msra.mxu0 %v3161
        %3194 = vmatprep.subr.bf16.mxu0 0
        %3195 = vmatpush1.bf16.msra.mxu0 %v3159
        %3196 = vmatprep.subr.bf16.mxu0 0
        %3197 = vmatpush1.bf16.msra.mxu0 %v3157
        %3198 = vmatprep.subr.bf16.mxu0 0
        %3199 = vmatpush1.bf16.msra.mxu0 %v3155
        %3200 = vmatprep.subr.bf16.mxu0 0
        %3201 = vmatpush2.bf16.msra.mxu0 0
        %3202 = vmatprep.subr.bf16.mxu0 0
        %3203 = vmatpush2.bf16.msra.mxu0 0
        %3204 = vmatprep.subr.bf16.mxu0 0
        %3205 = vmatpush2.bf16.msra.mxu0 0
        %3206 = vmatprep.subr.bf16.mxu0 0
        %3207 = vmatpush2.bf16.msra.mxu0 0
        %3208 = vmatprep.subr.bf16.mxu0 0
        %3209 = vmatpush2.bf16.msra.mxu0 0
        %3210 = vmatprep.subr.bf16.mxu0 0
        %3211 = vmatpush2.bf16.msra.mxu0 0
        %3212 = vmatprep.subr.bf16.mxu0 0
        %3213 = vmatpush2.bf16.msra.mxu0 0
        %3214 = vmatprep.subr.bf16.mxu0 0
        %3215 = vmatpush2.bf16.msra.mxu0 0
        %3216 = vmatprep.mubr.bf16.mxu0 0
        %3217 = vmatmul.mubr.bf16.gmra.mxu0 %v3170
        %v3218 = vpop.f32.mrf.mxu0
        %v3219 = vadd.f32 0.0, %v3218
        %v3220 = vpop.f32.mrf.mxu0
        %v3221 = vpop.f32.mrf.mxu0
        %v3222 = vadd.f32 0.0, %v3221
        %v3223 = vpop.f32.mrf.mxu0
        %3224 = vmatprep.mubr.bf16.mxu0 0
        %3225 = vmatmul.mubr.bf16.gmra.mxu0 %v3173
        %v3226 = vpop.f32.mrf.mxu0
        %v3227 = vadd.f32 0.0, %v3226
        %v3228 = vpop.f32.mrf.mxu0
        %v3229 = vpop.f32.mrf.mxu0
        %v3230 = vadd.f32 0.0, %v3229
        %v3231 = vpop.f32.mrf.mxu0
        %3232 = vmatprep.mubr.bf16.mxu0 0
        %3233 = vmatmul.mubr.bf16.gmra.mxu0 %v3176
        %v3234 = vpop.f32.mrf.mxu0
        %v3235 = vadd.f32 0.0, %v3234
        %v3236 = vpop.f32.mrf.mxu0
        %v3237 = vpop.f32.mrf.mxu0
        %v3238 = vadd.f32 0.0, %v3237
        %v3239 = vpop.f32.mrf.mxu0
        %3240 = vmatprep.mubr.bf16.mxu0 0
        %3241 = vmatmul.mubr.bf16.gmra.mxu0 %v3179
        %v3242 = vpop.f32.mrf.mxu0
        %v3243 = vadd.f32 0.0, %v3242
        %v3244 = vpop.f32.mrf.mxu0
        %v3245 = vpop.f32.mrf.mxu0
        %v3246 = vadd.f32 0.0, %v3245
        %v3247 = vpop.f32.mrf.mxu0
        %3248 = vmatprep.mubr.bf16.mxu0 0
        %3249 = vmatmul.mubr.bf16.gmra.mxu0 %v3182
        %v3250 = vpop.f32.mrf.mxu0
        %v3251 = vadd.f32 0.0, %v3250
        %v3252 = vpop.f32.mrf.mxu0
        %v3253 = vpop.f32.mrf.mxu0
        %v3254 = vadd.f32 0.0, %v3253
        %v3255 = vpop.f32.mrf.mxu0
        %3256 = vdwg.mxu0
        %v3257 = vpack.c.bf16 %v3222, %v3219
        %v3258 = vpack.c.bf16 %v3230, %v3227
        %v3259 = vpack.c.bf16 %v3238, %v3235
        %v3260 = vpack.c.bf16 %v3246, %v3243
        %v3261 = vpack.c.bf16 %v3254, %v3251
        %v3262 = vld [vmem:[%s578 + $0x20] sm:$0xf]
        %v3263 = vld [vmem:[%s578 + $0x24] sm:$0xf]
        %v3266 = vunpack.c.l.b16 %v3262
        %v3267 = vunpack.c.l.b16 %v3263
        %v3268 = vpack.c.b16 %v3267, %v3266
        %v3271 = vsel %vm1146, %v3257, 0
        %v3274 = vsel %vm1146, %v3258, 0
        %v3277 = vsel %vm1146, %v3259, 0
        %v3280 = vsel %vm1146, %v3260, 0
        %v3283 = vsel %vm1146, %v3261, 0
        %3285 = vmatprep.subr.bf16.mxu0 0
        %3286 = vmatpush1.bf16.msra.mxu0 0
        %3287 = vmatprep.subr.bf16.mxu0 0
        %3288 = vmatpush1.bf16.msra.mxu0 0
        %3289 = vmatprep.subr.bf16.mxu0 0
        %3290 = vmatpush1.bf16.msra.mxu0 0
        %3291 = vmatprep.subr.bf16.mxu0 0
        %3292 = vmatpush1.bf16.msra.mxu0 0
        %3293 = vmatprep.subr.bf16.mxu0 0
        %3294 = vmatpush1.bf16.msra.mxu0 0
        %3295 = vmatprep.subr.bf16.mxu0 0
        %3296 = vmatpush1.bf16.msra.mxu0 0
        %3297 = vmatprep.subr.bf16.mxu0 0
        %3298 = vmatpush1.bf16.msra.mxu0 0
        %3299 = vmatprep.subr.bf16.mxu0 0
        %3300 = vmatpush1.bf16.msra.mxu0 %v3268
        %3301 = vmatprep.subr.bf16.mxu0 0
        %3302 = vmatpush2.bf16.msra.mxu0 0
        %3303 = vmatprep.subr.bf16.mxu0 0
        %3304 = vmatpush2.bf16.msra.mxu0 0
        %3305 = vmatprep.subr.bf16.mxu0 0
        %3306 = vmatpush2.bf16.msra.mxu0 0
        %3307 = vmatprep.subr.bf16.mxu0 0
        %3308 = vmatpush2.bf16.msra.mxu0 0
        %3309 = vmatprep.subr.bf16.mxu0 0
        %3310 = vmatpush2.bf16.msra.mxu0 0
        %3311 = vmatprep.subr.bf16.mxu0 0
        %3312 = vmatpush2.bf16.msra.mxu0 0
        %3313 = vmatprep.subr.bf16.mxu0 0
        %3314 = vmatpush2.bf16.msra.mxu0 0
        %3315 = vmatprep.subr.bf16.mxu0 0
        %3316 = vmatpush2.bf16.msra.mxu0 0
        %3317 = vmatprep.mubr.bf16.mxu0 0
        %3318 = vmatmul.mubr.bf16.gmra.mxu0 %v3271
        %v3319 = vpop.f32.mrf.mxu0
        %v3320 = vadd.f32 0.0, %v3319
        %v3321 = vpop.f32.mrf.mxu0
        %v3322 = vpop.f32.mrf.mxu0
        %v3323 = vadd.f32 0.0, %v3322
        %v3324 = vpop.f32.mrf.mxu0
        %3325 = vmatprep.mubr.bf16.mxu0 0
        %3326 = vmatmul.mubr.bf16.gmra.mxu0 %v3274
        %v3327 = vpop.f32.mrf.mxu0
        %v3328 = vadd.f32 0.0, %v3327
        %v3329 = vpop.f32.mrf.mxu0
        %v3330 = vpop.f32.mrf.mxu0
        %v3331 = vadd.f32 0.0, %v3330
        %v3332 = vpop.f32.mrf.mxu0
        %3333 = vmatprep.mubr.bf16.mxu0 0
        %3334 = vmatmul.mubr.bf16.gmra.mxu0 %v3277
        %v3335 = vpop.f32.mrf.mxu0
        %v3336 = vadd.f32 0.0, %v3335
        %v3337 = vpop.f32.mrf.mxu0
        %v3338 = vpop.f32.mrf.mxu0
        %v3339 = vadd.f32 0.0, %v3338
        %v3340 = vpop.f32.mrf.mxu0
        %3341 = vmatprep.mubr.bf16.mxu0 0
        %3342 = vmatmul.mubr.bf16.gmra.mxu0 %v3280
        %v3343 = vpop.f32.mrf.mxu0
        %v3344 = vadd.f32 0.0, %v3343
        %v3345 = vpop.f32.mrf.mxu0
        %v3346 = vpop.f32.mrf.mxu0
        %v3347 = vadd.f32 0.0, %v3346
        %v3348 = vpop.f32.mrf.mxu0
        %3349 = vmatprep.mubr.bf16.mxu0 0
        %3350 = vmatmul.mubr.bf16.gmra.mxu0 %v3283
        %v3351 = vpop.f32.mrf.mxu0
        %v3352 = vadd.f32 0.0, %v3351
        %v3353 = vpop.f32.mrf.mxu0
        %v3354 = vpop.f32.mrf.mxu0
        %v3355 = vadd.f32 0.0, %v3354
        %v3356 = vpop.f32.mrf.mxu0
        %3357 = vdwg.mxu0
        %v3358 = vadd.f32 %v2906, %v3320
        %v3359 = vadd.f32 %v2907, %v3323
        %v3360 = vadd.f32 %v2908, %v3328
        %v3361 = vadd.f32 %v2909, %v3331
        %v3362 = vadd.f32 %v2910, %v3336
        %v3363 = vadd.f32 %v2911, %v3339
        %v3364 = vadd.f32 %v2912, %v3344
        %v3365 = vadd.f32 %v2913, %v3347
        %v3366 = vadd.f32 %v2914, %v3352
        %v3367 = vadd.f32 %v2915, %v3355
        %3368 = vrot.lane.b32.xlu0 %v1127, 48
        %v3369 = vpop.permute.xlu0 %3368
        %3370 = vrot.lane.b32.xlu0 %v1130, 48
        %v3371 = vpop.permute.xlu0 %3370
        %3372 = vrot.lane.b32.xlu0 %v1133, 48
        %v3373 = vpop.permute.xlu0 %3372
        %3374 = vrot.lane.b32.xlu0 %v1136, 48
        %v3375 = vpop.permute.xlu0 %3374
        %3376 = vrot.lane.b32.xlu0 %v1139, 48
        %v3377 = vpop.permute.xlu0 %3376
        %3378 = vrot.lane.b32.xlu0 %v1128, 48
        %v3379 = vpop.permute.xlu0 %3378
        %3380 = vrot.lane.b32.xlu0 %v1131, 48
        %v3381 = vpop.permute.xlu0 %3380
        %3382 = vrot.lane.b32.xlu0 %v1134, 48
        %v3383 = vpop.permute.xlu0 %3382
        %3384 = vrot.lane.b32.xlu0 %v1137, 48
        %v3385 = vpop.permute.xlu0 %3384
        %3386 = vrot.lane.b32.xlu0 %v1140, 48
        %v3387 = vpop.permute.xlu0 %3386
        %v3389 = vsel %vm1146, %v3369, 0
        %v3392 = vsel %vm1146, %v3371, 0
        %v3395 = vsel %vm1146, %v3373, 0
        %v3398 = vsel %vm1146, %v3375, 0
        %v3401 = vsel %vm1146, %v3377, 0
        %v3404 = vsel %vm1146, %v3379, 0
        %v3407 = vsel %vm1146, %v3381, 0
        %v3410 = vsel %vm1146, %v3383, 0
        %v3413 = vsel %vm1146, %v3385, 0
        %v3416 = vsel %vm1146, %v3387, 0
        %3418 = vmatprep.subr.bf16.mxu0 0
        %3419 = vmatpush1.bf16.xpose.msra.mxu0 0
        %3420 = vmatprep.subr.bf16.mxu0 0
        %3421 = vmatpush1.bf16.xpose.msra.mxu0 0
        %3422 = vmatprep.subr.bf16.mxu0 0
        %3423 = vmatpush1.bf16.xpose.msra.mxu0 0
        %3424 = vmatprep.subr.bf16.mxu0 0
        %3425 = vmatpush1.bf16.xpose.msra.mxu0 %v3416
        %3426 = vmatprep.subr.bf16.mxu0 0
        %3427 = vmatpush1.bf16.xpose.msra.mxu0 %v3413
        %3428 = vmatprep.subr.bf16.mxu0 0
        %3429 = vmatpush1.bf16.xpose.msra.mxu0 %v3410
        %3430 = vmatprep.subr.bf16.mxu0 0
        %3431 = vmatpush1.bf16.xpose.msra.mxu0 %v3407
        %3432 = vmatprep.subr.bf16.mxu0 0
        %3433 = vmatpush1.bf16.xpose.msra.mxu0 %v3404
        %3434 = vmatprep.subr.bf16.mxu0 0
        %3435 = vmatpush2.bf16.xpose.msra.mxu0 0
        %3436 = vmatprep.subr.bf16.mxu0 0
        %3437 = vmatpush2.bf16.xpose.msra.mxu0 0
        %3438 = vmatprep.subr.bf16.mxu0 0
        %3439 = vmatpush2.bf16.xpose.msra.mxu0 0
        %3440 = vmatprep.subr.bf16.mxu0 0
        %3441 = vmatpush2.bf16.xpose.msra.mxu0 0
        %3442 = vmatprep.subr.bf16.mxu0 0
        %3443 = vmatpush2.bf16.xpose.msra.mxu0 0
        %3444 = vmatprep.subr.bf16.mxu0 0
        %3445 = vmatpush2.bf16.xpose.msra.mxu0 0
        %3446 = vmatprep.subr.bf16.mxu0 0
        %3447 = vmatpush2.bf16.xpose.msra.mxu0 0
        %3448 = vmatprep.subr.bf16.mxu0 0
        %3449 = vmatpush2.bf16.xpose.msra.mxu0 0
        %3450 = vmatprep.mubr.bf16.mxu0 0
        %3451 = vmatmul.mubr.bf16.gmra.mxu0 %v3389
        %v3452 = vpop.f32.mrf.mxu0
        %v3453 = vadd.f32 %v1145, %v3452
        %v3454 = vpop.f32.mrf.mxu0
        %v3455 = vpop.f32.mrf.mxu0
        %v3456 = vadd.f32 %v1145, %v3455
        %v3457 = vpop.f32.mrf.mxu0
        %3458 = vmatprep.mubr.bf16.mxu0 0
        %3459 = vmatmul.mubr.bf16.gmra.mxu0 %v3392
        %v3460 = vpop.f32.mrf.mxu0
        %v3461 = vadd.f32 %v1145, %v3460
        %v3462 = vpop.f32.mrf.mxu0
        %v3463 = vpop.f32.mrf.mxu0
        %v3464 = vadd.f32 %v1145, %v3463
        %v3465 = vpop.f32.mrf.mxu0
        %3466 = vmatprep.mubr.bf16.mxu0 0
        %3467 = vmatmul.mubr.bf16.gmra.mxu0 %v3395
        %v3468 = vpop.f32.mrf.mxu0
        %v3469 = vadd.f32 %v1145, %v3468
        %v3470 = vpop.f32.mrf.mxu0
        %v3471 = vpop.f32.mrf.mxu0
        %v3472 = vadd.f32 %v1145, %v3471
        %v3473 = vpop.f32.mrf.mxu0
        %3474 = vmatprep.mubr.bf16.mxu0 0
        %3475 = vmatmul.mubr.bf16.gmra.mxu0 %v3398
        %v3476 = vpop.f32.mrf.mxu0
        %v3477 = vadd.f32 %v1145, %v3476
        %v3478 = vpop.f32.mrf.mxu0
        %v3479 = vpop.f32.mrf.mxu0
        %v3480 = vadd.f32 %v1145, %v3479
        %v3481 = vpop.f32.mrf.mxu0
        %3482 = vmatprep.mubr.bf16.mxu0 0
        %3483 = vmatmul.mubr.bf16.gmra.mxu0 %v3401
        %v3484 = vpop.f32.mrf.mxu0
        %v3485 = vadd.f32 %v1145, %v3484
        %v3486 = vpop.f32.mrf.mxu0
        %v3487 = vpop.f32.mrf.mxu0
        %v3488 = vadd.f32 %v1145, %v3487
        %v3489 = vpop.f32.mrf.mxu0
        %3490 = vdwg.mxu0
        %v3491 = vsel %vm1250, %v3453, -inf
        %3492 = vmax.xlane.f32.xlu0 %v3491
        %v3493 = vpop.xlane.xlu0 %3492
        %v3494 = vsel %vm1250, %v3456, -inf
        %3495 = vmax.xlane.f32.xlu0 %v3494
        %v3496 = vpop.xlane.xlu0 %3495
        %v3497 = vsel %vm1250, %v3461, -inf
        %3498 = vmax.xlane.f32.xlu0 %v3497
        %v3499 = vpop.xlane.xlu0 %3498
        %v3500 = vsel %vm1250, %v3464, -inf
        %3501 = vmax.xlane.f32.xlu0 %v3500
        %v3502 = vpop.xlane.xlu0 %3501
        %v3503 = vsel %vm1250, %v3469, -inf
        %3504 = vmax.xlane.f32.xlu0 %v3503
        %v3505 = vpop.xlane.xlu0 %3504
        %v3506 = vsel %vm1250, %v3472, -inf
        %3507 = vmax.xlane.f32.xlu0 %v3506
        %v3508 = vpop.xlane.xlu0 %3507
        %v3509 = vsel %vm1250, %v3477, -inf
        %3510 = vmax.xlane.f32.xlu0 %v3509
        %v3511 = vpop.xlane.xlu0 %3510
        %v3512 = vsel %vm1250, %v3480, -inf
        %3513 = vmax.xlane.f32.xlu0 %v3512
        %v3514 = vpop.xlane.xlu0 %3513
        %v3515 = vsel %vm1250, %v3485, -inf
        %3516 = vmax.xlane.f32.xlu0 %v3515
        %v3517 = vpop.xlane.xlu0 %3516
        %v3518 = vsel %vm1250, %v3488, -inf
        %3519 = vmax.xlane.f32.xlu0 %v3518
        %v3520 = vpop.xlane.xlu0 %3519
        %v3521 = vsub.f32 %v3453, %v3493
        %v3522 = vsub.f32 %v3456, %v3496
        %v3523 = vsub.f32 %v3461, %v3499
        %v3524 = vsub.f32 %v3464, %v3502
        %v3525 = vsub.f32 %v3469, %v3505
        %v3526 = vsub.f32 %v3472, %v3508
        %v3527 = vsub.f32 %v3477, %v3511
        %v3528 = vsub.f32 %v3480, %v3514
        %v3529 = vsub.f32 %v3485, %v3517
        %v3530 = vsub.f32 %v3488, %v3520
        %v3531 = vmul.f32 %v3521, 1.442695
        %v3532 = vpow.pop %v3531
        %v3533 = vmul.f32 %v3522, 1.442695
        %v3534 = vpow.pop %v3533
        %v3535 = vmul.f32 %v3523, 1.442695
        %v3536 = vpow.pop %v3535
        %v3537 = vmul.f32 %v3524, 1.442695
        %v3538 = vpow.pop %v3537
        %v3539 = vmul.f32 %v3525, 1.442695
        %v3540 = vpow.pop %v3539
        %v3541 = vmul.f32 %v3526, 1.442695
        %v3542 = vpow.pop %v3541
        %v3543 = vmul.f32 %v3527, 1.442695
        %v3544 = vpow.pop %v3543
        %v3545 = vmul.f32 %v3528, 1.442695
        %v3546 = vpow.pop %v3545
        %v3547 = vmul.f32 %v3529, 1.442695
        %v3548 = vpow.pop %v3547
        %v3549 = vmul.f32 %v3530, 1.442695
        %v3550 = vpow.pop %v3549
        %v3551 = vsel %vm1250, %v3532, 0.0
        %3552 = vadd.xlane.f32.xlu0 %v3551
        %v3553 = vpop.xlane.xlu0 %3552
        %v3554 = vsel %vm1250, %v3534, 0.0
        %3555 = vadd.xlane.f32.xlu0 %v3554
        %v3556 = vpop.xlane.xlu0 %3555
        %v3557 = vsel %vm1250, %v3536, 0.0
        %3558 = vadd.xlane.f32.xlu0 %v3557
        %v3559 = vpop.xlane.xlu0 %3558
        %v3560 = vsel %vm1250, %v3538, 0.0
        %3561 = vadd.xlane.f32.xlu0 %v3560
        %v3562 = vpop.xlane.xlu0 %3561
        %v3563 = vsel %vm1250, %v3540, 0.0
        %3564 = vadd.xlane.f32.xlu0 %v3563
        %v3565 = vpop.xlane.xlu0 %3564
        %v3566 = vsel %vm1250, %v3542, 0.0
        %3567 = vadd.xlane.f32.xlu0 %v3566
        %v3568 = vpop.xlane.xlu0 %3567
        %v3569 = vsel %vm1250, %v3544, 0.0
        %3570 = vadd.xlane.f32.xlu0 %v3569
        %v3571 = vpop.xlane.xlu0 %3570
        %v3572 = vsel %vm1250, %v3546, 0.0
        %3573 = vadd.xlane.f32.xlu0 %v3572
        %v3574 = vpop.xlane.xlu0 %3573
        %v3575 = vsel %vm1250, %v3548, 0.0
        %3576 = vadd.xlane.f32.xlu0 %v3575
        %v3577 = vpop.xlane.xlu0 %3576
        %v3578 = vsel %vm1250, %v3550, 0.0
        %3579 = vadd.xlane.f32.xlu0 %v3578
        %v3580 = vpop.xlane.xlu0 %3579
        %v3581 = vrcp.pop %v3553
        %v3582 = vrcp.pop %v3556
        %v3583 = vrcp.pop %v3559
        %v3584 = vrcp.pop %v3562
        %v3585 = vrcp.pop %v3565
        %v3586 = vrcp.pop %v3568
        %v3587 = vrcp.pop %v3571
        %v3588 = vrcp.pop %v3574
        %v3589 = vrcp.pop %v3577
        %v3590 = vrcp.pop %v3580
        %v3591 = vmul.f32 %v3532, %v3581
        %v3592 = vmul.f32 %v3534, %v3582
        %v3593 = vmul.f32 %v3536, %v3583
        %v3594 = vmul.f32 %v3538, %v3584
        %v3595 = vmul.f32 %v3540, %v3585
        %v3596 = vmul.f32 %v3542, %v3586
        %v3597 = vmul.f32 %v3544, %v3587
        %v3598 = vmul.f32 %v3546, %v3588
        %v3599 = vmul.f32 %v3548, %v3589
        %v3600 = vmul.f32 %v3550, %v3590
        %v3601 = vpack.c.bf16 %v3592, %v3591
        %v3602 = vpack.c.bf16 %v3594, %v3593
        %v3603 = vpack.c.bf16 %v3596, %v3595
        %v3604 = vpack.c.bf16 %v3598, %v3597
        %v3605 = vpack.c.bf16 %v3600, %v3599
        %3606 = vrot.lane.b32.xlu0 %v1129, 48
        %v3607 = vpop.permute.xlu0 %3606
        %3608 = vrot.lane.b32.xlu0 %v1132, 48
        %v3609 = vpop.permute.xlu0 %3608
        %3610 = vrot.lane.b32.xlu0 %v1135, 48
        %v3611 = vpop.permute.xlu0 %3610
        %3612 = vrot.lane.b32.xlu0 %v1138, 48
        %v3613 = vpop.permute.xlu0 %3612
        %3614 = vrot.lane.b32.xlu0 %v1141, 48
        %v3615 = vpop.permute.xlu0 %3614
        %v3622 = vsel %vm1250, %v3601, 0
        %v3625 = vsel %vm1250, %v3602, 0
        %v3628 = vsel %vm1250, %v3603, 0
        %v3631 = vsel %vm1250, %v3604, 0
        %v3634 = vsel %vm1250, %v3605, 0
        %3636 = vmatprep.subr.bf16.mxu0 0
        %3637 = vmatpush1.bf16.msra.mxu0 0
        %3638 = vmatprep.subr.bf16.mxu0 0
        %3639 = vmatpush1.bf16.msra.mxu0 0
        %3640 = vmatprep.subr.bf16.mxu0 0
        %3641 = vmatpush1.bf16.msra.mxu0 0
        %3642 = vmatprep.subr.bf16.mxu0 0
        %3643 = vmatpush1.bf16.msra.mxu0 %v3615
        %3644 = vmatprep.subr.bf16.mxu0 0
        %3645 = vmatpush1.bf16.msra.mxu0 %v3613
        %3646 = vmatprep.subr.bf16.mxu0 0
        %3647 = vmatpush1.bf16.msra.mxu0 %v3611
        %3648 = vmatprep.subr.bf16.mxu0 0
        %3649 = vmatpush1.bf16.msra.mxu0 %v3609
        %3650 = vmatprep.subr.bf16.mxu0 0
        %3651 = vmatpush1.bf16.msra.mxu0 %v3607
        %3652 = vmatprep.subr.bf16.mxu0 0
        %3653 = vmatpush2.bf16.msra.mxu0 0
        %3654 = vmatprep.subr.bf16.mxu0 0
        %3655 = vmatpush2.bf16.msra.mxu0 0
        %3656 = vmatprep.subr.bf16.mxu0 0
        %3657 = vmatpush2.bf16.msra.mxu0 0
        %3658 = vmatprep.subr.bf16.mxu0 0
        %3659 = vmatpush2.bf16.msra.mxu0 0
        %3660 = vmatprep.subr.bf16.mxu0 0
        %3661 = vmatpush2.bf16.msra.mxu0 0
        %3662 = vmatprep.subr.bf16.mxu0 0
        %3663 = vmatpush2.bf16.msra.mxu0 0
        %3664 = vmatprep.subr.bf16.mxu0 0
        %3665 = vmatpush2.bf16.msra.mxu0 0
        %3666 = vmatprep.subr.bf16.mxu0 0
        %3667 = vmatpush2.bf16.msra.mxu0 0
        %3668 = vmatprep.mubr.bf16.mxu0 0
        %3669 = vmatmul.mubr.bf16.gmra.mxu0 %v3622
        %v3670 = vpop.f32.mrf.mxu0
        %v3671 = vadd.f32 0.0, %v3670
        %v3672 = vpop.f32.mrf.mxu0
        %v3673 = vpop.f32.mrf.mxu0
        %v3674 = vadd.f32 0.0, %v3673
        %v3675 = vpop.f32.mrf.mxu0
        %3676 = vmatprep.mubr.bf16.mxu0 0
        %3677 = vmatmul.mubr.bf16.gmra.mxu0 %v3625
        %v3678 = vpop.f32.mrf.mxu0
        %v3679 = vadd.f32 0.0, %v3678
        %v3680 = vpop.f32.mrf.mxu0
        %v3681 = vpop.f32.mrf.mxu0
        %v3682 = vadd.f32 0.0, %v3681
        %v3683 = vpop.f32.mrf.mxu0
        %3684 = vmatprep.mubr.bf16.mxu0 0
        %3685 = vmatmul.mubr.bf16.gmra.mxu0 %v3628
        %v3686 = vpop.f32.mrf.mxu0
        %v3687 = vadd.f32 0.0, %v3686
        %v3688 = vpop.f32.mrf.mxu0
        %v3689 = vpop.f32.mrf.mxu0
        %v3690 = vadd.f32 0.0, %v3689
        %v3691 = vpop.f32.mrf.mxu0
        %3692 = vmatprep.mubr.bf16.mxu0 0
        %3693 = vmatmul.mubr.bf16.gmra.mxu0 %v3631
        %v3694 = vpop.f32.mrf.mxu0
        %v3695 = vadd.f32 0.0, %v3694
        %v3696 = vpop.f32.mrf.mxu0
        %v3697 = vpop.f32.mrf.mxu0
        %v3698 = vadd.f32 0.0, %v3697
        %v3699 = vpop.f32.mrf.mxu0
        %3700 = vmatprep.mubr.bf16.mxu0 0
        %3701 = vmatmul.mubr.bf16.gmra.mxu0 %v3634
        %v3702 = vpop.f32.mrf.mxu0
        %v3703 = vadd.f32 0.0, %v3702
        %v3704 = vpop.f32.mrf.mxu0
        %v3705 = vpop.f32.mrf.mxu0
        %v3706 = vadd.f32 0.0, %v3705
        %v3707 = vpop.f32.mrf.mxu0
        %3708 = vdwg.mxu0
        %v3709 = vpack.c.bf16 %v3674, %v3671
        %v3710 = vpack.c.bf16 %v3682, %v3679
        %v3711 = vpack.c.bf16 %v3690, %v3687
        %v3712 = vpack.c.bf16 %v3698, %v3695
        %v3713 = vpack.c.bf16 %v3706, %v3703
        %v3714 = vld [vmem:[%s578 + $0x28] sm:$0xf]
        %v3715 = vld [vmem:[%s578 + $0x2c] sm:$0xf]
        %v3718 = vunpack.c.l.b16 %v3714
        %v3719 = vunpack.c.l.b16 %v3715
        %v3720 = vpack.c.b16 %v3719, %v3718
        %v3723 = vsel %vm1146, %v3709, 0
        %v3726 = vsel %vm1146, %v3710, 0
        %v3729 = vsel %vm1146, %v3711, 0
        %v3732 = vsel %vm1146, %v3712, 0
        %v3735 = vsel %vm1146, %v3713, 0
        %3737 = vmatprep.subr.bf16.mxu0 0
        %3738 = vmatpush1.bf16.msra.mxu0 0
        %3739 = vmatprep.subr.bf16.mxu0 0
        %3740 = vmatpush1.bf16.msra.mxu0 0
        %3741 = vmatprep.subr.bf16.mxu0 0
        %3742 = vmatpush1.bf16.msra.mxu0 0
        %3743 = vmatprep.subr.bf16.mxu0 0
        %3744 = vmatpush1.bf16.msra.mxu0 0
        %3745 = vmatprep.subr.bf16.mxu0 0
        %3746 = vmatpush1.bf16.msra.mxu0 0
        %3747 = vmatprep.subr.bf16.mxu0 0
        %3748 = vmatpush1.bf16.msra.mxu0 0
        %3749 = vmatprep.subr.bf16.mxu0 0
        %3750 = vmatpush1.bf16.msra.mxu0 0
        %3751 = vmatprep.subr.bf16.mxu0 0
        %3752 = vmatpush1.bf16.msra.mxu0 %v3720
        %3753 = vmatprep.subr.bf16.mxu0 0
        %3754 = vmatpush2.bf16.msra.mxu0 0
        %3755 = vmatprep.subr.bf16.mxu0 0
        %3756 = vmatpush2.bf16.msra.mxu0 0
        %3757 = vmatprep.subr.bf16.mxu0 0
        %3758 = vmatpush2.bf16.msra.mxu0 0
        %3759 = vmatprep.subr.bf16.mxu0 0
        %3760 = vmatpush2.bf16.msra.mxu0 0
        %3761 = vmatprep.subr.bf16.mxu0 0
        %3762 = vmatpush2.bf16.msra.mxu0 0
        %3763 = vmatprep.subr.bf16.mxu0 0
        %3764 = vmatpush2.bf16.msra.mxu0 0
        %3765 = vmatprep.subr.bf16.mxu0 0
        %3766 = vmatpush2.bf16.msra.mxu0 0
        %3767 = vmatprep.subr.bf16.mxu0 0
        %3768 = vmatpush2.bf16.msra.mxu0 0
        %3769 = vmatprep.mubr.bf16.mxu0 0
        %3770 = vmatmul.mubr.bf16.gmra.mxu0 %v3723
        %v3771 = vpop.f32.mrf.mxu0
        %v3772 = vadd.f32 0.0, %v3771
        %v3773 = vpop.f32.mrf.mxu0
        %v3774 = vpop.f32.mrf.mxu0
        %v3775 = vadd.f32 0.0, %v3774
        %v3776 = vpop.f32.mrf.mxu0
        %3777 = vmatprep.mubr.bf16.mxu0 0
        %3778 = vmatmul.mubr.bf16.gmra.mxu0 %v3726
        %v3779 = vpop.f32.mrf.mxu0
        %v3780 = vadd.f32 0.0, %v3779
        %v3781 = vpop.f32.mrf.mxu0
        %v3782 = vpop.f32.mrf.mxu0
        %v3783 = vadd.f32 0.0, %v3782
        %v3784 = vpop.f32.mrf.mxu0
        %3785 = vmatprep.mubr.bf16.mxu0 0
        %3786 = vmatmul.mubr.bf16.gmra.mxu0 %v3729
        %v3787 = vpop.f32.mrf.mxu0
        %v3788 = vadd.f32 0.0, %v3787
        %v3789 = vpop.f32.mrf.mxu0
        %v3790 = vpop.f32.mrf.mxu0
        %v3791 = vadd.f32 0.0, %v3790
        %v3792 = vpop.f32.mrf.mxu0
        %3793 = vmatprep.mubr.bf16.mxu0 0
        %3794 = vmatmul.mubr.bf16.gmra.mxu0 %v3732
        %v3795 = vpop.f32.mrf.mxu0
        %v3796 = vadd.f32 0.0, %v3795
        %v3797 = vpop.f32.mrf.mxu0
        %v3798 = vpop.f32.mrf.mxu0
        %v3799 = vadd.f32 0.0, %v3798
        %v3800 = vpop.f32.mrf.mxu0
        %3801 = vmatprep.mubr.bf16.mxu0 0
        %3802 = vmatmul.mubr.bf16.gmra.mxu0 %v3735
        %v3803 = vpop.f32.mrf.mxu0
        %v3804 = vadd.f32 0.0, %v3803
        %v3805 = vpop.f32.mrf.mxu0
        %v3806 = vpop.f32.mrf.mxu0
        %v3807 = vadd.f32 0.0, %v3806
        %v3808 = vpop.f32.mrf.mxu0
        %3809 = vdwg.mxu0
        %v3810 = vadd.f32 %v3358, %v3772
        %v3811 = vadd.f32 %v3359, %v3775
        %v3812 = vadd.f32 %v3360, %v3780
        %v3813 = vadd.f32 %v3361, %v3783
        %v3814 = vadd.f32 %v3362, %v3788
        %v3815 = vadd.f32 %v3363, %v3791
        %v3816 = vadd.f32 %v3364, %v3796
        %v3817 = vadd.f32 %v3365, %v3799
        %v3818 = vadd.f32 %v3366, %v3804
        %v3819 = vadd.f32 %v3367, %v3807
        %3820 = vrot.lane.b32.xlu0 %v1127, 32
        %v3821 = vpop.permute.xlu0 %3820
        %3822 = vrot.lane.b32.xlu0 %v1130, 32
        %v3823 = vpop.permute.xlu0 %3822
        %3824 = vrot.lane.b32.xlu0 %v1133, 32
        %v3825 = vpop.permute.xlu0 %3824
        %3826 = vrot.lane.b32.xlu0 %v1136, 32
        %v3827 = vpop.permute.xlu0 %3826
        %3828 = vrot.lane.b32.xlu0 %v1139, 32
        %v3829 = vpop.permute.xlu0 %3828
        %3830 = vrot.lane.b32.xlu0 %v1128, 32
        %v3831 = vpop.permute.xlu0 %3830
        %3832 = vrot.lane.b32.xlu0 %v1131, 32
        %v3833 = vpop.permute.xlu0 %3832
        %3834 = vrot.lane.b32.xlu0 %v1134, 32
        %v3835 = vpop.permute.xlu0 %3834
        %3836 = vrot.lane.b32.xlu0 %v1137, 32
        %v3837 = vpop.permute.xlu0 %3836
        %3838 = vrot.lane.b32.xlu0 %v1140, 32
        %v3839 = vpop.permute.xlu0 %3838
        %v3841 = vsel %vm1146, %v3821, 0
        %v3844 = vsel %vm1146, %v3823, 0
        %v3847 = vsel %vm1146, %v3825, 0
        %v3850 = vsel %vm1146, %v3827, 0
        %v3853 = vsel %vm1146, %v3829, 0
        %v3856 = vsel %vm1146, %v3831, 0
        %v3859 = vsel %vm1146, %v3833, 0
        %v3862 = vsel %vm1146, %v3835, 0
        %v3865 = vsel %vm1146, %v3837, 0
        %v3868 = vsel %vm1146, %v3839, 0
        %3870 = vmatprep.subr.bf16.mxu0 0
        %3871 = vmatpush1.bf16.xpose.msra.mxu0 0
        %3872 = vmatprep.subr.bf16.mxu0 0
        %3873 = vmatpush1.bf16.xpose.msra.mxu0 0
        %3874 = vmatprep.subr.bf16.mxu0 0
        %3875 = vmatpush1.bf16.xpose.msra.mxu0 0
        %3876 = vmatprep.subr.bf16.mxu0 0
        %3877 = vmatpush1.bf16.xpose.msra.mxu0 %v3868
        %3878 = vmatprep.subr.bf16.mxu0 0
        %3879 = vmatpush1.bf16.xpose.msra.mxu0 %v3865
        %3880 = vmatprep.subr.bf16.mxu0 0
        %3881 = vmatpush1.bf16.xpose.msra.mxu0 %v3862
        %3882 = vmatprep.subr.bf16.mxu0 0
        %3883 = vmatpush1.bf16.xpose.msra.mxu0 %v3859
        %3884 = vmatprep.subr.bf16.mxu0 0
        %3885 = vmatpush1.bf16.xpose.msra.mxu0 %v3856
        %3886 = vmatprep.subr.bf16.mxu0 0
        %3887 = vmatpush2.bf16.xpose.msra.mxu0 0
        %3888 = vmatprep.subr.bf16.mxu0 0
        %3889 = vmatpush2.bf16.xpose.msra.mxu0 0
        %3890 = vmatprep.subr.bf16.mxu0 0
        %3891 = vmatpush2.bf16.xpose.msra.mxu0 0
        %3892 = vmatprep.subr.bf16.mxu0 0
        %3893 = vmatpush2.bf16.xpose.msra.mxu0 0
        %3894 = vmatprep.subr.bf16.mxu0 0
        %3895 = vmatpush2.bf16.xpose.msra.mxu0 0
        %3896 = vmatprep.subr.bf16.mxu0 0
        %3897 = vmatpush2.bf16.xpose.msra.mxu0 0
        %3898 = vmatprep.subr.bf16.mxu0 0
        %3899 = vmatpush2.bf16.xpose.msra.mxu0 0
        %3900 = vmatprep.subr.bf16.mxu0 0
        %3901 = vmatpush2.bf16.xpose.msra.mxu0 0
        %3902 = vmatprep.mubr.bf16.mxu0 0
        %3903 = vmatmul.mubr.bf16.gmra.mxu0 %v3841
        %v3904 = vpop.f32.mrf.mxu0
        %v3905 = vadd.f32 %v1145, %v3904
        %v3906 = vpop.f32.mrf.mxu0
        %v3907 = vpop.f32.mrf.mxu0
        %v3908 = vadd.f32 %v1145, %v3907
        %v3909 = vpop.f32.mrf.mxu0
        %3910 = vmatprep.mubr.bf16.mxu0 0
        %3911 = vmatmul.mubr.bf16.gmra.mxu0 %v3844
        %v3912 = vpop.f32.mrf.mxu0
        %v3913 = vadd.f32 %v1145, %v3912
        %v3914 = vpop.f32.mrf.mxu0
        %v3915 = vpop.f32.mrf.mxu0
        %v3916 = vadd.f32 %v1145, %v3915
        %v3917 = vpop.f32.mrf.mxu0
        %3918 = vmatprep.mubr.bf16.mxu0 0
        %3919 = vmatmul.mubr.bf16.gmra.mxu0 %v3847
        %v3920 = vpop.f32.mrf.mxu0
        %v3921 = vadd.f32 %v1145, %v3920
        %v3922 = vpop.f32.mrf.mxu0
        %v3923 = vpop.f32.mrf.mxu0
        %v3924 = vadd.f32 %v1145, %v3923
        %v3925 = vpop.f32.mrf.mxu0
        %3926 = vmatprep.mubr.bf16.mxu0 0
        %3927 = vmatmul.mubr.bf16.gmra.mxu0 %v3850
        %v3928 = vpop.f32.mrf.mxu0
        %v3929 = vadd.f32 %v1145, %v3928
        %v3930 = vpop.f32.mrf.mxu0
        %v3931 = vpop.f32.mrf.mxu0
        %v3932 = vadd.f32 %v1145, %v3931
        %v3933 = vpop.f32.mrf.mxu0
        %3934 = vmatprep.mubr.bf16.mxu0 0
        %3935 = vmatmul.mubr.bf16.gmra.mxu0 %v3853
        %v3936 = vpop.f32.mrf.mxu0
        %v3937 = vadd.f32 %v1145, %v3936
        %v3938 = vpop.f32.mrf.mxu0
        %v3939 = vpop.f32.mrf.mxu0
        %v3940 = vadd.f32 %v1145, %v3939
        %v3941 = vpop.f32.mrf.mxu0
        %3942 = vdwg.mxu0
        %v3943 = vsel %vm1250, %v3905, -inf
        %3944 = vmax.xlane.f32.xlu0 %v3943
        %v3945 = vpop.xlane.xlu0 %3944
        %v3946 = vsel %vm1250, %v3908, -inf
        %3947 = vmax.xlane.f32.xlu0 %v3946
        %v3948 = vpop.xlane.xlu0 %3947
        %v3949 = vsel %vm1250, %v3913, -inf
        %3950 = vmax.xlane.f32.xlu0 %v3949
        %v3951 = vpop.xlane.xlu0 %3950
        %v3952 = vsel %vm1250, %v3916, -inf
        %3953 = vmax.xlane.f32.xlu0 %v3952
        %v3954 = vpop.xlane.xlu0 %3953
        %v3955 = vsel %vm1250, %v3921, -inf
        %3956 = vmax.xlane.f32.xlu0 %v3955
        %v3957 = vpop.xlane.xlu0 %3956
        %v3958 = vsel %vm1250, %v3924, -inf
        %3959 = vmax.xlane.f32.xlu0 %v3958
        %v3960 = vpop.xlane.xlu0 %3959
        %v3961 = vsel %vm1250, %v3929, -inf
        %3962 = vmax.xlane.f32.xlu0 %v3961
        %v3963 = vpop.xlane.xlu0 %3962
        %v3964 = vsel %vm1250, %v3932, -inf
        %3965 = vmax.xlane.f32.xlu0 %v3964
        %v3966 = vpop.xlane.xlu0 %3965
        %v3967 = vsel %vm1250, %v3937, -inf
        %3968 = vmax.xlane.f32.xlu0 %v3967
        %v3969 = vpop.xlane.xlu0 %3968
        %v3970 = vsel %vm1250, %v3940, -inf
        %3971 = vmax.xlane.f32.xlu0 %v3970
        %v3972 = vpop.xlane.xlu0 %3971
        %v3973 = vsub.f32 %v3905, %v3945
        %v3974 = vsub.f32 %v3908, %v3948
        %v3975 = vsub.f32 %v3913, %v3951
        %v3976 = vsub.f32 %v3916, %v3954
        %v3977 = vsub.f32 %v3921, %v3957
        %v3978 = vsub.f32 %v3924, %v3960
        %v3979 = vsub.f32 %v3929, %v3963
        %v3980 = vsub.f32 %v3932, %v3966
        %v3981 = vsub.f32 %v3937, %v3969
        %v3982 = vsub.f32 %v3940, %v3972
        %v3983 = vmul.f32 %v3973, 1.442695
        %v3984 = vpow.pop %v3983
        %v3985 = vmul.f32 %v3974, 1.442695
        %v3986 = vpow.pop %v3985
        %v3987 = vmul.f32 %v3975, 1.442695
        %v3988 = vpow.pop %v3987
        %v3989 = vmul.f32 %v3976, 1.442695
        %v3990 = vpow.pop %v3989
        %v3991 = vmul.f32 %v3977, 1.442695
        %v3992 = vpow.pop %v3991
        %v3993 = vmul.f32 %v3978, 1.442695
        %v3994 = vpow.pop %v3993
        %v3995 = vmul.f32 %v3979, 1.442695
        %v3996 = vpow.pop %v3995
        %v3997 = vmul.f32 %v3980, 1.442695
        %v3998 = vpow.pop %v3997
        %v3999 = vmul.f32 %v3981, 1.442695
        %v4000 = vpow.pop %v3999
        %v4001 = vmul.f32 %v3982, 1.442695
        %v4002 = vpow.pop %v4001
        %v4003 = vsel %vm1250, %v3984, 0.0
        %4004 = vadd.xlane.f32.xlu0 %v4003
        %v4005 = vpop.xlane.xlu0 %4004
        %v4006 = vsel %vm1250, %v3986, 0.0
        %4007 = vadd.xlane.f32.xlu0 %v4006
        %v4008 = vpop.xlane.xlu0 %4007
        %v4009 = vsel %vm1250, %v3988, 0.0
        %4010 = vadd.xlane.f32.xlu0 %v4009
        %v4011 = vpop.xlane.xlu0 %4010
        %v4012 = vsel %vm1250, %v3990, 0.0
        %4013 = vadd.xlane.f32.xlu0 %v4012
        %v4014 = vpop.xlane.xlu0 %4013
        %v4015 = vsel %vm1250, %v3992, 0.0
        %4016 = vadd.xlane.f32.xlu0 %v4015
        %v4017 = vpop.xlane.xlu0 %4016
        %v4018 = vsel %vm1250, %v3994, 0.0
        %4019 = vadd.xlane.f32.xlu0 %v4018
        %v4020 = vpop.xlane.xlu0 %4019
        %v4021 = vsel %vm1250, %v3996, 0.0
        %4022 = vadd.xlane.f32.xlu0 %v4021
        %v4023 = vpop.xlane.xlu0 %4022
        %v4024 = vsel %vm1250, %v3998, 0.0
        %4025 = vadd.xlane.f32.xlu0 %v4024
        %v4026 = vpop.xlane.xlu0 %4025
        %v4027 = vsel %vm1250, %v4000, 0.0
        %4028 = vadd.xlane.f32.xlu0 %v4027
        %v4029 = vpop.xlane.xlu0 %4028
        %v4030 = vsel %vm1250, %v4002, 0.0
        %4031 = vadd.xlane.f32.xlu0 %v4030
        %v4032 = vpop.xlane.xlu0 %4031
        %v4033 = vrcp.pop %v4005
        %v4034 = vrcp.pop %v4008
        %v4035 = vrcp.pop %v4011
        %v4036 = vrcp.pop %v4014
        %v4037 = vrcp.pop %v4017
        %v4038 = vrcp.pop %v4020
        %v4039 = vrcp.pop %v4023
        %v4040 = vrcp.pop %v4026
        %v4041 = vrcp.pop %v4029
        %v4042 = vrcp.pop %v4032
        %v4043 = vmul.f32 %v3984, %v4033
        %v4044 = vmul.f32 %v3986, %v4034
        %v4045 = vmul.f32 %v3988, %v4035
        %v4046 = vmul.f32 %v3990, %v4036
        %v4047 = vmul.f32 %v3992, %v4037
        %v4048 = vmul.f32 %v3994, %v4038
        %v4049 = vmul.f32 %v3996, %v4039
        %v4050 = vmul.f32 %v3998, %v4040
        %v4051 = vmul.f32 %v4000, %v4041
        %v4052 = vmul.f32 %v4002, %v4042
        %v4053 = vpack.c.bf16 %v4044, %v4043
        %v4054 = vpack.c.bf16 %v4046, %v4045
        %v4055 = vpack.c.bf16 %v4048, %v4047
        %v4056 = vpack.c.bf16 %v4050, %v4049
        %v4057 = vpack.c.bf16 %v4052, %v4051
        %4058 = vrot.lane.b32.xlu0 %v1129, 32
        %v4059 = vpop.permute.xlu0 %4058
        %4060 = vrot.lane.b32.xlu0 %v1132, 32
        %v4061 = vpop.permute.xlu0 %4060
        %4062 = vrot.lane.b32.xlu0 %v1135, 32
        %v4063 = vpop.permute.xlu0 %4062
        %4064 = vrot.lane.b32.xlu0 %v1138, 32
        %v4065 = vpop.permute.xlu0 %4064
        %4066 = vrot.lane.b32.xlu0 %v1141, 32
        %v4067 = vpop.permute.xlu0 %4066
        %v4074 = vsel %vm1250, %v4053, 0
        %v4077 = vsel %vm1250, %v4054, 0
        %v4080 = vsel %vm1250, %v4055, 0
        %v4083 = vsel %vm1250, %v4056, 0
        %v4086 = vsel %vm1250, %v4057, 0
        %4088 = vmatprep.subr.bf16.mxu0 0
        %4089 = vmatpush1.bf16.msra.mxu0 0
        %4090 = vmatprep.subr.bf16.mxu0 0
        %4091 = vmatpush1.bf16.msra.mxu0 0
        %4092 = vmatprep.subr.bf16.mxu0 0
        %4093 = vmatpush1.bf16.msra.mxu0 0
        %4094 = vmatprep.subr.bf16.mxu0 0
        %4095 = vmatpush1.bf16.msra.mxu0 %v4067
        %4096 = vmatprep.subr.bf16.mxu0 0
        %4097 = vmatpush1.bf16.msra.mxu0 %v4065
        %4098 = vmatprep.subr.bf16.mxu0 0
        %4099 = vmatpush1.bf16.msra.mxu0 %v4063
        %4100 = vmatprep.subr.bf16.mxu0 0
        %4101 = vmatpush1.bf16.msra.mxu0 %v4061
        %4102 = vmatprep.subr.bf16.mxu0 0
        %4103 = vmatpush1.bf16.msra.mxu0 %v4059
        %4104 = vmatprep.subr.bf16.mxu0 0
        %4105 = vmatpush2.bf16.msra.mxu0 0
        %4106 = vmatprep.subr.bf16.mxu0 0
        %4107 = vmatpush2.bf16.msra.mxu0 0
        %4108 = vmatprep.subr.bf16.mxu0 0
        %4109 = vmatpush2.bf16.msra.mxu0 0
        %4110 = vmatprep.subr.bf16.mxu0 0
        %4111 = vmatpush2.bf16.msra.mxu0 0
        %4112 = vmatprep.subr.bf16.mxu0 0
        %4113 = vmatpush2.bf16.msra.mxu0 0
        %4114 = vmatprep.subr.bf16.mxu0 0
        %4115 = vmatpush2.bf16.msra.mxu0 0
        %4116 = vmatprep.subr.bf16.mxu0 0
        %4117 = vmatpush2.bf16.msra.mxu0 0
        %4118 = vmatprep.subr.bf16.mxu0 0
        %4119 = vmatpush2.bf16.msra.mxu0 0
        %4120 = vmatprep.mubr.bf16.mxu0 0
        %4121 = vmatmul.mubr.bf16.gmra.mxu0 %v4074
        %v4122 = vpop.f32.mrf.mxu0
        %v4123 = vadd.f32 0.0, %v4122
        %v4124 = vpop.f32.mrf.mxu0
        %v4125 = vpop.f32.mrf.mxu0
        %v4126 = vadd.f32 0.0, %v4125
        %v4127 = vpop.f32.mrf.mxu0
        %4128 = vmatprep.mubr.bf16.mxu0 0
        %4129 = vmatmul.mubr.bf16.gmra.mxu0 %v4077
        %v4130 = vpop.f32.mrf.mxu0
        %v4131 = vadd.f32 0.0, %v4130
        %v4132 = vpop.f32.mrf.mxu0
        %v4133 = vpop.f32.mrf.mxu0
        %v4134 = vadd.f32 0.0, %v4133
        %v4135 = vpop.f32.mrf.mxu0
        %4136 = vmatprep.mubr.bf16.mxu0 0
        %4137 = vmatmul.mubr.bf16.gmra.mxu0 %v4080
        %v4138 = vpop.f32.mrf.mxu0
        %v4139 = vadd.f32 0.0, %v4138
        %v4140 = vpop.f32.mrf.mxu0
        %v4141 = vpop.f32.mrf.mxu0
        %v4142 = vadd.f32 0.0, %v4141
        %v4143 = vpop.f32.mrf.mxu0
        %4144 = vmatprep.mubr.bf16.mxu0 0
        %4145 = vmatmul.mubr.bf16.gmra.mxu0 %v4083
        %v4146 = vpop.f32.mrf.mxu0
        %v4147 = vadd.f32 0.0, %v4146
        %v4148 = vpop.f32.mrf.mxu0
        %v4149 = vpop.f32.mrf.mxu0
        %v4150 = vadd.f32 0.0, %v4149
        %v4151 = vpop.f32.mrf.mxu0
        %4152 = vmatprep.mubr.bf16.mxu0 0
        %4153 = vmatmul.mubr.bf16.gmra.mxu0 %v4086
        %v4154 = vpop.f32.mrf.mxu0
        %v4155 = vadd.f32 0.0, %v4154
        %v4156 = vpop.f32.mrf.mxu0
        %v4157 = vpop.f32.mrf.mxu0
        %v4158 = vadd.f32 0.0, %v4157
        %v4159 = vpop.f32.mrf.mxu0
        %4160 = vdwg.mxu0
        %v4161 = vpack.c.bf16 %v4126, %v4123
        %v4162 = vpack.c.bf16 %v4134, %v4131
        %v4163 = vpack.c.bf16 %v4142, %v4139
        %v4164 = vpack.c.bf16 %v4150, %v4147
        %v4165 = vpack.c.bf16 %v4158, %v4155
        %v4166 = vld [vmem:[%s578 + $0x30] sm:$0xf]
        %v4167 = vld [vmem:[%s578 + $0x34] sm:$0xf]
        %v4170 = vunpack.c.l.b16 %v4166
        %v4171 = vunpack.c.l.b16 %v4167
        %v4172 = vpack.c.b16 %v4171, %v4170
        %v4175 = vsel %vm1146, %v4161, 0
        %v4178 = vsel %vm1146, %v4162, 0
        %v4181 = vsel %vm1146, %v4163, 0
        %v4184 = vsel %vm1146, %v4164, 0
        %v4187 = vsel %vm1146, %v4165, 0
        %4189 = vmatprep.subr.bf16.mxu0 0
        %4190 = vmatpush1.bf16.msra.mxu0 0
        %4191 = vmatprep.subr.bf16.mxu0 0
        %4192 = vmatpush1.bf16.msra.mxu0 0
        %4193 = vmatprep.subr.bf16.mxu0 0
        %4194 = vmatpush1.bf16.msra.mxu0 0
        %4195 = vmatprep.subr.bf16.mxu0 0
        %4196 = vmatpush1.bf16.msra.mxu0 0
        %4197 = vmatprep.subr.bf16.mxu0 0
        %4198 = vmatpush1.bf16.msra.mxu0 0
        %4199 = vmatprep.subr.bf16.mxu0 0
        %4200 = vmatpush1.bf16.msra.mxu0 0
        %4201 = vmatprep.subr.bf16.mxu0 0
        %4202 = vmatpush1.bf16.msra.mxu0 0
        %4203 = vmatprep.subr.bf16.mxu0 0
        %4204 = vmatpush1.bf16.msra.mxu0 %v4172
        %4205 = vmatprep.subr.bf16.mxu0 0
        %4206 = vmatpush2.bf16.msra.mxu0 0
        %4207 = vmatprep.subr.bf16.mxu0 0
        %4208 = vmatpush2.bf16.msra.mxu0 0
        %4209 = vmatprep.subr.bf16.mxu0 0
        %4210 = vmatpush2.bf16.msra.mxu0 0
        %4211 = vmatprep.subr.bf16.mxu0 0
        %4212 = vmatpush2.bf16.msra.mxu0 0
        %4213 = vmatprep.subr.bf16.mxu0 0
        %4214 = vmatpush2.bf16.msra.mxu0 0
        %4215 = vmatprep.subr.bf16.mxu0 0
        %4216 = vmatpush2.bf16.msra.mxu0 0
        %4217 = vmatprep.subr.bf16.mxu0 0
        %4218 = vmatpush2.bf16.msra.mxu0 0
        %4219 = vmatprep.subr.bf16.mxu0 0
        %4220 = vmatpush2.bf16.msra.mxu0 0
        %4221 = vmatprep.mubr.bf16.mxu0 0
        %4222 = vmatmul.mubr.bf16.gmra.mxu0 %v4175
        %v4223 = vpop.f32.mrf.mxu0
        %v4224 = vadd.f32 0.0, %v4223
        %v4225 = vpop.f32.mrf.mxu0
        %v4226 = vpop.f32.mrf.mxu0
        %v4227 = vadd.f32 0.0, %v4226
        %v4228 = vpop.f32.mrf.mxu0
        %4229 = vmatprep.mubr.bf16.mxu0 0
        %4230 = vmatmul.mubr.bf16.gmra.mxu0 %v4178
        %v4231 = vpop.f32.mrf.mxu0
        %v4232 = vadd.f32 0.0, %v4231
        %v4233 = vpop.f32.mrf.mxu0
        %v4234 = vpop.f32.mrf.mxu0
        %v4235 = vadd.f32 0.0, %v4234
        %v4236 = vpop.f32.mrf.mxu0
        %4237 = vmatprep.mubr.bf16.mxu0 0
        %4238 = vmatmul.mubr.bf16.gmra.mxu0 %v4181
        %v4239 = vpop.f32.mrf.mxu0
        %v4240 = vadd.f32 0.0, %v4239
        %v4241 = vpop.f32.mrf.mxu0
        %v4242 = vpop.f32.mrf.mxu0
        %v4243 = vadd.f32 0.0, %v4242
        %v4244 = vpop.f32.mrf.mxu0
        %4245 = vmatprep.mubr.bf16.mxu0 0
        %4246 = vmatmul.mubr.bf16.gmra.mxu0 %v4184
        %v4247 = vpop.f32.mrf.mxu0
        %v4248 = vadd.f32 0.0, %v4247
        %v4249 = vpop.f32.mrf.mxu0
        %v4250 = vpop.f32.mrf.mxu0
        %v4251 = vadd.f32 0.0, %v4250
        %v4252 = vpop.f32.mrf.mxu0
        %4253 = vmatprep.mubr.bf16.mxu0 0
        %4254 = vmatmul.mubr.bf16.gmra.mxu0 %v4187
        %v4255 = vpop.f32.mrf.mxu0
        %v4256 = vadd.f32 0.0, %v4255
        %v4257 = vpop.f32.mrf.mxu0
        %v4258 = vpop.f32.mrf.mxu0
        %v4259 = vadd.f32 0.0, %v4258
        %v4260 = vpop.f32.mrf.mxu0
        %4261 = vdwg.mxu0
        %v4262 = vadd.f32 %v3810, %v4224
        %v4263 = vadd.f32 %v3811, %v4227
        %v4264 = vadd.f32 %v3812, %v4232
        %v4265 = vadd.f32 %v3813, %v4235
        %v4266 = vadd.f32 %v3814, %v4240
        %v4267 = vadd.f32 %v3815, %v4243
        %v4268 = vadd.f32 %v3816, %v4248
        %v4269 = vadd.f32 %v3817, %v4251
        %v4270 = vadd.f32 %v3818, %v4256
        %v4271 = vadd.f32 %v3819, %v4259
        %4272 = vrot.lane.b32.xlu0 %v1127, 16
        %v4273 = vpop.permute.xlu0 %4272
        %4274 = vrot.lane.b32.xlu0 %v1130, 16
        %v4275 = vpop.permute.xlu0 %4274
        %4276 = vrot.lane.b32.xlu0 %v1133, 16
        %v4277 = vpop.permute.xlu0 %4276
        %4278 = vrot.lane.b32.xlu0 %v1136, 16
        %v4279 = vpop.permute.xlu0 %4278
        %4280 = vrot.lane.b32.xlu0 %v1139, 16
        %v4281 = vpop.permute.xlu0 %4280
        %4282 = vrot.lane.b32.xlu0 %v1128, 16
        %v4283 = vpop.permute.xlu0 %4282
        %4284 = vrot.lane.b32.xlu0 %v1131, 16
        %v4285 = vpop.permute.xlu0 %4284
        %4286 = vrot.lane.b32.xlu0 %v1134, 16
        %v4287 = vpop.permute.xlu0 %4286
        %4288 = vrot.lane.b32.xlu0 %v1137, 16
        %v4289 = vpop.permute.xlu0 %4288
        %4290 = vrot.lane.b32.xlu0 %v1140, 16
        %v4291 = vpop.permute.xlu0 %4290
        %v4293 = vsel %vm1146, %v4273, 0
        %v4296 = vsel %vm1146, %v4275, 0
        %v4299 = vsel %vm1146, %v4277, 0
        %v4302 = vsel %vm1146, %v4279, 0
        %v4305 = vsel %vm1146, %v4281, 0
        %v4308 = vsel %vm1146, %v4283, 0
        %v4311 = vsel %vm1146, %v4285, 0
        %v4314 = vsel %vm1146, %v4287, 0
        %v4317 = vsel %vm1146, %v4289, 0
        %v4320 = vsel %vm1146, %v4291, 0
        %4322 = vmatprep.subr.bf16.mxu0 0
        %4323 = vmatpush1.bf16.xpose.msra.mxu0 0
        %4324 = vmatprep.subr.bf16.mxu0 0
        %4325 = vmatpush1.bf16.xpose.msra.mxu0 0
        %4326 = vmatprep.subr.bf16.mxu0 0
        %4327 = vmatpush1.bf16.xpose.msra.mxu0 0
        %4328 = vmatprep.subr.bf16.mxu0 0
        %4329 = vmatpush1.bf16.xpose.msra.mxu0 %v4320
        %4330 = vmatprep.subr.bf16.mxu0 0
        %4331 = vmatpush1.bf16.xpose.msra.mxu0 %v4317
        %4332 = vmatprep.subr.bf16.mxu0 0
        %4333 = vmatpush1.bf16.xpose.msra.mxu0 %v4314
        %4334 = vmatprep.subr.bf16.mxu0 0
        %4335 = vmatpush1.bf16.xpose.msra.mxu0 %v4311
        %4336 = vmatprep.subr.bf16.mxu0 0
        %4337 = vmatpush1.bf16.xpose.msra.mxu0 %v4308
        %4338 = vmatprep.subr.bf16.mxu0 0
        %4339 = vmatpush2.bf16.xpose.msra.mxu0 0
        %4340 = vmatprep.subr.bf16.mxu0 0
        %4341 = vmatpush2.bf16.xpose.msra.mxu0 0
        %4342 = vmatprep.subr.bf16.mxu0 0
        %4343 = vmatpush2.bf16.xpose.msra.mxu0 0
        %4344 = vmatprep.subr.bf16.mxu0 0
        %4345 = vmatpush2.bf16.xpose.msra.mxu0 0
        %4346 = vmatprep.subr.bf16.mxu0 0
        %4347 = vmatpush2.bf16.xpose.msra.mxu0 0
        %4348 = vmatprep.subr.bf16.mxu0 0
        %4349 = vmatpush2.bf16.xpose.msra.mxu0 0
        %4350 = vmatprep.subr.bf16.mxu0 0
        %4351 = vmatpush2.bf16.xpose.msra.mxu0 0
        %4352 = vmatprep.subr.bf16.mxu0 0
        %4353 = vmatpush2.bf16.xpose.msra.mxu0 0
        %4354 = vmatprep.mubr.bf16.mxu0 0
        %4355 = vmatmul.mubr.bf16.gmra.mxu0 %v4293
        %v4356 = vpop.f32.mrf.mxu0
        %v4357 = vadd.f32 %v1145, %v4356
        %v4358 = vpop.f32.mrf.mxu0
        %v4359 = vpop.f32.mrf.mxu0
        %v4360 = vadd.f32 %v1145, %v4359
        %v4361 = vpop.f32.mrf.mxu0
        %4362 = vmatprep.mubr.bf16.mxu0 0
        %4363 = vmatmul.mubr.bf16.gmra.mxu0 %v4296
        %v4364 = vpop.f32.mrf.mxu0
        %v4365 = vadd.f32 %v1145, %v4364
        %v4366 = vpop.f32.mrf.mxu0
        %v4367 = vpop.f32.mrf.mxu0
        %v4368 = vadd.f32 %v1145, %v4367
        %v4369 = vpop.f32.mrf.mxu0
        %4370 = vmatprep.mubr.bf16.mxu0 0
        %4371 = vmatmul.mubr.bf16.gmra.mxu0 %v4299
        %v4372 = vpop.f32.mrf.mxu0
        %v4373 = vadd.f32 %v1145, %v4372
        %v4374 = vpop.f32.mrf.mxu0
        %v4375 = vpop.f32.mrf.mxu0
        %v4376 = vadd.f32 %v1145, %v4375
        %v4377 = vpop.f32.mrf.mxu0
        %4378 = vmatprep.mubr.bf16.mxu0 0
        %4379 = vmatmul.mubr.bf16.gmra.mxu0 %v4302
        %v4380 = vpop.f32.mrf.mxu0
        %v4381 = vadd.f32 %v1145, %v4380
        %v4382 = vpop.f32.mrf.mxu0
        %v4383 = vpop.f32.mrf.mxu0
        %v4384 = vadd.f32 %v1145, %v4383
        %v4385 = vpop.f32.mrf.mxu0
        %4386 = vmatprep.mubr.bf16.mxu0 0
        %4387 = vmatmul.mubr.bf16.gmra.mxu0 %v4305
        %v4388 = vpop.f32.mrf.mxu0
        %v4389 = vadd.f32 %v1145, %v4388
        %v4390 = vpop.f32.mrf.mxu0
        %v4391 = vpop.f32.mrf.mxu0
        %v4392 = vadd.f32 %v1145, %v4391
        %v4393 = vpop.f32.mrf.mxu0
        %4394 = vdwg.mxu0
        %v4395 = vsel %vm1250, %v4357, -inf
        %4396 = vmax.xlane.f32.xlu0 %v4395
        %v4397 = vpop.xlane.xlu0 %4396
        %v4398 = vsel %vm1250, %v4360, -inf
        %4399 = vmax.xlane.f32.xlu0 %v4398
        %v4400 = vpop.xlane.xlu0 %4399
        %v4401 = vsel %vm1250, %v4365, -inf
        %4402 = vmax.xlane.f32.xlu0 %v4401
        %v4403 = vpop.xlane.xlu0 %4402
        %v4404 = vsel %vm1250, %v4368, -inf
        %4405 = vmax.xlane.f32.xlu0 %v4404
        %v4406 = vpop.xlane.xlu0 %4405
        %v4407 = vsel %vm1250, %v4373, -inf
        %4408 = vmax.xlane.f32.xlu0 %v4407
        %v4409 = vpop.xlane.xlu0 %4408
        %v4410 = vsel %vm1250, %v4376, -inf
        %4411 = vmax.xlane.f32.xlu0 %v4410
        %v4412 = vpop.xlane.xlu0 %4411
        %v4413 = vsel %vm1250, %v4381, -inf
        %4414 = vmax.xlane.f32.xlu0 %v4413
        %v4415 = vpop.xlane.xlu0 %4414
        %v4416 = vsel %vm1250, %v4384, -inf
        %4417 = vmax.xlane.f32.xlu0 %v4416
        %v4418 = vpop.xlane.xlu0 %4417
        %v4419 = vsel %vm1250, %v4389, -inf
        %4420 = vmax.xlane.f32.xlu0 %v4419
        %v4421 = vpop.xlane.xlu0 %4420
        %v4422 = vsel %vm1250, %v4392, -inf
        %4423 = vmax.xlane.f32.xlu0 %v4422
        %v4424 = vpop.xlane.xlu0 %4423
        %v4425 = vsub.f32 %v4357, %v4397
        %v4426 = vsub.f32 %v4360, %v4400
        %v4427 = vsub.f32 %v4365, %v4403
        %v4428 = vsub.f32 %v4368, %v4406
        %v4429 = vsub.f32 %v4373, %v4409
        %v4430 = vsub.f32 %v4376, %v4412
        %v4431 = vsub.f32 %v4381, %v4415
        %v4432 = vsub.f32 %v4384, %v4418
        %v4433 = vsub.f32 %v4389, %v4421
        %v4434 = vsub.f32 %v4392, %v4424
        %v4435 = vmul.f32 %v4425, 1.442695
        %v4436 = vpow.pop %v4435
        %v4437 = vmul.f32 %v4426, 1.442695
        %v4438 = vpow.pop %v4437
        %v4439 = vmul.f32 %v4427, 1.442695
        %v4440 = vpow.pop %v4439
        %v4441 = vmul.f32 %v4428, 1.442695
        %v4442 = vpow.pop %v4441
        %v4443 = vmul.f32 %v4429, 1.442695
        %v4444 = vpow.pop %v4443
        %v4445 = vmul.f32 %v4430, 1.442695
        %v4446 = vpow.pop %v4445
        %v4447 = vmul.f32 %v4431, 1.442695
        %v4448 = vpow.pop %v4447
        %v4449 = vmul.f32 %v4432, 1.442695
        %v4450 = vpow.pop %v4449
        %v4451 = vmul.f32 %v4433, 1.442695
        %v4452 = vpow.pop %v4451
        %v4453 = vmul.f32 %v4434, 1.442695
        %v4454 = vpow.pop %v4453
        %v4455 = vsel %vm1250, %v4436, 0.0
        %4456 = vadd.xlane.f32.xlu0 %v4455
        %v4457 = vpop.xlane.xlu0 %4456
        %v4458 = vsel %vm1250, %v4438, 0.0
        %4459 = vadd.xlane.f32.xlu0 %v4458
        %v4460 = vpop.xlane.xlu0 %4459
        %v4461 = vsel %vm1250, %v4440, 0.0
        %4462 = vadd.xlane.f32.xlu0 %v4461
        %v4463 = vpop.xlane.xlu0 %4462
        %v4464 = vsel %vm1250, %v4442, 0.0
        %4465 = vadd.xlane.f32.xlu0 %v4464
        %v4466 = vpop.xlane.xlu0 %4465
        %v4467 = vsel %vm1250, %v4444, 0.0
        %4468 = vadd.xlane.f32.xlu0 %v4467
        %v4469 = vpop.xlane.xlu0 %4468
        %v4470 = vsel %vm1250, %v4446, 0.0
        %4471 = vadd.xlane.f32.xlu0 %v4470
        %v4472 = vpop.xlane.xlu0 %4471
        %v4473 = vsel %vm1250, %v4448, 0.0
        %4474 = vadd.xlane.f32.xlu0 %v4473
        %v4475 = vpop.xlane.xlu0 %4474
        %v4476 = vsel %vm1250, %v4450, 0.0
        %4477 = vadd.xlane.f32.xlu0 %v4476
        %v4478 = vpop.xlane.xlu0 %4477
        %v4479 = vsel %vm1250, %v4452, 0.0
        %4480 = vadd.xlane.f32.xlu0 %v4479
        %v4481 = vpop.xlane.xlu0 %4480
        %v4482 = vsel %vm1250, %v4454, 0.0
        %4483 = vadd.xlane.f32.xlu0 %v4482
        %v4484 = vpop.xlane.xlu0 %4483
        %v4485 = vrcp.pop %v4457
        %v4486 = vrcp.pop %v4460
        %v4487 = vrcp.pop %v4463
        %v4488 = vrcp.pop %v4466
        %v4489 = vrcp.pop %v4469
        %v4490 = vrcp.pop %v4472
        %v4491 = vrcp.pop %v4475
        %v4492 = vrcp.pop %v4478
        %v4493 = vrcp.pop %v4481
        %v4494 = vrcp.pop %v4484
        %v4495 = vmul.f32 %v4436, %v4485
        %v4496 = vmul.f32 %v4438, %v4486
        %v4497 = vmul.f32 %v4440, %v4487
        %v4498 = vmul.f32 %v4442, %v4488
        %v4499 = vmul.f32 %v4444, %v4489
        %v4500 = vmul.f32 %v4446, %v4490
        %v4501 = vmul.f32 %v4448, %v4491
        %v4502 = vmul.f32 %v4450, %v4492
        %v4503 = vmul.f32 %v4452, %v4493
        %v4504 = vmul.f32 %v4454, %v4494
        %v4505 = vpack.c.bf16 %v4496, %v4495
        %v4506 = vpack.c.bf16 %v4498, %v4497
        %v4507 = vpack.c.bf16 %v4500, %v4499
        %v4508 = vpack.c.bf16 %v4502, %v4501
        %v4509 = vpack.c.bf16 %v4504, %v4503
        %4510 = vrot.lane.b32.xlu0 %v1129, 16
        %v4511 = vpop.permute.xlu0 %4510
        %4512 = vrot.lane.b32.xlu0 %v1132, 16
        %v4513 = vpop.permute.xlu0 %4512
        %4514 = vrot.lane.b32.xlu0 %v1135, 16
        %v4515 = vpop.permute.xlu0 %4514
        %4516 = vrot.lane.b32.xlu0 %v1138, 16
        %v4517 = vpop.permute.xlu0 %4516
        %4518 = vrot.lane.b32.xlu0 %v1141, 16
        %v4519 = vpop.permute.xlu0 %4518
        %v4526 = vsel %vm1250, %v4505, 0
        %v4529 = vsel %vm1250, %v4506, 0
        %v4532 = vsel %vm1250, %v4507, 0
        %v4535 = vsel %vm1250, %v4508, 0
        %v4538 = vsel %vm1250, %v4509, 0
        %4540 = vmatprep.subr.bf16.mxu0 0
        %4541 = vmatpush1.bf16.msra.mxu0 0
        %4542 = vmatprep.subr.bf16.mxu0 0
        %4543 = vmatpush1.bf16.msra.mxu0 0
        %4544 = vmatprep.subr.bf16.mxu0 0
        %4545 = vmatpush1.bf16.msra.mxu0 0
        %4546 = vmatprep.subr.bf16.mxu0 0
        %4547 = vmatpush1.bf16.msra.mxu0 %v4519
        %4548 = vmatprep.subr.bf16.mxu0 0
        %4549 = vmatpush1.bf16.msra.mxu0 %v4517
        %4550 = vmatprep.subr.bf16.mxu0 0
        %4551 = vmatpush1.bf16.msra.mxu0 %v4515
        %4552 = vmatprep.subr.bf16.mxu0 0
        %4553 = vmatpush1.bf16.msra.mxu0 %v4513
        %4554 = vmatprep.subr.bf16.mxu0 0
        %4555 = vmatpush1.bf16.msra.mxu0 %v4511
        %4556 = vmatprep.subr.bf16.mxu0 0
        %4557 = vmatpush2.bf16.msra.mxu0 0
        %4558 = vmatprep.subr.bf16.mxu0 0
        %4559 = vmatpush2.bf16.msra.mxu0 0
        %4560 = vmatprep.subr.bf16.mxu0 0
        %4561 = vmatpush2.bf16.msra.mxu0 0
        %4562 = vmatprep.subr.bf16.mxu0 0
        %4563 = vmatpush2.bf16.msra.mxu0 0
        %4564 = vmatprep.subr.bf16.mxu0 0
        %4565 = vmatpush2.bf16.msra.mxu0 0
        %4566 = vmatprep.subr.bf16.mxu0 0
        %4567 = vmatpush2.bf16.msra.mxu0 0
        %4568 = vmatprep.subr.bf16.mxu0 0
        %4569 = vmatpush2.bf16.msra.mxu0 0
        %4570 = vmatprep.subr.bf16.mxu0 0
        %4571 = vmatpush2.bf16.msra.mxu0 0
        %4572 = vmatprep.mubr.bf16.mxu0 0
        %4573 = vmatmul.mubr.bf16.gmra.mxu0 %v4526
        %v4574 = vpop.f32.mrf.mxu0
        %v4575 = vadd.f32 0.0, %v4574
        %v4576 = vpop.f32.mrf.mxu0
        %v4577 = vpop.f32.mrf.mxu0
        %v4578 = vadd.f32 0.0, %v4577
        %v4579 = vpop.f32.mrf.mxu0
        %4580 = vmatprep.mubr.bf16.mxu0 0
        %4581 = vmatmul.mubr.bf16.gmra.mxu0 %v4529
        %v4582 = vpop.f32.mrf.mxu0
        %v4583 = vadd.f32 0.0, %v4582
        %v4584 = vpop.f32.mrf.mxu0
        %v4585 = vpop.f32.mrf.mxu0
        %v4586 = vadd.f32 0.0, %v4585
        %v4587 = vpop.f32.mrf.mxu0
        %4588 = vmatprep.mubr.bf16.mxu0 0
        %4589 = vmatmul.mubr.bf16.gmra.mxu0 %v4532
        %v4590 = vpop.f32.mrf.mxu0
        %v4591 = vadd.f32 0.0, %v4590
        %v4592 = vpop.f32.mrf.mxu0
        %v4593 = vpop.f32.mrf.mxu0
        %v4594 = vadd.f32 0.0, %v4593
        %v4595 = vpop.f32.mrf.mxu0
        %4596 = vmatprep.mubr.bf16.mxu0 0
        %4597 = vmatmul.mubr.bf16.gmra.mxu0 %v4535
        %v4598 = vpop.f32.mrf.mxu0
        %v4599 = vadd.f32 0.0, %v4598
        %v4600 = vpop.f32.mrf.mxu0
        %v4601 = vpop.f32.mrf.mxu0
        %v4602 = vadd.f32 0.0, %v4601
        %v4603 = vpop.f32.mrf.mxu0
        %4604 = vmatprep.mubr.bf16.mxu0 0
        %4605 = vmatmul.mubr.bf16.gmra.mxu0 %v4538
        %v4606 = vpop.f32.mrf.mxu0
        %v4607 = vadd.f32 0.0, %v4606
        %v4608 = vpop.f32.mrf.mxu0
        %v4609 = vpop.f32.mrf.mxu0
        %v4610 = vadd.f32 0.0, %v4609
        %v4611 = vpop.f32.mrf.mxu0
        %4612 = vdwg.mxu0
        %v4613 = vpack.c.bf16 %v4578, %v4575
        %v4614 = vpack.c.bf16 %v4586, %v4583
        %v4615 = vpack.c.bf16 %v4594, %v4591
        %v4616 = vpack.c.bf16 %v4602, %v4599
        %v4617 = vpack.c.bf16 %v4610, %v4607
        %v4618 = vld [vmem:[%s578 + $0x38] sm:$0xf]
        %v4619 = vld [vmem:[%s578 + $0x3c] sm:$0xf]
        %v4622 = vunpack.c.l.b16 %v4618
        %v4623 = vunpack.c.l.b16 %v4619
        %v4624 = vpack.c.b16 %v4623, %v4622
        %v4627 = vsel %vm1146, %v4613, 0
        %v4630 = vsel %vm1146, %v4614, 0
        %v4633 = vsel %vm1146, %v4615, 0
        %v4636 = vsel %vm1146, %v4616, 0
        %v4639 = vsel %vm1146, %v4617, 0
        %4641 = vmatprep.subr.bf16.mxu0 0
        %4642 = vmatpush1.bf16.msra.mxu0 0
        %4643 = vmatprep.subr.bf16.mxu0 0
        %4644 = vmatpush1.bf16.msra.mxu0 0
        %4645 = vmatprep.subr.bf16.mxu0 0
        %4646 = vmatpush1.bf16.msra.mxu0 0
        %4647 = vmatprep.subr.bf16.mxu0 0
        %4648 = vmatpush1.bf16.msra.mxu0 0
        %4649 = vmatprep.subr.bf16.mxu0 0
        %4650 = vmatpush1.bf16.msra.mxu0 0
        %4651 = vmatprep.subr.bf16.mxu0 0
        %4652 = vmatpush1.bf16.msra.mxu0 0
        %4653 = vmatprep.subr.bf16.mxu0 0
        %4654 = vmatpush1.bf16.msra.mxu0 0
        %4655 = vmatprep.subr.bf16.mxu0 0
        %4656 = vmatpush1.bf16.msra.mxu0 %v4624
        %4657 = vmatprep.subr.bf16.mxu0 0
        %4658 = vmatpush2.bf16.msra.mxu0 0
        %4659 = vmatprep.subr.bf16.mxu0 0
        %4660 = vmatpush2.bf16.msra.mxu0 0
        %4661 = vmatprep.subr.bf16.mxu0 0
        %4662 = vmatpush2.bf16.msra.mxu0 0
        %4663 = vmatprep.subr.bf16.mxu0 0
        %4664 = vmatpush2.bf16.msra.mxu0 0
        %4665 = vmatprep.subr.bf16.mxu0 0
        %4666 = vmatpush2.bf16.msra.mxu0 0
        %4667 = vmatprep.subr.bf16.mxu0 0
        %4668 = vmatpush2.bf16.msra.mxu0 0
        %4669 = vmatprep.subr.bf16.mxu0 0
        %4670 = vmatpush2.bf16.msra.mxu0 0
        %4671 = vmatprep.subr.bf16.mxu0 0
        %4672 = vmatpush2.bf16.msra.mxu0 0
        %4673 = vmatprep.mubr.bf16.mxu0 0
        %4674 = vmatmul.mubr.bf16.gmra.mxu0 %v4627
        %v4675 = vpop.f32.mrf.mxu0
        %v4676 = vadd.f32 0.0, %v4675
        %v4677 = vpop.f32.mrf.mxu0
        %v4678 = vpop.f32.mrf.mxu0
        %v4679 = vadd.f32 0.0, %v4678
        %v4680 = vpop.f32.mrf.mxu0
        %4681 = vmatprep.mubr.bf16.mxu0 0
        %4682 = vmatmul.mubr.bf16.gmra.mxu0 %v4630
        %v4683 = vpop.f32.mrf.mxu0
        %v4684 = vadd.f32 0.0, %v4683
        %v4685 = vpop.f32.mrf.mxu0
        %v4686 = vpop.f32.mrf.mxu0
        %v4687 = vadd.f32 0.0, %v4686
        %v4688 = vpop.f32.mrf.mxu0
        %4689 = vmatprep.mubr.bf16.mxu0 0
        %4690 = vmatmul.mubr.bf16.gmra.mxu0 %v4633
        %v4691 = vpop.f32.mrf.mxu0
        %v4692 = vadd.f32 0.0, %v4691
        %v4693 = vpop.f32.mrf.mxu0
        %v4694 = vpop.f32.mrf.mxu0
        %v4695 = vadd.f32 0.0, %v4694
        %v4696 = vpop.f32.mrf.mxu0
        %4697 = vmatprep.mubr.bf16.mxu0 0
        %4698 = vmatmul.mubr.bf16.gmra.mxu0 %v4636
        %v4699 = vpop.f32.mrf.mxu0
        %v4700 = vadd.f32 0.0, %v4699
        %v4701 = vpop.f32.mrf.mxu0
        %v4702 = vpop.f32.mrf.mxu0
        %v4703 = vadd.f32 0.0, %v4702
        %v4704 = vpop.f32.mrf.mxu0
        %4705 = vmatprep.mubr.bf16.mxu0 0
        %4706 = vmatmul.mubr.bf16.gmra.mxu0 %v4639
        %v4707 = vpop.f32.mrf.mxu0
        %v4708 = vadd.f32 0.0, %v4707
        %v4709 = vpop.f32.mrf.mxu0
        %v4710 = vpop.f32.mrf.mxu0
        %v4711 = vadd.f32 0.0, %v4710
        %v4712 = vpop.f32.mrf.mxu0
        %4713 = vdwg.mxu0
        %v4714 = vadd.f32 %v4262, %v4676
        %v4715 = vadd.f32 %v4263, %v4679
        %v4716 = vadd.f32 %v4264, %v4684
        %v4717 = vadd.f32 %v4265, %v4687
        %v4718 = vadd.f32 %v4266, %v4692
        %v4719 = vadd.f32 %v4267, %v4695
        %v4720 = vadd.f32 %v4268, %v4700
        %v4721 = vadd.f32 %v4269, %v4703
        %v4722 = vadd.f32 %v4270, %v4708
        %v4723 = vadd.f32 %v4271, %v4711
        %v4724 = vadd.f32 %v4714, %v772
        %v4725 = vadd.f32 %v4715, %v772
        %v4726 = vadd.f32 %v4716, %v772
        %v4727 = vadd.f32 %v4717, %v772
        %v4728 = vadd.f32 %v4718, %v772
        %v4729 = vadd.f32 %v4719, %v772
        %v4730 = vadd.f32 %v4720, %v772
        %v4731 = vadd.f32 %v4721, %v772
        %v4732 = vadd.f32 %v4722, %v772
        %v4733 = vadd.f32 %v4723, %v772
        %v4734 = vadd.f32 %v780, %v4724
        %v4735 = vadd.f32 %v781, %v4725
        %v4736 = vadd.f32 %v782, %v4726
        %v4737 = vadd.f32 %v783, %v4727
        %v4738 = vadd.f32 %v784, %v4728
        %v4739 = vadd.f32 %v785, %v4729
        %v4740 = vadd.f32 %v786, %v4730
        %v4741 = vadd.f32 %v787, %v4731
        %v4742 = vadd.f32 %v788, %v4732
        %v4743 = vadd.f32 %v789, %v4733
        %4744 = vadd.xlane.f32.xlu0 %v4734
        %v4745 = vpop.xlane.xlu0 %4744
        %4746 = vadd.xlane.f32.xlu0 %v4735
        %v4747 = vpop.xlane.xlu0 %4746
        %4748 = vadd.xlane.f32.xlu0 %v4736
        %v4749 = vpop.xlane.xlu0 %4748
        %4750 = vadd.xlane.f32.xlu0 %v4737
        %v4751 = vpop.xlane.xlu0 %4750
        %4752 = vadd.xlane.f32.xlu0 %v4738
        %v4753 = vpop.xlane.xlu0 %4752
        %4754 = vadd.xlane.f32.xlu0 %v4739
        %v4755 = vpop.xlane.xlu0 %4754
        %4756 = vadd.xlane.f32.xlu0 %v4740
        %v4757 = vpop.xlane.xlu0 %4756
        %4758 = vadd.xlane.f32.xlu0 %v4741
        %v4759 = vpop.xlane.xlu0 %4758
        %4760 = vadd.xlane.f32.xlu0 %v4742
        %v4761 = vpop.xlane.xlu0 %4760
        %4762 = vadd.xlane.f32.xlu0 %v4743
        %v4763 = vpop.xlane.xlu0 %4762
        %v4764 = vrcp.pop 128.0
        %v4765 = vmul.f32 %v4745, %v4764
        %v4766 = vmul.f32 %v4747, %v4764
        %v4767 = vmul.f32 %v4749, %v4764
        %v4768 = vmul.f32 %v4751, %v4764
        %v4769 = vmul.f32 %v4753, %v4764
        %v4770 = vmul.f32 %v4755, %v4764
        %v4771 = vmul.f32 %v4757, %v4764
        %v4772 = vmul.f32 %v4759, %v4764
        %v4773 = vmul.f32 %v4761, %v4764
        %v4774 = vmul.f32 %v4763, %v4764
        %v4775 = vsub.f32 %v4734, %v4765
        %v4776 = vsub.f32 %v4735, %v4766
        %v4777 = vsub.f32 %v4736, %v4767
        %v4778 = vsub.f32 %v4737, %v4768
        %v4779 = vsub.f32 %v4738, %v4769
        %v4780 = vsub.f32 %v4739, %v4770
        %v4781 = vsub.f32 %v4740, %v4771
        %v4782 = vsub.f32 %v4741, %v4772
        %v4783 = vsub.f32 %v4742, %v4773
        %v4784 = vsub.f32 %v4743, %v4774
        %v4785 = vmul.f32 %v4775, %v4775
        %v4786 = vmul.f32 %v4776, %v4776
        %v4787 = vmul.f32 %v4777, %v4777
        %v4788 = vmul.f32 %v4778, %v4778
        %v4789 = vmul.f32 %v4779, %v4779
        %v4790 = vmul.f32 %v4780, %v4780
        %v4791 = vmul.f32 %v4781, %v4781
        %v4792 = vmul.f32 %v4782, %v4782
        %v4793 = vmul.f32 %v4783, %v4783
        %v4794 = vmul.f32 %v4784, %v4784
        %4795 = vadd.xlane.f32.xlu0 %v4785
        %v4796 = vpop.xlane.xlu0 %4795
        %4797 = vadd.xlane.f32.xlu0 %v4786
        %v4798 = vpop.xlane.xlu0 %4797
        %4799 = vadd.xlane.f32.xlu0 %v4787
        %v4800 = vpop.xlane.xlu0 %4799
        %4801 = vadd.xlane.f32.xlu0 %v4788
        %v4802 = vpop.xlane.xlu0 %4801
        %4803 = vadd.xlane.f32.xlu0 %v4789
        %v4804 = vpop.xlane.xlu0 %4803
        %4805 = vadd.xlane.f32.xlu0 %v4790
        %v4806 = vpop.xlane.xlu0 %4805
        %4807 = vadd.xlane.f32.xlu0 %v4791
        %v4808 = vpop.xlane.xlu0 %4807
        %4809 = vadd.xlane.f32.xlu0 %v4792
        %v4810 = vpop.xlane.xlu0 %4809
        %4811 = vadd.xlane.f32.xlu0 %v4793
        %v4812 = vpop.xlane.xlu0 %4811
        %4813 = vadd.xlane.f32.xlu0 %v4794
        %v4814 = vpop.xlane.xlu0 %4813
        %v4815 = vmul.f32 %v4796, %v4764
        %v4816 = vmul.f32 %v4798, %v4764
        %v4817 = vmul.f32 %v4800, %v4764
        %v4818 = vmul.f32 %v4802, %v4764
        %v4819 = vmul.f32 %v4804, %v4764
        %v4820 = vmul.f32 %v4806, %v4764
        %v4821 = vmul.f32 %v4808, %v4764
        %v4822 = vmul.f32 %v4810, %v4764
        %v4823 = vmul.f32 %v4812, %v4764
        %v4824 = vmul.f32 %v4814, %v4764
        %v4825 = vadd.f32 %v4815, 1e-05
        %v4826 = vadd.f32 %v4816, 1e-05
        %v4827 = vadd.f32 %v4817, 1e-05
        %v4828 = vadd.f32 %v4818, 1e-05
        %v4829 = vadd.f32 %v4819, 1e-05
        %v4830 = vadd.f32 %v4820, 1e-05
        %v4831 = vadd.f32 %v4821, 1e-05
        %v4832 = vadd.f32 %v4822, 1e-05
        %v4833 = vadd.f32 %v4823, 1e-05
        %v4834 = vadd.f32 %v4824, 1e-05
        %v4835 = vrsqrt.pop %v4825
        %v4836 = vrsqrt.pop %v4826
        %v4837 = vrsqrt.pop %v4827
        %v4838 = vrsqrt.pop %v4828
        %v4839 = vrsqrt.pop %v4829
        %v4840 = vrsqrt.pop %v4830
        %v4841 = vrsqrt.pop %v4831
        %v4842 = vrsqrt.pop %v4832
        %v4843 = vrsqrt.pop %v4833
        %v4844 = vrsqrt.pop %v4834
        %v4845 = vmul.f32 %v4775, %v4835
        %v4846 = vmul.f32 %v4776, %v4836
        %v4847 = vmul.f32 %v4777, %v4837
        %v4848 = vmul.f32 %v4778, %v4838
        %v4849 = vmul.f32 %v4779, %v4839
        %v4850 = vmul.f32 %v4780, %v4840
        %v4851 = vmul.f32 %v4781, %v4841
        %v4852 = vmul.f32 %v4782, %v4842
        %v4853 = vmul.f32 %v4783, %v4843
        %v4854 = vmul.f32 %v4784, %v4844
        %v4855 = vmul.f32 %v4845, %v773
        %v4856 = vmul.f32 %v4846, %v773
        %v4857 = vmul.f32 %v4847, %v773
        %v4858 = vmul.f32 %v4848, %v773
        %v4859 = vmul.f32 %v4849, %v773
        %v4860 = vmul.f32 %v4850, %v773
        %v4861 = vmul.f32 %v4851, %v773
        %v4862 = vmul.f32 %v4852, %v773
        %v4863 = vmul.f32 %v4853, %v773
        %v4864 = vmul.f32 %v4854, %v773
        %v4865 = vadd.f32 %v4855, %v774
        %v4866 = vadd.f32 %v4856, %v774
        %v4867 = vadd.f32 %v4857, %v774
        %v4868 = vadd.f32 %v4858, %v774
        %v4869 = vadd.f32 %v4859, %v774
        %v4870 = vadd.f32 %v4860, %v774
        %v4871 = vadd.f32 %v4861, %v774
        %v4872 = vadd.f32 %v4862, %v774
        %v4873 = vadd.f32 %v4863, %v774
        %v4874 = vadd.f32 %v4864, %v774
        %v4875 = vpack.c.bf16 %v4866, %v4865
        %v4876 = vpack.c.bf16 %v4868, %v4867
        %v4877 = vpack.c.bf16 %v4870, %v4869
        %v4878 = vpack.c.bf16 %v4872, %v4871
        %v4879 = vpack.c.bf16 %v4874, %v4873
        %v4880 = vld [vmem:[%s583] sm:$0xff]
        %v4881 = vld [vmem:[%s583 + $0x8] sm:$0xff]
        %v4882 = vld [vmem:[%s583 + $0x10] sm:$0xff]
        %v4883 = vld [vmem:[%s583 + $0x18] sm:$0xff]
        %v4884 = vld [vmem:[%s583 + $0x20] sm:$0xff]
        %v4885 = vld [vmem:[%s583 + $0x28] sm:$0xff]
        %v4886 = vld [vmem:[%s583 + $0x30] sm:$0xff]
        %v4887 = vld [vmem:[%s583 + $0x38] sm:$0xff]
        %v4888 = vld [vmem:[%s583 + $0x40] sm:$0xff]
        %v4889 = vld [vmem:[%s583 + $0x48] sm:$0xff]
        %v4890 = vld [vmem:[%s583 + $0x50] sm:$0xff]
        %v4891 = vld [vmem:[%s583 + $0x58] sm:$0xff]
        %v4892 = vld [vmem:[%s583 + $0x60] sm:$0xff]
        %v4893 = vld [vmem:[%s583 + $0x68] sm:$0xff]
        %v4894 = vld [vmem:[%s583 + $0x70] sm:$0xff]
        %v4895 = vld [vmem:[%s583 + $0x78] sm:$0xff]
        %v4897 = vlaneseq
        %v4898 = vshrl.u32 %v4897, 7
        %v4899 = vsub.s32 0, %v4898
        %v4900 = vrot.slane %v776, %v4899
        %v4901 = vlaneseq
        %v4902 = vshrl.u32 %v4901, 7
        %v4903 = vsub.s32 1, %v4902
        %v4904 = vrot.slane %v776, %v4903
        %v4923 = vunpack.c.l.b16 %v4880
        %v4924 = vunpack.c.h.b16 %v4880
        %v4925 = vunpack.c.l.b16 %v4881
        %v4926 = vunpack.c.h.b16 %v4881
        %v4927 = vunpack.c.l.b16 %v4882
        %v4928 = vunpack.c.h.b16 %v4882
        %v4929 = vunpack.c.l.b16 %v4883
        %v4930 = vunpack.c.h.b16 %v4883
        %v4931 = vunpack.c.l.b16 %v4884
        %v4932 = vunpack.c.h.b16 %v4884
        %v4933 = vunpack.c.l.b16 %v4885
        %v4934 = vunpack.c.h.b16 %v4885
        %v4935 = vunpack.c.l.b16 %v4886
        %v4936 = vunpack.c.h.b16 %v4886
        %v4937 = vunpack.c.l.b16 %v4887
        %v4938 = vunpack.c.h.b16 %v4887
        %v4939 = vunpack.c.l.b16 %v4888
        %v4940 = vunpack.c.h.b16 %v4888
        %v4941 = vunpack.c.l.b16 %v4889
        %v4942 = vunpack.c.h.b16 %v4889
        %v4943 = vunpack.c.l.b16 %v4890
        %v4944 = vunpack.c.h.b16 %v4890
        %v4945 = vunpack.c.l.b16 %v4891
        %v4946 = vunpack.c.h.b16 %v4891
        %v4947 = vunpack.c.l.b16 %v4892
        %v4948 = vunpack.c.h.b16 %v4892
        %v4949 = vunpack.c.l.b16 %v4893
        %v4950 = vunpack.c.h.b16 %v4893
        %v4951 = vunpack.c.l.b16 %v4894
        %v4952 = vunpack.c.h.b16 %v4894
        %v4953 = vunpack.c.l.b16 %v4895
        %v4954 = vunpack.c.h.b16 %v4895
        %v4955 = vpack.c.b16 %v4925, %v4923
        %v4956 = vpack.c.b16 %v4926, %v4924
        %v4957 = vpack.c.b16 %v4929, %v4927
        %v4958 = vpack.c.b16 %v4930, %v4928
        %v4959 = vpack.c.b16 %v4933, %v4931
        %v4960 = vpack.c.b16 %v4934, %v4932
        %v4961 = vpack.c.b16 %v4937, %v4935
        %v4962 = vpack.c.b16 %v4938, %v4936
        %v4963 = vpack.c.b16 %v4941, %v4939
        %v4964 = vpack.c.b16 %v4942, %v4940
        %v4965 = vpack.c.b16 %v4945, %v4943
        %v4966 = vpack.c.b16 %v4946, %v4944
        %v4967 = vpack.c.b16 %v4949, %v4947
        %v4968 = vpack.c.b16 %v4950, %v4948
        %v4969 = vpack.c.b16 %v4953, %v4951
        %v4970 = vpack.c.b16 %v4954, %v4952
        %4987 = vmatprep.subr.bf16.mxu0 %v4970
        %4988 = vmatpush1.bf16.msra.mxu0 %v4969
        %4989 = vmatprep.subr.bf16.mxu0 %v4968
        %4990 = vmatpush1.bf16.msra.mxu0 %v4967
        %4991 = vmatprep.subr.bf16.mxu0 %v4966
        %4992 = vmatpush1.bf16.msra.mxu0 %v4965
        %4993 = vmatprep.subr.bf16.mxu0 %v4964
        %4994 = vmatpush1.bf16.msra.mxu0 %v4963
        %4995 = vmatprep.subr.bf16.mxu0 %v4962
        %4996 = vmatpush1.bf16.msra.mxu0 %v4961
        %4997 = vmatprep.subr.bf16.mxu0 %v4960
        %4998 = vmatpush1.bf16.msra.mxu0 %v4959
        %4999 = vmatprep.subr.bf16.mxu0 %v4958
        %5000 = vmatpush1.bf16.msra.mxu0 %v4957
        %5001 = vmatprep.subr.bf16.mxu0 %v4956
        %5002 = vmatpush1.bf16.msra.mxu0 %v4955
        %5003 = vmatprep.subr.bf16.mxu0 0
        %5004 = vmatpush2.bf16.msra.mxu0 0
        %5005 = vmatprep.subr.bf16.mxu0 0
        %5006 = vmatpush2.bf16.msra.mxu0 0
        %5007 = vmatprep.subr.bf16.mxu0 0
        %5008 = vmatpush2.bf16.msra.mxu0 0
        %5009 = vmatprep.subr.bf16.mxu0 0
        %5010 = vmatpush2.bf16.msra.mxu0 0
        %5011 = vmatprep.subr.bf16.mxu0 0
        %5012 = vmatpush2.bf16.msra.mxu0 0
        %5013 = vmatprep.subr.bf16.mxu0 0
        %5014 = vmatpush2.bf16.msra.mxu0 0
        %5015 = vmatprep.subr.bf16.mxu0 0
        %5016 = vmatpush2.bf16.msra.mxu0 0
        %5017 = vmatprep.subr.bf16.mxu0 0
        %5018 = vmatpush2.bf16.msra.mxu0 0
        %5019 = vmatprep.mubr.bf16.mxu0 0
        %5020 = vmatmul.mubr.bf16.gmra.mxu0 %v4875
        %v5021 = vpop.f32.mrf.mxu0
        %v5022 = vadd.f32 %v4900, %v5021
        %v5023 = vpop.f32.mrf.mxu0
        %v5024 = vadd.f32 %v4904, %v5023
        %v5025 = vpop.f32.mrf.mxu0
        %v5026 = vadd.f32 %v4900, %v5025
        %v5027 = vpop.f32.mrf.mxu0
        %v5028 = vadd.f32 %v4904, %v5027
        %5029 = vmatprep.mubr.bf16.mxu0 0
        %5030 = vmatmul.mubr.bf16.gmra.mxu0 %v4876
        %v5031 = vpop.f32.mrf.mxu0
        %v5032 = vadd.f32 %v4900, %v5031
        %v5033 = vpop.f32.mrf.mxu0
        %v5034 = vadd.f32 %v4904, %v5033
        %v5035 = vpop.f32.mrf.mxu0
        %v5036 = vadd.f32 %v4900, %v5035
        %v5037 = vpop.f32.mrf.mxu0
        %v5038 = vadd.f32 %v4904, %v5037
        %5039 = vmatprep.mubr.bf16.mxu0 0
        %5040 = vmatmul.mubr.bf16.gmra.mxu0 %v4877
        %v5041 = vpop.f32.mrf.mxu0
        %v5042 = vadd.f32 %v4900, %v5041
        %v5043 = vpop.f32.mrf.mxu0
        %v5044 = vadd.f32 %v4904, %v5043
        %v5045 = vpop.f32.mrf.mxu0
        %v5046 = vadd.f32 %v4900, %v5045
        %v5047 = vpop.f32.mrf.mxu0
        %v5048 = vadd.f32 %v4904, %v5047
        %5049 = vmatprep.mubr.bf16.mxu0 0
        %5050 = vmatmul.mubr.bf16.gmra.mxu0 %v4878
        %v5051 = vpop.f32.mrf.mxu0
        %v5052 = vadd.f32 %v4900, %v5051
        %v5053 = vpop.f32.mrf.mxu0
        %v5054 = vadd.f32 %v4904, %v5053
        %v5055 = vpop.f32.mrf.mxu0
        %v5056 = vadd.f32 %v4900, %v5055
        %v5057 = vpop.f32.mrf.mxu0
        %v5058 = vadd.f32 %v4904, %v5057
        %5059 = vmatprep.mubr.bf16.mxu0 0
        %5060 = vmatmul.mubr.bf16.gmra.mxu0 %v4879
        %v5061 = vpop.f32.mrf.mxu0
        %v5062 = vadd.f32 %v4900, %v5061
        %v5063 = vpop.f32.mrf.mxu0
        %v5064 = vadd.f32 %v4904, %v5063
        %v5065 = vpop.f32.mrf.mxu0
        %v5066 = vadd.f32 %v4900, %v5065
        %v5067 = vpop.f32.mrf.mxu0
        %v5068 = vadd.f32 %v4904, %v5067
        %5069 = vdwg.mxu0
        %v5070 = vmax.f32 %v5022, 0.0
        %v5071 = vmax.f32 %v5024, 0.0
        %v5072 = vmax.f32 %v5026, 0.0
        %v5073 = vmax.f32 %v5028, 0.0
        %v5074 = vmax.f32 %v5032, 0.0
        %v5075 = vmax.f32 %v5034, 0.0
        %v5076 = vmax.f32 %v5036, 0.0
        %v5077 = vmax.f32 %v5038, 0.0
        %v5078 = vmax.f32 %v5042, 0.0
        %v5079 = vmax.f32 %v5044, 0.0
        %v5080 = vmax.f32 %v5046, 0.0
        %v5081 = vmax.f32 %v5048, 0.0
        %v5082 = vmax.f32 %v5052, 0.0
        %v5083 = vmax.f32 %v5054, 0.0
        %v5084 = vmax.f32 %v5056, 0.0
        %v5085 = vmax.f32 %v5058, 0.0
        %v5086 = vmax.f32 %v5062, 0.0
        %v5087 = vmax.f32 %v5064, 0.0
        %v5088 = vmax.f32 %v5066, 0.0
        %v5089 = vmax.f32 %v5068, 0.0
        %v5090 = vpack.c.bf16 %v5072, %v5070
        %v5091 = vpack.c.bf16 %v5073, %v5071
        %v5092 = vpack.c.bf16 %v5076, %v5074
        %v5093 = vpack.c.bf16 %v5077, %v5075
        %v5094 = vpack.c.bf16 %v5080, %v5078
        %v5095 = vpack.c.bf16 %v5081, %v5079
        %v5096 = vpack.c.bf16 %v5084, %v5082
        %v5097 = vpack.c.bf16 %v5085, %v5083
        %v5098 = vpack.c.bf16 %v5088, %v5086
        %v5099 = vpack.c.bf16 %v5089, %v5087
        %v5100 = vld [vmem:[%s588] sm:$0xf]
        %v5101 = vld [vmem:[%s588 + $0x4] sm:$0xf]
        %v5102 = vld [vmem:[%s588 + $0x8] sm:$0xf]
        %v5103 = vld [vmem:[%s588 + $0xc] sm:$0xf]
        %v5104 = vld [vmem:[%s588 + $0x10] sm:$0xf]
        %v5105 = vld [vmem:[%s588 + $0x14] sm:$0xf]
        %v5106 = vld [vmem:[%s588 + $0x18] sm:$0xf]
        %v5107 = vld [vmem:[%s588 + $0x1c] sm:$0xf]
        %v5108 = vld [vmem:[%s588 + $0x20] sm:$0xf]
        %v5109 = vld [vmem:[%s588 + $0x24] sm:$0xf]
        %v5110 = vld [vmem:[%s588 + $0x28] sm:$0xf]
        %v5111 = vld [vmem:[%s588 + $0x2c] sm:$0xf]
        %v5112 = vld [vmem:[%s588 + $0x30] sm:$0xf]
        %v5113 = vld [vmem:[%s588 + $0x34] sm:$0xf]
        %v5114 = vld [vmem:[%s588 + $0x38] sm:$0xf]
        %v5115 = vld [vmem:[%s588 + $0x3c] sm:$0xf]
        %v5116 = vld [vmem:[%s588 + $0x40] sm:$0xf]
        %v5117 = vld [vmem:[%s588 + $0x44] sm:$0xf]
        %v5118 = vld [vmem:[%s588 + $0x48] sm:$0xf]
        %v5119 = vld [vmem:[%s588 + $0x4c] sm:$0xf]
        %v5120 = vld [vmem:[%s588 + $0x50] sm:$0xf]
        %v5121 = vld [vmem:[%s588 + $0x54] sm:$0xf]
        %v5122 = vld [vmem:[%s588 + $0x58] sm:$0xf]
        %v5123 = vld [vmem:[%s588 + $0x5c] sm:$0xf]
        %v5124 = vld [vmem:[%s588 + $0x60] sm:$0xf]
        %v5125 = vld [vmem:[%s588 + $0x64] sm:$0xf]
        %v5126 = vld [vmem:[%s588 + $0x68] sm:$0xf]
        %v5127 = vld [vmem:[%s588 + $0x6c] sm:$0xf]
        %v5128 = vld [vmem:[%s588 + $0x70] sm:$0xf]
        %v5129 = vld [vmem:[%s588 + $0x74] sm:$0xf]
        %v5130 = vld [vmem:[%s588 + $0x78] sm:$0xf]
        %v5131 = vld [vmem:[%s588 + $0x7c] sm:$0xf]
        %v5164 = vunpack.c.l.b16 %v5100
        %v5165 = vunpack.c.l.b16 %v5101
        %v5166 = vunpack.c.l.b16 %v5102
        %v5167 = vunpack.c.l.b16 %v5103
        %v5168 = vunpack.c.l.b16 %v5104
        %v5169 = vunpack.c.l.b16 %v5105
        %v5170 = vunpack.c.l.b16 %v5106
        %v5171 = vunpack.c.l.b16 %v5107
        %v5172 = vunpack.c.l.b16 %v5108
        %v5173 = vunpack.c.l.b16 %v5109
        %v5174 = vunpack.c.l.b16 %v5110
        %v5175 = vunpack.c.l.b16 %v5111
        %v5176 = vunpack.c.l.b16 %v5112
        %v5177 = vunpack.c.l.b16 %v5113
        %v5178 = vunpack.c.l.b16 %v5114
        %v5179 = vunpack.c.l.b16 %v5115
        %v5180 = vunpack.c.l.b16 %v5116
        %v5181 = vunpack.c.l.b16 %v5117
        %v5182 = vunpack.c.l.b16 %v5118
        %v5183 = vunpack.c.l.b16 %v5119
        %v5184 = vunpack.c.l.b16 %v5120
        %v5185 = vunpack.c.l.b16 %v5121
        %v5186 = vunpack.c.l.b16 %v5122
        %v5187 = vunpack.c.l.b16 %v5123
        %v5188 = vunpack.c.l.b16 %v5124
        %v5189 = vunpack.c.l.b16 %v5125
        %v5190 = vunpack.c.l.b16 %v5126
        %v5191 = vunpack.c.l.b16 %v5127
        %v5192 = vunpack.c.l.b16 %v5128
        %v5193 = vunpack.c.l.b16 %v5129
        %v5194 = vunpack.c.l.b16 %v5130
        %v5195 = vunpack.c.l.b16 %v5131
        %v5196 = vpack.c.b16 %v5165, %v5164
        %v5197 = vpack.c.b16 %v5167, %v5166
        %v5198 = vpack.c.b16 %v5169, %v5168
        %v5199 = vpack.c.b16 %v5171, %v5170
        %v5200 = vpack.c.b16 %v5173, %v5172
        %v5201 = vpack.c.b16 %v5175, %v5174
        %v5202 = vpack.c.b16 %v5177, %v5176
        %v5203 = vpack.c.b16 %v5179, %v5178
        %v5204 = vpack.c.b16 %v5181, %v5180
        %v5205 = vpack.c.b16 %v5183, %v5182
        %v5206 = vpack.c.b16 %v5185, %v5184
        %v5207 = vpack.c.b16 %v5187, %v5186
        %v5208 = vpack.c.b16 %v5189, %v5188
        %v5209 = vpack.c.b16 %v5191, %v5190
        %v5210 = vpack.c.b16 %v5193, %v5192
        %v5211 = vpack.c.b16 %v5195, %v5194
        %5228 = vmatprep.subr.bf16.mxu0 0
        %5229 = vmatpush1.bf16.msra.mxu0 %v5203
        %5230 = vmatprep.subr.bf16.mxu0 0
        %5231 = vmatpush1.bf16.msra.mxu0 %v5202
        %5232 = vmatprep.subr.bf16.mxu0 0
        %5233 = vmatpush1.bf16.msra.mxu0 %v5201
        %5234 = vmatprep.subr.bf16.mxu0 0
        %5235 = vmatpush1.bf16.msra.mxu0 %v5200
        %5236 = vmatprep.subr.bf16.mxu0 0
        %5237 = vmatpush1.bf16.msra.mxu0 %v5199
        %5238 = vmatprep.subr.bf16.mxu0 0
        %5239 = vmatpush1.bf16.msra.mxu0 %v5198
        %5240 = vmatprep.subr.bf16.mxu0 0
        %5241 = vmatpush1.bf16.msra.mxu0 %v5197
        %5242 = vmatprep.subr.bf16.mxu0 0
        %5243 = vmatpush1.bf16.msra.mxu0 %v5196
        %5244 = vmatprep.subr.bf16.mxu0 0
        %5245 = vmatpush2.bf16.msra.mxu0 %v5211
        %5246 = vmatprep.subr.bf16.mxu0 0
        %5247 = vmatpush2.bf16.msra.mxu0 %v5210
        %5248 = vmatprep.subr.bf16.mxu0 0
        %5249 = vmatpush2.bf16.msra.mxu0 %v5209
        %5250 = vmatprep.subr.bf16.mxu0 0
        %5251 = vmatpush2.bf16.msra.mxu0 %v5208
        %5252 = vmatprep.subr.bf16.mxu0 0
        %5253 = vmatpush2.bf16.msra.mxu0 %v5207
        %5254 = vmatprep.subr.bf16.mxu0 0
        %5255 = vmatpush2.bf16.msra.mxu0 %v5206
        %5256 = vmatprep.subr.bf16.mxu0 0
        %5257 = vmatpush2.bf16.msra.mxu0 %v5205
        %5258 = vmatprep.subr.bf16.mxu0 0
        %5259 = vmatpush2.bf16.msra.mxu0 %v5204
        %5260 = vmatprep.mubr.bf16.mxu0 %v5091
        %5261 = vmatmul.mubr.bf16.gmra.mxu0 %v5090
        %v5262 = vpop.f32.mrf.mxu0
        %v5263 = vadd.f32 %v777, %v5262
        %v5264 = vpop.f32.mrf.mxu0
        %v5265 = vpop.f32.mrf.mxu0
        %v5266 = vadd.f32 %v777, %v5265
        %v5267 = vpop.f32.mrf.mxu0
        %5268 = vmatprep.mubr.bf16.mxu0 %v5093
        %5269 = vmatmul.mubr.bf16.gmra.mxu0 %v5092
        %v5270 = vpop.f32.mrf.mxu0
        %v5271 = vadd.f32 %v777, %v5270
        %v5272 = vpop.f32.mrf.mxu0
        %v5273 = vpop.f32.mrf.mxu0
        %v5274 = vadd.f32 %v777, %v5273
        %v5275 = vpop.f32.mrf.mxu0
        %5276 = vmatprep.mubr.bf16.mxu0 %v5095
        %5277 = vmatmul.mubr.bf16.gmra.mxu0 %v5094
        %v5278 = vpop.f32.mrf.mxu0
        %v5279 = vadd.f32 %v777, %v5278
        %v5280 = vpop.f32.mrf.mxu0
        %v5281 = vpop.f32.mrf.mxu0
        %v5282 = vadd.f32 %v777, %v5281
        %v5283 = vpop.f32.mrf.mxu0
        %5284 = vmatprep.mubr.bf16.mxu0 %v5097
        %5285 = vmatmul.mubr.bf16.gmra.mxu0 %v5096
        %v5286 = vpop.f32.mrf.mxu0
        %v5287 = vadd.f32 %v777, %v5286
        %v5288 = vpop.f32.mrf.mxu0
        %v5289 = vpop.f32.mrf.mxu0
        %v5290 = vadd.f32 %v777, %v5289
        %v5291 = vpop.f32.mrf.mxu0
        %5292 = vmatprep.mubr.bf16.mxu0 %v5099
        %5293 = vmatmul.mubr.bf16.gmra.mxu0 %v5098
        %v5294 = vpop.f32.mrf.mxu0
        %v5295 = vadd.f32 %v777, %v5294
        %v5296 = vpop.f32.mrf.mxu0
        %v5297 = vpop.f32.mrf.mxu0
        %v5298 = vadd.f32 %v777, %v5297
        %v5299 = vpop.f32.mrf.mxu0
        %5300 = vdwg.mxu0
        %v5301 = vadd.f32 %v4865, %v5263
        %v5302 = vadd.f32 %v4866, %v5266
        %v5303 = vadd.f32 %v4867, %v5271
        %v5304 = vadd.f32 %v4868, %v5274
        %v5305 = vadd.f32 %v4869, %v5279
        %v5306 = vadd.f32 %v4870, %v5282
        %v5307 = vadd.f32 %v4871, %v5287
        %v5308 = vadd.f32 %v4872, %v5290
        %v5309 = vadd.f32 %v4873, %v5295
        %v5310 = vadd.f32 %v4874, %v5298
        %5311 = vadd.xlane.f32.xlu0 %v5301
        %v5312 = vpop.xlane.xlu0 %5311
        %5313 = vadd.xlane.f32.xlu0 %v5302
        %v5314 = vpop.xlane.xlu0 %5313
        %5315 = vadd.xlane.f32.xlu0 %v5303
        %v5316 = vpop.xlane.xlu0 %5315
        %5317 = vadd.xlane.f32.xlu0 %v5304
        %v5318 = vpop.xlane.xlu0 %5317
        %5319 = vadd.xlane.f32.xlu0 %v5305
        %v5320 = vpop.xlane.xlu0 %5319
        %5321 = vadd.xlane.f32.xlu0 %v5306
        %v5322 = vpop.xlane.xlu0 %5321
        %5323 = vadd.xlane.f32.xlu0 %v5307
        %v5324 = vpop.xlane.xlu0 %5323
        %5325 = vadd.xlane.f32.xlu0 %v5308
        %v5326 = vpop.xlane.xlu0 %5325
        %5327 = vadd.xlane.f32.xlu0 %v5309
        %v5328 = vpop.xlane.xlu0 %5327
        %5329 = vadd.xlane.f32.xlu0 %v5310
        %v5330 = vpop.xlane.xlu0 %5329
        %v5331 = vmul.f32 %v5312, %v4764
        %v5332 = vmul.f32 %v5314, %v4764
        %v5333 = vmul.f32 %v5316, %v4764
        %v5334 = vmul.f32 %v5318, %v4764
        %v5335 = vmul.f32 %v5320, %v4764
        %v5336 = vmul.f32 %v5322, %v4764
        %v5337 = vmul.f32 %v5324, %v4764
        %v5338 = vmul.f32 %v5326, %v4764
        %v5339 = vmul.f32 %v5328, %v4764
        %v5340 = vmul.f32 %v5330, %v4764
        %v5341 = vsub.f32 %v5301, %v5331
        %v5342 = vsub.f32 %v5302, %v5332
        %v5343 = vsub.f32 %v5303, %v5333
        %v5344 = vsub.f32 %v5304, %v5334
        %v5345 = vsub.f32 %v5305, %v5335
        %v5346 = vsub.f32 %v5306, %v5336
        %v5347 = vsub.f32 %v5307, %v5337
        %v5348 = vsub.f32 %v5308, %v5338
        %v5349 = vsub.f32 %v5309, %v5339
        %v5350 = vsub.f32 %v5310, %v5340
        %v5351 = vmul.f32 %v5341, %v5341
        %v5352 = vmul.f32 %v5342, %v5342
        %v5353 = vmul.f32 %v5343, %v5343
        %v5354 = vmul.f32 %v5344, %v5344
        %v5355 = vmul.f32 %v5345, %v5345
        %v5356 = vmul.f32 %v5346, %v5346
        %v5357 = vmul.f32 %v5347, %v5347
        %v5358 = vmul.f32 %v5348, %v5348
        %v5359 = vmul.f32 %v5349, %v5349
        %v5360 = vmul.f32 %v5350, %v5350
        %5361 = vadd.xlane.f32.xlu0 %v5351
        %v5362 = vpop.xlane.xlu0 %5361
        %5363 = vadd.xlane.f32.xlu0 %v5352
        %v5364 = vpop.xlane.xlu0 %5363
        %5365 = vadd.xlane.f32.xlu0 %v5353
        %v5366 = vpop.xlane.xlu0 %5365
        %5367 = vadd.xlane.f32.xlu0 %v5354
        %v5368 = vpop.xlane.xlu0 %5367
        %5369 = vadd.xlane.f32.xlu0 %v5355
        %v5370 = vpop.xlane.xlu0 %5369
        %5371 = vadd.xlane.f32.xlu0 %v5356
        %v5372 = vpop.xlane.xlu0 %5371
        %5373 = vadd.xlane.f32.xlu0 %v5357
        %v5374 = vpop.xlane.xlu0 %5373
        %5375 = vadd.xlane.f32.xlu0 %v5358
        %v5376 = vpop.xlane.xlu0 %5375
        %5377 = vadd.xlane.f32.xlu0 %v5359
        %v5378 = vpop.xlane.xlu0 %5377
        %5379 = vadd.xlane.f32.xlu0 %v5360
        %v5380 = vpop.xlane.xlu0 %5379
        %v5381 = vmul.f32 %v5362, %v4764
        %v5382 = vmul.f32 %v5364, %v4764
        %v5383 = vmul.f32 %v5366, %v4764
        %v5384 = vmul.f32 %v5368, %v4764
        %v5385 = vmul.f32 %v5370, %v4764
        %v5386 = vmul.f32 %v5372, %v4764
        %v5387 = vmul.f32 %v5374, %v4764
        %v5388 = vmul.f32 %v5376, %v4764
        %v5389 = vmul.f32 %v5378, %v4764
        %v5390 = vmul.f32 %v5380, %v4764
        %v5391 = vadd.f32 %v5381, 1e-05
        %v5392 = vadd.f32 %v5382, 1e-05
        %v5393 = vadd.f32 %v5383, 1e-05
        %v5394 = vadd.f32 %v5384, 1e-05
        %v5395 = vadd.f32 %v5385, 1e-05
        %v5396 = vadd.f32 %v5386, 1e-05
        %v5397 = vadd.f32 %v5387, 1e-05
        %v5398 = vadd.f32 %v5388, 1e-05
        %v5399 = vadd.f32 %v5389, 1e-05
        %v5400 = vadd.f32 %v5390, 1e-05
        %v5401 = vrsqrt.pop %v5391
        %v5402 = vrsqrt.pop %v5392
        %v5403 = vrsqrt.pop %v5393
        %v5404 = vrsqrt.pop %v5394
        %v5405 = vrsqrt.pop %v5395
        %v5406 = vrsqrt.pop %v5396
        %v5407 = vrsqrt.pop %v5397
        %v5408 = vrsqrt.pop %v5398
        %v5409 = vrsqrt.pop %v5399
        %v5410 = vrsqrt.pop %v5400
        %v5411 = vmul.f32 %v5341, %v5401
        %v5412 = vmul.f32 %v5342, %v5402
        %v5413 = vmul.f32 %v5343, %v5403
        %v5414 = vmul.f32 %v5344, %v5404
        %v5415 = vmul.f32 %v5345, %v5405
        %v5416 = vmul.f32 %v5346, %v5406
        %v5417 = vmul.f32 %v5347, %v5407
        %v5418 = vmul.f32 %v5348, %v5408
        %v5419 = vmul.f32 %v5349, %v5409
        %v5420 = vmul.f32 %v5350, %v5410
        %v5421 = vmul.f32 %v5411, %v778
        %v5422 = vmul.f32 %v5412, %v778
        %v5423 = vmul.f32 %v5413, %v778
        %v5424 = vmul.f32 %v5414, %v778
        %v5425 = vmul.f32 %v5415, %v778
        %v5426 = vmul.f32 %v5416, %v778
        %v5427 = vmul.f32 %v5417, %v778
        %v5428 = vmul.f32 %v5418, %v778
        %v5429 = vmul.f32 %v5419, %v778
        %v5430 = vmul.f32 %v5420, %v778
        %v5431 = vadd.f32 %v5421, %v779
        %v5432 = vadd.f32 %v5422, %v779
        %v5433 = vadd.f32 %v5423, %v779
        %v5434 = vadd.f32 %v5424, %v779
        %v5435 = vadd.f32 %v5425, %v779
        %v5436 = vadd.f32 %v5426, %v779
        %v5437 = vadd.f32 %v5427, %v779
        %v5438 = vadd.f32 %v5428, %v779
        %v5439 = vadd.f32 %v5429, %v779
        %v5440 = vadd.f32 %v5430, %v779
        %5441 = vst [vmem:[#allocation2] sm:$0xff] %v5431
        %5442 = vst [vmem:[#allocation2 + $0x8] sm:$0xff] %v5432
        %5443 = vst [vmem:[#allocation2 + $0x10] sm:$0xff] %v5433
        %5444 = vst [vmem:[#allocation2 + $0x18] sm:$0xff] %v5434
        %5445 = vst [vmem:[#allocation2 + $0x20] sm:$0xff] %v5435
        %5446 = vst [vmem:[#allocation2 + $0x28] sm:$0xff] %v5436
        %5447 = vst [vmem:[#allocation2 + $0x30] sm:$0xff] %v5437
        %5448 = vst [vmem:[#allocation2 + $0x38] sm:$0xff] %v5438
        %5449 = vst [vmem:[#allocation2 + $0x40] sm:$0xff] %v5439
        %5450 = vst [vmem:[#allocation2 + $0x48] sm:$0xff] %v5440
        %p5451 = scmp.eq.s32.totalorder %s33, 1
        // Predicated region
        $region81: #{enhanced_transformer_forward.1} parent=75 // pred_check
          %p5452 = pneg %p5451
        $region82: #{enhanced_transformer_forward.1} parent=75 // pred_check_branch
          %5454 = sbr.rel (%p5452) target = $region84
        $region83: #{enhanced_transformer_forward.1} parent=75 // pred_region
          %v5455 = vpack.c.bf16 %v5431, %v5431
          %v5456 = vld [vmem:[%s9] sm:$0xff]
          %v5457 = vld [vmem:[%s9 + $0x8] sm:$0xff]
          %v5458 = vld [vmem:[%s9 + $0x10] sm:$0xff]
          %v5459 = vld [vmem:[%s9 + $0x18] sm:$0xff]
          %v5460 = vld [vmem:[%s9 + $0x20] sm:$0xff]
          %v5461 = vld [vmem:[%s9 + $0x28] sm:$0xff]
          %v5462 = vld [vmem:[%s9 + $0x30] sm:$0xff]
          %v5463 = vld [vmem:[%s9 + $0x38] sm:$0xff]
          %v5464 = vld [vmem:[%s9 + $0x40] sm:$0xff]
          %v5465 = vld [vmem:[%s9 + $0x48] sm:$0xff]
          %v5466 = vld [vmem:[%s9 + $0x50] sm:$0xff]
          %v5467 = vld [vmem:[%s9 + $0x58] sm:$0xff]
          %v5468 = vld [vmem:[%s9 + $0x60] sm:$0xff]
          %v5469 = vld [vmem:[%s9 + $0x68] sm:$0xff]
          %v5470 = vld [vmem:[%s9 + $0x70] sm:$0xff]
          %v5471 = vld [vmem:[%s9 + $0x78] sm:$0xff]
          %v5472 = vld [vmem:[%s9 + $0x80] sm:$0xff]
          %v5473 = vld [vmem:[%s9 + $0x88] sm:$0xff]
          %v5474 = vld [vmem:[%s9 + $0x90] sm:$0xff]
          %v5475 = vld [vmem:[%s9 + $0x98] sm:$0xff]
          %v5476 = vld [vmem:[%s9 + $0xa0] sm:$0xff]
          %v5477 = vld [vmem:[%s9 + $0xa8] sm:$0xff]
          %v5478 = vld [vmem:[%s9 + $0xb0] sm:$0xff]
          %v5479 = vld [vmem:[%s9 + $0xb8] sm:$0xff]
          %v5480 = vld [vmem:[%s9 + $0xc0] sm:$0xff]
          %v5481 = vld [vmem:[%s9 + $0xc8] sm:$0xff]
          %v5482 = vld [vmem:[%s9 + $0xd0] sm:$0xff]
          %v5483 = vld [vmem:[%s9 + $0xd8] sm:$0xff]
          %v5484 = vld [vmem:[%s9 + $0xe0] sm:$0xff]
          %v5485 = vld [vmem:[%s9 + $0xe8] sm:$0xff]
          %v5486 = vld [vmem:[%s9 + $0xf0] sm:$0xff]
          %v5487 = vld [vmem:[%s9 + $0xf8] sm:$0xff]
          %v5488 = vld [vmem:[%s10] sm:$0xf]
          %v5490 = vlaneseq
          %v5491 = vshrl.u32 %v5490, 7
          %v5492 = vsub.s32 0, %v5491
          %v5493 = vrot.slane %v5488, %v5492
          %v5494 = vlaneseq
          %v5495 = vshrl.u32 %v5494, 7
          %v5496 = vsub.s32 1, %v5495
          %v5497 = vrot.slane %v5488, %v5496
          %v5498 = vlaneseq
          %v5499 = vshrl.u32 %v5498, 7
          %v5500 = vsub.s32 2, %v5499
          %v5501 = vrot.slane %v5488, %v5500
          %v5502 = vlaneseq
          %v5503 = vshrl.u32 %v5502, 7
          %v5504 = vsub.s32 3, %v5503
          %v5505 = vrot.slane %v5488, %v5504
          %v5542 = vunpack.c.l.b16 %v5456
          %v5543 = vunpack.c.h.b16 %v5456
          %v5544 = vunpack.c.l.b16 %v5457
          %v5545 = vunpack.c.h.b16 %v5457
          %v5546 = vunpack.c.l.b16 %v5458
          %v5547 = vunpack.c.h.b16 %v5458
          %v5548 = vunpack.c.l.b16 %v5459
          %v5549 = vunpack.c.h.b16 %v5459
          %v5550 = vunpack.c.l.b16 %v5460
          %v5551 = vunpack.c.h.b16 %v5460
          %v5552 = vunpack.c.l.b16 %v5461
          %v5553 = vunpack.c.h.b16 %v5461
          %v5554 = vunpack.c.l.b16 %v5462
          %v5555 = vunpack.c.h.b16 %v5462
          %v5556 = vunpack.c.l.b16 %v5463
          %v5557 = vunpack.c.h.b16 %v5463
          %v5558 = vunpack.c.l.b16 %v5464
          %v5559 = vunpack.c.h.b16 %v5464
          %v5560 = vunpack.c.l.b16 %v5465
          %v5561 = vunpack.c.h.b16 %v5465
          %v5562 = vunpack.c.l.b16 %v5466
          %v5563 = vunpack.c.h.b16 %v5466
          %v5564 = vunpack.c.l.b16 %v5467
          %v5565 = vunpack.c.h.b16 %v5467
          %v5566 = vunpack.c.l.b16 %v5468
          %v5567 = vunpack.c.h.b16 %v5468
          %v5568 = vunpack.c.l.b16 %v5469
          %v5569 = vunpack.c.h.b16 %v5469
          %v5570 = vunpack.c.l.b16 %v5470
          %v5571 = vunpack.c.h.b16 %v5470
          %v5572 = vunpack.c.l.b16 %v5471
          %v5573 = vunpack.c.h.b16 %v5471
          %v5574 = vunpack.c.l.b16 %v5472
          %v5575 = vunpack.c.h.b16 %v5472
          %v5576 = vunpack.c.l.b16 %v5473
          %v5577 = vunpack.c.h.b16 %v5473
          %v5578 = vunpack.c.l.b16 %v5474
          %v5579 = vunpack.c.h.b16 %v5474
          %v5580 = vunpack.c.l.b16 %v5475
          %v5581 = vunpack.c.h.b16 %v5475
          %v5582 = vunpack.c.l.b16 %v5476
          %v5583 = vunpack.c.h.b16 %v5476
          %v5584 = vunpack.c.l.b16 %v5477
          %v5585 = vunpack.c.h.b16 %v5477
          %v5586 = vunpack.c.l.b16 %v5478
          %v5587 = vunpack.c.h.b16 %v5478
          %v5588 = vunpack.c.l.b16 %v5479
          %v5589 = vunpack.c.h.b16 %v5479
          %v5590 = vunpack.c.l.b16 %v5480
          %v5591 = vunpack.c.h.b16 %v5480
          %v5592 = vunpack.c.l.b16 %v5481
          %v5593 = vunpack.c.h.b16 %v5481
          %v5594 = vunpack.c.l.b16 %v5482
          %v5595 = vunpack.c.h.b16 %v5482
          %v5596 = vunpack.c.l.b16 %v5483
          %v5597 = vunpack.c.h.b16 %v5483
          %v5598 = vunpack.c.l.b16 %v5484
          %v5599 = vunpack.c.h.b16 %v5484
          %v5600 = vunpack.c.l.b16 %v5485
          %v5601 = vunpack.c.h.b16 %v5485
          %v5602 = vunpack.c.l.b16 %v5486
          %v5603 = vunpack.c.h.b16 %v5486
          %v5604 = vunpack.c.l.b16 %v5487
          %v5605 = vunpack.c.h.b16 %v5487
          %v5606 = vpack.c.b16 %v5546, %v5542
          %v5607 = vpack.c.b16 %v5547, %v5543
          %v5608 = vpack.c.b16 %v5548, %v5544
          %v5609 = vpack.c.b16 %v5549, %v5545
          %v5610 = vpack.c.b16 %v5554, %v5550
          %v5611 = vpack.c.b16 %v5555, %v5551
          %v5612 = vpack.c.b16 %v5556, %v5552
          %v5613 = vpack.c.b16 %v5557, %v5553
          %v5614 = vpack.c.b16 %v5562, %v5558
          %v5615 = vpack.c.b16 %v5563, %v5559
          %v5616 = vpack.c.b16 %v5564, %v5560
          %v5617 = vpack.c.b16 %v5565, %v5561
          %v5618 = vpack.c.b16 %v5570, %v5566
          %v5619 = vpack.c.b16 %v5571, %v5567
          %v5620 = vpack.c.b16 %v5572, %v5568
          %v5621 = vpack.c.b16 %v5573, %v5569
          %v5622 = vpack.c.b16 %v5578, %v5574
          %v5623 = vpack.c.b16 %v5579, %v5575
          %v5624 = vpack.c.b16 %v5580, %v5576
          %v5625 = vpack.c.b16 %v5581, %v5577
          %v5626 = vpack.c.b16 %v5586, %v5582
          %v5627 = vpack.c.b16 %v5587, %v5583
          %v5628 = vpack.c.b16 %v5588, %v5584
          %v5629 = vpack.c.b16 %v5589, %v5585
          %v5630 = vpack.c.b16 %v5594, %v5590
          %v5631 = vpack.c.b16 %v5595, %v5591
          %v5632 = vpack.c.b16 %v5596, %v5592
          %v5633 = vpack.c.b16 %v5597, %v5593
          %v5634 = vpack.c.b16 %v5602, %v5598
          %v5635 = vpack.c.b16 %v5603, %v5599
          %v5636 = vpack.c.b16 %v5604, %v5600
          %v5637 = vpack.c.b16 %v5605, %v5601
          %5670 = vmatprep.subr.bf16.mxu0 %v5635
          %5671 = vmatpush1.bf16.msra.mxu0 %v5634
          %5672 = vmatprep.subr.bf16.mxu0 %v5631
          %5673 = vmatpush1.bf16.msra.mxu0 %v5630
          %5674 = vmatprep.subr.bf16.mxu0 %v5627
          %5675 = vmatpush1.bf16.msra.mxu0 %v5626
          %5676 = vmatprep.subr.bf16.mxu0 %v5623
          %5677 = vmatpush1.bf16.msra.mxu0 %v5622
          %5678 = vmatprep.subr.bf16.mxu0 %v5619
          %5679 = vmatpush1.bf16.msra.mxu0 %v5618
          %5680 = vmatprep.subr.bf16.mxu0 %v5615
          %5681 = vmatpush1.bf16.msra.mxu0 %v5614
          %5682 = vmatprep.subr.bf16.mxu0 %v5611
          %5683 = vmatpush1.bf16.msra.mxu0 %v5610
          %5684 = vmatprep.subr.bf16.mxu0 %v5607
          %5685 = vmatpush1.bf16.msra.mxu0 %v5606
          %5686 = vmatprep.subr.bf16.mxu0 0
          %5687 = vmatpush2.bf16.msra.mxu0 0
          %5688 = vmatprep.subr.bf16.mxu0 0
          %5689 = vmatpush2.bf16.msra.mxu0 0
          %5690 = vmatprep.subr.bf16.mxu0 0
          %5691 = vmatpush2.bf16.msra.mxu0 0
          %5692 = vmatprep.subr.bf16.mxu0 0
          %5693 = vmatpush2.bf16.msra.mxu0 0
          %5694 = vmatprep.subr.bf16.mxu0 0
          %5695 = vmatpush2.bf16.msra.mxu0 0
          %5696 = vmatprep.subr.bf16.mxu0 0
          %5697 = vmatpush2.bf16.msra.mxu0 0
          %5698 = vmatprep.subr.bf16.mxu0 0
          %5699 = vmatpush2.bf16.msra.mxu0 0
          %5700 = vmatprep.subr.bf16.mxu0 0
          %5701 = vmatpush2.bf16.msra.mxu0 0
          %5702 = vmatprep.mubr.bf16.mxu0 0
          %5703 = vmatmul.mubr.bf16.gmra.mxu0 %v5455
          %v5704 = vpop.f32.mrf.mxu0
          %v5705 = vadd.f32 %v5493, %v5704
          %v5706 = vpop.f32.mrf.mxu0
          %v5707 = vadd.f32 %v5497, %v5706
          %v5708 = vpop.f32.mrf.mxu0
          %v5709 = vpop.f32.mrf.mxu0
          %5710 = vdwg.mxu0
          %5711 = vmatprep.subr.bf16.mxu0 %v5637
          %5712 = vmatpush1.bf16.msra.mxu0 %v5636
          %5713 = vmatprep.subr.bf16.mxu0 %v5633
          %5714 = vmatpush1.bf16.msra.mxu0 %v5632
          %5715 = vmatprep.subr.bf16.mxu0 %v5629
          %5716 = vmatpush1.bf16.msra.mxu0 %v5628
          %5717 = vmatprep.subr.bf16.mxu0 %v5625
          %5718 = vmatpush1.bf16.msra.mxu0 %v5624
          %5719 = vmatprep.subr.bf16.mxu0 %v5621
          %5720 = vmatpush1.bf16.msra.mxu0 %v5620
          %5721 = vmatprep.subr.bf16.mxu0 %v5617
          %5722 = vmatpush1.bf16.msra.mxu0 %v5616
          %5723 = vmatprep.subr.bf16.mxu0 %v5613
          %5724 = vmatpush1.bf16.msra.mxu0 %v5612
          %5725 = vmatprep.subr.bf16.mxu0 %v5609
          %5726 = vmatpush1.bf16.msra.mxu0 %v5608
          %5727 = vmatprep.subr.bf16.mxu0 0
          %5728 = vmatpush2.bf16.msra.mxu0 0
          %5729 = vmatprep.subr.bf16.mxu0 0
          %5730 = vmatpush2.bf16.msra.mxu0 0
          %5731 = vmatprep.subr.bf16.mxu0 0
          %5732 = vmatpush2.bf16.msra.mxu0 0
          %5733 = vmatprep.subr.bf16.mxu0 0
          %5734 = vmatpush2.bf16.msra.mxu0 0
          %5735 = vmatprep.subr.bf16.mxu0 0
          %5736 = vmatpush2.bf16.msra.mxu0 0
          %5737 = vmatprep.subr.bf16.mxu0 0
          %5738 = vmatpush2.bf16.msra.mxu0 0
          %5739 = vmatprep.subr.bf16.mxu0 0
          %5740 = vmatpush2.bf16.msra.mxu0 0
          %5741 = vmatprep.subr.bf16.mxu0 0
          %5742 = vmatpush2.bf16.msra.mxu0 0
          %5743 = vmatprep.mubr.bf16.mxu0 0
          %5744 = vmatmul.mubr.bf16.gmra.mxu0 %v5455
          %v5745 = vpop.f32.mrf.mxu0
          %v5746 = vadd.f32 %v5501, %v5745
          %v5747 = vpop.f32.mrf.mxu0
          %v5748 = vadd.f32 %v5505, %v5747
          %v5749 = vpop.f32.mrf.mxu0
          %v5750 = vpop.f32.mrf.mxu0
          %5751 = vdwg.mxu0
          %v5752 = vmax.f32 %v5705, 0.0
          %v5753 = vmax.f32 %v5707, 0.0
          %v5754 = vmax.f32 %v5746, 0.0
          %v5755 = vmax.f32 %v5748, 0.0
          %v5756 = vld [vmem:[%s568] sm:$0xff]
          %v5757 = vld [vmem:[%s568 + $0x8] sm:$0xff]
          %v5758 = vld [vmem:[%s568 + $0x10] sm:$0xf]
          %v5762 = vlaneseq
          %v5763 = vshrl.u32 %v5762, 7
          %v5764 = vsub.s32 0, %v5763
          %v5765 = vrot.slane %v5756, %v5764
          %v5766 = vlaneseq
          %v5767 = vshrl.u32 %v5766, 7
          %v5768 = vsub.s32 1, %v5767
          %v5769 = vrot.slane %v5756, %v5768
          %v5770 = vlaneseq
          %v5771 = vshrl.u32 %v5770, 7
          %v5772 = vsub.s32 2, %v5771
          %v5773 = vrot.slane %v5756, %v5772
          %v5774 = vlaneseq
          %v5775 = vshrl.u32 %v5774, 7
          %v5776 = vsub.s32 3, %v5775
          %v5777 = vrot.slane %v5756, %v5776
          %v5778 = vlaneseq
          %v5779 = vshrl.u32 %v5778, 7
          %v5780 = vsub.s32 4, %v5779
          %v5781 = vrot.slane %v5756, %v5780
          %v5782 = vlaneseq
          %v5783 = vshrl.u32 %v5782, 7
          %v5784 = vsub.s32 5, %v5783
          %v5785 = vrot.slane %v5756, %v5784
          %v5786 = vlaneseq
          %v5787 = vshrl.u32 %v5786, 7
          %v5788 = vsub.s32 6, %v5787
          %v5789 = vrot.slane %v5756, %v5788
          %v5790 = vlaneseq
          %v5791 = vshrl.u32 %v5790, 7
          %v5792 = vsub.s32 7, %v5791
          %v5793 = vrot.slane %v5756, %v5792
          %v5794 = vlaneseq
          %v5795 = vshrl.u32 %v5794, 7
          %v5796 = vsub.s32 0, %v5795
          %v5797 = vrot.slane %v5757, %v5796
          %v5798 = vlaneseq
          %v5799 = vshrl.u32 %v5798, 7
          %v5800 = vsub.s32 1, %v5799
          %v5801 = vrot.slane %v5757, %v5800
          %v5802 = vlaneseq
          %v5803 = vshrl.u32 %v5802, 7
          %v5804 = vsub.s32 2, %v5803
          %v5805 = vrot.slane %v5757, %v5804
          %v5806 = vlaneseq
          %v5807 = vshrl.u32 %v5806, 7
          %v5808 = vsub.s32 3, %v5807
          %v5809 = vrot.slane %v5757, %v5808
          %v5810 = vlaneseq
          %v5811 = vshrl.u32 %v5810, 7
          %v5812 = vsub.s32 4, %v5811
          %v5813 = vrot.slane %v5757, %v5812
          %v5814 = vlaneseq
          %v5815 = vshrl.u32 %v5814, 7
          %v5816 = vsub.s32 5, %v5815
          %v5817 = vrot.slane %v5757, %v5816
          %v5818 = vlaneseq
          %v5819 = vshrl.u32 %v5818, 7
          %v5820 = vsub.s32 6, %v5819
          %v5821 = vrot.slane %v5757, %v5820
          %v5822 = vlaneseq
          %v5823 = vshrl.u32 %v5822, 7
          %v5824 = vsub.s32 7, %v5823
          %v5825 = vrot.slane %v5757, %v5824
          %v5826 = vlaneseq
          %v5827 = vshrl.u32 %v5826, 7
          %v5828 = vsub.s32 0, %v5827
          %v5829 = vrot.slane %v5758, %v5828
          %v5830 = vlaneseq
          %v5831 = vshrl.u32 %v5830, 7
          %v5832 = vsub.s32 1, %v5831
          %v5833 = vrot.slane %v5758, %v5832
          %v5834 = vlaneseq
          %v5835 = vshrl.u32 %v5834, 7
          %v5836 = vsub.s32 2, %v5835
          %v5837 = vrot.slane %v5758, %v5836
          %v5838 = vlaneseq
          %v5839 = vshrl.u32 %v5838, 7
          %v5840 = vsub.s32 3, %v5839
          %v5841 = vrot.slane %v5758, %v5840
          %v5862 = vpack.c.bf16 %v5765, %v5765
          %v5863 = vpack.c.bf16 %v5769, %v5769
          %v5864 = vpack.c.bf16 %v5773, %v5773
          %v5865 = vpack.c.bf16 %v5777, %v5777
          %v5866 = vpack.c.bf16 %v5781, %v5781
          %v5867 = vpack.c.bf16 %v5785, %v5785
          %v5868 = vpack.c.bf16 %v5789, %v5789
          %v5869 = vpack.c.bf16 %v5793, %v5793
          %v5870 = vpack.c.bf16 %v5797, %v5797
          %v5871 = vpack.c.bf16 %v5801, %v5801
          %v5872 = vpack.c.bf16 %v5805, %v5805
          %v5873 = vpack.c.bf16 %v5809, %v5809
          %v5874 = vpack.c.bf16 %v5813, %v5813
          %v5875 = vpack.c.bf16 %v5817, %v5817
          %v5876 = vpack.c.bf16 %v5821, %v5821
          %v5877 = vpack.c.bf16 %v5825, %v5825
          %v5878 = vpack.c.bf16 %v5829, %v5829
          %v5879 = vpack.c.bf16 %v5833, %v5833
          %v5880 = vpack.c.bf16 %v5837, %v5837
          %v5881 = vpack.c.bf16 %v5841, %v5841
          %v5883 = vpack.i.b16 %v5862, %v5862
          %v5885 = vlaneseq
          %v5886 = vshrl.u32 %v5885, 7
          %v5887 = vsub.s32 0, %v5886
          %v5888 = vrot.slane %v5883, %v5887
          %v5890 = vpack.i.b16 %v5863, %v5863
          %v5892 = vlaneseq
          %v5893 = vshrl.u32 %v5892, 7
          %v5894 = vsub.s32 0, %v5893
          %v5895 = vrot.slane %v5890, %v5894
          %v5897 = vpack.i.b16 %v5864, %v5864
          %v5899 = vlaneseq
          %v5900 = vshrl.u32 %v5899, 7
          %v5901 = vsub.s32 0, %v5900
          %v5902 = vrot.slane %v5897, %v5901
          %v5904 = vpack.i.b16 %v5865, %v5865
          %v5906 = vlaneseq
          %v5907 = vshrl.u32 %v5906, 7
          %v5908 = vsub.s32 0, %v5907
          %v5909 = vrot.slane %v5904, %v5908
          %v5911 = vpack.i.b16 %v5866, %v5866
          %v5913 = vlaneseq
          %v5914 = vshrl.u32 %v5913, 7
          %v5915 = vsub.s32 0, %v5914
          %v5916 = vrot.slane %v5911, %v5915
          %v5918 = vpack.i.b16 %v5867, %v5867
          %v5920 = vlaneseq
          %v5921 = vshrl.u32 %v5920, 7
          %v5922 = vsub.s32 0, %v5921
          %v5923 = vrot.slane %v5918, %v5922
          %v5925 = vpack.i.b16 %v5868, %v5868
          %v5927 = vlaneseq
          %v5928 = vshrl.u32 %v5927, 7
          %v5929 = vsub.s32 0, %v5928
          %v5930 = vrot.slane %v5925, %v5929
          %v5932 = vpack.i.b16 %v5869, %v5869
          %v5934 = vlaneseq
          %v5935 = vshrl.u32 %v5934, 7
          %v5936 = vsub.s32 0, %v5935
          %v5937 = vrot.slane %v5932, %v5936
          %v5939 = vpack.i.b16 %v5870, %v5870
          %v5941 = vlaneseq
          %v5942 = vshrl.u32 %v5941, 7
          %v5943 = vsub.s32 0, %v5942
          %v5944 = vrot.slane %v5939, %v5943
          %v5946 = vpack.i.b16 %v5871, %v5871
          %v5948 = vlaneseq
          %v5949 = vshrl.u32 %v5948, 7
          %v5950 = vsub.s32 0, %v5949
          %v5951 = vrot.slane %v5946, %v5950
          %v5953 = vpack.i.b16 %v5872, %v5872
          %v5955 = vlaneseq
          %v5956 = vshrl.u32 %v5955, 7
          %v5957 = vsub.s32 0, %v5956
          %v5958 = vrot.slane %v5953, %v5957
          %v5960 = vpack.i.b16 %v5873, %v5873
          %v5962 = vlaneseq
          %v5963 = vshrl.u32 %v5962, 7
          %v5964 = vsub.s32 0, %v5963
          %v5965 = vrot.slane %v5960, %v5964
          %v5967 = vpack.i.b16 %v5874, %v5874
          %v5969 = vlaneseq
          %v5970 = vshrl.u32 %v5969, 7
          %v5971 = vsub.s32 0, %v5970
          %v5972 = vrot.slane %v5967, %v5971
          %v5974 = vpack.i.b16 %v5875, %v5875
          %v5976 = vlaneseq
          %v5977 = vshrl.u32 %v5976, 7
          %v5978 = vsub.s32 0, %v5977
          %v5979 = vrot.slane %v5974, %v5978
          %v5981 = vpack.i.b16 %v5876, %v5876
          %v5983 = vlaneseq
          %v5984 = vshrl.u32 %v5983, 7
          %v5985 = vsub.s32 0, %v5984
          %v5986 = vrot.slane %v5981, %v5985
          %v5988 = vpack.i.b16 %v5877, %v5877
          %v5990 = vlaneseq
          %v5991 = vshrl.u32 %v5990, 7
          %v5992 = vsub.s32 0, %v5991
          %v5993 = vrot.slane %v5988, %v5992
          %v5995 = vpack.i.b16 %v5878, %v5878
          %v5997 = vlaneseq
          %v5998 = vshrl.u32 %v5997, 7
          %v5999 = vsub.s32 0, %v5998
          %v6000 = vrot.slane %v5995, %v5999
          %v6002 = vpack.i.b16 %v5879, %v5879
          %v6004 = vlaneseq
          %v6005 = vshrl.u32 %v6004, 7
          %v6006 = vsub.s32 0, %v6005
          %v6007 = vrot.slane %v6002, %v6006
          %v6009 = vpack.i.b16 %v5880, %v5880
          %v6011 = vlaneseq
          %v6012 = vshrl.u32 %v6011, 7
          %v6013 = vsub.s32 0, %v6012
          %v6014 = vrot.slane %v6009, %v6013
          %v6016 = vpack.i.b16 %v5881, %v5881
          %v6018 = vlaneseq
          %v6019 = vshrl.u32 %v6018, 7
          %v6020 = vsub.s32 0, %v6019
          %v6021 = vrot.slane %v6016, %v6020
          %v6022 = vpack.c.bf16 %v5752, %v5752
          %v6023 = vpack.c.bf16 %v5753, %v5753
          %v6024 = vpack.c.bf16 %v5754, %v5754
          %v6025 = vpack.c.bf16 %v5755, %v5755
          %v6026 = vld [vmem:[%s11] sm:$0xf]
          %v6027 = vld [vmem:[%s11 + $0x4] sm:$0xf]
          %v6028 = vld [vmem:[%s11 + $0x8] sm:$0xf]
          %v6029 = vld [vmem:[%s11 + $0xc] sm:$0xf]
          %v6030 = vld [vmem:[%s11 + $0x10] sm:$0xf]
          %v6031 = vld [vmem:[%s11 + $0x14] sm:$0xf]
          %v6032 = vld [vmem:[%s11 + $0x18] sm:$0xf]
          %v6033 = vld [vmem:[%s11 + $0x1c] sm:$0xf]
          %v6034 = vld [vmem:[%s11 + $0x20] sm:$0xf]
          %v6035 = vld [vmem:[%s11 + $0x24] sm:$0xf]
          %v6036 = vld [vmem:[%s11 + $0x28] sm:$0xf]
          %v6037 = vld [vmem:[%s11 + $0x2c] sm:$0xf]
          %v6038 = vld [vmem:[%s11 + $0x30] sm:$0xf]
          %v6039 = vld [vmem:[%s11 + $0x34] sm:$0xf]
          %v6040 = vld [vmem:[%s11 + $0x38] sm:$0xf]
          %v6041 = vld [vmem:[%s11 + $0x3c] sm:$0xf]
          %v6042 = vld [vmem:[%s11 + $0x40] sm:$0xf]
          %v6043 = vld [vmem:[%s11 + $0x44] sm:$0xf]
          %v6044 = vld [vmem:[%s11 + $0x48] sm:$0xf]
          %v6045 = vld [vmem:[%s11 + $0x4c] sm:$0xf]
          %v6046 = vld [vmem:[%s11 + $0x50] sm:$0xf]
          %v6047 = vld [vmem:[%s11 + $0x54] sm:$0xf]
          %v6048 = vld [vmem:[%s11 + $0x58] sm:$0xf]
          %v6049 = vld [vmem:[%s11 + $0x5c] sm:$0xf]
          %v6050 = vld [vmem:[%s11 + $0x60] sm:$0xf]
          %v6051 = vld [vmem:[%s11 + $0x64] sm:$0xf]
          %v6052 = vld [vmem:[%s11 + $0x68] sm:$0xf]
          %v6053 = vld [vmem:[%s11 + $0x6c] sm:$0xf]
          %v6054 = vld [vmem:[%s11 + $0x70] sm:$0xf]
          %v6055 = vld [vmem:[%s11 + $0x74] sm:$0xf]
          %v6056 = vld [vmem:[%s11 + $0x78] sm:$0xf]
          %v6057 = vld [vmem:[%s11 + $0x7c] sm:$0xf]
          %v6058 = vld [vmem:[%s11 + $0x80] sm:$0xf]
          %v6059 = vld [vmem:[%s11 + $0x84] sm:$0xf]
          %v6060 = vld [vmem:[%s11 + $0x88] sm:$0xf]
          %v6061 = vld [vmem:[%s11 + $0x8c] sm:$0xf]
          %v6062 = vld [vmem:[%s11 + $0x90] sm:$0xf]
          %v6063 = vld [vmem:[%s11 + $0x94] sm:$0xf]
          %v6064 = vld [vmem:[%s11 + $0x98] sm:$0xf]
          %v6065 = vld [vmem:[%s11 + $0x9c] sm:$0xf]
          %v6066 = vld [vmem:[%s11 + $0xa0] sm:$0xf]
          %v6067 = vld [vmem:[%s11 + $0xa4] sm:$0xf]
          %v6068 = vld [vmem:[%s11 + $0xa8] sm:$0xf]
          %v6069 = vld [vmem:[%s11 + $0xac] sm:$0xf]
          %v6070 = vld [vmem:[%s11 + $0xb0] sm:$0xf]
          %v6071 = vld [vmem:[%s11 + $0xb4] sm:$0xf]
          %v6072 = vld [vmem:[%s11 + $0xb8] sm:$0xf]
          %v6073 = vld [vmem:[%s11 + $0xbc] sm:$0xf]
          %v6074 = vld [vmem:[%s11 + $0xc0] sm:$0xf]
          %v6075 = vld [vmem:[%s11 + $0xc4] sm:$0xf]
          %v6076 = vld [vmem:[%s11 + $0xc8] sm:$0xf]
          %v6077 = vld [vmem:[%s11 + $0xcc] sm:$0xf]
          %v6078 = vld [vmem:[%s11 + $0xd0] sm:$0xf]
          %v6079 = vld [vmem:[%s11 + $0xd4] sm:$0xf]
          %v6080 = vld [vmem:[%s11 + $0xd8] sm:$0xf]
          %v6081 = vld [vmem:[%s11 + $0xdc] sm:$0xf]
          %v6082 = vld [vmem:[%s11 + $0xe0] sm:$0xf]
          %v6083 = vld [vmem:[%s11 + $0xe4] sm:$0xf]
          %v6084 = vld [vmem:[%s11 + $0xe8] sm:$0xf]
          %v6085 = vld [vmem:[%s11 + $0xec] sm:$0xf]
          %v6086 = vld [vmem:[%s11 + $0xf0] sm:$0xf]
          %v6087 = vld [vmem:[%s11 + $0xf4] sm:$0xf]
          %v6088 = vld [vmem:[%s11 + $0xf8] sm:$0xf]
          %v6089 = vld [vmem:[%s11 + $0xfc] sm:$0xf]
          %v6090 = vld [vmem:[%s12] sm:$0xf]
          %v6091 = vld [vmem:[%s12 + $0x4] sm:$0xf]
          %v6092 = vld [vmem:[%s12 + $0x8] sm:$0xf]
          %v6093 = vld [vmem:[%s12 + $0xc] sm:$0xf]
          %v6094 = vld [vmem:[%s12 + $0x10] sm:$0xf]
          %v6095 = vld [vmem:[%s12 + $0x14] sm:$0xf]
          %v6096 = vld [vmem:[%s12 + $0x18] sm:$0xf]
          %v6097 = vld [vmem:[%s12 + $0x1c] sm:$0xf]
          %v6098 = vld [vmem:[%s12 + $0x20] sm:$0xf]
          %v6099 = vld [vmem:[%s12 + $0x24] sm:$0xf]
          %v6100 = vld [vmem:[%s12 + $0x28] sm:$0xf]
          %v6101 = vld [vmem:[%s12 + $0x2c] sm:$0xf]
          %v6102 = vld [vmem:[%s12 + $0x30] sm:$0xf]
          %v6103 = vld [vmem:[%s12 + $0x34] sm:$0xf]
          %v6104 = vld [vmem:[%s12 + $0x38] sm:$0xf]
          %v6105 = vld [vmem:[%s12 + $0x3c] sm:$0xf]
          %v6106 = vld [vmem:[%s12 + $0x40] sm:$0xf]
          %v6107 = vld [vmem:[%s12 + $0x44] sm:$0xf]
          %v6108 = vld [vmem:[%s12 + $0x48] sm:$0xf]
          %v6109 = vld [vmem:[%s12 + $0x4c] sm:$0xf]
          %v6110 = vld [vmem:[%s12 + $0x50] sm:$0xf]
          %v6111 = vld [vmem:[%s12 + $0x54] sm:$0xf]
          %v6112 = vld [vmem:[%s12 + $0x58] sm:$0xf]
          %v6113 = vld [vmem:[%s12 + $0x5c] sm:$0xf]
          %v6114 = vld [vmem:[%s12 + $0x60] sm:$0xf]
          %v6115 = vld [vmem:[%s12 + $0x64] sm:$0xf]
          %v6116 = vld [vmem:[%s12 + $0x68] sm:$0xf]
          %v6117 = vld [vmem:[%s12 + $0x6c] sm:$0xf]
          %v6118 = vld [vmem:[%s12 + $0x70] sm:$0xf]
          %v6119 = vld [vmem:[%s12 + $0x74] sm:$0xf]
          %v6120 = vld [vmem:[%s12 + $0x78] sm:$0xf]
          %v6121 = vld [vmem:[%s12 + $0x7c] sm:$0xf]
          %v6122 = vld [vmem:[%s12 + $0x80] sm:$0xf]
          %v6123 = vld [vmem:[%s12 + $0x84] sm:$0xf]
          %v6124 = vld [vmem:[%s12 + $0x88] sm:$0xf]
          %v6125 = vld [vmem:[%s12 + $0x8c] sm:$0xf]
          %v6126 = vld [vmem:[%s12 + $0x90] sm:$0xf]
          %v6127 = vld [vmem:[%s12 + $0x94] sm:$0xf]
          %v6128 = vld [vmem:[%s12 + $0x98] sm:$0xf]
          %v6129 = vld [vmem:[%s12 + $0x9c] sm:$0xf]
          %v6130 = vld [vmem:[%s12 + $0xa0] sm:$0xf]
          %v6131 = vld [vmem:[%s12 + $0xa4] sm:$0xf]
          %v6132 = vld [vmem:[%s12 + $0xa8] sm:$0xf]
          %v6133 = vld [vmem:[%s12 + $0xac] sm:$0xf]
          %v6134 = vld [vmem:[%s12 + $0xb0] sm:$0xf]
          %v6135 = vld [vmem:[%s12 + $0xb4] sm:$0xf]
          %v6136 = vld [vmem:[%s12 + $0xb8] sm:$0xf]
          %v6137 = vld [vmem:[%s12 + $0xbc] sm:$0xf]
          %v6138 = vld [vmem:[%s12 + $0xc0] sm:$0xf]
          %v6139 = vld [vmem:[%s12 + $0xc4] sm:$0xf]
          %v6140 = vld [vmem:[%s12 + $0xc8] sm:$0xf]
          %v6141 = vld [vmem:[%s12 + $0xcc] sm:$0xf]
          %v6142 = vld [vmem:[%s12 + $0xd0] sm:$0xf]
          %v6143 = vld [vmem:[%s12 + $0xd4] sm:$0xf]
          %v6144 = vld [vmem:[%s12 + $0xd8] sm:$0xf]
          %v6145 = vld [vmem:[%s12 + $0xdc] sm:$0xf]
          %v6146 = vld [vmem:[%s12 + $0xe0] sm:$0xf]
          %v6147 = vld [vmem:[%s12 + $0xe4] sm:$0xf]
          %v6148 = vld [vmem:[%s12 + $0xe8] sm:$0xf]
          %v6149 = vld [vmem:[%s12 + $0xec] sm:$0xf]
          %v6150 = vld [vmem:[%s12 + $0xf0] sm:$0xf]
          %v6151 = vld [vmem:[%s12 + $0xf4] sm:$0xf]
          %v6152 = vld [vmem:[%s12 + $0xf8] sm:$0xf]
          %v6153 = vld [vmem:[%s12 + $0xfc] sm:$0xf]
          %v6154 = vld [vmem:[%s12 + $0x100] sm:$0xf]
          %v6155 = vld [vmem:[%s12 + $0x104] sm:$0xf]
          %v6156 = vld [vmem:[%s12 + $0x108] sm:$0xf]
          %v6157 = vld [vmem:[%s12 + $0x10c] sm:$0xf]
          %v6158 = vld [vmem:[%s12 + $0x110] sm:$0xf]
          %v6159 = vld [vmem:[%s12 + $0x114] sm:$0xf]
          %v6160 = vld [vmem:[%s12 + $0x118] sm:$0xf]
          %v6161 = vld [vmem:[%s12 + $0x11c] sm:$0xf]
          %v6162 = vld [vmem:[%s12 + $0x120] sm:$0xf]
          %v6163 = vld [vmem:[%s12 + $0x124] sm:$0xf]
          %v6164 = vld [vmem:[%s12 + $0x128] sm:$0xf]
          %v6165 = vld [vmem:[%s12 + $0x12c] sm:$0xf]
          %v6166 = vld [vmem:[%s12 + $0x130] sm:$0xf]
          %v6167 = vld [vmem:[%s12 + $0x134] sm:$0xf]
          %v6168 = vld [vmem:[%s12 + $0x138] sm:$0xf]
          %v6169 = vld [vmem:[%s12 + $0x13c] sm:$0xf]
          %v6170 = vld [vmem:[%s12 + $0x140] sm:$0xf]
          %v6171 = vld [vmem:[%s12 + $0x144] sm:$0xf]
          %v6172 = vld [vmem:[%s12 + $0x148] sm:$0xf]
          %v6173 = vld [vmem:[%s12 + $0x14c] sm:$0xf]
          %v6174 = vld [vmem:[%s12 + $0x150] sm:$0xf]
          %v6175 = vld [vmem:[%s12 + $0x154] sm:$0xf]
          %v6176 = vld [vmem:[%s12 + $0x158] sm:$0xf]
          %v6177 = vld [vmem:[%s12 + $0x15c] sm:$0xf]
          %v6178 = vld [vmem:[%s12 + $0x160] sm:$0xf]
          %v6179 = vld [vmem:[%s12 + $0x164] sm:$0xf]
          %v6180 = vld [vmem:[%s12 + $0x168] sm:$0xf]
          %v6181 = vld [vmem:[%s12 + $0x16c] sm:$0xf]
          %v6182 = vld [vmem:[%s12 + $0x170] sm:$0xf]
          %v6183 = vld [vmem:[%s12 + $0x174] sm:$0xf]
          %v6184 = vld [vmem:[%s12 + $0x178] sm:$0xf]
          %v6185 = vld [vmem:[%s12 + $0x17c] sm:$0xf]
          %v6186 = vld [vmem:[%s12 + $0x180] sm:$0xf]
          %v6187 = vld [vmem:[%s12 + $0x184] sm:$0xf]
          %v6188 = vld [vmem:[%s12 + $0x188] sm:$0xf]
          %v6189 = vld [vmem:[%s12 + $0x18c] sm:$0xf]
          %v6190 = vld [vmem:[%s12 + $0x190] sm:$0xf]
          %v6191 = vld [vmem:[%s12 + $0x194] sm:$0xf]
          %v6192 = vld [vmem:[%s12 + $0x198] sm:$0xf]
          %v6193 = vld [vmem:[%s12 + $0x19c] sm:$0xf]
          %v6194 = vld [vmem:[%s12 + $0x1a0] sm:$0xf]
          %v6195 = vld [vmem:[%s12 + $0x1a4] sm:$0xf]
          %v6196 = vld [vmem:[%s12 + $0x1a8] sm:$0xf]
          %v6197 = vld [vmem:[%s12 + $0x1ac] sm:$0xf]
          %v6198 = vld [vmem:[%s12 + $0x1b0] sm:$0xf]
          %v6199 = vld [vmem:[%s12 + $0x1b4] sm:$0xf]
          %v6200 = vld [vmem:[%s12 + $0x1b8] sm:$0xf]
          %v6201 = vld [vmem:[%s12 + $0x1bc] sm:$0xf]
          %v6202 = vld [vmem:[%s12 + $0x1c0] sm:$0xf]
          %v6203 = vld [vmem:[%s12 + $0x1c4] sm:$0xf]
          %v6204 = vld [vmem:[%s12 + $0x1c8] sm:$0xf]
          %v6205 = vld [vmem:[%s12 + $0x1cc] sm:$0xf]
          %v6206 = vld [vmem:[%s12 + $0x1d0] sm:$0xf]
          %v6207 = vld [vmem:[%s12 + $0x1d4] sm:$0xf]
          %v6208 = vld [vmem:[%s12 + $0x1d8] sm:$0xf]
          %v6209 = vld [vmem:[%s12 + $0x1dc] sm:$0xf]
          %v6210 = vld [vmem:[%s12 + $0x1e0] sm:$0xf]
          %v6211 = vld [vmem:[%s12 + $0x1e4] sm:$0xf]
          %v6212 = vld [vmem:[%s12 + $0x1e8] sm:$0xf]
          %v6213 = vld [vmem:[%s12 + $0x1ec] sm:$0xf]
          %v6214 = vld [vmem:[%s12 + $0x1f0] sm:$0xf]
          %v6215 = vld [vmem:[%s12 + $0x1f4] sm:$0xf]
          %v6216 = vld [vmem:[%s12 + $0x1f8] sm:$0xf]
          %v6217 = vld [vmem:[%s12 + $0x1fc] sm:$0xf]
          %v6218 = vld [vmem:[%s12 + $0x200] sm:$0xf]
          %v6219 = vld [vmem:[%s12 + $0x204] sm:$0xf]
          %v6220 = vld [vmem:[%s12 + $0x208] sm:$0xf]
          %v6221 = vld [vmem:[%s12 + $0x20c] sm:$0xf]
          %v6222 = vld [vmem:[%s12 + $0x210] sm:$0xf]
          %v6223 = vld [vmem:[%s12 + $0x214] sm:$0xf]
          %v6224 = vld [vmem:[%s12 + $0x218] sm:$0xf]
          %v6225 = vld [vmem:[%s12 + $0x21c] sm:$0xf]
          %v6226 = vld [vmem:[%s12 + $0x220] sm:$0xf]
          %v6227 = vld [vmem:[%s12 + $0x224] sm:$0xf]
          %v6228 = vld [vmem:[%s12 + $0x228] sm:$0xf]
          %v6229 = vld [vmem:[%s12 + $0x22c] sm:$0xf]
          %v6230 = vld [vmem:[%s12 + $0x230] sm:$0xf]
          %v6231 = vld [vmem:[%s12 + $0x234] sm:$0xf]
          %v6232 = vld [vmem:[%s12 + $0x238] sm:$0xf]
          %v6233 = vld [vmem:[%s12 + $0x23c] sm:$0xf]
          %v6234 = vld [vmem:[%s12 + $0x240] sm:$0xf]
          %v6235 = vld [vmem:[%s12 + $0x244] sm:$0xf]
          %v6236 = vld [vmem:[%s12 + $0x248] sm:$0xf]
          %v6237 = vld [vmem:[%s12 + $0x24c] sm:$0xf]
          %v6238 = vld [vmem:[%s12 + $0x250] sm:$0xf]
          %v6239 = vld [vmem:[%s12 + $0x254] sm:$0xf]
          %v6240 = vld [vmem:[%s12 + $0x258] sm:$0xf]
          %v6241 = vld [vmem:[%s12 + $0x25c] sm:$0xf]
          %v6242 = vld [vmem:[%s12 + $0x260] sm:$0xf]
          %v6243 = vld [vmem:[%s12 + $0x264] sm:$0xf]
          %v6244 = vld [vmem:[%s12 + $0x268] sm:$0xf]
          %v6245 = vld [vmem:[%s12 + $0x26c] sm:$0xf]
          %v6246 = vld [vmem:[%s12 + $0x270] sm:$0xf]
          %v6247 = vld [vmem:[%s12 + $0x274] sm:$0xf]
          %v6248 = vld [vmem:[%s12 + $0x278] sm:$0xf]
          %v6249 = vld [vmem:[%s12 + $0x27c] sm:$0xf]
          %v6250 = vld [vmem:[%s12 + $0x280] sm:$0xf]
          %v6251 = vld [vmem:[%s12 + $0x284] sm:$0xf]
          %v6252 = vld [vmem:[%s12 + $0x288] sm:$0xf]
          %v6253 = vld [vmem:[%s12 + $0x28c] sm:$0xf]
          %v6254 = vld [vmem:[%s12 + $0x290] sm:$0xf]
          %v6255 = vld [vmem:[%s12 + $0x294] sm:$0xf]
          %v6256 = vld [vmem:[%s12 + $0x298] sm:$0xf]
          %v6257 = vld [vmem:[%s12 + $0x29c] sm:$0xf]
          %v6258 = vld [vmem:[%s12 + $0x2a0] sm:$0xf]
          %v6259 = vld [vmem:[%s12 + $0x2a4] sm:$0xf]
          %v6260 = vld [vmem:[%s12 + $0x2a8] sm:$0xf]
          %v6261 = vld [vmem:[%s12 + $0x2ac] sm:$0xf]
          %v6262 = vld [vmem:[%s12 + $0x2b0] sm:$0xf]
          %v6263 = vld [vmem:[%s12 + $0x2b4] sm:$0xf]
          %v6264 = vld [vmem:[%s12 + $0x2b8] sm:$0xf]
          %v6265 = vld [vmem:[%s12 + $0x2bc] sm:$0xf]
          %v6266 = vld [vmem:[%s12 + $0x2c0] sm:$0xf]
          %v6267 = vld [vmem:[%s12 + $0x2c4] sm:$0xf]
          %v6268 = vld [vmem:[%s12 + $0x2c8] sm:$0xf]
          %v6269 = vld [vmem:[%s12 + $0x2cc] sm:$0xf]
          %v6270 = vld [vmem:[%s12 + $0x2d0] sm:$0xf]
          %v6271 = vld [vmem:[%s12 + $0x2d4] sm:$0xf]
          %v6272 = vld [vmem:[%s12 + $0x2d8] sm:$0xf]
          %v6273 = vld [vmem:[%s12 + $0x2dc] sm:$0xf]
          %v6274 = vld [vmem:[%s12 + $0x2e0] sm:$0xf]
          %v6275 = vld [vmem:[%s12 + $0x2e4] sm:$0xf]
          %v6276 = vld [vmem:[%s12 + $0x2e8] sm:$0xf]
          %v6277 = vld [vmem:[%s12 + $0x2ec] sm:$0xf]
          %v6278 = vld [vmem:[%s12 + $0x2f0] sm:$0xf]
          %v6279 = vld [vmem:[%s12 + $0x2f4] sm:$0xf]
          %v6280 = vld [vmem:[%s12 + $0x2f8] sm:$0xf]
          %v6281 = vld [vmem:[%s12 + $0x2fc] sm:$0xf]
          %v6282 = vld [vmem:[%s12 + $0x300] sm:$0xf]
          %v6283 = vld [vmem:[%s12 + $0x304] sm:$0xf]
          %v6284 = vld [vmem:[%s12 + $0x308] sm:$0xf]
          %v6285 = vld [vmem:[%s12 + $0x30c] sm:$0xf]
          %v6286 = vld [vmem:[%s12 + $0x310] sm:$0xf]
          %v6287 = vld [vmem:[%s12 + $0x314] sm:$0xf]
          %v6288 = vld [vmem:[%s12 + $0x318] sm:$0xf]
          %v6289 = vld [vmem:[%s12 + $0x31c] sm:$0xf]
          %v6290 = vld [vmem:[%s12 + $0x320] sm:$0xf]
          %v6291 = vld [vmem:[%s12 + $0x324] sm:$0xf]
          %v6292 = vld [vmem:[%s12 + $0x328] sm:$0xf]
          %v6293 = vld [vmem:[%s12 + $0x32c] sm:$0xf]
          %v6294 = vld [vmem:[%s12 + $0x330] sm:$0xf]
          %v6295 = vld [vmem:[%s12 + $0x334] sm:$0xf]
          %v6296 = vld [vmem:[%s12 + $0x338] sm:$0xf]
          %v6297 = vld [vmem:[%s12 + $0x33c] sm:$0xf]
          %v6298 = vld [vmem:[%s12 + $0x340] sm:$0xf]
          %v6299 = vld [vmem:[%s12 + $0x344] sm:$0xf]
          %v6300 = vld [vmem:[%s12 + $0x348] sm:$0xf]
          %v6301 = vld [vmem:[%s12 + $0x34c] sm:$0xf]
          %v6302 = vld [vmem:[%s12 + $0x350] sm:$0xf]
          %v6303 = vld [vmem:[%s12 + $0x354] sm:$0xf]
          %v6304 = vld [vmem:[%s12 + $0x358] sm:$0xf]
          %v6305 = vld [vmem:[%s12 + $0x35c] sm:$0xf]
          %v6306 = vld [vmem:[%s12 + $0x360] sm:$0xf]
          %v6307 = vld [vmem:[%s12 + $0x364] sm:$0xf]
          %v6308 = vld [vmem:[%s12 + $0x368] sm:$0xf]
          %v6309 = vld [vmem:[%s12 + $0x36c] sm:$0xf]
          %v6310 = vld [vmem:[%s12 + $0x370] sm:$0xf]
          %v6311 = vld [vmem:[%s12 + $0x374] sm:$0xf]
          %v6312 = vld [vmem:[%s12 + $0x378] sm:$0xf]
          %v6313 = vld [vmem:[%s12 + $0x37c] sm:$0xf]
          %v6314 = vld [vmem:[%s12 + $0x380] sm:$0xf]
          %v6315 = vld [vmem:[%s12 + $0x384] sm:$0xf]
          %v6316 = vld [vmem:[%s12 + $0x388] sm:$0xf]
          %v6317 = vld [vmem:[%s12 + $0x38c] sm:$0xf]
          %v6318 = vld [vmem:[%s12 + $0x390] sm:$0xf]
          %v6319 = vld [vmem:[%s12 + $0x394] sm:$0xf]
          %v6320 = vld [vmem:[%s12 + $0x398] sm:$0xf]
          %v6321 = vld [vmem:[%s12 + $0x39c] sm:$0xf]
          %v6322 = vld [vmem:[%s12 + $0x3a0] sm:$0xf]
          %v6323 = vld [vmem:[%s12 + $0x3a4] sm:$0xf]
          %v6324 = vld [vmem:[%s12 + $0x3a8] sm:$0xf]
          %v6325 = vld [vmem:[%s12 + $0x3ac] sm:$0xf]
          %v6326 = vld [vmem:[%s12 + $0x3b0] sm:$0xf]
          %v6327 = vld [vmem:[%s12 + $0x3b4] sm:$0xf]
          %v6328 = vld [vmem:[%s12 + $0x3b8] sm:$0xf]
          %v6329 = vld [vmem:[%s12 + $0x3bc] sm:$0xf]
          %v6330 = vld [vmem:[%s12 + $0x3c0] sm:$0xf]
          %v6331 = vld [vmem:[%s12 + $0x3c4] sm:$0xf]
          %v6332 = vld [vmem:[%s12 + $0x3c8] sm:$0xf]
          %v6333 = vld [vmem:[%s12 + $0x3cc] sm:$0xf]
          %v6334 = vld [vmem:[%s12 + $0x3d0] sm:$0xf]
          %v6335 = vld [vmem:[%s12 + $0x3d4] sm:$0xf]
          %v6336 = vld [vmem:[%s12 + $0x3d8] sm:$0xf]
          %v6337 = vld [vmem:[%s12 + $0x3dc] sm:$0xf]
          %v6338 = vld [vmem:[%s12 + $0x3e0] sm:$0xf]
          %v6339 = vld [vmem:[%s12 + $0x3e4] sm:$0xf]
          %v6340 = vld [vmem:[%s12 + $0x3e8] sm:$0xf]
          %v6341 = vld [vmem:[%s12 + $0x3ec] sm:$0xf]
          %v6342 = vld [vmem:[%s12 + $0x3f0] sm:$0xf]
          %v6343 = vld [vmem:[%s12 + $0x3f4] sm:$0xf]
          %v6344 = vld [vmem:[%s12 + $0x3f8] sm:$0xf]
          %v6345 = vld [vmem:[%s12 + $0x3fc] sm:$0xf]
          %v6346 = vld [vmem:[%s12 + $0x400] sm:$0xf]
          %v6347 = vld [vmem:[%s12 + $0x404] sm:$0xf]
          %v6348 = vld [vmem:[%s12 + $0x408] sm:$0xf]
          %v6349 = vld [vmem:[%s12 + $0x40c] sm:$0xf]
          %v6350 = vld [vmem:[%s12 + $0x410] sm:$0xf]
          %v6351 = vld [vmem:[%s12 + $0x414] sm:$0xf]
          %v6352 = vld [vmem:[%s12 + $0x418] sm:$0xf]
          %v6353 = vld [vmem:[%s12 + $0x41c] sm:$0xf]
          %v6354 = vld [vmem:[%s12 + $0x420] sm:$0xf]
          %v6355 = vld [vmem:[%s12 + $0x424] sm:$0xf]
          %v6356 = vld [vmem:[%s12 + $0x428] sm:$0xf]
          %v6357 = vld [vmem:[%s12 + $0x42c] sm:$0xf]
          %v6358 = vld [vmem:[%s12 + $0x430] sm:$0xf]
          %v6359 = vld [vmem:[%s12 + $0x434] sm:$0xf]
          %v6360 = vld [vmem:[%s12 + $0x438] sm:$0xf]
          %v6361 = vld [vmem:[%s12 + $0x43c] sm:$0xf]
          %v6362 = vld [vmem:[%s12 + $0x440] sm:$0xf]
          %v6363 = vld [vmem:[%s12 + $0x444] sm:$0xf]
          %v6364 = vld [vmem:[%s12 + $0x448] sm:$0xf]
          %v6365 = vld [vmem:[%s12 + $0x44c] sm:$0xf]
          %v6366 = vld [vmem:[%s12 + $0x450] sm:$0xf]
          %v6367 = vld [vmem:[%s12 + $0x454] sm:$0xf]
          %v6368 = vld [vmem:[%s12 + $0x458] sm:$0xf]
          %v6369 = vld [vmem:[%s12 + $0x45c] sm:$0xf]
          %v6370 = vld [vmem:[%s12 + $0x460] sm:$0xf]
          %v6371 = vld [vmem:[%s12 + $0x464] sm:$0xf]
          %v6372 = vld [vmem:[%s12 + $0x468] sm:$0xf]
          %v6373 = vld [vmem:[%s12 + $0x46c] sm:$0xf]
          %v6374 = vld [vmem:[%s12 + $0x470] sm:$0xf]
          %v6375 = vld [vmem:[%s12 + $0x474] sm:$0xf]
          %v6376 = vld [vmem:[%s12 + $0x478] sm:$0xf]
          %v6377 = vld [vmem:[%s12 + $0x47c] sm:$0xf]
          %v6378 = vld [vmem:[%s12 + $0x480] sm:$0xf]
          %v6379 = vld [vmem:[%s12 + $0x484] sm:$0xf]
          %v6380 = vld [vmem:[%s12 + $0x488] sm:$0xf]
          %v6381 = vld [vmem:[%s12 + $0x48c] sm:$0xf]
          %v6382 = vld [vmem:[%s12 + $0x490] sm:$0xf]
          %v6383 = vld [vmem:[%s12 + $0x494] sm:$0xf]
          %v6384 = vld [vmem:[%s12 + $0x498] sm:$0xf]
          %v6385 = vld [vmem:[%s12 + $0x49c] sm:$0xf]
          %v6386 = vld [vmem:[%s12 + $0x4a0] sm:$0xf]
          %v6387 = vld [vmem:[%s12 + $0x4a4] sm:$0xf]
          %v6388 = vld [vmem:[%s12 + $0x4a8] sm:$0xf]
          %v6389 = vld [vmem:[%s12 + $0x4ac] sm:$0xf]
          %v6390 = vld [vmem:[%s12 + $0x4b0] sm:$0xf]
          %v6391 = vld [vmem:[%s12 + $0x4b4] sm:$0xf]
          %v6392 = vld [vmem:[%s12 + $0x4b8] sm:$0xf]
          %v6393 = vld [vmem:[%s12 + $0x4bc] sm:$0xf]
          %v6394 = vld [vmem:[%s12 + $0x4c0] sm:$0xf]
          %v6395 = vld [vmem:[%s12 + $0x4c4] sm:$0xf]
          %v6396 = vld [vmem:[%s12 + $0x4c8] sm:$0xf]
          %v6397 = vld [vmem:[%s12 + $0x4cc] sm:$0xf]
          %v6398 = vld [vmem:[%s12 + $0x4d0] sm:$0xf]
          %v6399 = vld [vmem:[%s12 + $0x4d4] sm:$0xf]
          %v6400 = vld [vmem:[%s12 + $0x4d8] sm:$0xf]
          %v6401 = vld [vmem:[%s12 + $0x4dc] sm:$0xf]
          %v6402 = vld [vmem:[%s12 + $0x4e0] sm:$0xf]
          %v6403 = vld [vmem:[%s12 + $0x4e4] sm:$0xf]
          %v6404 = vld [vmem:[%s12 + $0x4e8] sm:$0xf]
          %v6405 = vld [vmem:[%s12 + $0x4ec] sm:$0xf]
          %v6406 = vld [vmem:[%s12 + $0x4f0] sm:$0xf]
          %v6407 = vld [vmem:[%s12 + $0x4f4] sm:$0xf]
          %v6408 = vld [vmem:[%s12 + $0x4f8] sm:$0xf]
          %v6409 = vld [vmem:[%s12 + $0x4fc] sm:$0xf]
          %v6730 = vunpack.c.l.b16 %v6090
          %v6731 = vunpack.c.l.b16 %v6091
          %v6732 = vunpack.c.l.b16 %v6092
          %v6733 = vunpack.c.l.b16 %v6093
          %v6734 = vunpack.c.l.b16 %v6094
          %v6735 = vunpack.c.l.b16 %v6095
          %v6736 = vunpack.c.l.b16 %v6096
          %v6737 = vunpack.c.l.b16 %v6097
          %v6738 = vunpack.c.l.b16 %v6098
          %v6739 = vunpack.c.l.b16 %v6099
          %v6740 = vunpack.c.l.b16 %v6100
          %v6741 = vunpack.c.l.b16 %v6101
          %v6742 = vunpack.c.l.b16 %v6102
          %v6743 = vunpack.c.l.b16 %v6103
          %v6744 = vunpack.c.l.b16 %v6104
          %v6745 = vunpack.c.l.b16 %v6105
          %v6746 = vunpack.c.l.b16 %v6106
          %v6747 = vunpack.c.l.b16 %v6107
          %v6748 = vunpack.c.l.b16 %v6108
          %v6749 = vunpack.c.l.b16 %v6109
          %v6750 = vunpack.c.l.b16 %v6110
          %v6751 = vunpack.c.l.b16 %v6111
          %v6752 = vunpack.c.l.b16 %v6112
          %v6753 = vunpack.c.l.b16 %v6113
          %v6754 = vunpack.c.l.b16 %v6114
          %v6755 = vunpack.c.l.b16 %v6115
          %v6756 = vunpack.c.l.b16 %v6116
          %v6757 = vunpack.c.l.b16 %v6117
          %v6758 = vunpack.c.l.b16 %v6118
          %v6759 = vunpack.c.l.b16 %v6119
          %v6760 = vunpack.c.l.b16 %v6120
          %v6761 = vunpack.c.l.b16 %v6121
          %v6762 = vunpack.c.l.b16 %v6122
          %v6763 = vunpack.c.l.b16 %v6123
          %v6764 = vunpack.c.l.b16 %v6124
          %v6765 = vunpack.c.l.b16 %v6125
          %v6766 = vunpack.c.l.b16 %v6126
          %v6767 = vunpack.c.l.b16 %v6127
          %v6768 = vunpack.c.l.b16 %v6128
          %v6769 = vunpack.c.l.b16 %v6129
          %v6770 = vunpack.c.l.b16 %v6130
          %v6771 = vunpack.c.l.b16 %v6131
          %v6772 = vunpack.c.l.b16 %v6132
          %v6773 = vunpack.c.l.b16 %v6133
          %v6774 = vunpack.c.l.b16 %v6134
          %v6775 = vunpack.c.l.b16 %v6135
          %v6776 = vunpack.c.l.b16 %v6136
          %v6777 = vunpack.c.l.b16 %v6137
          %v6778 = vunpack.c.l.b16 %v6138
          %v6779 = vunpack.c.l.b16 %v6139
          %v6780 = vunpack.c.l.b16 %v6140
          %v6781 = vunpack.c.l.b16 %v6141
          %v6782 = vunpack.c.l.b16 %v6142
          %v6783 = vunpack.c.l.b16 %v6143
          %v6784 = vunpack.c.l.b16 %v6144
          %v6785 = vunpack.c.l.b16 %v6145
          %v6786 = vunpack.c.l.b16 %v6146
          %v6787 = vunpack.c.l.b16 %v6147
          %v6788 = vunpack.c.l.b16 %v6148
          %v6789 = vunpack.c.l.b16 %v6149
          %v6790 = vunpack.c.l.b16 %v6150
          %v6791 = vunpack.c.l.b16 %v6151
          %v6792 = vunpack.c.l.b16 %v6152
          %v6793 = vunpack.c.l.b16 %v6153
          %v6794 = vunpack.c.l.b16 %v6154
          %v6795 = vunpack.c.l.b16 %v6155
          %v6796 = vunpack.c.l.b16 %v6156
          %v6797 = vunpack.c.l.b16 %v6157
          %v6798 = vunpack.c.l.b16 %v6158
          %v6799 = vunpack.c.l.b16 %v6159
          %v6800 = vunpack.c.l.b16 %v6160
          %v6801 = vunpack.c.l.b16 %v6161
          %v6802 = vunpack.c.l.b16 %v6162
          %v6803 = vunpack.c.l.b16 %v6163
          %v6804 = vunpack.c.l.b16 %v6164
          %v6805 = vunpack.c.l.b16 %v6165
          %v6806 = vunpack.c.l.b16 %v6166
          %v6807 = vunpack.c.l.b16 %v6167
          %v6808 = vunpack.c.l.b16 %v6168
          %v6809 = vunpack.c.l.b16 %v6169
          %v6810 = vunpack.c.l.b16 %v6170
          %v6811 = vunpack.c.l.b16 %v6171
          %v6812 = vunpack.c.l.b16 %v6172
          %v6813 = vunpack.c.l.b16 %v6173
          %v6814 = vunpack.c.l.b16 %v6174
          %v6815 = vunpack.c.l.b16 %v6175
          %v6816 = vunpack.c.l.b16 %v6176
          %v6817 = vunpack.c.l.b16 %v6177
          %v6818 = vunpack.c.l.b16 %v6178
          %v6819 = vunpack.c.l.b16 %v6179
          %v6820 = vunpack.c.l.b16 %v6180
          %v6821 = vunpack.c.l.b16 %v6181
          %v6822 = vunpack.c.l.b16 %v6182
          %v6823 = vunpack.c.l.b16 %v6183
          %v6824 = vunpack.c.l.b16 %v6184
          %v6825 = vunpack.c.l.b16 %v6185
          %v6826 = vunpack.c.l.b16 %v6186
          %v6827 = vunpack.c.l.b16 %v6187
          %v6828 = vunpack.c.l.b16 %v6188
          %v6829 = vunpack.c.l.b16 %v6189
          %v6830 = vunpack.c.l.b16 %v6190
          %v6831 = vunpack.c.l.b16 %v6191
          %v6832 = vunpack.c.l.b16 %v6192
          %v6833 = vunpack.c.l.b16 %v6193
          %v6834 = vunpack.c.l.b16 %v6194
          %v6835 = vunpack.c.l.b16 %v6195
          %v6836 = vunpack.c.l.b16 %v6196
          %v6837 = vunpack.c.l.b16 %v6197
          %v6838 = vunpack.c.l.b16 %v6198
          %v6839 = vunpack.c.l.b16 %v6199
          %v6840 = vunpack.c.l.b16 %v6200
          %v6841 = vunpack.c.l.b16 %v6201
          %v6842 = vunpack.c.l.b16 %v6202
          %v6843 = vunpack.c.l.b16 %v6203
          %v6844 = vunpack.c.l.b16 %v6204
          %v6845 = vunpack.c.l.b16 %v6205
          %v6846 = vunpack.c.l.b16 %v6206
          %v6847 = vunpack.c.l.b16 %v6207
          %v6848 = vunpack.c.l.b16 %v6208
          %v6849 = vunpack.c.l.b16 %v6209
          %v6850 = vunpack.c.l.b16 %v6210
          %v6851 = vunpack.c.l.b16 %v6211
          %v6852 = vunpack.c.l.b16 %v6212
          %v6853 = vunpack.c.l.b16 %v6213
          %v6854 = vunpack.c.l.b16 %v6214
          %v6855 = vunpack.c.l.b16 %v6215
          %v6856 = vunpack.c.l.b16 %v6216
          %v6857 = vunpack.c.l.b16 %v6217
          %v6858 = vunpack.c.l.b16 %v6218
          %v6859 = vunpack.c.l.b16 %v6219
          %v6860 = vunpack.c.l.b16 %v6220
          %v6861 = vunpack.c.l.b16 %v6221
          %v6862 = vunpack.c.l.b16 %v6222
          %v6863 = vunpack.c.l.b16 %v6223
          %v6864 = vunpack.c.l.b16 %v6224
          %v6865 = vunpack.c.l.b16 %v6225
          %v6866 = vunpack.c.l.b16 %v6226
          %v6867 = vunpack.c.l.b16 %v6227
          %v6868 = vunpack.c.l.b16 %v6228
          %v6869 = vunpack.c.l.b16 %v6229
          %v6870 = vunpack.c.l.b16 %v6230
          %v6871 = vunpack.c.l.b16 %v6231
          %v6872 = vunpack.c.l.b16 %v6232
          %v6873 = vunpack.c.l.b16 %v6233
          %v6874 = vunpack.c.l.b16 %v6234
          %v6875 = vunpack.c.l.b16 %v6235
          %v6876 = vunpack.c.l.b16 %v6236
          %v6877 = vunpack.c.l.b16 %v6237
          %v6878 = vunpack.c.l.b16 %v6238
          %v6879 = vunpack.c.l.b16 %v6239
          %v6880 = vunpack.c.l.b16 %v6240
          %v6881 = vunpack.c.l.b16 %v6241
          %v6882 = vunpack.c.l.b16 %v6242
          %v6883 = vunpack.c.l.b16 %v6243
          %v6884 = vunpack.c.l.b16 %v6244
          %v6885 = vunpack.c.l.b16 %v6245
          %v6886 = vunpack.c.l.b16 %v6246
          %v6887 = vunpack.c.l.b16 %v6247
          %v6888 = vunpack.c.l.b16 %v6248
          %v6889 = vunpack.c.l.b16 %v6249
          %v6890 = vunpack.c.l.b16 %v6250
          %v6891 = vunpack.c.l.b16 %v6251
          %v6892 = vunpack.c.l.b16 %v6252
          %v6893 = vunpack.c.l.b16 %v6253
          %v6894 = vunpack.c.l.b16 %v6254
          %v6895 = vunpack.c.l.b16 %v6255
          %v6896 = vunpack.c.l.b16 %v6256
          %v6897 = vunpack.c.l.b16 %v6257
          %v6898 = vunpack.c.l.b16 %v6258
          %v6899 = vunpack.c.l.b16 %v6259
          %v6900 = vunpack.c.l.b16 %v6260
          %v6901 = vunpack.c.l.b16 %v6261
          %v6902 = vunpack.c.l.b16 %v6262
          %v6903 = vunpack.c.l.b16 %v6263
          %v6904 = vunpack.c.l.b16 %v6264
          %v6905 = vunpack.c.l.b16 %v6265
          %v6906 = vunpack.c.l.b16 %v6266
          %v6907 = vunpack.c.l.b16 %v6267
          %v6908 = vunpack.c.l.b16 %v6268
          %v6909 = vunpack.c.l.b16 %v6269
          %v6910 = vunpack.c.l.b16 %v6270
          %v6911 = vunpack.c.l.b16 %v6271
          %v6912 = vunpack.c.l.b16 %v6272
          %v6913 = vunpack.c.l.b16 %v6273
          %v6914 = vunpack.c.l.b16 %v6274
          %v6915 = vunpack.c.l.b16 %v6275
          %v6916 = vunpack.c.l.b16 %v6276
          %v6917 = vunpack.c.l.b16 %v6277
          %v6918 = vunpack.c.l.b16 %v6278
          %v6919 = vunpack.c.l.b16 %v6279
          %v6920 = vunpack.c.l.b16 %v6280
          %v6921 = vunpack.c.l.b16 %v6281
          %v6922 = vunpack.c.l.b16 %v6282
          %v6923 = vunpack.c.l.b16 %v6283
          %v6924 = vunpack.c.l.b16 %v6284
          %v6925 = vunpack.c.l.b16 %v6285
          %v6926 = vunpack.c.l.b16 %v6286
          %v6927 = vunpack.c.l.b16 %v6287
          %v6928 = vunpack.c.l.b16 %v6288
          %v6929 = vunpack.c.l.b16 %v6289
          %v6930 = vunpack.c.l.b16 %v6290
          %v6931 = vunpack.c.l.b16 %v6291
          %v6932 = vunpack.c.l.b16 %v6292
          %v6933 = vunpack.c.l.b16 %v6293
          %v6934 = vunpack.c.l.b16 %v6294
          %v6935 = vunpack.c.l.b16 %v6295
          %v6936 = vunpack.c.l.b16 %v6296
          %v6937 = vunpack.c.l.b16 %v6297
          %v6938 = vunpack.c.l.b16 %v6298
          %v6939 = vunpack.c.l.b16 %v6299
          %v6940 = vunpack.c.l.b16 %v6300
          %v6941 = vunpack.c.l.b16 %v6301
          %v6942 = vunpack.c.l.b16 %v6302
          %v6943 = vunpack.c.l.b16 %v6303
          %v6944 = vunpack.c.l.b16 %v6304
          %v6945 = vunpack.c.l.b16 %v6305
          %v6946 = vunpack.c.l.b16 %v6306
          %v6947 = vunpack.c.l.b16 %v6307
          %v6948 = vunpack.c.l.b16 %v6308
          %v6949 = vunpack.c.l.b16 %v6309
          %v6950 = vunpack.c.l.b16 %v6310
          %v6951 = vunpack.c.l.b16 %v6311
          %v6952 = vunpack.c.l.b16 %v6312
          %v6953 = vunpack.c.l.b16 %v6313
          %v6954 = vunpack.c.l.b16 %v6314
          %v6955 = vunpack.c.l.b16 %v6315
          %v6956 = vunpack.c.l.b16 %v6316
          %v6957 = vunpack.c.l.b16 %v6317
          %v6958 = vunpack.c.l.b16 %v6318
          %v6959 = vunpack.c.l.b16 %v6319
          %v6960 = vunpack.c.l.b16 %v6320
          %v6961 = vunpack.c.l.b16 %v6321
          %v6962 = vunpack.c.l.b16 %v6322
          %v6963 = vunpack.c.l.b16 %v6323
          %v6964 = vunpack.c.l.b16 %v6324
          %v6965 = vunpack.c.l.b16 %v6325
          %v6966 = vunpack.c.l.b16 %v6326
          %v6967 = vunpack.c.l.b16 %v6327
          %v6968 = vunpack.c.l.b16 %v6328
          %v6969 = vunpack.c.l.b16 %v6329
          %v6970 = vunpack.c.l.b16 %v6330
          %v6971 = vunpack.c.l.b16 %v6331
          %v6972 = vunpack.c.l.b16 %v6332
          %v6973 = vunpack.c.l.b16 %v6333
          %v6974 = vunpack.c.l.b16 %v6334
          %v6975 = vunpack.c.l.b16 %v6335
          %v6976 = vunpack.c.l.b16 %v6336
          %v6977 = vunpack.c.l.b16 %v6337
          %v6978 = vunpack.c.l.b16 %v6338
          %v6979 = vunpack.c.l.b16 %v6339
          %v6980 = vunpack.c.l.b16 %v6340
          %v6981 = vunpack.c.l.b16 %v6341
          %v6982 = vunpack.c.l.b16 %v6342
          %v6983 = vunpack.c.l.b16 %v6343
          %v6984 = vunpack.c.l.b16 %v6344
          %v6985 = vunpack.c.l.b16 %v6345
          %v6986 = vunpack.c.l.b16 %v6346
          %v6987 = vunpack.c.l.b16 %v6347
          %v6988 = vunpack.c.l.b16 %v6348
          %v6989 = vunpack.c.l.b16 %v6349
          %v6990 = vunpack.c.l.b16 %v6350
          %v6991 = vunpack.c.l.b16 %v6351
          %v6992 = vunpack.c.l.b16 %v6352
          %v6993 = vunpack.c.l.b16 %v6353
          %v6994 = vunpack.c.l.b16 %v6354
          %v6995 = vunpack.c.l.b16 %v6355
          %v6996 = vunpack.c.l.b16 %v6356
          %v6997 = vunpack.c.l.b16 %v6357
          %v6998 = vunpack.c.l.b16 %v6358
          %v6999 = vunpack.c.l.b16 %v6359
          %v7000 = vunpack.c.l.b16 %v6360
          %v7001 = vunpack.c.l.b16 %v6361
          %v7002 = vunpack.c.l.b16 %v6362
          %v7003 = vunpack.c.l.b16 %v6363
          %v7004 = vunpack.c.l.b16 %v6364
          %v7005 = vunpack.c.l.b16 %v6365
          %v7006 = vunpack.c.l.b16 %v6366
          %v7007 = vunpack.c.l.b16 %v6367
          %v7008 = vunpack.c.l.b16 %v6368
          %v7009 = vunpack.c.l.b16 %v6369
          %v7010 = vunpack.c.l.b16 %v6370
          %v7011 = vunpack.c.l.b16 %v6371
          %v7012 = vunpack.c.l.b16 %v6372
          %v7013 = vunpack.c.l.b16 %v6373
          %v7014 = vunpack.c.l.b16 %v6374
          %v7015 = vunpack.c.l.b16 %v6375
          %v7016 = vunpack.c.l.b16 %v6376
          %v7017 = vunpack.c.l.b16 %v6377
          %v7018 = vunpack.c.l.b16 %v6378
          %v7019 = vunpack.c.l.b16 %v6379
          %v7020 = vunpack.c.l.b16 %v6380
          %v7021 = vunpack.c.l.b16 %v6381
          %v7022 = vunpack.c.l.b16 %v6382
          %v7023 = vunpack.c.l.b16 %v6383
          %v7024 = vunpack.c.l.b16 %v6384
          %v7025 = vunpack.c.l.b16 %v6385
          %v7026 = vunpack.c.l.b16 %v6386
          %v7027 = vunpack.c.l.b16 %v6387
          %v7028 = vunpack.c.l.b16 %v6388
          %v7029 = vunpack.c.l.b16 %v6389
          %v7030 = vunpack.c.l.b16 %v6390
          %v7031 = vunpack.c.l.b16 %v6391
          %v7032 = vunpack.c.l.b16 %v6392
          %v7033 = vunpack.c.l.b16 %v6393
          %v7034 = vunpack.c.l.b16 %v6394
          %v7035 = vunpack.c.l.b16 %v6395
          %v7036 = vunpack.c.l.b16 %v6396
          %v7037 = vunpack.c.l.b16 %v6397
          %v7038 = vunpack.c.l.b16 %v6398
          %v7039 = vunpack.c.l.b16 %v6399
          %v7040 = vunpack.c.l.b16 %v6400
          %v7041 = vunpack.c.l.b16 %v6401
          %v7042 = vunpack.c.l.b16 %v6402
          %v7043 = vunpack.c.l.b16 %v6403
          %v7044 = vunpack.c.l.b16 %v6404
          %v7045 = vunpack.c.l.b16 %v6405
          %v7046 = vunpack.c.l.b16 %v6406
          %v7047 = vunpack.c.l.b16 %v6407
          %v7048 = vunpack.c.l.b16 %v6408
          %v7049 = vunpack.c.l.b16 %v6409
          %v7050 = vpack.c.b16 %v6731, %v6730
          %v7051 = vpack.c.b16 %v6733, %v6732
          %v7052 = vpack.c.b16 %v6735, %v6734
          %v7053 = vpack.c.b16 %v6737, %v6736
          %v7054 = vpack.c.b16 %v6739, %v6738
          %v7055 = vpack.c.b16 %v6741, %v6740
          %v7056 = vpack.c.b16 %v6743, %v6742
          %v7057 = vpack.c.b16 %v6745, %v6744
          %v7058 = vpack.c.b16 %v6747, %v6746
          %v7059 = vpack.c.b16 %v6749, %v6748
          %v7060 = vpack.c.b16 %v6751, %v6750
          %v7061 = vpack.c.b16 %v6753, %v6752
          %v7062 = vpack.c.b16 %v6755, %v6754
          %v7063 = vpack.c.b16 %v6757, %v6756
          %v7064 = vpack.c.b16 %v6759, %v6758
          %v7065 = vpack.c.b16 %v6761, %v6760
          %v7066 = vpack.c.b16 %v6763, %v6762
          %v7067 = vpack.c.b16 %v6765, %v6764
          %v7068 = vpack.c.b16 %v6767, %v6766
          %v7069 = vpack.c.b16 %v6769, %v6768
          %v7070 = vpack.c.b16 %v6771, %v6770
          %v7071 = vpack.c.b16 %v6773, %v6772
          %v7072 = vpack.c.b16 %v6775, %v6774
          %v7073 = vpack.c.b16 %v6777, %v6776
          %v7074 = vpack.c.b16 %v6779, %v6778
          %v7075 = vpack.c.b16 %v6781, %v6780
          %v7076 = vpack.c.b16 %v6783, %v6782
          %v7077 = vpack.c.b16 %v6785, %v6784
          %v7078 = vpack.c.b16 %v6787, %v6786
          %v7079 = vpack.c.b16 %v6789, %v6788
          %v7080 = vpack.c.b16 %v6791, %v6790
          %v7081 = vpack.c.b16 %v6793, %v6792
          %v7082 = vpack.c.b16 %v6795, %v6794
          %v7083 = vpack.c.b16 %v6797, %v6796
          %v7084 = vpack.c.b16 %v6799, %v6798
          %v7085 = vpack.c.b16 %v6801, %v6800
          %v7086 = vpack.c.b16 %v6803, %v6802
          %v7087 = vpack.c.b16 %v6805, %v6804
          %v7088 = vpack.c.b16 %v6807, %v6806
          %v7089 = vpack.c.b16 %v6809, %v6808
          %v7090 = vpack.c.b16 %v6811, %v6810
          %v7091 = vpack.c.b16 %v6813, %v6812
          %v7092 = vpack.c.b16 %v6815, %v6814
          %v7093 = vpack.c.b16 %v6817, %v6816
          %v7094 = vpack.c.b16 %v6819, %v6818
          %v7095 = vpack.c.b16 %v6821, %v6820
          %v7096 = vpack.c.b16 %v6823, %v6822
          %v7097 = vpack.c.b16 %v6825, %v6824
          %v7098 = vpack.c.b16 %v6827, %v6826
          %v7099 = vpack.c.b16 %v6829, %v6828
          %v7100 = vpack.c.b16 %v6831, %v6830
          %v7101 = vpack.c.b16 %v6833, %v6832
          %v7102 = vpack.c.b16 %v6835, %v6834
          %v7103 = vpack.c.b16 %v6837, %v6836
          %v7104 = vpack.c.b16 %v6839, %v6838
          %v7105 = vpack.c.b16 %v6841, %v6840
          %v7106 = vpack.c.b16 %v6843, %v6842
          %v7107 = vpack.c.b16 %v6845, %v6844
          %v7108 = vpack.c.b16 %v6847, %v6846
          %v7109 = vpack.c.b16 %v6849, %v6848
          %v7110 = vpack.c.b16 %v6851, %v6850
          %v7111 = vpack.c.b16 %v6853, %v6852
          %v7112 = vpack.c.b16 %v6855, %v6854
          %v7113 = vpack.c.b16 %v6857, %v6856
          %v7114 = vpack.c.b16 %v6859, %v6858
          %v7115 = vpack.c.b16 %v6861, %v6860
          %v7116 = vpack.c.b16 %v6863, %v6862
          %v7117 = vpack.c.b16 %v6865, %v6864
          %v7118 = vpack.c.b16 %v6867, %v6866
          %v7119 = vpack.c.b16 %v6869, %v6868
          %v7120 = vpack.c.b16 %v6871, %v6870
          %v7121 = vpack.c.b16 %v6873, %v6872
          %v7122 = vpack.c.b16 %v6875, %v6874
          %v7123 = vpack.c.b16 %v6877, %v6876
          %v7124 = vpack.c.b16 %v6879, %v6878
          %v7125 = vpack.c.b16 %v6881, %v6880
          %v7126 = vpack.c.b16 %v6883, %v6882
          %v7127 = vpack.c.b16 %v6885, %v6884
          %v7128 = vpack.c.b16 %v6887, %v6886
          %v7129 = vpack.c.b16 %v6889, %v6888
          %v7130 = vpack.c.b16 %v6891, %v6890
          %v7131 = vpack.c.b16 %v6893, %v6892
          %v7132 = vpack.c.b16 %v6895, %v6894
          %v7133 = vpack.c.b16 %v6897, %v6896
          %v7134 = vpack.c.b16 %v6899, %v6898
          %v7135 = vpack.c.b16 %v6901, %v6900
          %v7136 = vpack.c.b16 %v6903, %v6902
          %v7137 = vpack.c.b16 %v6905, %v6904
          %v7138 = vpack.c.b16 %v6907, %v6906
          %v7139 = vpack.c.b16 %v6909, %v6908
          %v7140 = vpack.c.b16 %v6911, %v6910
          %v7141 = vpack.c.b16 %v6913, %v6912
          %v7142 = vpack.c.b16 %v6915, %v6914
          %v7143 = vpack.c.b16 %v6917, %v6916
          %v7144 = vpack.c.b16 %v6919, %v6918
          %v7145 = vpack.c.b16 %v6921, %v6920
          %v7146 = vpack.c.b16 %v6923, %v6922
          %v7147 = vpack.c.b16 %v6925, %v6924
          %v7148 = vpack.c.b16 %v6927, %v6926
          %v7149 = vpack.c.b16 %v6929, %v6928
          %v7150 = vpack.c.b16 %v6931, %v6930
          %v7151 = vpack.c.b16 %v6933, %v6932
          %v7152 = vpack.c.b16 %v6935, %v6934
          %v7153 = vpack.c.b16 %v6937, %v6936
          %v7154 = vpack.c.b16 %v6939, %v6938
          %v7155 = vpack.c.b16 %v6941, %v6940
          %v7156 = vpack.c.b16 %v6943, %v6942
          %v7157 = vpack.c.b16 %v6945, %v6944
          %v7158 = vpack.c.b16 %v6947, %v6946
          %v7159 = vpack.c.b16 %v6949, %v6948
          %v7160 = vpack.c.b16 %v6951, %v6950
          %v7161 = vpack.c.b16 %v6953, %v6952
          %v7162 = vpack.c.b16 %v6955, %v6954
          %v7163 = vpack.c.b16 %v6957, %v6956
          %v7164 = vpack.c.b16 %v6959, %v6958
          %v7165 = vpack.c.b16 %v6961, %v6960
          %v7166 = vpack.c.b16 %v6963, %v6962
          %v7167 = vpack.c.b16 %v6965, %v6964
          %v7168 = vpack.c.b16 %v6967, %v6966
          %v7169 = vpack.c.b16 %v6969, %v6968
          %v7170 = vpack.c.b16 %v6971, %v6970
          %v7171 = vpack.c.b16 %v6973, %v6972
          %v7172 = vpack.c.b16 %v6975, %v6974
          %v7173 = vpack.c.b16 %v6977, %v6976
          %v7174 = vpack.c.b16 %v6979, %v6978
          %v7175 = vpack.c.b16 %v6981, %v6980
          %v7176 = vpack.c.b16 %v6983, %v6982
          %v7177 = vpack.c.b16 %v6985, %v6984
          %v7178 = vpack.c.b16 %v6987, %v6986
          %v7179 = vpack.c.b16 %v6989, %v6988
          %v7180 = vpack.c.b16 %v6991, %v6990
          %v7181 = vpack.c.b16 %v6993, %v6992
          %v7182 = vpack.c.b16 %v6995, %v6994
          %v7183 = vpack.c.b16 %v6997, %v6996
          %v7184 = vpack.c.b16 %v6999, %v6998
          %v7185 = vpack.c.b16 %v7001, %v7000
          %v7186 = vpack.c.b16 %v7003, %v7002
          %v7187 = vpack.c.b16 %v7005, %v7004
          %v7188 = vpack.c.b16 %v7007, %v7006
          %v7189 = vpack.c.b16 %v7009, %v7008
          %v7190 = vpack.c.b16 %v7011, %v7010
          %v7191 = vpack.c.b16 %v7013, %v7012
          %v7192 = vpack.c.b16 %v7015, %v7014
          %v7193 = vpack.c.b16 %v7017, %v7016
          %v7194 = vpack.c.b16 %v7019, %v7018
          %v7195 = vpack.c.b16 %v7021, %v7020
          %v7196 = vpack.c.b16 %v7023, %v7022
          %v7197 = vpack.c.b16 %v7025, %v7024
          %v7198 = vpack.c.b16 %v7027, %v7026
          %v7199 = vpack.c.b16 %v7029, %v7028
          %v7200 = vpack.c.b16 %v7031, %v7030
          %v7201 = vpack.c.b16 %v7033, %v7032
          %v7202 = vpack.c.b16 %v7035, %v7034
          %v7203 = vpack.c.b16 %v7037, %v7036
          %v7204 = vpack.c.b16 %v7039, %v7038
          %v7205 = vpack.c.b16 %v7041, %v7040
          %v7206 = vpack.c.b16 %v7043, %v7042
          %v7207 = vpack.c.b16 %v7045, %v7044
          %v7208 = vpack.c.b16 %v7047, %v7046
          %v7209 = vpack.c.b16 %v7049, %v7048
          %7370 = vmatprep.subr.bf16.mxu0 0
          %7371 = vmatpush1.bf16.msra.mxu0 %v7057
          %7372 = vmatprep.subr.bf16.mxu0 0
          %7373 = vmatpush1.bf16.msra.mxu0 %v7056
          %7374 = vmatprep.subr.bf16.mxu0 0
          %7375 = vmatpush1.bf16.msra.mxu0 %v7055
          %7376 = vmatprep.subr.bf16.mxu0 0
          %7377 = vmatpush1.bf16.msra.mxu0 %v7054
          %7378 = vmatprep.subr.bf16.mxu0 0
          %7379 = vmatpush1.bf16.msra.mxu0 %v7053
          %7380 = vmatprep.subr.bf16.mxu0 0
          %7381 = vmatpush1.bf16.msra.mxu0 %v7052
          %7382 = vmatprep.subr.bf16.mxu0 0
          %7383 = vmatpush1.bf16.msra.mxu0 %v7051
          %7384 = vmatprep.subr.bf16.mxu0 0
          %7385 = vmatpush1.bf16.msra.mxu0 %v7050
          %7386 = vmatprep.subr.bf16.mxu0 0
          %7387 = vmatpush2.bf16.msra.mxu0 %v7065
          %7388 = vmatprep.subr.bf16.mxu0 0
          %7389 = vmatpush2.bf16.msra.mxu0 %v7064
          %7390 = vmatprep.subr.bf16.mxu0 0
          %7391 = vmatpush2.bf16.msra.mxu0 %v7063
          %7392 = vmatprep.subr.bf16.mxu0 0
          %7393 = vmatpush2.bf16.msra.mxu0 %v7062
          %7394 = vmatprep.subr.bf16.mxu0 0
          %7395 = vmatpush2.bf16.msra.mxu0 %v7061
          %7396 = vmatprep.subr.bf16.mxu0 0
          %7397 = vmatpush2.bf16.msra.mxu0 %v7060
          %7398 = vmatprep.subr.bf16.mxu0 0
          %7399 = vmatpush2.bf16.msra.mxu0 %v7059
          %7400 = vmatprep.subr.bf16.mxu0 0
          %7401 = vmatpush2.bf16.msra.mxu0 %v7058
          %7402 = vmatprep.mubr.bf16.mxu0 %v5895
          %7403 = vmatmul.mubr.bf16.gmra.mxu0 %v5888
          %v7404 = vpop.f32.mrf.mxu0
          %v7405 = vadd.f32 0.0, %v7404
          %v7406 = vpop.f32.mrf.mxu0
          %v7407 = vpop.f32.mrf.mxu0
          %v7408 = vpop.f32.mrf.mxu0
          %7409 = vdwg.mxu0
          %7410 = vmatprep.subr.bf16.mxu0 0
          %7411 = vmatpush1.bf16.msra.mxu0 %v7073
          %7412 = vmatprep.subr.bf16.mxu0 0
          %7413 = vmatpush1.bf16.msra.mxu0 %v7072
          %7414 = vmatprep.subr.bf16.mxu0 0
          %7415 = vmatpush1.bf16.msra.mxu0 %v7071
          %7416 = vmatprep.subr.bf16.mxu0 0
          %7417 = vmatpush1.bf16.msra.mxu0 %v7070
          %7418 = vmatprep.subr.bf16.mxu0 0
          %7419 = vmatpush1.bf16.msra.mxu0 %v7069
          %7420 = vmatprep.subr.bf16.mxu0 0
          %7421 = vmatpush1.bf16.msra.mxu0 %v7068
          %7422 = vmatprep.subr.bf16.mxu0 0
          %7423 = vmatpush1.bf16.msra.mxu0 %v7067
          %7424 = vmatprep.subr.bf16.mxu0 0
          %7425 = vmatpush1.bf16.msra.mxu0 %v7066
          %7426 = vmatprep.subr.bf16.mxu0 0
          %7427 = vmatpush2.bf16.msra.mxu0 %v7081
          %7428 = vmatprep.subr.bf16.mxu0 0
          %7429 = vmatpush2.bf16.msra.mxu0 %v7080
          %7430 = vmatprep.subr.bf16.mxu0 0
          %7431 = vmatpush2.bf16.msra.mxu0 %v7079
          %7432 = vmatprep.subr.bf16.mxu0 0
          %7433 = vmatpush2.bf16.msra.mxu0 %v7078
          %7434 = vmatprep.subr.bf16.mxu0 0
          %7435 = vmatpush2.bf16.msra.mxu0 %v7077
          %7436 = vmatprep.subr.bf16.mxu0 0
          %7437 = vmatpush2.bf16.msra.mxu0 %v7076
          %7438 = vmatprep.subr.bf16.mxu0 0
          %7439 = vmatpush2.bf16.msra.mxu0 %v7075
          %7440 = vmatprep.subr.bf16.mxu0 0
          %7441 = vmatpush2.bf16.msra.mxu0 %v7074
          %7442 = vmatprep.mubr.bf16.mxu0 %v5909
          %7443 = vmatmul.mubr.bf16.gmra.mxu0 %v5902
          %v7444 = vpop.f32.mrf.mxu0
          %v7445 = vadd.f32 %v7405, %v7444
          %v7446 = vpop.f32.mrf.mxu0
          %v7447 = vpop.f32.mrf.mxu0
          %v7448 = vpop.f32.mrf.mxu0
          %7449 = vdwg.mxu0
          %7450 = vmatprep.subr.bf16.mxu0 0
          %7451 = vmatpush1.bf16.msra.mxu0 %v7089
          %7452 = vmatprep.subr.bf16.mxu0 0
          %7453 = vmatpush1.bf16.msra.mxu0 %v7088
          %7454 = vmatprep.subr.bf16.mxu0 0
          %7455 = vmatpush1.bf16.msra.mxu0 %v7087
          %7456 = vmatprep.subr.bf16.mxu0 0
          %7457 = vmatpush1.bf16.msra.mxu0 %v7086
          %7458 = vmatprep.subr.bf16.mxu0 0
          %7459 = vmatpush1.bf16.msra.mxu0 %v7085
          %7460 = vmatprep.subr.bf16.mxu0 0
          %7461 = vmatpush1.bf16.msra.mxu0 %v7084
          %7462 = vmatprep.subr.bf16.mxu0 0
          %7463 = vmatpush1.bf16.msra.mxu0 %v7083
          %7464 = vmatprep.subr.bf16.mxu0 0
          %7465 = vmatpush1.bf16.msra.mxu0 %v7082
          %7466 = vmatprep.subr.bf16.mxu0 0
          %7467 = vmatpush2.bf16.msra.mxu0 %v7097
          %7468 = vmatprep.subr.bf16.mxu0 0
          %7469 = vmatpush2.bf16.msra.mxu0 %v7096
          %7470 = vmatprep.subr.bf16.mxu0 0
          %7471 = vmatpush2.bf16.msra.mxu0 %v7095
          %7472 = vmatprep.subr.bf16.mxu0 0
          %7473 = vmatpush2.bf16.msra.mxu0 %v7094
          %7474 = vmatprep.subr.bf16.mxu0 0
          %7475 = vmatpush2.bf16.msra.mxu0 %v7093
          %7476 = vmatprep.subr.bf16.mxu0 0
          %7477 = vmatpush2.bf16.msra.mxu0 %v7092
          %7478 = vmatprep.subr.bf16.mxu0 0
          %7479 = vmatpush2.bf16.msra.mxu0 %v7091
          %7480 = vmatprep.subr.bf16.mxu0 0
          %7481 = vmatpush2.bf16.msra.mxu0 %v7090
          %7482 = vmatprep.mubr.bf16.mxu0 %v5923
          %7483 = vmatmul.mubr.bf16.gmra.mxu0 %v5916
          %v7484 = vpop.f32.mrf.mxu0
          %v7485 = vadd.f32 %v7445, %v7484
          %v7486 = vpop.f32.mrf.mxu0
          %v7487 = vpop.f32.mrf.mxu0
          %v7488 = vpop.f32.mrf.mxu0
          %7489 = vdwg.mxu0
          %7490 = vmatprep.subr.bf16.mxu0 0
          %7491 = vmatpush1.bf16.msra.mxu0 %v7105
          %7492 = vmatprep.subr.bf16.mxu0 0
          %7493 = vmatpush1.bf16.msra.mxu0 %v7104
          %7494 = vmatprep.subr.bf16.mxu0 0
          %7495 = vmatpush1.bf16.msra.mxu0 %v7103
          %7496 = vmatprep.subr.bf16.mxu0 0
          %7497 = vmatpush1.bf16.msra.mxu0 %v7102
          %7498 = vmatprep.subr.bf16.mxu0 0
          %7499 = vmatpush1.bf16.msra.mxu0 %v7101
          %7500 = vmatprep.subr.bf16.mxu0 0
          %7501 = vmatpush1.bf16.msra.mxu0 %v7100
          %7502 = vmatprep.subr.bf16.mxu0 0
          %7503 = vmatpush1.bf16.msra.mxu0 %v7099
          %7504 = vmatprep.subr.bf16.mxu0 0
          %7505 = vmatpush1.bf16.msra.mxu0 %v7098
          %7506 = vmatprep.subr.bf16.mxu0 0
          %7507 = vmatpush2.bf16.msra.mxu0 %v7113
          %7508 = vmatprep.subr.bf16.mxu0 0
          %7509 = vmatpush2.bf16.msra.mxu0 %v7112
          %7510 = vmatprep.subr.bf16.mxu0 0
          %7511 = vmatpush2.bf16.msra.mxu0 %v7111
          %7512 = vmatprep.subr.bf16.mxu0 0
          %7513 = vmatpush2.bf16.msra.mxu0 %v7110
          %7514 = vmatprep.subr.bf16.mxu0 0
          %7515 = vmatpush2.bf16.msra.mxu0 %v7109
          %7516 = vmatprep.subr.bf16.mxu0 0
          %7517 = vmatpush2.bf16.msra.mxu0 %v7108
          %7518 = vmatprep.subr.bf16.mxu0 0
          %7519 = vmatpush2.bf16.msra.mxu0 %v7107
          %7520 = vmatprep.subr.bf16.mxu0 0
          %7521 = vmatpush2.bf16.msra.mxu0 %v7106
          %7522 = vmatprep.mubr.bf16.mxu0 %v5937
          %7523 = vmatmul.mubr.bf16.gmra.mxu0 %v5930
          %v7524 = vpop.f32.mrf.mxu0
          %v7525 = vadd.f32 %v7485, %v7524
          %v7526 = vpop.f32.mrf.mxu0
          %v7527 = vpop.f32.mrf.mxu0
          %v7528 = vpop.f32.mrf.mxu0
          %7529 = vdwg.mxu0
          %7530 = vmatprep.subr.bf16.mxu0 0
          %7531 = vmatpush1.bf16.msra.mxu0 %v7121
          %7532 = vmatprep.subr.bf16.mxu0 0
          %7533 = vmatpush1.bf16.msra.mxu0 %v7120
          %7534 = vmatprep.subr.bf16.mxu0 0
          %7535 = vmatpush1.bf16.msra.mxu0 %v7119
          %7536 = vmatprep.subr.bf16.mxu0 0
          %7537 = vmatpush1.bf16.msra.mxu0 %v7118
          %7538 = vmatprep.subr.bf16.mxu0 0
          %7539 = vmatpush1.bf16.msra.mxu0 %v7117
          %7540 = vmatprep.subr.bf16.mxu0 0
          %7541 = vmatpush1.bf16.msra.mxu0 %v7116
          %7542 = vmatprep.subr.bf16.mxu0 0
          %7543 = vmatpush1.bf16.msra.mxu0 %v7115
          %7544 = vmatprep.subr.bf16.mxu0 0
          %7545 = vmatpush1.bf16.msra.mxu0 %v7114
          %7546 = vmatprep.subr.bf16.mxu0 0
          %7547 = vmatpush2.bf16.msra.mxu0 %v7129
          %7548 = vmatprep.subr.bf16.mxu0 0
          %7549 = vmatpush2.bf16.msra.mxu0 %v7128
          %7550 = vmatprep.subr.bf16.mxu0 0
          %7551 = vmatpush2.bf16.msra.mxu0 %v7127
          %7552 = vmatprep.subr.bf16.mxu0 0
          %7553 = vmatpush2.bf16.msra.mxu0 %v7126
          %7554 = vmatprep.subr.bf16.mxu0 0
          %7555 = vmatpush2.bf16.msra.mxu0 %v7125
          %7556 = vmatprep.subr.bf16.mxu0 0
          %7557 = vmatpush2.bf16.msra.mxu0 %v7124
          %7558 = vmatprep.subr.bf16.mxu0 0
          %7559 = vmatpush2.bf16.msra.mxu0 %v7123
          %7560 = vmatprep.subr.bf16.mxu0 0
          %7561 = vmatpush2.bf16.msra.mxu0 %v7122
          %7562 = vmatprep.mubr.bf16.mxu0 %v5951
          %7563 = vmatmul.mubr.bf16.gmra.mxu0 %v5944
          %v7564 = vpop.f32.mrf.mxu0
          %v7565 = vadd.f32 %v7525, %v7564
          %v7566 = vpop.f32.mrf.mxu0
          %v7567 = vpop.f32.mrf.mxu0
          %v7568 = vpop.f32.mrf.mxu0
          %7569 = vdwg.mxu0
          %7570 = vmatprep.subr.bf16.mxu0 0
          %7571 = vmatpush1.bf16.msra.mxu0 %v7137
          %7572 = vmatprep.subr.bf16.mxu0 0
          %7573 = vmatpush1.bf16.msra.mxu0 %v7136
          %7574 = vmatprep.subr.bf16.mxu0 0
          %7575 = vmatpush1.bf16.msra.mxu0 %v7135
          %7576 = vmatprep.subr.bf16.mxu0 0
          %7577 = vmatpush1.bf16.msra.mxu0 %v7134
          %7578 = vmatprep.subr.bf16.mxu0 0
          %7579 = vmatpush1.bf16.msra.mxu0 %v7133
          %7580 = vmatprep.subr.bf16.mxu0 0
          %7581 = vmatpush1.bf16.msra.mxu0 %v7132
          %7582 = vmatprep.subr.bf16.mxu0 0
          %7583 = vmatpush1.bf16.msra.mxu0 %v7131
          %7584 = vmatprep.subr.bf16.mxu0 0
          %7585 = vmatpush1.bf16.msra.mxu0 %v7130
          %7586 = vmatprep.subr.bf16.mxu0 0
          %7587 = vmatpush2.bf16.msra.mxu0 %v7145
          %7588 = vmatprep.subr.bf16.mxu0 0
          %7589 = vmatpush2.bf16.msra.mxu0 %v7144
          %7590 = vmatprep.subr.bf16.mxu0 0
          %7591 = vmatpush2.bf16.msra.mxu0 %v7143
          %7592 = vmatprep.subr.bf16.mxu0 0
          %7593 = vmatpush2.bf16.msra.mxu0 %v7142
          %7594 = vmatprep.subr.bf16.mxu0 0
          %7595 = vmatpush2.bf16.msra.mxu0 %v7141
          %7596 = vmatprep.subr.bf16.mxu0 0
          %7597 = vmatpush2.bf16.msra.mxu0 %v7140
          %7598 = vmatprep.subr.bf16.mxu0 0
          %7599 = vmatpush2.bf16.msra.mxu0 %v7139
          %7600 = vmatprep.subr.bf16.mxu0 0
          %7601 = vmatpush2.bf16.msra.mxu0 %v7138
          %7602 = vmatprep.mubr.bf16.mxu0 %v5965
          %7603 = vmatmul.mubr.bf16.gmra.mxu0 %v5958
          %v7604 = vpop.f32.mrf.mxu0
          %v7605 = vadd.f32 %v7565, %v7604
          %v7606 = vpop.f32.mrf.mxu0
          %v7607 = vpop.f32.mrf.mxu0
          %v7608 = vpop.f32.mrf.mxu0
          %7609 = vdwg.mxu0
          %7610 = vmatprep.subr.bf16.mxu0 0
          %7611 = vmatpush1.bf16.msra.mxu0 %v7153
          %7612 = vmatprep.subr.bf16.mxu0 0
          %7613 = vmatpush1.bf16.msra.mxu0 %v7152
          %7614 = vmatprep.subr.bf16.mxu0 0
          %7615 = vmatpush1.bf16.msra.mxu0 %v7151
          %7616 = vmatprep.subr.bf16.mxu0 0
          %7617 = vmatpush1.bf16.msra.mxu0 %v7150
          %7618 = vmatprep.subr.bf16.mxu0 0
          %7619 = vmatpush1.bf16.msra.mxu0 %v7149
          %7620 = vmatprep.subr.bf16.mxu0 0
          %7621 = vmatpush1.bf16.msra.mxu0 %v7148
          %7622 = vmatprep.subr.bf16.mxu0 0
          %7623 = vmatpush1.bf16.msra.mxu0 %v7147
          %7624 = vmatprep.subr.bf16.mxu0 0
          %7625 = vmatpush1.bf16.msra.mxu0 %v7146
          %7626 = vmatprep.subr.bf16.mxu0 0
          %7627 = vmatpush2.bf16.msra.mxu0 %v7161
          %7628 = vmatprep.subr.bf16.mxu0 0
          %7629 = vmatpush2.bf16.msra.mxu0 %v7160
          %7630 = vmatprep.subr.bf16.mxu0 0
          %7631 = vmatpush2.bf16.msra.mxu0 %v7159
          %7632 = vmatprep.subr.bf16.mxu0 0
          %7633 = vmatpush2.bf16.msra.mxu0 %v7158
          %7634 = vmatprep.subr.bf16.mxu0 0
          %7635 = vmatpush2.bf16.msra.mxu0 %v7157
          %7636 = vmatprep.subr.bf16.mxu0 0
          %7637 = vmatpush2.bf16.msra.mxu0 %v7156
          %7638 = vmatprep.subr.bf16.mxu0 0
          %7639 = vmatpush2.bf16.msra.mxu0 %v7155
          %7640 = vmatprep.subr.bf16.mxu0 0
          %7641 = vmatpush2.bf16.msra.mxu0 %v7154
          %7642 = vmatprep.mubr.bf16.mxu0 %v5979
          %7643 = vmatmul.mubr.bf16.gmra.mxu0 %v5972
          %v7644 = vpop.f32.mrf.mxu0
          %v7645 = vadd.f32 %v7605, %v7644
          %v7646 = vpop.f32.mrf.mxu0
          %v7647 = vpop.f32.mrf.mxu0
          %v7648 = vpop.f32.mrf.mxu0
          %7649 = vdwg.mxu0
          %7650 = vmatprep.subr.bf16.mxu0 0
          %7651 = vmatpush1.bf16.msra.mxu0 %v7169
          %7652 = vmatprep.subr.bf16.mxu0 0
          %7653 = vmatpush1.bf16.msra.mxu0 %v7168
          %7654 = vmatprep.subr.bf16.mxu0 0
          %7655 = vmatpush1.bf16.msra.mxu0 %v7167
          %7656 = vmatprep.subr.bf16.mxu0 0
          %7657 = vmatpush1.bf16.msra.mxu0 %v7166
          %7658 = vmatprep.subr.bf16.mxu0 0
          %7659 = vmatpush1.bf16.msra.mxu0 %v7165
          %7660 = vmatprep.subr.bf16.mxu0 0
          %7661 = vmatpush1.bf16.msra.mxu0 %v7164
          %7662 = vmatprep.subr.bf16.mxu0 0
          %7663 = vmatpush1.bf16.msra.mxu0 %v7163
          %7664 = vmatprep.subr.bf16.mxu0 0
          %7665 = vmatpush1.bf16.msra.mxu0 %v7162
          %7666 = vmatprep.subr.bf16.mxu0 0
          %7667 = vmatpush2.bf16.msra.mxu0 %v7177
          %7668 = vmatprep.subr.bf16.mxu0 0
          %7669 = vmatpush2.bf16.msra.mxu0 %v7176
          %7670 = vmatprep.subr.bf16.mxu0 0
          %7671 = vmatpush2.bf16.msra.mxu0 %v7175
          %7672 = vmatprep.subr.bf16.mxu0 0
          %7673 = vmatpush2.bf16.msra.mxu0 %v7174
          %7674 = vmatprep.subr.bf16.mxu0 0
          %7675 = vmatpush2.bf16.msra.mxu0 %v7173
          %7676 = vmatprep.subr.bf16.mxu0 0
          %7677 = vmatpush2.bf16.msra.mxu0 %v7172
          %7678 = vmatprep.subr.bf16.mxu0 0
          %7679 = vmatpush2.bf16.msra.mxu0 %v7171
          %7680 = vmatprep.subr.bf16.mxu0 0
          %7681 = vmatpush2.bf16.msra.mxu0 %v7170
          %7682 = vmatprep.mubr.bf16.mxu0 %v5993
          %7683 = vmatmul.mubr.bf16.gmra.mxu0 %v5986
          %v7684 = vpop.f32.mrf.mxu0
          %v7685 = vadd.f32 %v7645, %v7684
          %v7686 = vpop.f32.mrf.mxu0
          %v7687 = vpop.f32.mrf.mxu0
          %v7688 = vpop.f32.mrf.mxu0
          %7689 = vdwg.mxu0
          %7690 = vmatprep.subr.bf16.mxu0 0
          %7691 = vmatpush1.bf16.msra.mxu0 %v7185
          %7692 = vmatprep.subr.bf16.mxu0 0
          %7693 = vmatpush1.bf16.msra.mxu0 %v7184
          %7694 = vmatprep.subr.bf16.mxu0 0
          %7695 = vmatpush1.bf16.msra.mxu0 %v7183
          %7696 = vmatprep.subr.bf16.mxu0 0
          %7697 = vmatpush1.bf16.msra.mxu0 %v7182
          %7698 = vmatprep.subr.bf16.mxu0 0
          %7699 = vmatpush1.bf16.msra.mxu0 %v7181
          %7700 = vmatprep.subr.bf16.mxu0 0
          %7701 = vmatpush1.bf16.msra.mxu0 %v7180
          %7702 = vmatprep.subr.bf16.mxu0 0
          %7703 = vmatpush1.bf16.msra.mxu0 %v7179
          %7704 = vmatprep.subr.bf16.mxu0 0
          %7705 = vmatpush1.bf16.msra.mxu0 %v7178
          %7706 = vmatprep.subr.bf16.mxu0 0
          %7707 = vmatpush2.bf16.msra.mxu0 %v7193
          %7708 = vmatprep.subr.bf16.mxu0 0
          %7709 = vmatpush2.bf16.msra.mxu0 %v7192
          %7710 = vmatprep.subr.bf16.mxu0 0
          %7711 = vmatpush2.bf16.msra.mxu0 %v7191
          %7712 = vmatprep.subr.bf16.mxu0 0
          %7713 = vmatpush2.bf16.msra.mxu0 %v7190
          %7714 = vmatprep.subr.bf16.mxu0 0
          %7715 = vmatpush2.bf16.msra.mxu0 %v7189
          %7716 = vmatprep.subr.bf16.mxu0 0
          %7717 = vmatpush2.bf16.msra.mxu0 %v7188
          %7718 = vmatprep.subr.bf16.mxu0 0
          %7719 = vmatpush2.bf16.msra.mxu0 %v7187
          %7720 = vmatprep.subr.bf16.mxu0 0
          %7721 = vmatpush2.bf16.msra.mxu0 %v7186
          %7722 = vmatprep.mubr.bf16.mxu0 %v6007
          %7723 = vmatmul.mubr.bf16.gmra.mxu0 %v6000
          %v7724 = vpop.f32.mrf.mxu0
          %v7725 = vadd.f32 %v7685, %v7724
          %v7726 = vpop.f32.mrf.mxu0
          %v7727 = vpop.f32.mrf.mxu0
          %v7728 = vpop.f32.mrf.mxu0
          %7729 = vdwg.mxu0
          %7730 = vmatprep.subr.bf16.mxu0 0
          %7731 = vmatpush1.bf16.msra.mxu0 %v7201
          %7732 = vmatprep.subr.bf16.mxu0 0
          %7733 = vmatpush1.bf16.msra.mxu0 %v7200
          %7734 = vmatprep.subr.bf16.mxu0 0
          %7735 = vmatpush1.bf16.msra.mxu0 %v7199
          %7736 = vmatprep.subr.bf16.mxu0 0
          %7737 = vmatpush1.bf16.msra.mxu0 %v7198
          %7738 = vmatprep.subr.bf16.mxu0 0
          %7739 = vmatpush1.bf16.msra.mxu0 %v7197
          %7740 = vmatprep.subr.bf16.mxu0 0
          %7741 = vmatpush1.bf16.msra.mxu0 %v7196
          %7742 = vmatprep.subr.bf16.mxu0 0
          %7743 = vmatpush1.bf16.msra.mxu0 %v7195
          %7744 = vmatprep.subr.bf16.mxu0 0
          %7745 = vmatpush1.bf16.msra.mxu0 %v7194
          %7746 = vmatprep.subr.bf16.mxu0 0
          %7747 = vmatpush2.bf16.msra.mxu0 %v7209
          %7748 = vmatprep.subr.bf16.mxu0 0
          %7749 = vmatpush2.bf16.msra.mxu0 %v7208
          %7750 = vmatprep.subr.bf16.mxu0 0
          %7751 = vmatpush2.bf16.msra.mxu0 %v7207
          %7752 = vmatprep.subr.bf16.mxu0 0
          %7753 = vmatpush2.bf16.msra.mxu0 %v7206
          %7754 = vmatprep.subr.bf16.mxu0 0
          %7755 = vmatpush2.bf16.msra.mxu0 %v7205
          %7756 = vmatprep.subr.bf16.mxu0 0
          %7757 = vmatpush2.bf16.msra.mxu0 %v7204
          %7758 = vmatprep.subr.bf16.mxu0 0
          %7759 = vmatpush2.bf16.msra.mxu0 %v7203
          %7760 = vmatprep.subr.bf16.mxu0 0
          %7761 = vmatpush2.bf16.msra.mxu0 %v7202
          %7762 = vmatprep.mubr.bf16.mxu0 %v6021
          %7763 = vmatmul.mubr.bf16.gmra.mxu0 %v6014
          %v7764 = vpop.f32.mrf.mxu0
          %v7765 = vadd.f32 %v7725, %v7764
          %v7766 = vpop.f32.mrf.mxu0
          %v7767 = vpop.f32.mrf.mxu0
          %v7768 = vpop.f32.mrf.mxu0
          %7769 = vdwg.mxu0
          %v7834 = vunpack.c.l.b16 %v6026
          %v7835 = vunpack.c.l.b16 %v6027
          %v7836 = vunpack.c.l.b16 %v6028
          %v7837 = vunpack.c.l.b16 %v6029
          %v7838 = vunpack.c.l.b16 %v6030
          %v7839 = vunpack.c.l.b16 %v6031
          %v7840 = vunpack.c.l.b16 %v6032
          %v7841 = vunpack.c.l.b16 %v6033
          %v7842 = vunpack.c.l.b16 %v6034
          %v7843 = vunpack.c.l.b16 %v6035
          %v7844 = vunpack.c.l.b16 %v6036
          %v7845 = vunpack.c.l.b16 %v6037
          %v7846 = vunpack.c.l.b16 %v6038
          %v7847 = vunpack.c.l.b16 %v6039
          %v7848 = vunpack.c.l.b16 %v6040
          %v7849 = vunpack.c.l.b16 %v6041
          %v7850 = vunpack.c.l.b16 %v6042
          %v7851 = vunpack.c.l.b16 %v6043
          %v7852 = vunpack.c.l.b16 %v6044
          %v7853 = vunpack.c.l.b16 %v6045
          %v7854 = vunpack.c.l.b16 %v6046
          %v7855 = vunpack.c.l.b16 %v6047
          %v7856 = vunpack.c.l.b16 %v6048
          %v7857 = vunpack.c.l.b16 %v6049
          %v7858 = vunpack.c.l.b16 %v6050
          %v7859 = vunpack.c.l.b16 %v6051
          %v7860 = vunpack.c.l.b16 %v6052
          %v7861 = vunpack.c.l.b16 %v6053
          %v7862 = vunpack.c.l.b16 %v6054
          %v7863 = vunpack.c.l.b16 %v6055
          %v7864 = vunpack.c.l.b16 %v6056
          %v7865 = vunpack.c.l.b16 %v6057
          %v7866 = vunpack.c.l.b16 %v6058
          %v7867 = vunpack.c.l.b16 %v6059
          %v7868 = vunpack.c.l.b16 %v6060
          %v7869 = vunpack.c.l.b16 %v6061
          %v7870 = vunpack.c.l.b16 %v6062
          %v7871 = vunpack.c.l.b16 %v6063
          %v7872 = vunpack.c.l.b16 %v6064
          %v7873 = vunpack.c.l.b16 %v6065
          %v7874 = vunpack.c.l.b16 %v6066
          %v7875 = vunpack.c.l.b16 %v6067
          %v7876 = vunpack.c.l.b16 %v6068
          %v7877 = vunpack.c.l.b16 %v6069
          %v7878 = vunpack.c.l.b16 %v6070
          %v7879 = vunpack.c.l.b16 %v6071
          %v7880 = vunpack.c.l.b16 %v6072
          %v7881 = vunpack.c.l.b16 %v6073
          %v7882 = vunpack.c.l.b16 %v6074
          %v7883 = vunpack.c.l.b16 %v6075
          %v7884 = vunpack.c.l.b16 %v6076
          %v7885 = vunpack.c.l.b16 %v6077
          %v7886 = vunpack.c.l.b16 %v6078
          %v7887 = vunpack.c.l.b16 %v6079
          %v7888 = vunpack.c.l.b16 %v6080
          %v7889 = vunpack.c.l.b16 %v6081
          %v7890 = vunpack.c.l.b16 %v6082
          %v7891 = vunpack.c.l.b16 %v6083
          %v7892 = vunpack.c.l.b16 %v6084
          %v7893 = vunpack.c.l.b16 %v6085
          %v7894 = vunpack.c.l.b16 %v6086
          %v7895 = vunpack.c.l.b16 %v6087
          %v7896 = vunpack.c.l.b16 %v6088
          %v7897 = vunpack.c.l.b16 %v6089
          %v7898 = vpack.c.b16 %v7835, %v7834
          %v7899 = vpack.c.b16 %v7837, %v7836
          %v7900 = vpack.c.b16 %v7839, %v7838
          %v7901 = vpack.c.b16 %v7841, %v7840
          %v7902 = vpack.c.b16 %v7843, %v7842
          %v7903 = vpack.c.b16 %v7845, %v7844
          %v7904 = vpack.c.b16 %v7847, %v7846
          %v7905 = vpack.c.b16 %v7849, %v7848
          %v7906 = vpack.c.b16 %v7851, %v7850
          %v7907 = vpack.c.b16 %v7853, %v7852
          %v7908 = vpack.c.b16 %v7855, %v7854
          %v7909 = vpack.c.b16 %v7857, %v7856
          %v7910 = vpack.c.b16 %v7859, %v7858
          %v7911 = vpack.c.b16 %v7861, %v7860
          %v7912 = vpack.c.b16 %v7863, %v7862
          %v7913 = vpack.c.b16 %v7865, %v7864
          %v7914 = vpack.c.b16 %v7867, %v7866
          %v7915 = vpack.c.b16 %v7869, %v7868
          %v7916 = vpack.c.b16 %v7871, %v7870
          %v7917 = vpack.c.b16 %v7873, %v7872
          %v7918 = vpack.c.b16 %v7875, %v7874
          %v7919 = vpack.c.b16 %v7877, %v7876
          %v7920 = vpack.c.b16 %v7879, %v7878
          %v7921 = vpack.c.b16 %v7881, %v7880
          %v7922 = vpack.c.b16 %v7883, %v7882
          %v7923 = vpack.c.b16 %v7885, %v7884
          %v7924 = vpack.c.b16 %v7887, %v7886
          %v7925 = vpack.c.b16 %v7889, %v7888
          %v7926 = vpack.c.b16 %v7891, %v7890
          %v7927 = vpack.c.b16 %v7893, %v7892
          %v7928 = vpack.c.b16 %v7895, %v7894
          %v7929 = vpack.c.b16 %v7897, %v7896
          %7962 = vmatprep.subr.bf16.mxu0 0
          %7963 = vmatpush1.bf16.msra.mxu0 %v7905
          %7964 = vmatprep.subr.bf16.mxu0 0
          %7965 = vmatpush1.bf16.msra.mxu0 %v7904
          %7966 = vmatprep.subr.bf16.mxu0 0
          %7967 = vmatpush1.bf16.msra.mxu0 %v7903
          %7968 = vmatprep.subr.bf16.mxu0 0
          %7969 = vmatpush1.bf16.msra.mxu0 %v7902
          %7970 = vmatprep.subr.bf16.mxu0 0
          %7971 = vmatpush1.bf16.msra.mxu0 %v7901
          %7972 = vmatprep.subr.bf16.mxu0 0
          %7973 = vmatpush1.bf16.msra.mxu0 %v7900
          %7974 = vmatprep.subr.bf16.mxu0 0
          %7975 = vmatpush1.bf16.msra.mxu0 %v7899
          %7976 = vmatprep.subr.bf16.mxu0 0
          %7977 = vmatpush1.bf16.msra.mxu0 %v7898
          %7978 = vmatprep.subr.bf16.mxu0 0
          %7979 = vmatpush2.bf16.msra.mxu0 %v7913
          %7980 = vmatprep.subr.bf16.mxu0 0
          %7981 = vmatpush2.bf16.msra.mxu0 %v7912
          %7982 = vmatprep.subr.bf16.mxu0 0
          %7983 = vmatpush2.bf16.msra.mxu0 %v7911
          %7984 = vmatprep.subr.bf16.mxu0 0
          %7985 = vmatpush2.bf16.msra.mxu0 %v7910
          %7986 = vmatprep.subr.bf16.mxu0 0
          %7987 = vmatpush2.bf16.msra.mxu0 %v7909
          %7988 = vmatprep.subr.bf16.mxu0 0
          %7989 = vmatpush2.bf16.msra.mxu0 %v7908
          %7990 = vmatprep.subr.bf16.mxu0 0
          %7991 = vmatpush2.bf16.msra.mxu0 %v7907
          %7992 = vmatprep.subr.bf16.mxu0 0
          %7993 = vmatpush2.bf16.msra.mxu0 %v7906
          %7994 = vmatprep.mubr.bf16.mxu0 %v6023
          %7995 = vmatmul.mubr.bf16.gmra.mxu0 %v6022
          %v7996 = vpop.f32.mrf.mxu0
          %v7997 = vadd.f32 %v7765, %v7996
          %v7998 = vpop.f32.mrf.mxu0
          %v7999 = vpop.f32.mrf.mxu0
          %v8000 = vpop.f32.mrf.mxu0
          %8001 = vdwg.mxu0
          %8002 = vmatprep.subr.bf16.mxu0 0
          %8003 = vmatpush1.bf16.msra.mxu0 %v7921
          %8004 = vmatprep.subr.bf16.mxu0 0
          %8005 = vmatpush1.bf16.msra.mxu0 %v7920
          %8006 = vmatprep.subr.bf16.mxu0 0
          %8007 = vmatpush1.bf16.msra.mxu0 %v7919
          %8008 = vmatprep.subr.bf16.mxu0 0
          %8009 = vmatpush1.bf16.msra.mxu0 %v7918
          %8010 = vmatprep.subr.bf16.mxu0 0
          %8011 = vmatpush1.bf16.msra.mxu0 %v7917
          %8012 = vmatprep.subr.bf16.mxu0 0
          %8013 = vmatpush1.bf16.msra.mxu0 %v7916
          %8014 = vmatprep.subr.bf16.mxu0 0
          %8015 = vmatpush1.bf16.msra.mxu0 %v7915
          %8016 = vmatprep.subr.bf16.mxu0 0
          %8017 = vmatpush1.bf16.msra.mxu0 %v7914
          %8018 = vmatprep.subr.bf16.mxu0 0
          %8019 = vmatpush2.bf16.msra.mxu0 %v7929
          %8020 = vmatprep.subr.bf16.mxu0 0
          %8021 = vmatpush2.bf16.msra.mxu0 %v7928
          %8022 = vmatprep.subr.bf16.mxu0 0
          %8023 = vmatpush2.bf16.msra.mxu0 %v7927
          %8024 = vmatprep.subr.bf16.mxu0 0
          %8025 = vmatpush2.bf16.msra.mxu0 %v7926
          %8026 = vmatprep.subr.bf16.mxu0 0
          %8027 = vmatpush2.bf16.msra.mxu0 %v7925
          %8028 = vmatprep.subr.bf16.mxu0 0
          %8029 = vmatpush2.bf16.msra.mxu0 %v7924
          %8030 = vmatprep.subr.bf16.mxu0 0
          %8031 = vmatpush2.bf16.msra.mxu0 %v7923
          %8032 = vmatprep.subr.bf16.mxu0 0
          %8033 = vmatpush2.bf16.msra.mxu0 %v7922
          %8034 = vmatprep.mubr.bf16.mxu0 %v6025
          %8035 = vmatmul.mubr.bf16.gmra.mxu0 %v6024
          %v8036 = vpop.f32.mrf.mxu0
          %v8037 = vadd.f32 %v7997, %v8036
          %v8038 = vpop.f32.mrf.mxu0
          %v8039 = vpop.f32.mrf.mxu0
          %v8040 = vpop.f32.mrf.mxu0
          %8041 = vdwg.mxu0
          %v8042 = vld [vmem:[%s13] sm:$0x1]
          %v8044 = vlaneseq
          %v8045 = vshrl.u32 %v8044, 7
          %v8046 = vsub.s32 0, %v8045
          %v8047 = vrot.slane %v8042, %v8046
          %v8049 = vadd.f32 %v8037, %v8047
          %8050 = vst [vmem:[%s559] sm:$0x1] %v8049
        $region84: #{enhanced_transformer_forward.1} parent=75 // pred_fallthru
          _
        %s8051 = sand.u32 %s377, 1
        %s8052 = scalar_lea.sflag [#allocation4], %s8051
        %s8053 = sand.u32 %s377, 1
        %s8054 = scalar_lea.vmem [#allocation3], %s8053
        // Predicated region
        $region85: #{enhanced_transformer_forward.1} parent=75 // pred_check
          %p8055 = pneg %p387
        $region86: #{enhanced_transformer_forward.1} parent=75 // pred_check_branch
          %8057 = sbr.rel (%p8055) target = $region88
        $region87: #{enhanced_transformer_forward.1} parent=75 // pred_region
          %s8059 = ssub.s32 16, 16
          %8060 = vsyncadd %s8052, %s8059
          %s8061 = smul.addr %s32, 16
          %s8062 = scalar_lea.hbm %s14, %s8061
          %s8064 = sshll.u32 %s8054, 4
          %s8065 = int_to_ptr.vmem [resolvable:$true] %s8064
          %8067 = dma.vmem_to_hbm [thread:$0]  %s8065, 16, %s8062, %s8052
        $region88: #{enhanced_transformer_forward.1} parent=75 // pred_fallthru
          _
      $region76: #{enhanced_transformer_forward.1} parent=5 // pred_fallthru
        _
      %p8068 = scmp.le.s32.totalorder 2, %s23
      // Predicated region
      $region89: #{enhanced_transformer_forward.1} parent=5 // pred_check
        %p8069 = pneg %p8068
      $region90: #{enhanced_transformer_forward.1} parent=5 // pred_check_branch
        %8071 = sbr.rel (%p8069) target = $region92
      $region91: #{enhanced_transformer_forward.1} parent=5 // pred_region
        %s8072 = ssub.s32 %s23, 2
        // Predicated region
        $region93: #{enhanced_transformer_forward.1} parent=91 // pred_check
          %p8073 = pneg %p393
        $region94: #{enhanced_transformer_forward.1} parent=91 // pred_check_branch
          %8075 = sbr.rel (%p8073) target = $region96
        $region95: #{enhanced_transformer_forward.1} parent=91 // pred_region
          %s8076 = sand.u32 %s378, 1
          %s8077 = scalar_lea.sflag [#allocation4], %s8076
          %s8078 = sand.u32 %s378, 1
          %s8079 = scalar_lea.vmem [#allocation3], %s8078
          %8080 = dma.done %s8077, 16
        $region96: #{enhanced_transformer_forward.1} parent=91 // pred_fallthru
          _
      $region92: #{enhanced_transformer_forward.1} parent=5 // pred_fallthru
        _
    $region6: #{enhanced_transformer_forward.1} parent=1 // loop_footer
      %s27 = sadd.s32 1, %s23
    $region7: #{enhanced_transformer_forward.1} parent=1 // loop_footer_branch
      %22 = sbr.rel target = $region3
    $region8: #{enhanced_transformer_forward.1} parent=1 // loop_exit
      _
    %8081 = vsyncpa [#allocation4], 1
    %s8082 = scalar_lea.sflag [#allocation4], 1
    %8083 = vsyncpa %s8082, 1

</llo_original>
